<compile_context>
chip_gen: v7x
topology: tpu7x:2x2x1
jax: 0.10.0
libtpu: 0.0.40
codegen_flags: <defaults>
</compile_context>

<pallas_src>
import functools
import numpy as np
import jax
import jax.numpy as jnp
from jax import lax
from jax.experimental import pallas as pl
from jax.experimental.pallas import tpu as pltpu  # noqa: F401


# ----------------------------- Pallas kernels -----------------------------

def _encoder_kernel(x_ref, wT_ref, aff_w_ref, aff_b_ref, qkv_ref, qkv_sq_ref,
                    wu_ref, wu_sq_ref, bias_ref, o_ref, *,
                    num_heads, conv_clamp, aff_gain):
    """Whole-batch Encoderlayer forward, channel-major: x_ref (N, H, L) -> o_ref (N, out_dim, L)."""
    N, H, L = x_ref.shape
    out_dim = o_ref.shape[1]
    dh = H // num_heads
    scale = dh ** -0.5

    # affine1 for all samples at once, column-major so per-sample scales are (rows, 1) slices.
    styles_T = (jnp.dot(aff_w_ref[...], wT_ref[...], preferred_element_type=jnp.float32)
                * aff_gain + aff_b_ref[...])                                        # (2H, N)
    s1_T = styles_T[:H]
    s2_T = styles_T[H:]

    # demodulation coefficients, fused over q/k/v and over w/u (one dot each; squares precomputed).
    qkv_d_T = lax.rsqrt(jnp.dot(qkv_sq_ref[...], s1_T * s1_T,
                                preferred_element_type=jnp.float32) + 1e-8)         # (3H, N)
    wu_d_T = lax.rsqrt(jnp.dot(wu_sq_ref[...], s2_T * s2_T,
                               preferred_element_type=jnp.float32) + 1e-8)          # (2*out_dim, N)

    for n in range(N):  # static unroll over the (small) batch: no per-sample grid-step overhead
        s1 = s1_T[:, n:n + 1]
        s2 = s2_T[:, n:n + 1]

        # modulate + InstanceNorm1d(seq): normalize each sequence position over channels.
        x = x_ref[n] * s1                                                           # (H, L)
        mean = jnp.mean(x, axis=0, keepdims=True)
        var = jnp.mean((x - mean) ** 2, axis=0, keepdims=True)
        x = (x - mean) * lax.rsqrt(var + 1e-5)

        # fused QKV projection: one (3H, H) @ (H, L) MXU matmul, lane-dense output.
        qkv = jnp.dot(qkv_ref[...], x, preferred_element_type=jnp.float32) * qkv_d_T[:, n:n + 1]
        q = qkv[:H]
        k = qkv[H:2 * H]
        v = qkv[2 * H:] * s2
        skip = v

        # multi-head channel attention; heads are contiguous sublane blocks (cheap sublane concat).
        heads = []
        for hh in range(num_heads):
            sl = slice(hh * dh, (hh + 1) * dh)
            s_qk = lax.dot_general(q[sl], k[sl], (((0,), (0,)), ((), ())),
                                   preferred_element_type=jnp.float32) * scale      # (L, L)
            s_qk = s_qk - jnp.max(s_qk, axis=-1, keepdims=True)
            e = jnp.exp(s_qk)
            p = e * pl.reciprocal(jnp.sum(e, axis=-1, keepdims=True), approx=True)
            heads.append(lax.dot_general(v[sl], p, (((1,), (1,)), ((), ())),
                                         preferred_element_type=jnp.float32))       # (dh, L)
        attn = jnp.concatenate(heads, axis=0)                                        # (H, L)

        # fused W/U projection: fold the per-sample demod into the weights, then a single
        # (out_dim, 2H) @ (2H, L) MXU matmul covering both the attention and the skip path.
        w_eff = wu_ref[0] * wu_d_T[:out_dim, n:n + 1]
        u_eff = wu_ref[1] * wu_d_T[out_dim:, n:n + 1]
        out = jnp.dot(jnp.concatenate([w_eff, u_eff], axis=1),
                      jnp.concatenate([attn, skip], axis=0),
                      preferred_element_type=jnp.float32)                            # (out_dim, L)

        # TODO(synk): random noise injection omitted — noise_strength is zero-initialized, so it is exactly 0.
        out = out + bias_ref[...]
        out = jnp.where(out >= 0.0, out, 0.2 * out)          # leaky_relu(negative_slope=0.2)
        out = jnp.clip(out, -conv_clamp, conv_clamp)          # act_clamp = conv_clamp * gain (gain=1)
        o_ref[n] = out


def _torgb_kernel(x_ref, wT_ref, aff_w_ref, aff_b_ref, rgbw_ref, rgb_sq_ref, rgbb_ref, o_ref,
                  *, aff_gain):
    """Whole-batch ToRGBLayer forward, channel-major: x_ref (N, C, L) -> o_ref (N, img_ch, L)."""
    N = x_ref.shape[0]
    styles_T = (jnp.dot(aff_w_ref[...], wT_ref[...], preferred_element_type=jnp.float32)
                * aff_gain + aff_b_ref[...])                                        # (C, N)
    d_T = lax.rsqrt(jnp.dot(rgb_sq_ref[...], styles_T * styles_T,
                            preferred_element_type=jnp.float32) + 1e-8)             # (img_ch, N)
    for n in range(N):
        xm = x_ref[n] * styles_T[:, n:n + 1]                                        # (C, L)
        y = jnp.dot(rgbw_ref[...], xm, preferred_element_type=jnp.float32) * d_T[:, n:n + 1]
        o_ref[n] = y + rgbb_ref[...]                                                 # lane-dense store


def _upsample_kernel(x_ref, kT_ref, o_ref):
    """(N, C, L) -> (N, C, 4L): 2x upfirdn2d upsample as one (C, L) @ (L, 4L) matmul per sample."""
    for n in range(x_ref.shape[0]):
        o_ref[n] = jnp.dot(x_ref[n], kT_ref[...], preferred_element_type=jnp.float32)


# ----------------------------- wrappers -----------------------------

def encoder_layer(x, w, p, *, num_heads, conv_clamp, w_dim):
    # x: (N, H, L) channel-major; w: (N, w_dim)
    N, H, L = x.shape
    out_dim = p['wu_weight'].shape[1]
    kernel = functools.partial(_encoder_kernel, num_heads=num_heads,
                               conv_clamp=float(conv_clamp),
                               aff_gain=float(1.0 / np.sqrt(w_dim)))
    return pl.pallas_call(
        kernel,
        out_shape=jax.ShapeDtypeStruct((N, out_dim, L), jnp.float32),
    )(x, w.T, p['aff_w'], p['aff_b'].reshape(2 * H, 1),
      p['qkv_weight'], p['qkv_sq'], p['wu_weight'], p['wu_sq'],
      p['bias'].reshape(out_dim, 1))


def torgb_layer(x, w, p, *, w_dim):
    # x: (N, C, L) channel-major; w: (N, w_dim); output (N, img_ch, L) == flattened NCHW.
    N, C, L = x.shape
    img_ch = p['rgb_weight'].shape[0]
    kernel = functools.partial(_torgb_kernel, aff_gain=float(1.0 / np.sqrt(w_dim)))
    return pl.pallas_call(
        kernel,
        out_shape=jax.ShapeDtypeStruct((N, img_ch, L), jnp.float32),
    )(x, w.T, p['rgb_aff_w'], p['rgb_aff_b'].reshape(C, 1),
      p['rgb_weight'], p['rgb_sq'], p['rgb_bias'].reshape(img_ch, 1))


@functools.lru_cache(maxsize=None)
def _upsample_operator_T(res):
    # 1D upsample-by-2 with normalized filter [1,3,3,1] (gain = up**2 folded in): taps [0.25, 0.75].
    U = np.zeros((2 * res, res), np.float32)
    for k in range(res):
        U[2 * k, k] += 0.75
        if k - 1 >= 0:
            U[2 * k, k - 1] += 0.25
        U[2 * k + 1, k] += 0.75
        if k + 1 < res:
            U[2 * k + 1, k + 1] += 0.25
    K = np.kron(U, U).astype(np.float32)     # (4L, L) acting on the row-major flattened image
    return np.ascontiguousarray(K.T)          # (L, 4L)


def upsample2x_seq(x):  # x: (N, C, L) with L = res*res  ->  (N, C, 4L)
    N, C, L = x.shape
    res = int(round(np.sqrt(L)))
    assert res * res == L
    kT = jnp.asarray(_upsample_operator_T(res))
    return pl.pallas_call(
        _upsample_kernel,
        out_shape=jax.ShapeDtypeStruct((N, C, 4 * L), jnp.float32),
    )(x, kT)


# ----------------------------- parameter init -----------------------------

def init_params(key, *, w_dim, block_resolutions, num_layers, G_dict, img_resolution, img_channels):
    channels_dict = dict(zip(block_resolutions, G_dict))
    params = {}
    for i, res in enumerate(block_resolutions):
        h_dim = channels_dict[res]
        out_dim_cfg = channels_dict[res * 2] if res != img_resolution else None
        nbr = num_layers[i]
        for j in range(nbr):
            is_first = (j == 0)
            is_last = (j == nbr - 1)
            out_dim = out_dim_cfg if (is_last and out_dim_cfg is not None) else h_dim
            seq = res * res
            key, *ks = jax.random.split(key, 12)
            lim = 1.0 / np.sqrt(h_dim)
            qw = jax.random.uniform(ks[1], (h_dim, h_dim), jnp.float32, -lim, lim)
            kw = jax.random.uniform(ks[2], (h_dim, h_dim), jnp.float32, -lim, lim)
            vw = jax.random.uniform(ks[3], (h_dim, h_dim), jnp.float32, -lim, lim)
            ww = jax.random.uniform(ks[4], (out_dim, h_dim), jnp.float32, -lim, lim)
            uw = jax.random.uniform(ks[5], (out_dim, h_dim), jnp.float32, -lim, lim)
            qkv = jnp.concatenate([qw, kw, vw], axis=0)              # fused (3H, H)
            bp = {
                'aff_w': jax.random.normal(ks[0], (2 * h_dim, w_dim), jnp.float32),
                'aff_b': jnp.ones((2 * h_dim,), jnp.float32),        # bias_init=1
                'qkv_weight': qkv,
                'qkv_sq': qkv * qkv,                                  # precomputed squares for demod
                'wu_weight': jnp.stack([ww, uw], axis=0),             # (2, out_dim, H)
                'wu_sq': jnp.concatenate([ww * ww, uw * uw], axis=0),  # (2*out_dim, H)
                'bias': jnp.zeros((out_dim,), jnp.float32),
            }
            if is_first and res == 8:
                bp['const'] = jax.random.normal(ks[6], (h_dim, seq), jnp.float32)      # channel-major
            if is_first:
                bp['pos_embedding'] = jnp.zeros((1, h_dim, seq), jnp.float32)          # channel-major
            if is_last:  # architecture == 'skip' -> ToRGB
                rlim = 1.0 / np.sqrt(out_dim)
                rgbw = jax.random.uniform(ks[8], (img_channels, out_dim), jnp.float32, -rlim, rlim)
                bp['rgb_aff_w'] = jax.random.normal(ks[7], (out_dim, w_dim), jnp.float32)
                bp['rgb_aff_b'] = jnp.ones((out_dim,), jnp.float32)                    # bias_init=1
                bp['rgb_weight'] = rgbw
                bp['rgb_sq'] = rgbw * rgbw
                bp['rgb_bias'] = jnp.zeros((img_channels,), jnp.float32)
            params[f'b{res}_{j}'] = bp
    return params


# ----------------------------- SynthesisNetwork forward -----------------------------

def synthesis_forward(ws, params, cfg):
    block_resolutions = cfg['block_resolutions']
    num_layers = cfg['num_layers']
    img_resolution = cfg['img_resolution']
    img_channels = cfg['img_channels']
    w_dim = cfg['w_dim']
    conv_clamp = cfg['conv_clamp']
    depth = cfg['depth']
    minimum_head = cfg['minimum_head']

    N = ws.shape[0]
    ws = ws.astype(jnp.float32)
    x = None
    img = None
    w_idx = 0
    for i, res in enumerate(block_resolutions):
        for j in range(num_layers[i]):
            bp = params[f'b{res}_{j}']
            is_first = (j == 0)
            is_last = (j == num_layers[i] - 1)
            h_dim = bp['qkv_weight'].shape[1]
            num_heads = max(minimum_head, h_dim // depth)
            seq = res * res

            cur_ws = ws[:, w_idx: w_idx + (2 if is_last else 1)]
            w_idx += 1  # advances by num_attention only (matches the reference)

            if is_first and res == 8:
                x = jnp.broadcast_to(bp['const'][None], (N, h_dim, seq))
            if is_first:
                x = x + bp['pos_embedding']

            x = encoder_layer(x, cur_ws[:, 0], bp, num_heads=num_heads,
                              conv_clamp=conv_clamp, w_dim=w_dim)          # (N, out_dim, seq)

            if is_last:
                if img is not None:
                    img = upsample2x_seq(img)                               # (N, img_ch, seq)
                y = torgb_layer(x, cur_ws[:, 1], bp, w_dim=w_dim)           # (N, img_ch, seq)
                img = y if img is None else img + y
                if res != img_resolution:
                    x = upsample2x_seq(x)                                    # (N, out_dim, 4*seq)
    # channel-major (N, C, L) is already flattened NCHW -> free reshape, no transpose.
    return img.reshape(N, img_channels, img_resolution, img_resolution)


# ----------------------------- main -----------------------------

if __name__ == "__main__":
    cfg = dict(
        w_dim=32,
        img_resolution=16,
        img_channels=3,
        depth=16,
        minimum_head=1,
        num_layers=[1, 1],        # one EncoderBlock at res 8 and one at res 16
        G_dict=[32, 32],          # h_dim per resolution
        conv_clamp=256.0,
    )
    cfg['block_resolutions'] = [2 ** i for i in range(3, int(np.log2(cfg['img_resolution'])) + 1)]
    # num_ws = sum(num_attention) + (one torgb per last block of each resolution)
    num_ws = sum(cfg['num_layers']) + len(cfg['block_resolutions'])

    key = jax.random.PRNGKey(0)
    key, pkey, wkey = jax.random.split(key, 3)
    params = init_params(pkey, w_dim=cfg['w_dim'], block_resolutions=cfg['block_resolutions'],
                         num_layers=cfg['num_layers'], G_dict=cfg['G_dict'],
                         img_resolution=cfg['img_resolution'], img_channels=cfg['img_channels'])

    batch = 2
    ws = jax.random.normal(wkey, (batch, num_ws, cfg['w_dim']), jnp.float32)

    fwd = jax.jit(lambda ws_, params_: synthesis_forward(ws_, params_, cfg))
    img = fwd(ws, params)
    img = jax.block_until_ready(img)
    assert img.shape == (batch, cfg['img_channels'], cfg['img_resolution'], cfg['img_resolution'])
    assert img.dtype == jnp.float32
    assert bool(jnp.all(jnp.isfinite(img)))
    print("KERNEL_OK")
</pallas_src>

<mosaic_0001>
module attributes {stable_mosaic.version = 11 : i64} {
  func.func @_encoder_kernel(%arg0: memref<2x32x64xf32, #tpu.memory_space<vmem>>, %arg1: memref<32x2xf32, #tpu.memory_space<vmem>>, %arg2: memref<64x32xf32, #tpu.memory_space<vmem>>, %arg3: memref<64x1xf32, #tpu.memory_space<vmem>>, %arg4: memref<96x32xf32, #tpu.memory_space<vmem>>, %arg5: memref<96x32xf32, #tpu.memory_space<vmem>>, %arg6: memref<2x32x32xf32, #tpu.memory_space<vmem>>, %arg7: memref<64x32xf32, #tpu.memory_space<vmem>>, %arg8: memref<32x1xf32, #tpu.memory_space<vmem>>, %arg9: memref<2x32x64xf32, #tpu.memory_space<vmem>>) attributes {dimension_semantics = [], scalar_prefetch = 0 : i64, scratch_operands = 0 : i64, tpu.core_type = #tpu.core_type<tc>} {
    %c0 = arith.constant 0 : index
    %c0_0 = arith.constant 0 : index
    %0 = vector.load %arg2[%c0, %c0_0] : memref<64x32xf32, #tpu.memory_space<vmem>>, vector<64x32xf32>
    %c0_1 = arith.constant 0 : index
    %c0_2 = arith.constant 0 : index
    %1 = vector.load %arg1[%c0_1, %c0_2] : memref<32x2xf32, #tpu.memory_space<vmem>>, vector<32x2xf32>
    %cst = arith.constant dense<0.000000e+00> : vector<64x2xf32>
    %2 = tpu.matmul %0, %1, %cst {dimension_numbers = #tpu.dot_dimension_numbers<[1], [0], [0], [1], [0, 0, 1, 1], [], []>} : vector<64x32xf32>, vector<32x2xf32>, vector<64x2xf32> -> vector<64x2xf32>
    %cst_3 = arith.constant 0.176776692 : f32
    %3 = vector.broadcast %cst_3 : f32 to vector<64x2xf32>
    %4 = arith.mulf %2, %3 : vector<64x2xf32>
    %c0_4 = arith.constant 0 : index
    %c0_5 = arith.constant 0 : index
    %5 = vector.load %arg3[%c0_4, %c0_5] : memref<64x1xf32, #tpu.memory_space<vmem>>, vector<64x1xf32>
    %6 = vector.broadcast %5 : vector<64x1xf32> to vector<64x2xf32>
    %7 = arith.addf %4, %6 : vector<64x2xf32>
    %8 = vector.extract_strided_slice %7 {offsets = [0, 0], sizes = [32, 2], strides = [1, 1]} : vector<64x2xf32> to vector<32x2xf32>
    %9 = vector.extract_strided_slice %7 {offsets = [32, 0], sizes = [32, 2], strides = [1, 1]} : vector<64x2xf32> to vector<32x2xf32>
    %c0_6 = arith.constant 0 : index
    %c0_7 = arith.constant 0 : index
    %10 = vector.load %arg5[%c0_6, %c0_7] : memref<96x32xf32, #tpu.memory_space<vmem>>, vector<96x32xf32>
    %11 = arith.mulf %8, %8 : vector<32x2xf32>
    %cst_8 = arith.constant dense<0.000000e+00> : vector<96x2xf32>
    %12 = tpu.matmul %10, %11, %cst_8 {dimension_numbers = #tpu.dot_dimension_numbers<[1], [0], [0], [1], [0, 0, 1, 1], [], []>} : vector<96x32xf32>, vector<32x2xf32>, vector<96x2xf32> -> vector<96x2xf32>
    %cst_9 = arith.constant 9.99999993E-9 : f32
    %13 = vector.broadcast %cst_9 : f32 to vector<96x2xf32>
    %14 = arith.addf %12, %13 : vector<96x2xf32>
    %15 = math.rsqrt %14 : vector<96x2xf32>
    %c0_10 = arith.constant 0 : index
    %c0_11 = arith.constant 0 : index
    %16 = vector.load %arg7[%c0_10, %c0_11] : memref<64x32xf32, #tpu.memory_space<vmem>>, vector<64x32xf32>
    %17 = arith.mulf %9, %9 : vector<32x2xf32>
    %cst_12 = arith.constant dense<0.000000e+00> : vector<64x2xf32>
    %18 = tpu.matmul %16, %17, %cst_12 {dimension_numbers = #tpu.dot_dimension_numbers<[1], [0], [0], [1], [0, 0, 1, 1], [], []>} : vector<64x32xf32>, vector<32x2xf32>, vector<64x2xf32> -> vector<64x2xf32>
    %cst_13 = arith.constant 9.99999993E-9 : f32
    %19 = vector.broadcast %cst_13 : f32 to vector<64x2xf32>
    %20 = arith.addf %18, %19 : vector<64x2xf32>
    %21 = math.rsqrt %20 : vector<64x2xf32>
    %22 = vector.extract_strided_slice %8 {offsets = [0, 0], sizes = [32, 1], strides = [1, 1]} : vector<32x2xf32> to vector<32x1xf32>
    %23 = vector.extract_strided_slice %9 {offsets = [0, 0], sizes = [32, 1], strides = [1, 1]} : vector<32x2xf32> to vector<32x1xf32>
    %c0_14 = arith.constant 0 : index
    %c0_15 = arith.constant 0 : index
    %c0_16 = arith.constant 0 : index
    %24 = vector.load %arg0[%c0_14, %c0_15, %c0_16] : memref<2x32x64xf32, #tpu.memory_space<vmem>>, vector<1x32x64xf32>
    %25 = vector.shape_cast %24 : vector<1x32x64xf32> to vector<32x64xf32>
    %26 = vector.broadcast %22 : vector<32x1xf32> to vector<32x64xf32>
    %27 = arith.mulf %25, %26 : vector<32x64xf32>
    %cst_17 = arith.constant dense<0.000000e+00> : vector<64xf32>
    %28 = vector.multi_reduction <add>, %27, %cst_17 [0] : vector<32x64xf32> to vector<64xf32>
    %29 = vector.shape_cast %28 : vector<64xf32> to vector<1x64xf32>
    %cst_18 = arith.constant 3.200000e+01 : f32
    %30 = vector.broadcast %cst_18 : f32 to vector<1x64xf32>
    %31 = arith.divf %29, %30 : vector<1x64xf32>
    %32 = vector.broadcast %31 : vector<1x64xf32> to vector<32x64xf32>
    %33 = arith.subf %27, %32 : vector<32x64xf32>
    %34 = arith.mulf %33, %33 : vector<32x64xf32>
    %cst_19 = arith.constant dense<0.000000e+00> : vector<64xf32>
    %35 = vector.multi_reduction <add>, %34, %cst_19 [0] : vector<32x64xf32> to vector<64xf32>
    %36 = vector.shape_cast %35 : vector<64xf32> to vector<1x64xf32>
    %cst_20 = arith.constant 3.200000e+01 : f32
    %37 = vector.broadcast %cst_20 : f32 to vector<1x64xf32>
    %38 = arith.divf %36, %37 : vector<1x64xf32>
    %39 = vector.broadcast %31 : vector<1x64xf32> to vector<32x64xf32>
    %40 = arith.subf %27, %39 : vector<32x64xf32>
    %cst_21 = arith.constant 9.99999974E-6 : f32
    %41 = vector.broadcast %cst_21 : f32 to vector<1x64xf32>
    %42 = arith.addf %38, %41 : vector<1x64xf32>
    %43 = math.rsqrt %42 : vector<1x64xf32>
    %44 = vector.broadcast %43 : vector<1x64xf32> to vector<32x64xf32>
    %45 = arith.mulf %40, %44 : vector<32x64xf32>
    %c0_22 = arith.constant 0 : index
    %c0_23 = arith.constant 0 : index
    %46 = vector.load %arg4[%c0_22, %c0_23] : memref<96x32xf32, #tpu.memory_space<vmem>>, vector<96x32xf32>
    %cst_24 = arith.constant dense<0.000000e+00> : vector<96x64xf32>
    %47 = tpu.matmul %46, %45, %cst_24 {dimension_numbers = #tpu.dot_dimension_numbers<[1], [0], [0], [1], [0, 0, 1, 1], [], []>} : vector<96x32xf32>, vector<32x64xf32>, vector<96x64xf32> -> vector<96x64xf32>
    %48 = vector.extract_strided_slice %15 {offsets = [0, 0], sizes = [96, 1], strides = [1, 1]} : vector<96x2xf32> to vector<96x1xf32>
    %49 = vector.broadcast %48 : vector<96x1xf32> to vector<96x64xf32>
    %50 = arith.mulf %47, %49 : vector<96x64xf32>
    %51 = vector.extract_strided_slice %50 {offsets = [0, 0], sizes = [32, 64], strides = [1, 1]} : vector<96x64xf32> to vector<32x64xf32>
    %52 = vector.extract_strided_slice %50 {offsets = [32, 0], sizes = [32, 64], strides = [1, 1]} : vector<96x64xf32> to vector<32x64xf32>
    %53 = vector.extract_strided_slice %50 {offsets = [64, 0], sizes = [32, 64], strides = [1, 1]} : vector<96x64xf32> to vector<32x64xf32>
    %54 = vector.broadcast %23 : vector<32x1xf32> to vector<32x64xf32>
    %55 = arith.mulf %53, %54 : vector<32x64xf32>
    %56 = vector.extract_strided_slice %51 {offsets = [0, 0], sizes = [16, 64], strides = [1, 1]} : vector<32x64xf32> to vector<16x64xf32>
    %57 = vector.extract_strided_slice %52 {offsets = [0, 0], sizes = [16, 64], strides = [1, 1]} : vector<32x64xf32> to vector<16x64xf32>
    %cst_25 = arith.constant dense<0.000000e+00> : vector<64x64xf32>
    %58 = tpu.matmul %56, %57, %cst_25 {dimension_numbers = #tpu.dot_dimension_numbers<[0], [0], [1], [1], [0, 1, 1, 1], [], []>} : vector<16x64xf32>, vector<16x64xf32>, vector<64x64xf32> -> vector<64x64xf32>
    %cst_26 = arith.constant 2.500000e-01 : f32
    %59 = vector.broadcast %cst_26 : f32 to vector<64x64xf32>
    %60 = arith.mulf %58, %59 : vector<64x64xf32>
    %cst_27 = arith.constant dense<0xFF800000> : vector<64xf32>
    %61 = vector.multi_reduction <maximumf>, %60, %cst_27 [1] : vector<64x64xf32> to vector<64xf32>
    %62 = vector.shape_cast %61 : vector<64xf32> to vector<64x1xf32>
    %63 = vector.broadcast %62 : vector<64x1xf32> to vector<64x64xf32>
    %64 = arith.subf %60, %63 : vector<64x64xf32>
    %65 = math.exp %64 : vector<64x64xf32>
    %cst_28 = arith.constant dense<0.000000e+00> : vector<64xf32>
    %66 = vector.multi_reduction <add>, %65, %cst_28 [1] : vector<64x64xf32> to vector<64xf32>
    %67 = vector.shape_cast %66 : vector<64xf32> to vector<64x1xf32>
    %68 = tpu.reciprocal %67 {approx = true} : vector<64x1xf32> -> vector<64x1xf32>
    %69 = vector.broadcast %68 : vector<64x1xf32> to vector<64x64xf32>
    %70 = arith.mulf %65, %69 : vector<64x64xf32>
    %71 = vector.extract_strided_slice %55 {offsets = [0, 0], sizes = [16, 64], strides = [1, 1]} : vector<32x64xf32> to vector<16x64xf32>
    %cst_29 = arith.constant dense<0.000000e+00> : vector<16x64xf32>
    %72 = tpu.matmul %71, %70, %cst_29 {dimension_numbers = #tpu.dot_dimension_numbers<[1], [1], [0], [0], [0, 0, 1, 0], [], []>} : vector<16x64xf32>, vector<64x64xf32>, vector<16x64xf32> -> vector<16x64xf32>
    %73 = vector.extract_strided_slice %51 {offsets = [16, 0], sizes = [16, 64], strides = [1, 1]} : vector<32x64xf32> to vector<16x64xf32>
    %74 = vector.extract_strided_slice %52 {offsets = [16, 0], sizes = [16, 64], strides = [1, 1]} : vector<32x64xf32> to vector<16x64xf32>
    %cst_30 = arith.constant dense<0.000000e+00> : vector<64x64xf32>
    %75 = tpu.matmul %73, %74, %cst_30 {dimension_numbers = #tpu.dot_dimension_numbers<[0], [0], [1], [1], [0, 1, 1, 1], [], []>} : vector<16x64xf32>, vector<16x64xf32>, vector<64x64xf32> -> vector<64x64xf32>
    %cst_31 = arith.constant 2.500000e-01 : f32
    %76 = vector.broadcast %cst_31 : f32 to vector<64x64xf32>
    %77 = arith.mulf %75, %76 : vector<64x64xf32>
    %cst_32 = arith.constant dense<0xFF800000> : vector<64xf32>
    %78 = vector.multi_reduction <maximumf>, %77, %cst_32 [1] : vector<64x64xf32> to vector<64xf32>
    %79 = vector.shape_cast %78 : vector<64xf32> to vector<64x1xf32>
    %80 = vector.broadcast %79 : vector<64x1xf32> to vector<64x64xf32>
    %81 = arith.subf %77, %80 : vector<64x64xf32>
    %82 = math.exp %81 : vector<64x64xf32>
    %cst_33 = arith.constant dense<0.000000e+00> : vector<64xf32>
    %83 = vector.multi_reduction <add>, %82, %cst_33 [1] : vector<64x64xf32> to vector<64xf32>
    %84 = vector.shape_cast %83 : vector<64xf32> to vector<64x1xf32>
    %85 = tpu.reciprocal %84 {approx = true} : vector<64x1xf32> -> vector<64x1xf32>
    %86 = vector.broadcast %85 : vector<64x1xf32> to vector<64x64xf32>
    %87 = arith.mulf %82, %86 : vector<64x64xf32>
    %88 = vector.extract_strided_slice %55 {offsets = [16, 0], sizes = [16, 64], strides = [1, 1]} : vector<32x64xf32> to vector<16x64xf32>
    %cst_34 = arith.constant dense<0.000000e+00> : vector<16x64xf32>
    %89 = tpu.matmul %88, %87, %cst_34 {dimension_numbers = #tpu.dot_dimension_numbers<[1], [1], [0], [0], [0, 0, 1, 0], [], []>} : vector<16x64xf32>, vector<64x64xf32>, vector<16x64xf32> -> vector<16x64xf32>
    %90 = tpu.concatenate %72, %89 in 0 : vector<16x64xf32>, vector<16x64xf32> -> vector<32x64xf32>
    %c0_35 = arith.constant 0 : index
    %c0_36 = arith.constant 0 : index
    %c0_37 = arith.constant 0 : index
    %91 = vector.load %arg6[%c0_35, %c0_36, %c0_37] : memref<2x32x32xf32, #tpu.memory_space<vmem>>, vector<1x32x32xf32>
    %92 = vector.shape_cast %91 : vector<1x32x32xf32> to vector<32x32xf32>
    %93 = vector.extract_strided_slice %21 {offsets = [0, 0], sizes = [32, 1], strides = [1, 1]} : vector<64x2xf32> to vector<32x1xf32>
    %94 = vector.broadcast %93 : vector<32x1xf32> to vector<32x32xf32>
    %95 = arith.mulf %92, %94 : vector<32x32xf32>
    %c1 = arith.constant 1 : index
    %c0_38 = arith.constant 0 : index
    %c0_39 = arith.constant 0 : index
    %96 = vector.load %arg6[%c1, %c0_38, %c0_39] : memref<2x32x32xf32, #tpu.memory_space<vmem>>, vector<1x32x32xf32>
    %97 = vector.shape_cast %96 : vector<1x32x32xf32> to vector<32x32xf32>
    %98 = vector.extract_strided_slice %21 {offsets = [32, 0], sizes = [32, 1], strides = [1, 1]} : vector<64x2xf32> to vector<32x1xf32>
    %99 = vector.broadcast %98 : vector<32x1xf32> to vector<32x32xf32>
    %100 = arith.mulf %97, %99 : vector<32x32xf32>
    %101 = tpu.concatenate %95, %100 in 1 : vector<32x32xf32>, vector<32x32xf32> -> vector<32x64xf32>
    %102 = tpu.concatenate %90, %55 in 0 : vector<32x64xf32>, vector<32x64xf32> -> vector<64x64xf32>
    %cst_40 = arith.constant dense<0.000000e+00> : vector<32x64xf32>
    %103 = tpu.matmul %101, %102, %cst_40 {dimension_numbers = #tpu.dot_dimension_numbers<[1], [0], [0], [1], [0, 0, 1, 1], [], []>} : vector<32x64xf32>, vector<64x64xf32>, vector<32x64xf32> -> vector<32x64xf32>
    %c0_41 = arith.constant 0 : index
    %c0_42 = arith.constant 0 : index
    %104 = vector.load %arg8[%c0_41, %c0_42] : memref<32x1xf32, #tpu.memory_space<vmem>>, vector<32x1xf32>
    %105 = vector.broadcast %104 : vector<32x1xf32> to vector<32x64xf32>
    %106 = arith.addf %103, %105 : vector<32x64xf32>
    %cst_43 = arith.constant 0.000000e+00 : f32
    %107 = vector.broadcast %cst_43 : f32 to vector<32x64xf32>
    %108 = arith.cmpf oge, %106, %107 : vector<32x64xf32>
    %cst_44 = arith.constant 2.000000e-01 : f32
    %109 = vector.broadcast %cst_44 : f32 to vector<32x64xf32>
    %110 = arith.mulf %109, %106 : vector<32x64xf32>
    %111 = arith.select %108, %106, %110 : vector<32x64xi1>, vector<32x64xf32>
    %cst_45 = arith.constant -2.560000e+02 : f32
    %cst_46 = arith.constant 2.560000e+02 : f32
    %112 = vector.broadcast %cst_45 : f32 to vector<32x64xf32>
    %113 = arith.maximumf %112, %111 : vector<32x64xf32>
    %114 = vector.broadcast %cst_46 : f32 to vector<32x64xf32>
    %115 = arith.minimumf %114, %113 : vector<32x64xf32>
    %c0_47 = arith.constant 0 : index
    %c0_48 = arith.constant 0 : index
    %c0_49 = arith.constant 0 : index
    %116 = vector.load %arg9[%c0_47, %c0_48, %c0_49] : memref<2x32x64xf32, #tpu.memory_space<vmem>>, vector<1x32x64xf32>
    %117 = vector.shape_cast %116 : vector<1x32x64xf32> to vector<32x64xf32>
    %118 = vector.shape_cast %115 : vector<32x64xf32> to vector<1x32x64xf32>
    tpu.vector_store %arg9[%c0_47, %c0_48, %c0_49], %118 {strides = array<i32>} : memref<2x32x64xf32, #tpu.memory_space<vmem>>, vector<1x32x64xf32>,
    %119 = vector.extract_strided_slice %8 {offsets = [0, 1], sizes = [32, 1], strides = [1, 1]} : vector<32x2xf32> to vector<32x1xf32>
    %120 = vector.extract_strided_slice %9 {offsets = [0, 1], sizes = [32, 1], strides = [1, 1]} : vector<32x2xf32> to vector<32x1xf32>
    %c1_50 = arith.constant 1 : index
    %c0_51 = arith.constant 0 : index
    %c0_52 = arith.constant 0 : index
    %121 = vector.load %arg0[%c1_50, %c0_51, %c0_52] : memref<2x32x64xf32, #tpu.memory_space<vmem>>, vector<1x32x64xf32>
    %122 = vector.shape_cast %121 : vector<1x32x64xf32> to vector<32x64xf32>
    %123 = vector.broadcast %119 : vector<32x1xf32> to vector<32x64xf32>
    %124 = arith.mulf %122, %123 : vector<32x64xf32>
    %cst_53 = arith.constant dense<0.000000e+00> : vector<64xf32>
    %125 = vector.multi_reduction <add>, %124, %cst_53 [0] : vector<32x64xf32> to vector<64xf32>
    %126 = vector.shape_cast %125 : vector<64xf32> to vector<1x64xf32>
    %cst_54 = arith.constant 3.200000e+01 : f32
    %127 = vector.broadcast %cst_54 : f32 to vector<1x64xf32>
    %128 = arith.divf %126, %127 : vector<1x64xf32>
    %129 = vector.broadcast %128 : vector<1x64xf32> to vector<32x64xf32>
    %130 = arith.subf %124, %129 : vector<32x64xf32>
    %131 = arith.mulf %130, %130 : vector<32x64xf32>
    %cst_55 = arith.constant dense<0.000000e+00> : vector<64xf32>
    %132 = vector.multi_reduction <add>, %131, %cst_55 [0] : vector<32x64xf32> to vector<64xf32>
    %133 = vector.shape_cast %132 : vector<64xf32> to vector<1x64xf32>
    %cst_56 = arith.constant 3.200000e+01 : f32
    %134 = vector.broadcast %cst_56 : f32 to vector<1x64xf32>
    %135 = arith.divf %133, %134 : vector<1x64xf32>
    %136 = vector.broadcast %128 : vector<1x64xf32> to vector<32x64xf32>
    %137 = arith.subf %124, %136 : vector<32x64xf32>
    %cst_57 = arith.constant 9.99999974E-6 : f32
    %138 = vector.broadcast %cst_57 : f32 to vector<1x64xf32>
    %139 = arith.addf %135, %138 : vector<1x64xf32>
    %140 = math.rsqrt %139 : vector<1x64xf32>
    %141 = vector.broadcast %140 : vector<1x64xf32> to vector<32x64xf32>
    %142 = arith.mulf %137, %141 : vector<32x64xf32>
    %c0_58 = arith.constant 0 : index
    %c0_59 = arith.constant 0 : index
    %143 = vector.load %arg4[%c0_58, %c0_59] : memref<96x32xf32, #tpu.memory_space<vmem>>, vector<96x32xf32>
    %cst_60 = arith.constant dense<0.000000e+00> : vector<96x64xf32>
    %144 = tpu.matmul %143, %142, %cst_60 {dimension_numbers = #tpu.dot_dimension_numbers<[1], [0], [0], [1], [0, 0, 1, 1], [], []>} : vector<96x32xf32>, vector<32x64xf32>, vector<96x64xf32> -> vector<96x64xf32>
    %145 = vector.extract_strided_slice %15 {offsets = [0, 1], sizes = [96, 1], strides = [1, 1]} : vector<96x2xf32> to vector<96x1xf32>
    %146 = vector.broadcast %145 : vector<96x1xf32> to vector<96x64xf32>
    %147 = arith.mulf %144, %146 : vector<96x64xf32>
    %148 = vector.extract_strided_slice %147 {offsets = [0, 0], sizes = [32, 64], strides = [1, 1]} : vector<96x64xf32> to vector<32x64xf32>
    %149 = vector.extract_strided_slice %147 {offsets = [32, 0], sizes = [32, 64], strides = [1, 1]} : vector<96x64xf32> to vector<32x64xf32>
    %150 = vector.extract_strided_slice %147 {offsets = [64, 0], sizes = [32, 64], strides = [1, 1]} : vector<96x64xf32> to vector<32x64xf32>
    %151 = vector.broadcast %120 : vector<32x1xf32> to vector<32x64xf32>
    %152 = arith.mulf %150, %151 : vector<32x64xf32>
    %153 = vector.extract_strided_slice %148 {offsets = [0, 0], sizes = [16, 64], strides = [1, 1]} : vector<32x64xf32> to vector<16x64xf32>
    %154 = vector.extract_strided_slice %149 {offsets = [0, 0], sizes = [16, 64], strides = [1, 1]} : vector<32x64xf32> to vector<16x64xf32>
    %cst_61 = arith.constant dense<0.000000e+00> : vector<64x64xf32>
    %155 = tpu.matmul %153, %154, %cst_61 {dimension_numbers = #tpu.dot_dimension_numbers<[0], [0], [1], [1], [0, 1, 1, 1], [], []>} : vector<16x64xf32>, vector<16x64xf32>, vector<64x64xf32> -> vector<64x64xf32>
    %cst_62 = arith.constant 2.500000e-01 : f32
    %156 = vector.broadcast %cst_62 : f32 to vector<64x64xf32>
    %157 = arith.mulf %155, %156 : vector<64x64xf32>
    %cst_63 = arith.constant dense<0xFF800000> : vector<64xf32>
    %158 = vector.multi_reduction <maximumf>, %157, %cst_63 [1] : vector<64x64xf32> to vector<64xf32>
    %159 = vector.shape_cast %158 : vector<64xf32> to vector<64x1xf32>
    %160 = vector.broadcast %159 : vector<64x1xf32> to vector<64x64xf32>
    %161 = arith.subf %157, %160 : vector<64x64xf32>
    %162 = math.exp %161 : vector<64x64xf32>
    %cst_64 = arith.constant dense<0.000000e+00> : vector<64xf32>
    %163 = vector.multi_reduction <add>, %162, %cst_64 [1] : vector<64x64xf32> to vector<64xf32>
    %164 = vector.shape_cast %163 : vector<64xf32> to vector<64x1xf32>
    %165 = tpu.reciprocal %164 {approx = true} : vector<64x1xf32> -> vector<64x1xf32>
    %166 = vector.broadcast %165 : vector<64x1xf32> to vector<64x64xf32>
    %167 = arith.mulf %162, %166 : vector<64x64xf32>
    %168 = vector.extract_strided_slice %152 {offsets = [0, 0], sizes = [16, 64], strides = [1, 1]} : vector<32x64xf32> to vector<16x64xf32>
    %cst_65 = arith.constant dense<0.000000e+00> : vector<16x64xf32>
    %169 = tpu.matmul %168, %167, %cst_65 {dimension_numbers = #tpu.dot_dimension_numbers<[1], [1], [0], [0], [0, 0, 1, 0], [], []>} : vector<16x64xf32>, vector<64x64xf32>, vector<16x64xf32> -> vector<16x64xf32>
    %170 = vector.extract_strided_slice %148 {offsets = [16, 0], sizes = [16, 64], strides = [1, 1]} : vector<32x64xf32> to vector<16x64xf32>
    %171 = vector.extract_strided_slice %149 {offsets = [16, 0], sizes = [16, 64], strides = [1, 1]} : vector<32x64xf32> to vector<16x64xf32>
    %cst_66 = arith.constant dense<0.000000e+00> : vector<64x64xf32>
    %172 = tpu.matmul %170, %171, %cst_66 {dimension_numbers = #tpu.dot_dimension_numbers<[0], [0], [1], [1], [0, 1, 1, 1], [], []>} : vector<16x64xf32>, vector<16x64xf32>, vector<64x64xf32> -> vector<64x64xf32>
    %cst_67 = arith.constant 2.500000e-01 : f32
    %173 = vector.broadcast %cst_67 : f32 to vector<64x64xf32>
    %174 = arith.mulf %172, %173 : vector<64x64xf32>
    %cst_68 = arith.constant dense<0xFF800000> : vector<64xf32>
    %175 = vector.multi_reduction <maximumf>, %174, %cst_68 [1] : vector<64x64xf32> to vector<64xf32>
    %176 = vector.shape_cast %175 : vector<64xf32> to vector<64x1xf32>
    %177 = vector.broadcast %176 : vector<64x1xf32> to vector<64x64xf32>
    %178 = arith.subf %174, %177 : vector<64x64xf32>
    %179 = math.exp %178 : vector<64x64xf32>
    %cst_69 = arith.constant dense<0.000000e+00> : vector<64xf32>
    %180 = vector.multi_reduction <add>, %179, %cst_69 [1] : vector<64x64xf32> to vector<64xf32>
    %181 = vector.shape_cast %180 : vector<64xf32> to vector<64x1xf32>
    %182 = tpu.reciprocal %181 {approx = true} : vector<64x1xf32> -> vector<64x1xf32>
    %183 = vector.broadcast %182 : vector<64x1xf32> to vector<64x64xf32>
    %184 = arith.mulf %179, %183 : vector<64x64xf32>
    %185 = vector.extract_strided_slice %152 {offsets = [16, 0], sizes = [16, 64], strides = [1, 1]} : vector<32x64xf32> to vector<16x64xf32>
    %cst_70 = arith.constant dense<0.000000e+00> : vector<16x64xf32>
    %186 = tpu.matmul %185, %184, %cst_70 {dimension_numbers = #tpu.dot_dimension_numbers<[1], [1], [0], [0], [0, 0, 1, 0], [], []>} : vector<16x64xf32>, vector<64x64xf32>, vector<16x64xf32> -> vector<16x64xf32>
    %187 = tpu.concatenate %169, %186 in 0 : vector<16x64xf32>, vector<16x64xf32> -> vector<32x64xf32>
    %c0_71 = arith.constant 0 : index
    %c0_72 = arith.constant 0 : index
    %c0_73 = arith.constant 0 : index
    %188 = vector.load %arg6[%c0_71, %c0_72, %c0_73] : memref<2x32x32xf32, #tpu.memory_space<vmem>>, vector<1x32x32xf32>
    %189 = vector.shape_cast %188 : vector<1x32x32xf32> to vector<32x32xf32>
    %190 = vector.extract_strided_slice %21 {offsets = [0, 1], sizes = [32, 1], strides = [1, 1]} : vector<64x2xf32> to vector<32x1xf32>
    %191 = vector.broadcast %190 : vector<32x1xf32> to vector<32x32xf32>
    %192 = arith.mulf %189, %191 : vector<32x32xf32>
    %c1_74 = arith.constant 1 : index
    %c0_75 = arith.constant 0 : index
    %c0_76 = arith.constant 0 : index
    %193 = vector.load %arg6[%c1_74, %c0_75, %c0_76] : memref<2x32x32xf32, #tpu.memory_space<vmem>>, vector<1x32x32xf32>
    %194 = vector.shape_cast %193 : vector<1x32x32xf32> to vector<32x32xf32>
    %195 = vector.extract_strided_slice %21 {offsets = [32, 1], sizes = [32, 1], strides = [1, 1]} : vector<64x2xf32> to vector<32x1xf32>
    %196 = vector.broadcast %195 : vector<32x1xf32> to vector<32x32xf32>
    %197 = arith.mulf %194, %196 : vector<32x32xf32>
    %198 = tpu.concatenate %192, %197 in 1 : vector<32x32xf32>, vector<32x32xf32> -> vector<32x64xf32>
    %199 = tpu.concatenate %187, %152 in 0 : vector<32x64xf32>, vector<32x64xf32> -> vector<64x64xf32>
    %cst_77 = arith.constant dense<0.000000e+00> : vector<32x64xf32>
    %200 = tpu.matmul %198, %199, %cst_77 {dimension_numbers = #tpu.dot_dimension_numbers<[1], [0], [0], [1], [0, 0, 1, 1], [], []>} : vector<32x64xf32>, vector<64x64xf32>, vector<32x64xf32> -> vector<32x64xf32>
    %c0_78 = arith.constant 0 : index
    %c0_79 = arith.constant 0 : index
    %201 = vector.load %arg8[%c0_78, %c0_79] : memref<32x1xf32, #tpu.memory_space<vmem>>, vector<32x1xf32>
    %202 = vector.broadcast %201 : vector<32x1xf32> to vector<32x64xf32>
    %203 = arith.addf %200, %202 : vector<32x64xf32>
    %cst_80 = arith.constant 0.000000e+00 : f32
    %204 = vector.broadcast %cst_80 : f32 to vector<32x64xf32>
    %205 = arith.cmpf oge, %203, %204 : vector<32x64xf32>
    %cst_81 = arith.constant 2.000000e-01 : f32
    %206 = vector.broadcast %cst_81 : f32 to vector<32x64xf32>
    %207 = arith.mulf %206, %203 : vector<32x64xf32>
    %208 = arith.select %205, %203, %207 : vector<32x64xi1>, vector<32x64xf32>
    %cst_82 = arith.constant -2.560000e+02 : f32
    %cst_83 = arith.constant 2.560000e+02 : f32
    %209 = vector.broadcast %cst_82 : f32 to vector<32x64xf32>
    %210 = arith.maximumf %209, %208 : vector<32x64xf32>
    %211 = vector.broadcast %cst_83 : f32 to vector<32x64xf32>
    %212 = arith.minimumf %211, %210 : vector<32x64xf32>
    %c1_84 = arith.constant 1 : index
    %c0_85 = arith.constant 0 : index
    %c0_86 = arith.constant 0 : index
    %213 = vector.load %arg9[%c1_84, %c0_85, %c0_86] : memref<2x32x64xf32, #tpu.memory_space<vmem>>, vector<1x32x64xf32>
    %214 = vector.shape_cast %213 : vector<1x32x64xf32> to vector<32x64xf32>
    %215 = vector.shape_cast %212 : vector<32x64xf32> to vector<1x32x64xf32>
    tpu.vector_store %arg9[%c1_84, %c0_85, %c0_86], %215 {strides = array<i32>} : memref<2x32x64xf32, #tpu.memory_space<vmem>>, vector<1x32x64xf32>,
    return
  }
}

module attributes {stable_mosaic.version = 11 : i64} {
  func.func @_upsample_kernel(%arg0: memref<2x3x64xf32, #tpu.memory_space<vmem>>, %arg1: memref<64x256xf32, #tpu.memory_space<vmem>>, %arg2: memref<2x3x256xf32, #tpu.memory_space<vmem>>) attributes {dimension_semantics = [], scalar_prefetch = 0 : i64, scratch_operands = 0 : i64, tpu.core_type = #tpu.core_type<tc>} {
    %c0 = arith.constant 0 : index
    %c0_0 = arith.constant 0 : index
    %c0_1 = arith.constant 0 : index
    %0 = vector.load %arg0[%c0, %c0_0, %c0_1] : memref<2x3x64xf32, #tpu.memory_space<vmem>>, vector<1x3x64xf32>
    %1 = vector.shape_cast %0 : vector<1x3x64xf32> to vector<3x64xf32>
    %c0_2 = arith.constant 0 : index
    %c0_3 = arith.constant 0 : index
    %2 = vector.load %arg1[%c0_2, %c0_3] : memref<64x256xf32, #tpu.memory_space<vmem>>, vector<64x256xf32>
    %cst = arith.constant dense<0.000000e+00> : vector<3x256xf32>
    %3 = tpu.matmul %1, %2, %cst {dimension_numbers = #tpu.dot_dimension_numbers<[1], [0], [0], [1], [0, 0, 1, 1], [], []>} : vector<3x64xf32>, vector<64x256xf32>, vector<3x256xf32> -> vector<3x256xf32>
    %c0_4 = arith.constant 0 : index
    %c0_5 = arith.constant 0 : index
    %c0_6 = arith.constant 0 : index
    %4 = vector.load %arg2[%c0_4, %c0_5, %c0_6] : memref<2x3x256xf32, #tpu.memory_space<vmem>>, vector<1x3x256xf32>
    %5 = vector.shape_cast %4 : vector<1x3x256xf32> to vector<3x256xf32>
    %6 = vector.shape_cast %3 : vector<3x256xf32> to vector<1x3x256xf32>
    tpu.vector_store %arg2[%c0_4, %c0_5, %c0_6], %6 {strides = array<i32>} : memref<2x3x256xf32, #tpu.memory_space<vmem>>, vector<1x3x256xf32>,
    %c1 = arith.constant 1 : index
    %c0_7 = arith.constant 0 : index
    %c0_8 = arith.constant 0 : index
    %7 = vector.load %arg0[%c1, %c0_7, %c0_8] : memref<2x3x64xf32, #tpu.memory_space<vmem>>, vector<1x3x64xf32>
    %8 = vector.shape_cast %7 : vector<1x3x64xf32> to vector<3x64xf32>
    %c0_9 = arith.constant 0 : index
    %c0_10 = arith.constant 0 : index
    %9 = vector.load %arg1[%c0_9, %c0_10] : memref<64x256xf32, #tpu.memory_space<vmem>>, vector<64x256xf32>
    %cst_11 = arith.constant dense<0.000000e+00> : vector<3x256xf32>
    %10 = tpu.matmul %8, %9, %cst_11 {dimension_numbers = #tpu.dot_dimension_numbers<[1], [0], [0], [1], [0, 0, 1, 1], [], []>} : vector<3x64xf32>, vector<64x256xf32>, vector<3x256xf32> -> vector<3x256xf32>
    %c1_12 = arith.constant 1 : index
    %c0_13 = arith.constant 0 : index
    %c0_14 = arith.constant 0 : index
    %11 = vector.load %arg2[%c1_12, %c0_13, %c0_14] : memref<2x3x256xf32, #tpu.memory_space<vmem>>, vector<1x3x256xf32>
    %12 = vector.shape_cast %11 : vector<1x3x256xf32> to vector<3x256xf32>
    %13 = vector.shape_cast %10 : vector<3x256xf32> to vector<1x3x256xf32>
    tpu.vector_store %arg2[%c1_12, %c0_13, %c0_14], %13 {strides = array<i32>} : memref<2x3x256xf32, #tpu.memory_space<vmem>>, vector<1x3x256xf32>,
    return
  }
}

module attributes {stable_mosaic.version = 11 : i64} {
  func.func @_upsample_kernel(%arg0: memref<2x32x64xf32, #tpu.memory_space<vmem>>, %arg1: memref<64x256xf32, #tpu.memory_space<vmem>>, %arg2: memref<2x32x256xf32, #tpu.memory_space<vmem>>) attributes {dimension_semantics = [], scalar_prefetch = 0 : i64, scratch_operands = 0 : i64, tpu.core_type = #tpu.core_type<tc>} {
    %c0 = arith.constant 0 : index
    %c0_0 = arith.constant 0 : index
    %c0_1 = arith.constant 0 : index
    %0 = vector.load %arg0[%c0, %c0_0, %c0_1] : memref<2x32x64xf32, #tpu.memory_space<vmem>>, vector<1x32x64xf32>
    %1 = vector.shape_cast %0 : vector<1x32x64xf32> to vector<32x64xf32>
    %c0_2 = arith.constant 0 : index
    %c0_3 = arith.constant 0 : index
    %2 = vector.load %arg1[%c0_2, %c0_3] : memref<64x256xf32, #tpu.memory_space<vmem>>, vector<64x256xf32>
    %cst = arith.constant dense<0.000000e+00> : vector<32x256xf32>
    %3 = tpu.matmul %1, %2, %cst {dimension_numbers = #tpu.dot_dimension_numbers<[1], [0], [0], [1], [0, 0, 1, 1], [], []>} : vector<32x64xf32>, vector<64x256xf32>, vector<32x256xf32> -> vector<32x256xf32>
    %c0_4 = arith.constant 0 : index
    %c0_5 = arith.constant 0 : index
    %c0_6 = arith.constant 0 : index
    %4 = vector.load %arg2[%c0_4, %c0_5, %c0_6] : memref<2x32x256xf32, #tpu.memory_space<vmem>>, vector<1x32x256xf32>
    %5 = vector.shape_cast %4 : vector<1x32x256xf32> to vector<32x256xf32>
    %6 = vector.shape_cast %3 : vector<32x256xf32> to vector<1x32x256xf32>
    tpu.vector_store %arg2[%c0_4, %c0_5, %c0_6], %6 {strides = array<i32>} : memref<2x32x256xf32, #tpu.memory_space<vmem>>, vector<1x32x256xf32>,
    %c1 = arith.constant 1 : index
    %c0_7 = arith.constant 0 : index
    %c0_8 = arith.constant 0 : index
    %7 = vector.load %arg0[%c1, %c0_7, %c0_8] : memref<2x32x64xf32, #tpu.memory_space<vmem>>, vector<1x32x64xf32>
    %8 = vector.shape_cast %7 : vector<1x32x64xf32> to vector<32x64xf32>
    %c0_9 = arith.constant 0 : index
    %c0_10 = arith.constant 0 : index
    %9 = vector.load %arg1[%c0_9, %c0_10] : memref<64x256xf32, #tpu.memory_space<vmem>>, vector<64x256xf32>
    %cst_11 = arith.constant dense<0.000000e+00> : vector<32x256xf32>
    %10 = tpu.matmul %8, %9, %cst_11 {dimension_numbers = #tpu.dot_dimension_numbers<[1], [0], [0], [1], [0, 0, 1, 1], [], []>} : vector<32x64xf32>, vector<64x256xf32>, vector<32x256xf32> -> vector<32x256xf32>
    %c1_12 = arith.constant 1 : index
    %c0_13 = arith.constant 0 : index
    %c0_14 = arith.constant 0 : index
    %11 = vector.load %arg2[%c1_12, %c0_13, %c0_14] : memref<2x32x256xf32, #tpu.memory_space<vmem>>, vector<1x32x256xf32>
    %12 = vector.shape_cast %11 : vector<1x32x256xf32> to vector<32x256xf32>
    %13 = vector.shape_cast %10 : vector<32x256xf32> to vector<1x32x256xf32>
    tpu.vector_store %arg2[%c1_12, %c0_13, %c0_14], %13 {strides = array<i32>} : memref<2x32x256xf32, #tpu.memory_space<vmem>>, vector<1x32x256xf32>,
    return
  }
}

module attributes {stable_mosaic.version = 11 : i64} {
  func.func @_torgb_kernel(%arg0: memref<2x32x64xf32, #tpu.memory_space<vmem>>, %arg1: memref<32x2xf32, #tpu.memory_space<vmem>>, %arg2: memref<32x32xf32, #tpu.memory_space<vmem>>, %arg3: memref<32x1xf32, #tpu.memory_space<vmem>>, %arg4: memref<3x32xf32, #tpu.memory_space<vmem>>, %arg5: memref<3x32xf32, #tpu.memory_space<vmem>>, %arg6: memref<3x1xf32, #tpu.memory_space<vmem>>, %arg7: memref<2x3x64xf32, #tpu.memory_space<vmem>>) attributes {dimension_semantics = [], scalar_prefetch = 0 : i64, scratch_operands = 0 : i64, tpu.core_type = #tpu.core_type<tc>} {
    %c0 = arith.constant 0 : index
    %c0_0 = arith.constant 0 : index
    %0 = vector.load %arg2[%c0, %c0_0] : memref<32x32xf32, #tpu.memory_space<vmem>>, vector<32x32xf32>
    %c0_1 = arith.constant 0 : index
    %c0_2 = arith.constant 0 : index
    %1 = vector.load %arg1[%c0_1, %c0_2] : memref<32x2xf32, #tpu.memory_space<vmem>>, vector<32x2xf32>
    %cst = arith.constant dense<0.000000e+00> : vector<32x2xf32>
    %2 = tpu.matmul %0, %1, %cst {dimension_numbers = #tpu.dot_dimension_numbers<[1], [0], [0], [1], [0, 0, 1, 1], [], []>} : vector<32x32xf32>, vector<32x2xf32>, vector<32x2xf32> -> vector<32x2xf32>
    %cst_3 = arith.constant 0.176776692 : f32
    %3 = vector.broadcast %cst_3 : f32 to vector<32x2xf32>
    %4 = arith.mulf %2, %3 : vector<32x2xf32>
    %c0_4 = arith.constant 0 : index
    %c0_5 = arith.constant 0 : index
    %5 = vector.load %arg3[%c0_4, %c0_5] : memref<32x1xf32, #tpu.memory_space<vmem>>, vector<32x1xf32>
    %6 = vector.broadcast %5 : vector<32x1xf32> to vector<32x2xf32>
    %7 = arith.addf %4, %6 : vector<32x2xf32>
    %c0_6 = arith.constant 0 : index
    %c0_7 = arith.constant 0 : index
    %8 = vector.load %arg5[%c0_6, %c0_7] : memref<3x32xf32, #tpu.memory_space<vmem>>, vector<3x32xf32>
    %9 = arith.mulf %7, %7 : vector<32x2xf32>
    %cst_8 = arith.constant dense<0.000000e+00> : vector<3x2xf32>
    %10 = tpu.matmul %8, %9, %cst_8 {dimension_numbers = #tpu.dot_dimension_numbers<[1], [0], [0], [1], [0, 0, 1, 1], [], []>} : vector<3x32xf32>, vector<32x2xf32>, vector<3x2xf32> -> vector<3x2xf32>
    %cst_9 = arith.constant 9.99999993E-9 : f32
    %11 = vector.broadcast %cst_9 : f32 to vector<3x2xf32>
    %12 = arith.addf %10, %11 : vector<3x2xf32>
    %13 = math.rsqrt %12 : vector<3x2xf32>
    %c0_10 = arith.constant 0 : index
    %c0_11 = arith.constant 0 : index
    %c0_12 = arith.constant 0 : index
    %14 = vector.load %arg0[%c0_10, %c0_11, %c0_12] : memref<2x32x64xf32, #tpu.memory_space<vmem>>, vector<1x32x64xf32>
    %15 = vector.shape_cast %14 : vector<1x32x64xf32> to vector<32x64xf32>
    %16 = vector.extract_strided_slice %7 {offsets = [0, 0], sizes = [32, 1], strides = [1, 1]} : vector<32x2xf32> to vector<32x1xf32>
    %17 = vector.broadcast %16 : vector<32x1xf32> to vector<32x64xf32>
    %18 = arith.mulf %15, %17 : vector<32x64xf32>
    %c0_13 = arith.constant 0 : index
    %c0_14 = arith.constant 0 : index
    %19 = vector.load %arg4[%c0_13, %c0_14] : memref<3x32xf32, #tpu.memory_space<vmem>>, vector<3x32xf32>
    %cst_15 = arith.constant dense<0.000000e+00> : vector<3x64xf32>
    %20 = tpu.matmul %19, %18, %cst_15 {dimension_numbers = #tpu.dot_dimension_numbers<[1], [0], [0], [1], [0, 0, 1, 1], [], []>} : vector<3x32xf32>, vector<32x64xf32>, vector<3x64xf32> -> vector<3x64xf32>
    %21 = vector.extract_strided_slice %13 {offsets = [0, 0], sizes = [3, 1], strides = [1, 1]} : vector<3x2xf32> to vector<3x1xf32>
    %22 = vector.broadcast %21 : vector<3x1xf32> to vector<3x64xf32>
    %23 = arith.mulf %20, %22 : vector<3x64xf32>
    %c0_16 = arith.constant 0 : index
    %c0_17 = arith.constant 0 : index
    %24 = vector.load %arg6[%c0_16, %c0_17] : memref<3x1xf32, #tpu.memory_space<vmem>>, vector<3x1xf32>
    %25 = vector.broadcast %24 : vector<3x1xf32> to vector<3x64xf32>
    %26 = arith.addf %23, %25 : vector<3x64xf32>
    %c0_18 = arith.constant 0 : index
    %c0_19 = arith.constant 0 : index
    %c0_20 = arith.constant 0 : index
    %27 = vector.load %arg7[%c0_18, %c0_19, %c0_20] : memref<2x3x64xf32, #tpu.memory_space<vmem>>, vector<1x3x64xf32>
    %28 = vector.shape_cast %27 : vector<1x3x64xf32> to vector<3x64xf32>
    %29 = vector.shape_cast %26 : vector<3x64xf32> to vector<1x3x64xf32>
    tpu.vector_store %arg7[%c0_18, %c0_19, %c0_20], %29 {strides = array<i32>} : memref<2x3x64xf32, #tpu.memory_space<vmem>>, vector<1x3x64xf32>,
    %c1 = arith.constant 1 : index
    %c0_21 = arith.constant 0 : index
    %c0_22 = arith.constant 0 : index
    %30 = vector.load %arg0[%c1, %c0_21, %c0_22] : memref<2x32x64xf32, #tpu.memory_space<vmem>>, vector<1x32x64xf32>
    %31 = vector.shape_cast %30 : vector<1x32x64xf32> to vector<32x64xf32>
    %32 = vector.extract_strided_slice %7 {offsets = [0, 1], sizes = [32, 1], strides = [1, 1]} : vector<32x2xf32> to vector<32x1xf32>
    %33 = vector.broadcast %32 : vector<32x1xf32> to vector<32x64xf32>
    %34 = arith.mulf %31, %33 : vector<32x64xf32>
    %c0_23 = arith.constant 0 : index
    %c0_24 = arith.constant 0 : index
    %35 = vector.load %arg4[%c0_23, %c0_24] : memref<3x32xf32, #tpu.memory_space<vmem>>, vector<3x32xf32>
    %cst_25 = arith.constant dense<0.000000e+00> : vector<3x64xf32>
    %36 = tpu.matmul %35, %34, %cst_25 {dimension_numbers = #tpu.dot_dimension_numbers<[1], [0], [0], [1], [0, 0, 1, 1], [], []>} : vector<3x32xf32>, vector<32x64xf32>, vector<3x64xf32> -> vector<3x64xf32>
    %37 = vector.extract_strided_slice %13 {offsets = [0, 1], sizes = [3, 1], strides = [1, 1]} : vector<3x2xf32> to vector<3x1xf32>
    %38 = vector.broadcast %37 : vector<3x1xf32> to vector<3x64xf32>
    %39 = arith.mulf %36, %38 : vector<3x64xf32>
    %c0_26 = arith.constant 0 : index
    %c0_27 = arith.constant 0 : index
    %40 = vector.load %arg6[%c0_26, %c0_27] : memref<3x1xf32, #tpu.memory_space<vmem>>, vector<3x1xf32>
    %41 = vector.broadcast %40 : vector<3x1xf32> to vector<3x64xf32>
    %42 = arith.addf %39, %41 : vector<3x64xf32>
    %c1_28 = arith.constant 1 : index
    %c0_29 = arith.constant 0 : index
    %c0_30 = arith.constant 0 : index
    %43 = vector.load %arg7[%c1_28, %c0_29, %c0_30] : memref<2x3x64xf32, #tpu.memory_space<vmem>>, vector<1x3x64xf32>
    %44 = vector.shape_cast %43 : vector<1x3x64xf32> to vector<3x64xf32>
    %45 = vector.shape_cast %42 : vector<3x64xf32> to vector<1x3x64xf32>
    tpu.vector_store %arg7[%c1_28, %c0_29, %c0_30], %45 {strides = array<i32>} : memref<2x3x64xf32, #tpu.memory_space<vmem>>, vector<1x3x64xf32>,
    return
  }
}

module attributes {stable_mosaic.version = 11 : i64} {
  func.func @_encoder_kernel(%arg0: memref<2x32x256xf32, #tpu.memory_space<vmem>>, %arg1: memref<32x2xf32, #tpu.memory_space<vmem>>, %arg2: memref<64x32xf32, #tpu.memory_space<vmem>>, %arg3: memref<64x1xf32, #tpu.memory_space<vmem>>, %arg4: memref<96x32xf32, #tpu.memory_space<vmem>>, %arg5: memref<96x32xf32, #tpu.memory_space<vmem>>, %arg6: memref<2x32x32xf32, #tpu.memory_space<vmem>>, %arg7: memref<64x32xf32, #tpu.memory_space<vmem>>, %arg8: memref<32x1xf32, #tpu.memory_space<vmem>>, %arg9: memref<2x32x256xf32, #tpu.memory_space<vmem>>) attributes {dimension_semantics = [], scalar_prefetch = 0 : i64, scratch_operands = 0 : i64, tpu.core_type = #tpu.core_type<tc>} {
    %c0 = arith.constant 0 : index
    %c0_0 = arith.constant 0 : index
    %0 = vector.load %arg2[%c0, %c0_0] : memref<64x32xf32, #tpu.memory_space<vmem>>, vector<64x32xf32>
    %c0_1 = arith.constant 0 : index
    %c0_2 = arith.constant 0 : index
    %1 = vector.load %arg1[%c0_1, %c0_2] : memref<32x2xf32, #tpu.memory_space<vmem>>, vector<32x2xf32>
    %cst = arith.constant dense<0.000000e+00> : vector<64x2xf32>
    %2 = tpu.matmul %0, %1, %cst {dimension_numbers = #tpu.dot_dimension_numbers<[1], [0], [0], [1], [0, 0, 1, 1], [], []>} : vector<64x32xf32>, vector<32x2xf32>, vector<64x2xf32> -> vector<64x2xf32>
    %cst_3 = arith.constant 0.176776692 : f32
    %3 = vector.broadcast %cst_3 : f32 to vector<64x2xf32>
    %4 = arith.mulf %2, %3 : vector<64x2xf32>
    %c0_4 = arith.constant 0 : index
    %c0_5 = arith.constant 0 : index
    %5 = vector.load %arg3[%c0_4, %c0_5] : memref<64x1xf32, #tpu.memory_space<vmem>>, vector<64x1xf32>
    %6 = vector.broadcast %5 : vector<64x1xf32> to vector<64x2xf32>
    %7 = arith.addf %4, %6 : vector<64x2xf32>
    %8 = vector.extract_strided_slice %7 {offsets = [0, 0], sizes = [32, 2], strides = [1, 1]} : vector<64x2xf32> to vector<32x2xf32>
    %9 = vector.extract_strided_slice %7 {offsets = [32, 0], sizes = [32, 2], strides = [1, 1]} : vector<64x2xf32> to vector<32x2xf32>
    %c0_6 = arith.constant 0 : index
    %c0_7 = arith.constant 0 : index
    %10 = vector.load %arg5[%c0_6, %c0_7] : memref<96x32xf32, #tpu.memory_space<vmem>>, vector<96x32xf32>
    %11 = arith.mulf %8, %8 : vector<32x2xf32>
    %cst_8 = arith.constant dense<0.000000e+00> : vector<96x2xf32>
    %12 = tpu.matmul %10, %11, %cst_8 {dimension_numbers = #tpu.dot_dimension_numbers<[1], [0], [0], [1], [0, 0, 1, 1], [], []>} : vector<96x32xf32>, vector<32x2xf32>, vector<96x2xf32> -> vector<96x2xf32>
    %cst_9 = arith.constant 9.99999993E-9 : f32
    %13 = vector.broadcast %cst_9 : f32 to vector<96x2xf32>
    %14 = arith.addf %12, %13 : vector<96x2xf32>
    %15 = math.rsqrt %14 : vector<96x2xf32>
    %c0_10 = arith.constant 0 : index
    %c0_11 = arith.constant 0 : index
    %16 = vector.load %arg7[%c0_10, %c0_11] : memref<64x32xf32, #tpu.memory_space<vmem>>, vector<64x32xf32>
    %17 = arith.mulf %9, %9 : vector<32x2xf32>
    %cst_12 = arith.constant dense<0.000000e+00> : vector<64x2xf32>
    %18 = tpu.matmul %16, %17, %cst_12 {dimension_numbers = #tpu.dot_dimension_numbers<[1], [0], [0], [1], [0, 0, 1, 1], [], []>} : vector<64x32xf32>, vector<32x2xf32>, vector<64x2xf32> -> vector<64x2xf32>
    %cst_13 = arith.constant 9.99999993E-9 : f32
    %19 = vector.broadcast %cst_13 : f32 to vector<64x2xf32>
    %20 = arith.addf %18, %19 : vector<64x2xf32>
    %21 = math.rsqrt %20 : vector<64x2xf32>
    %22 = vector.extract_strided_slice %8 {offsets = [0, 0], sizes = [32, 1], strides = [1, 1]} : vector<32x2xf32> to vector<32x1xf32>
    %23 = vector.extract_strided_slice %9 {offsets = [0, 0], sizes = [32, 1], strides = [1, 1]} : vector<32x2xf32> to vector<32x1xf32>
    %c0_14 = arith.constant 0 : index
    %c0_15 = arith.constant 0 : index
    %c0_16 = arith.constant 0 : index
    %24 = vector.load %arg0[%c0_14, %c0_15, %c0_16] : memref<2x32x256xf32, #tpu.memory_space<vmem>>, vector<1x32x256xf32>
    %25 = vector.shape_cast %24 : vector<1x32x256xf32> to vector<32x256xf32>
    %26 = vector.broadcast %22 : vector<32x1xf32> to vector<32x256xf32>
    %27 = arith.mulf %25, %26 : vector<32x256xf32>
    %cst_17 = arith.constant dense<0.000000e+00> : vector<256xf32>
    %28 = vector.multi_reduction <add>, %27, %cst_17 [0] : vector<32x256xf32> to vector<256xf32>
    %29 = vector.shape_cast %28 : vector<256xf32> to vector<1x256xf32>
    %cst_18 = arith.constant 3.200000e+01 : f32
    %30 = vector.broadcast %cst_18 : f32 to vector<1x256xf32>
    %31 = arith.divf %29, %30 : vector<1x256xf32>
    %32 = vector.broadcast %31 : vector<1x256xf32> to vector<32x256xf32>
    %33 = arith.subf %27, %32 : vector<32x256xf32>
    %34 = arith.mulf %33, %33 : vector<32x256xf32>
    %cst_19 = arith.constant dense<0.000000e+00> : vector<256xf32>
    %35 = vector.multi_reduction <add>, %34, %cst_19 [0] : vector<32x256xf32> to vector<256xf32>
    %36 = vector.shape_cast %35 : vector<256xf32> to vector<1x256xf32>
    %cst_20 = arith.constant 3.200000e+01 : f32
    %37 = vector.broadcast %cst_20 : f32 to vector<1x256xf32>
    %38 = arith.divf %36, %37 : vector<1x256xf32>
    %39 = vector.broadcast %31 : vector<1x256xf32> to vector<32x256xf32>
    %40 = arith.subf %27, %39 : vector<32x256xf32>
    %cst_21 = arith.constant 9.99999974E-6 : f32
    %41 = vector.broadcast %cst_21 : f32 to vector<1x256xf32>
    %42 = arith.addf %38, %41 : vector<1x256xf32>
    %43 = math.rsqrt %42 : vector<1x256xf32>
    %44 = vector.broadcast %43 : vector<1x256xf32> to vector<32x256xf32>
    %45 = arith.mulf %40, %44 : vector<32x256xf32>
    %c0_22 = arith.constant 0 : index
    %c0_23 = arith.constant 0 : index
    %46 = vector.load %arg4[%c0_22, %c0_23] : memref<96x32xf32, #tpu.memory_space<vmem>>, vector<96x32xf32>
    %cst_24 = arith.constant dense<0.000000e+00> : vector<96x256xf32>
    %47 = tpu.matmul %46, %45, %cst_24 {dimension_numbers = #tpu.dot_dimension_numbers<[1], [0], [0], [1], [0, 0, 1, 1], [], []>} : vector<96x32xf32>, vector<32x256xf32>, vector<96x256xf32> -> vector<96x256xf32>
    %48 = vector.extract_strided_slice %15 {offsets = [0, 0], sizes = [96, 1], strides = [1, 1]} : vector<96x2xf32> to vector<96x1xf32>
    %49 = vector.broadcast %48 : vector<96x1xf32> to vector<96x256xf32>
    %50 = arith.mulf %47, %49 : vector<96x256xf32>
    %51 = vector.extract_strided_slice %50 {offsets = [0, 0], sizes = [32, 256], strides = [1, 1]} : vector<96x256xf32> to vector<32x256xf32>
    %52 = vector.extract_strided_slice %50 {offsets = [32, 0], sizes = [32, 256], strides = [1, 1]} : vector<96x256xf32> to vector<32x256xf32>
    %53 = vector.extract_strided_slice %50 {offsets = [64, 0], sizes = [32, 256], strides = [1, 1]} : vector<96x256xf32> to vector<32x256xf32>
    %54 = vector.broadcast %23 : vector<32x1xf32> to vector<32x256xf32>
    %55 = arith.mulf %53, %54 : vector<32x256xf32>
    %56 = vector.extract_strided_slice %51 {offsets = [0, 0], sizes = [16, 256], strides = [1, 1]} : vector<32x256xf32> to vector<16x256xf32>
    %57 = vector.extract_strided_slice %52 {offsets = [0, 0], sizes = [16, 256], strides = [1, 1]} : vector<32x256xf32> to vector<16x256xf32>
    %cst_25 = arith.constant dense<0.000000e+00> : vector<256x256xf32>
    %58 = tpu.matmul %56, %57, %cst_25 {dimension_numbers = #tpu.dot_dimension_numbers<[0], [0], [1], [1], [0, 1, 1, 1], [], []>} : vector<16x256xf32>, vector<16x256xf32>, vector<256x256xf32> -> vector<256x256xf32>
    %cst_26 = arith.constant 2.500000e-01 : f32
    %59 = vector.broadcast %cst_26 : f32 to vector<256x256xf32>
    %60 = arith.mulf %58, %59 : vector<256x256xf32>
    %cst_27 = arith.constant dense<0xFF800000> : vector<256xf32>
    %61 = vector.multi_reduction <maximumf>, %60, %cst_27 [1] : vector<256x256xf32> to vector<256xf32>
    %62 = vector.shape_cast %61 : vector<256xf32> to vector<256x1xf32>
    %63 = vector.broadcast %62 : vector<256x1xf32> to vector<256x256xf32>
    %64 = arith.subf %60, %63 : vector<256x256xf32>
    %65 = math.exp %64 : vector<256x256xf32>
    %cst_28 = arith.constant dense<0.000000e+00> : vector<256xf32>
    %66 = vector.multi_reduction <add>, %65, %cst_28 [1] : vector<256x256xf32> to vector<256xf32>
    %67 = vector.shape_cast %66 : vector<256xf32> to vector<256x1xf32>
    %68 = tpu.reciprocal %67 {approx = true} : vector<256x1xf32> -> vector<256x1xf32>
    %69 = vector.broadcast %68 : vector<256x1xf32> to vector<256x256xf32>
    %70 = arith.mulf %65, %69 : vector<256x256xf32>
    %71 = vector.extract_strided_slice %55 {offsets = [0, 0], sizes = [16, 256], strides = [1, 1]} : vector<32x256xf32> to vector<16x256xf32>
    %cst_29 = arith.constant dense<0.000000e+00> : vector<16x256xf32>
    %72 = tpu.matmul %71, %70, %cst_29 {dimension_numbers = #tpu.dot_dimension_numbers<[1], [1], [0], [0], [0, 0, 1, 0], [], []>} : vector<16x256xf32>, vector<256x256xf32>, vector<16x256xf32> -> vector<16x256xf32>
    %73 = vector.extract_strided_slice %51 {offsets = [16, 0], sizes = [16, 256], strides = [1, 1]} : vector<32x256xf32> to vector<16x256xf32>
    %74 = vector.extract_strided_slice %52 {offsets = [16, 0], sizes = [16, 256], strides = [1, 1]} : vector<32x256xf32> to vector<16x256xf32>
    %cst_30 = arith.constant dense<0.000000e+00> : vector<256x256xf32>
    %75 = tpu.matmul %73, %74, %cst_30 {dimension_numbers = #tpu.dot_dimension_numbers<[0], [0], [1], [1], [0, 1, 1, 1], [], []>} : vector<16x256xf32>, vector<16x256xf32>, vector<256x256xf32> -> vector<256x256xf32>
    %cst_31 = arith.constant 2.500000e-01 : f32
    %76 = vector.broadcast %cst_31 : f32 to vector<256x256xf32>
    %77 = arith.mulf %75, %76 : vector<256x256xf32>
    %cst_32 = arith.constant dense<0xFF800000> : vector<256xf32>
    %78 = vector.multi_reduction <maximumf>, %77, %cst_32 [1] : vector<256x256xf32> to vector<256xf32>
    %79 = vector.shape_cast %78 : vector<256xf32> to vector<256x1xf32>
    %80 = vector.broadcast %79 : vector<256x1xf32> to vector<256x256xf32>
    %81 = arith.subf %77, %80 : vector<256x256xf32>
    %82 = math.exp %81 : vector<256x256xf32>
    %cst_33 = arith.constant dense<0.000000e+00> : vector<256xf32>
    %83 = vector.multi_reduction <add>, %82, %cst_33 [1] : vector<256x256xf32> to vector<256xf32>
    %84 = vector.shape_cast %83 : vector<256xf32> to vector<256x1xf32>
    %85 = tpu.reciprocal %84 {approx = true} : vector<256x1xf32> -> vector<256x1xf32>
    %86 = vector.broadcast %85 : vector<256x1xf32> to vector<256x256xf32>
    %87 = arith.mulf %82, %86 : vector<256x256xf32>
    %88 = vector.extract_strided_slice %55 {offsets = [16, 0], sizes = [16, 256], strides = [1, 1]} : vector<32x256xf32> to vector<16x256xf32>
    %cst_34 = arith.constant dense<0.000000e+00> : vector<16x256xf32>
    %89 = tpu.matmul %88, %87, %cst_34 {dimension_numbers = #tpu.dot_dimension_numbers<[1], [1], [0], [0], [0, 0, 1, 0], [], []>} : vector<16x256xf32>, vector<256x256xf32>, vector<16x256xf32> -> vector<16x256xf32>
    %90 = tpu.concatenate %72, %89 in 0 : vector<16x256xf32>, vector<16x256xf32> -> vector<32x256xf32>
    %c0_35 = arith.constant 0 : index
    %c0_36 = arith.constant 0 : index
    %c0_37 = arith.constant 0 : index
    %91 = vector.load %arg6[%c0_35, %c0_36, %c0_37] : memref<2x32x32xf32, #tpu.memory_space<vmem>>, vector<1x32x32xf32>
    %92 = vector.shape_cast %91 : vector<1x32x32xf32> to vector<32x32xf32>
    %93 = vector.extract_strided_slice %21 {offsets = [0, 0], sizes = [32, 1], strides = [1, 1]} : vector<64x2xf32> to vector<32x1xf32>
    %94 = vector.broadcast %93 : vector<32x1xf32> to vector<32x32xf32>
    %95 = arith.mulf %92, %94 : vector<32x32xf32>
    %c1 = arith.constant 1 : index
    %c0_38 = arith.constant 0 : index
    %c0_39 = arith.constant 0 : index
    %96 = vector.load %arg6[%c1, %c0_38, %c0_39] : memref<2x32x32xf32, #tpu.memory_space<vmem>>, vector<1x32x32xf32>
    %97 = vector.shape_cast %96 : vector<1x32x32xf32> to vector<32x32xf32>
    %98 = vector.extract_strided_slice %21 {offsets = [32, 0], sizes = [32, 1], strides = [1, 1]} : vector<64x2xf32> to vector<32x1xf32>
    %99 = vector.broadcast %98 : vector<32x1xf32> to vector<32x32xf32>
    %100 = arith.mulf %97, %99 : vector<32x32xf32>
    %101 = tpu.concatenate %95, %100 in 1 : vector<32x32xf32>, vector<32x32xf32> -> vector<32x64xf32>
    %102 = tpu.concatenate %90, %55 in 0 : vector<32x256xf32>, vector<32x256xf32> -> vector<64x256xf32>
    %cst_40 = arith.constant dense<0.000000e+00> : vector<32x256xf32>
    %103 = tpu.matmul %101, %102, %cst_40 {dimension_numbers = #tpu.dot_dimension_numbers<[1], [0], [0], [1], [0, 0, 1, 1], [], []>} : vector<32x64xf32>, vector<64x256xf32>, vector<32x256xf32> -> vector<32x256xf32>
    %c0_41 = arith.constant 0 : index
    %c0_42 = arith.constant 0 : index
    %104 = vector.load %arg8[%c0_41, %c0_42] : memref<32x1xf32, #tpu.memory_space<vmem>>, vector<32x1xf32>
    %105 = vector.broadcast %104 : vector<32x1xf32> to vector<32x256xf32>
    %106 = arith.addf %103, %105 : vector<32x256xf32>
    %cst_43 = arith.constant 0.000000e+00 : f32
    %107 = vector.broadcast %cst_43 : f32 to vector<32x256xf32>
    %108 = arith.cmpf oge, %106, %107 : vector<32x256xf32>
    %cst_44 = arith.constant 2.000000e-01 : f32
    %109 = vector.broadcast %cst_44 : f32 to vector<32x256xf32>
    %110 = arith.mulf %109, %106 : vector<32x256xf32>
    %111 = arith.select %108, %106, %110 : vector<32x256xi1>, vector<32x256xf32>
    %cst_45 = arith.constant -2.560000e+02 : f32
    %cst_46 = arith.constant 2.560000e+02 : f32
    %112 = vector.broadcast %cst_45 : f32 to vector<32x256xf32>
    %113 = arith.maximumf %112, %111 : vector<32x256xf32>
    %114 = vector.broadcast %cst_46 : f32 to vector<32x256xf32>
    %115 = arith.minimumf %114, %113 : vector<32x256xf32>
    %c0_47 = arith.constant 0 : index
    %c0_48 = arith.constant 0 : index
    %c0_49 = arith.constant 0 : index
    %116 = vector.load %arg9[%c0_47, %c0_48, %c0_49] : memref<2x32x256xf32, #tpu.memory_space<vmem>>, vector<1x32x256xf32>
    %117 = vector.shape_cast %116 : vector<1x32x256xf32> to vector<32x256xf32>
    %118 = vector.shape_cast %115 : vector<32x256xf32> to vector<1x32x256xf32>
    tpu.vector_store %arg9[%c0_47, %c0_48, %c0_49], %118 {strides = array<i32>} : memref<2x32x256xf32, #tpu.memory_space<vmem>>, vector<1x32x256xf32>,
    %119 = vector.extract_strided_slice %8 {offsets = [0, 1], sizes = [32, 1], strides = [1, 1]} : vector<32x2xf32> to vector<32x1xf32>
    %120 = vector.extract_strided_slice %9 {offsets = [0, 1], sizes = [32, 1], strides = [1, 1]} : vector<32x2xf32> to vector<32x1xf32>
    %c1_50 = arith.constant 1 : index
    %c0_51 = arith.constant 0 : index
    %c0_52 = arith.constant 0 : index
    %121 = vector.load %arg0[%c1_50, %c0_51, %c0_52] : memref<2x32x256xf32, #tpu.memory_space<vmem>>, vector<1x32x256xf32>
    %122 = vector.shape_cast %121 : vector<1x32x256xf32> to vector<32x256xf32>
    %123 = vector.broadcast %119 : vector<32x1xf32> to vector<32x256xf32>
    %124 = arith.mulf %122, %123 : vector<32x256xf32>
    %cst_53 = arith.constant dense<0.000000e+00> : vector<256xf32>
    %125 = vector.multi_reduction <add>, %124, %cst_53 [0] : vector<32x256xf32> to vector<256xf32>
    %126 = vector.shape_cast %125 : vector<256xf32> to vector<1x256xf32>
    %cst_54 = arith.constant 3.200000e+01 : f32
    %127 = vector.broadcast %cst_54 : f32 to vector<1x256xf32>
    %128 = arith.divf %126, %127 : vector<1x256xf32>
    %129 = vector.broadcast %128 : vector<1x256xf32> to vector<32x256xf32>
    %130 = arith.subf %124, %129 : vector<32x256xf32>
    %131 = arith.mulf %130, %130 : vector<32x256xf32>
    %cst_55 = arith.constant dense<0.000000e+00> : vector<256xf32>
    %132 = vector.multi_reduction <add>, %131, %cst_55 [0] : vector<32x256xf32> to vector<256xf32>
    %133 = vector.shape_cast %132 : vector<256xf32> to vector<1x256xf32>
    %cst_56 = arith.constant 3.200000e+01 : f32
    %134 = vector.broadcast %cst_56 : f32 to vector<1x256xf32>
    %135 = arith.divf %133, %134 : vector<1x256xf32>
    %136 = vector.broadcast %128 : vector<1x256xf32> to vector<32x256xf32>
    %137 = arith.subf %124, %136 : vector<32x256xf32>
    %cst_57 = arith.constant 9.99999974E-6 : f32
    %138 = vector.broadcast %cst_57 : f32 to vector<1x256xf32>
    %139 = arith.addf %135, %138 : vector<1x256xf32>
    %140 = math.rsqrt %139 : vector<1x256xf32>
    %141 = vector.broadcast %140 : vector<1x256xf32> to vector<32x256xf32>
    %142 = arith.mulf %137, %141 : vector<32x256xf32>
    %c0_58 = arith.constant 0 : index
    %c0_59 = arith.constant 0 : index
    %143 = vector.load %arg4[%c0_58, %c0_59] : memref<96x32xf32, #tpu.memory_space<vmem>>, vector<96x32xf32>
    %cst_60 = arith.constant dense<0.000000e+00> : vector<96x256xf32>
    %144 = tpu.matmul %143, %142, %cst_60 {dimension_numbers = #tpu.dot_dimension_numbers<[1], [0], [0], [1], [0, 0, 1, 1], [], []>} : vector<96x32xf32>, vector<32x256xf32>, vector<96x256xf32> -> vector<96x256xf32>
    %145 = vector.extract_strided_slice %15 {offsets = [0, 1], sizes = [96, 1], strides = [1, 1]} : vector<96x2xf32> to vector<96x1xf32>
    %146 = vector.broadcast %145 : vector<96x1xf32> to vector<96x256xf32>
    %147 = arith.mulf %144, %146 : vector<96x256xf32>
    %148 = vector.extract_strided_slice %147 {offsets = [0, 0], sizes = [32, 256], strides = [1, 1]} : vector<96x256xf32> to vector<32x256xf32>
    %149 = vector.extract_strided_slice %147 {offsets = [32, 0], sizes = [32, 256], strides = [1, 1]} : vector<96x256xf32> to vector<32x256xf32>
    %150 = vector.extract_strided_slice %147 {offsets = [64, 0], sizes = [32, 256], strides = [1, 1]} : vector<96x256xf32> to vector<32x256xf32>
    %151 = vector.broadcast %120 : vector<32x1xf32> to vector<32x256xf32>
    %152 = arith.mulf %150, %151 : vector<32x256xf32>
    %153 = vector.extract_strided_slice %148 {offsets = [0, 0], sizes = [16, 256], strides = [1, 1]} : vector<32x256xf32> to vector<16x256xf32>
    %154 = vector.extract_strided_slice %149 {offsets = [0, 0], sizes = [16, 256], strides = [1, 1]} : vector<32x256xf32> to vector<16x256xf32>
    %cst_61 = arith.constant dense<0.000000e+00> : vector<256x256xf32>
    %155 = tpu.matmul %153, %154, %cst_61 {dimension_numbers = #tpu.dot_dimension_numbers<[0], [0], [1], [1], [0, 1, 1, 1], [], []>} : vector<16x256xf32>, vector<16x256xf32>, vector<256x256xf32> -> vector<256x256xf32>
    %cst_62 = arith.constant 2.500000e-01 : f32
    %156 = vector.broadcast %cst_62 : f32 to vector<256x256xf32>
    %157 = arith.mulf %155, %156 : vector<256x256xf32>
    %cst_63 = arith.constant dense<0xFF800000> : vector<256xf32>
    %158 = vector.multi_reduction <maximumf>, %157, %cst_63 [1] : vector<256x256xf32> to vector<256xf32>
    %159 = vector.shape_cast %158 : vector<256xf32> to vector<256x1xf32>
    %160 = vector.broadcast %159 : vector<256x1xf32> to vector<256x256xf32>
    %161 = arith.subf %157, %160 : vector<256x256xf32>
    %162 = math.exp %161 : vector<256x256xf32>
    %cst_64 = arith.constant dense<0.000000e+00> : vector<256xf32>
    %163 = vector.multi_reduction <add>, %162, %cst_64 [1] : vector<256x256xf32> to vector<256xf32>
    %164 = vector.shape_cast %163 : vector<256xf32> to vector<256x1xf32>
    %165 = tpu.reciprocal %164 {approx = true} : vector<256x1xf32> -> vector<256x1xf32>
    %166 = vector.broadcast %165 : vector<256x1xf32> to vector<256x256xf32>
    %167 = arith.mulf %162, %166 : vector<256x256xf32>
    %168 = vector.extract_strided_slice %152 {offsets = [0, 0], sizes = [16, 256], strides = [1, 1]} : vector<32x256xf32> to vector<16x256xf32>
    %cst_65 = arith.constant dense<0.000000e+00> : vector<16x256xf32>
    %169 = tpu.matmul %168, %167, %cst_65 {dimension_numbers = #tpu.dot_dimension_numbers<[1], [1], [0], [0], [0, 0, 1, 0], [], []>} : vector<16x256xf32>, vector<256x256xf32>, vector<16x256xf32> -> vector<16x256xf32>
    %170 = vector.extract_strided_slice %148 {offsets = [16, 0], sizes = [16, 256], strides = [1, 1]} : vector<32x256xf32> to vector<16x256xf32>
    %171 = vector.extract_strided_slice %149 {offsets = [16, 0], sizes = [16, 256], strides = [1, 1]} : vector<32x256xf32> to vector<16x256xf32>
    %cst_66 = arith.constant dense<0.000000e+00> : vector<256x256xf32>
    %172 = tpu.matmul %170, %171, %cst_66 {dimension_numbers = #tpu.dot_dimension_numbers<[0], [0], [1], [1], [0, 1, 1, 1], [], []>} : vector<16x256xf32>, vector<16x256xf32>, vector<256x256xf32> -> vector<256x256xf32>
    %cst_67 = arith.constant 2.500000e-01 : f32
    %173 = vector.broadcast %cst_67 : f32 to vector<256x256xf32>
    %174 = arith.mulf %172, %173 : vector<256x256xf32>
    %cst_68 = arith.constant dense<0xFF800000> : vector<256xf32>
    %175 = vector.multi_reduction <maximumf>, %174, %cst_68 [1] : vector<256x256xf32> to vector<256xf32>
    %176 = vector.shape_cast %175 : vector<256xf32> to vector<256x1xf32>
    %177 = vector.broadcast %176 : vector<256x1xf32> to vector<256x256xf32>
    %178 = arith.subf %174, %177 : vector<256x256xf32>
    %179 = math.exp %178 : vector<256x256xf32>
    %cst_69 = arith.constant dense<0.000000e+00> : vector<256xf32>
    %180 = vector.multi_reduction <add>, %179, %cst_69 [1] : vector<256x256xf32> to vector<256xf32>
    %181 = vector.shape_cast %180 : vector<256xf32> to vector<256x1xf32>
    %182 = tpu.reciprocal %181 {approx = true} : vector<256x1xf32> -> vector<256x1xf32>
    %183 = vector.broadcast %182 : vector<256x1xf32> to vector<256x256xf32>
    %184 = arith.mulf %179, %183 : vector<256x256xf32>
    %185 = vector.extract_strided_slice %152 {offsets = [16, 0], sizes = [16, 256], strides = [1, 1]} : vector<32x256xf32> to vector<16x256xf32>
    %cst_70 = arith.constant dense<0.000000e+00> : vector<16x256xf32>
    %186 = tpu.matmul %185, %184, %cst_70 {dimension_numbers = #tpu.dot_dimension_numbers<[1], [1], [0], [0], [0, 0, 1, 0], [], []>} : vector<16x256xf32>, vector<256x256xf32>, vector<16x256xf32> -> vector<16x256xf32>
    %187 = tpu.concatenate %169, %186 in 0 : vector<16x256xf32>, vector<16x256xf32> -> vector<32x256xf32>
    %c0_71 = arith.constant 0 : index
    %c0_72 = arith.constant 0 : index
    %c0_73 = arith.constant 0 : index
    %188 = vector.load %arg6[%c0_71, %c0_72, %c0_73] : memref<2x32x32xf32, #tpu.memory_space<vmem>>, vector<1x32x32xf32>
    %189 = vector.shape_cast %188 : vector<1x32x32xf32> to vector<32x32xf32>
    %190 = vector.extract_strided_slice %21 {offsets = [0, 1], sizes = [32, 1], strides = [1, 1]} : vector<64x2xf32> to vector<32x1xf32>
    %191 = vector.broadcast %190 : vector<32x1xf32> to vector<32x32xf32>
    %192 = arith.mulf %189, %191 : vector<32x32xf32>
    %c1_74 = arith.constant 1 : index
    %c0_75 = arith.constant 0 : index
    %c0_76 = arith.constant 0 : index
    %193 = vector.load %arg6[%c1_74, %c0_75, %c0_76] : memref<2x32x32xf32, #tpu.memory_space<vmem>>, vector<1x32x32xf32>
    %194 = vector.shape_cast %193 : vector<1x32x32xf32> to vector<32x32xf32>
    %195 = vector.extract_strided_slice %21 {offsets = [32, 1], sizes = [32, 1], strides = [1, 1]} : vector<64x2xf32> to vector<32x1xf32>
    %196 = vector.broadcast %195 : vector<32x1xf32> to vector<32x32xf32>
    %197 = arith.mulf %194, %196 : vector<32x32xf32>
    %198 = tpu.concatenate %192, %197 in 1 : vector<32x32xf32>, vector<32x32xf32> -> vector<32x64xf32>
    %199 = tpu.concatenate %187, %152 in 0 : vector<32x256xf32>, vector<32x256xf32> -> vector<64x256xf32>
    %cst_77 = arith.constant dense<0.000000e+00> : vector<32x256xf32>
    %200 = tpu.matmul %198, %199, %cst_77 {dimension_numbers = #tpu.dot_dimension_numbers<[1], [0], [0], [1], [0, 0, 1, 1], [], []>} : vector<32x64xf32>, vector<64x256xf32>, vector<32x256xf32> -> vector<32x256xf32>
    %c0_78 = arith.constant 0 : index
    %c0_79 = arith.constant 0 : index
    %201 = vector.load %arg8[%c0_78, %c0_79] : memref<32x1xf32, #tpu.memory_space<vmem>>, vector<32x1xf32>
    %202 = vector.broadcast %201 : vector<32x1xf32> to vector<32x256xf32>
    %203 = arith.addf %200, %202 : vector<32x256xf32>
    %cst_80 = arith.constant 0.000000e+00 : f32
    %204 = vector.broadcast %cst_80 : f32 to vector<32x256xf32>
    %205 = arith.cmpf oge, %203, %204 : vector<32x256xf32>
    %cst_81 = arith.constant 2.000000e-01 : f32
    %206 = vector.broadcast %cst_81 : f32 to vector<32x256xf32>
    %207 = arith.mulf %206, %203 : vector<32x256xf32>
    %208 = arith.select %205, %203, %207 : vector<32x256xi1>, vector<32x256xf32>
    %cst_82 = arith.constant -2.560000e+02 : f32
    %cst_83 = arith.constant 2.560000e+02 : f32
    %209 = vector.broadcast %cst_82 : f32 to vector<32x256xf32>
    %210 = arith.maximumf %209, %208 : vector<32x256xf32>
    %211 = vector.broadcast %cst_83 : f32 to vector<32x256xf32>
    %212 = arith.minimumf %211, %210 : vector<32x256xf32>
    %c1_84 = arith.constant 1 : index
    %c0_85 = arith.constant 0 : index
    %c0_86 = arith.constant 0 : index
    %213 = vector.load %arg9[%c1_84, %c0_85, %c0_86] : memref<2x32x256xf32, #tpu.memory_space<vmem>>, vector<1x32x256xf32>
    %214 = vector.shape_cast %213 : vector<1x32x256xf32> to vector<32x256xf32>
    %215 = vector.shape_cast %212 : vector<32x256xf32> to vector<1x32x256xf32>
    tpu.vector_store %arg9[%c1_84, %c0_85, %c0_86], %215 {strides = array<i32>} : memref<2x32x256xf32, #tpu.memory_space<vmem>>, vector<1x32x256xf32>,
    return
  }
}

module attributes {stable_mosaic.version = 11 : i64} {
  func.func @_torgb_kernel(%arg0: memref<2x32x256xf32, #tpu.memory_space<vmem>>, %arg1: memref<32x2xf32, #tpu.memory_space<vmem>>, %arg2: memref<32x32xf32, #tpu.memory_space<vmem>>, %arg3: memref<32x1xf32, #tpu.memory_space<vmem>>, %arg4: memref<3x32xf32, #tpu.memory_space<vmem>>, %arg5: memref<3x32xf32, #tpu.memory_space<vmem>>, %arg6: memref<3x1xf32, #tpu.memory_space<vmem>>, %arg7: memref<2x3x256xf32, #tpu.memory_space<vmem>>) attributes {dimension_semantics = [], scalar_prefetch = 0 : i64, scratch_operands = 0 : i64, tpu.core_type = #tpu.core_type<tc>} {
    %c0 = arith.constant 0 : index
    %c0_0 = arith.constant 0 : index
    %0 = vector.load %arg2[%c0, %c0_0] : memref<32x32xf32, #tpu.memory_space<vmem>>, vector<32x32xf32>
    %c0_1 = arith.constant 0 : index
    %c0_2 = arith.constant 0 : index
    %1 = vector.load %arg1[%c0_1, %c0_2] : memref<32x2xf32, #tpu.memory_space<vmem>>, vector<32x2xf32>
    %cst = arith.constant dense<0.000000e+00> : vector<32x2xf32>
    %2 = tpu.matmul %0, %1, %cst {dimension_numbers = #tpu.dot_dimension_numbers<[1], [0], [0], [1], [0, 0, 1, 1], [], []>} : vector<32x32xf32>, vector<32x2xf32>, vector<32x2xf32> -> vector<32x2xf32>
    %cst_3 = arith.constant 0.176776692 : f32
    %3 = vector.broadcast %cst_3 : f32 to vector<32x2xf32>
    %4 = arith.mulf %2, %3 : vector<32x2xf32>
    %c0_4 = arith.constant 0 : index
    %c0_5 = arith.constant 0 : index
    %5 = vector.load %arg3[%c0_4, %c0_5] : memref<32x1xf32, #tpu.memory_space<vmem>>, vector<32x1xf32>
    %6 = vector.broadcast %5 : vector<32x1xf32> to vector<32x2xf32>
    %7 = arith.addf %4, %6 : vector<32x2xf32>
    %c0_6 = arith.constant 0 : index
    %c0_7 = arith.constant 0 : index
    %8 = vector.load %arg5[%c0_6, %c0_7] : memref<3x32xf32, #tpu.memory_space<vmem>>, vector<3x32xf32>
    %9 = arith.mulf %7, %7 : vector<32x2xf32>
    %cst_8 = arith.constant dense<0.000000e+00> : vector<3x2xf32>
    %10 = tpu.matmul %8, %9, %cst_8 {dimension_numbers = #tpu.dot_dimension_numbers<[1], [0], [0], [1], [0, 0, 1, 1], [], []>} : vector<3x32xf32>, vector<32x2xf32>, vector<3x2xf32> -> vector<3x2xf32>
    %cst_9 = arith.constant 9.99999993E-9 : f32
    %11 = vector.broadcast %cst_9 : f32 to vector<3x2xf32>
    %12 = arith.addf %10, %11 : vector<3x2xf32>
    %13 = math.rsqrt %12 : vector<3x2xf32>
    %c0_10 = arith.constant 0 : index
    %c0_11 = arith.constant 0 : index
    %c0_12 = arith.constant 0 : index
    %14 = vector.load %arg0[%c0_10, %c0_11, %c0_12] : memref<2x32x256xf32, #tpu.memory_space<vmem>>, vector<1x32x256xf32>
    %15 = vector.shape_cast %14 : vector<1x32x256xf32> to vector<32x256xf32>
    %16 = vector.extract_strided_slice %7 {offsets = [0, 0], sizes = [32, 1], strides = [1, 1]} : vector<32x2xf32> to vector<32x1xf32>
    %17 = vector.broadcast %16 : vector<32x1xf32> to vector<32x256xf32>
    %18 = arith.mulf %15, %17 : vector<32x256xf32>
    %c0_13 = arith.constant 0 : index
    %c0_14 = arith.constant 0 : index
    %19 = vector.load %arg4[%c0_13, %c0_14] : memref<3x32xf32, #tpu.memory_space<vmem>>, vector<3x32xf32>
    %cst_15 = arith.constant dense<0.000000e+00> : vector<3x256xf32>
    %20 = tpu.matmul %19, %18, %cst_15 {dimension_numbers = #tpu.dot_dimension_numbers<[1], [0], [0], [1], [0, 0, 1, 1], [], []>} : vector<3x32xf32>, vector<32x256xf32>, vector<3x256xf32> -> vector<3x256xf32>
    %21 = vector.extract_strided_slice %13 {offsets = [0, 0], sizes = [3, 1], strides = [1, 1]} : vector<3x2xf32> to vector<3x1xf32>
    %22 = vector.broadcast %21 : vector<3x1xf32> to vector<3x256xf32>
    %23 = arith.mulf %20, %22 : vector<3x256xf32>
    %c0_16 = arith.constant 0 : index
    %c0_17 = arith.constant 0 : index
    %24 = vector.load %arg6[%c0_16, %c0_17] : memref<3x1xf32, #tpu.memory_space<vmem>>, vector<3x1xf32>
    %25 = vector.broadcast %24 : vector<3x1xf32> to vector<3x256xf32>
    %26 = arith.addf %23, %25 : vector<3x256xf32>
    %c0_18 = arith.constant 0 : index
    %c0_19 = arith.constant 0 : index
    %c0_20 = arith.constant 0 : index
    %27 = vector.load %arg7[%c0_18, %c0_19, %c0_20] : memref<2x3x256xf32, #tpu.memory_space<vmem>>, vector<1x3x256xf32>
    %28 = vector.shape_cast %27 : vector<1x3x256xf32> to vector<3x256xf32>
    %29 = vector.shape_cast %26 : vector<3x256xf32> to vector<1x3x256xf32>
    tpu.vector_store %arg7[%c0_18, %c0_19, %c0_20], %29 {strides = array<i32>} : memref<2x3x256xf32, #tpu.memory_space<vmem>>, vector<1x3x256xf32>,
    %c1 = arith.constant 1 : index
    %c0_21 = arith.constant 0 : index
    %c0_22 = arith.constant 0 : index
    %30 = vector.load %arg0[%c1, %c0_21, %c0_22] : memref<2x32x256xf32, #tpu.memory_space<vmem>>, vector<1x32x256xf32>
    %31 = vector.shape_cast %30 : vector<1x32x256xf32> to vector<32x256xf32>
    %32 = vector.extract_strided_slice %7 {offsets = [0, 1], sizes = [32, 1], strides = [1, 1]} : vector<32x2xf32> to vector<32x1xf32>
    %33 = vector.broadcast %32 : vector<32x1xf32> to vector<32x256xf32>
    %34 = arith.mulf %31, %33 : vector<32x256xf32>
    %c0_23 = arith.constant 0 : index
    %c0_24 = arith.constant 0 : index
    %35 = vector.load %arg4[%c0_23, %c0_24] : memref<3x32xf32, #tpu.memory_space<vmem>>, vector<3x32xf32>
    %cst_25 = arith.constant dense<0.000000e+00> : vector<3x256xf32>
    %36 = tpu.matmul %35, %34, %cst_25 {dimension_numbers = #tpu.dot_dimension_numbers<[1], [0], [0], [1], [0, 0, 1, 1], [], []>} : vector<3x32xf32>, vector<32x256xf32>, vector<3x256xf32> -> vector<3x256xf32>
    %37 = vector.extract_strided_slice %13 {offsets = [0, 1], sizes = [3, 1], strides = [1, 1]} : vector<3x2xf32> to vector<3x1xf32>
    %38 = vector.broadcast %37 : vector<3x1xf32> to vector<3x256xf32>
    %39 = arith.mulf %36, %38 : vector<3x256xf32>
    %c0_26 = arith.constant 0 : index
    %c0_27 = arith.constant 0 : index
    %40 = vector.load %arg6[%c0_26, %c0_27] : memref<3x1xf32, #tpu.memory_space<vmem>>, vector<3x1xf32>
    %41 = vector.broadcast %40 : vector<3x1xf32> to vector<3x256xf32>
    %42 = arith.addf %39, %41 : vector<3x256xf32>
    %c1_28 = arith.constant 1 : index
    %c0_29 = arith.constant 0 : index
    %c0_30 = arith.constant 0 : index
    %43 = vector.load %arg7[%c1_28, %c0_29, %c0_30] : memref<2x3x256xf32, #tpu.memory_space<vmem>>, vector<1x3x256xf32>
    %44 = vector.shape_cast %43 : vector<1x3x256xf32> to vector<3x256xf32>
    %45 = vector.shape_cast %42 : vector<3x256xf32> to vector<1x3x256xf32>
    tpu.vector_store %arg7[%c1_28, %c0_29, %c0_30], %45 {strides = array<i32>} : memref<2x3x256xf32, #tpu.memory_space<vmem>>, vector<1x3x256xf32>,
    return
  }
}

</mosaic_0001>

<llo_original>
// kernel: _lambda_.10
$region0: #{_lambda_.10}
  #allocation0 [shape = 'u32[]', space=smem, size = 0x4, offset = 0x4, fixed_abs, tag = 'smem constant byte address 0x4 - core index']
  #allocation1 [shape = 'u32[144,128]{1,0:T(1,128)}', space=vmem, size = 0x12000, scoped, tag = 'internal scratch']
  %s0 = inlined_call_operand.vmem [shape: f32[2,3,64], index: 0, kind: input, shape index: {}]
  %s1 = inlined_call_operand.vmem [shape: f32[64,256], index: 1, kind: input, shape index: {}]
  %s2 = inlined_call_operand.vmem [shape: f32[2,3,256], index: 2, kind: output, shape index: {}]
  %s3 = sld [smem:[#allocation0]]
  $region18: #{_lambda_.10} parent=0
    _
  %s5 = ssub.s32 1, %s3
  %s6 = scalar_select 0, %s5, %s3
  // Predicated region
  $region2: #{_lambda_.10} parent=0 // pred_check
    _
  $region3: #{_lambda_.10} parent=0 // pred_check_branch
    %8 = sbr.rel (0) target = $region5
  $region4: #{_lambda_.10} parent=0 // pred_region
    _
  $region5: #{_lambda_.10} parent=0 // pred_fallthru
    _
  // Predicated region
  $region6: #{_lambda_.10} parent=0 // pred_check
    _
  $region7: #{_lambda_.10} parent=0 // pred_check_branch
    %10 = sbr.rel (0) target = $region9
  $region8: #{_lambda_.10} parent=0 // pred_region
    _
  $region9: #{_lambda_.10} parent=0 // pred_fallthru
    _
  %v11 = vld [vmem:[%s0] sm:$0x7]
  %v12 = vld [vmem:[%s1] sm:$0xff]
  %v13 = vld [vmem:[%s1 + $0x8] sm:$0xff]
  %v14 = vld [vmem:[%s1 + $0x10] sm:$0xff]
  %v15 = vld [vmem:[%s1 + $0x18] sm:$0xff]
  %v16 = vld [vmem:[%s1 + $0x20] sm:$0xff]
  %v17 = vld [vmem:[%s1 + $0x28] sm:$0xff]
  %v18 = vld [vmem:[%s1 + $0x30] sm:$0xff]
  %v19 = vld [vmem:[%s1 + $0x38] sm:$0xff]
  %v20 = vld [vmem:[%s1 + $0x40] sm:$0xff]
  %v21 = vld [vmem:[%s1 + $0x48] sm:$0xff]
  %v22 = vld [vmem:[%s1 + $0x50] sm:$0xff]
  %v23 = vld [vmem:[%s1 + $0x58] sm:$0xff]
  %v24 = vld [vmem:[%s1 + $0x60] sm:$0xff]
  %v25 = vld [vmem:[%s1 + $0x68] sm:$0xff]
  %v26 = vld [vmem:[%s1 + $0x70] sm:$0xff]
  %v27 = vld [vmem:[%s1 + $0x78] sm:$0xff]
  %vm28 = vcmask 523264
  %v30 = vsel %vm28, %v11, 0
  %32 = vmatprep.subr.mxu0 %v13
  %33 = vmatpush1.msra.mxu0 %v12
  %34 = vmatprep.subr.mxu0 %v15
  %35 = vmatpush1.msra.mxu0 %v14
  %36 = vmatprep.subr.mxu0 %v17
  %37 = vmatpush1.msra.mxu0 %v16
  %38 = vmatprep.subr.mxu0 %v19
  %39 = vmatpush1.msra.mxu0 %v18
  %40 = vmatprep.subr.mxu0 %v21
  %41 = vmatpush1.msra.mxu0 %v20
  %42 = vmatprep.subr.mxu0 %v23
  %43 = vmatpush1.msra.mxu0 %v22
  %44 = vmatprep.subr.mxu0 %v25
  %45 = vmatpush1.msra.mxu0 %v24
  %46 = vmatprep.subr.mxu0 %v27
  %47 = vmatpush1.msra.mxu0 %v26
  %48 = vmatprep.subr.mxu0 0.0
  %49 = vmatpush1.msra.mxu0 0.0
  %50 = vmatprep.subr.mxu0 0.0
  %51 = vmatpush1.msra.mxu0 0.0
  %52 = vmatprep.subr.mxu0 0.0
  %53 = vmatpush1.msra.mxu0 0.0
  %54 = vmatprep.subr.mxu0 0.0
  %55 = vmatpush1.msra.mxu0 0.0
  %56 = vmatprep.subr.mxu0 0.0
  %57 = vmatpush1.msra.mxu0 0.0
  %58 = vmatprep.subr.mxu0 0.0
  %59 = vmatpush1.msra.mxu0 0.0
  %60 = vmatprep.subr.mxu0 0.0
  %61 = vmatpush1.msra.mxu0 0.0
  %62 = vmatprep.subr.mxu0 0.0
  %63 = vmatpush1.msra.mxu0 0.0
  %64 = vmatprep.subr.mxu0 0.0
  %65 = vmatpush1.msra.mxu0 0.0
  %66 = vmatprep.subr.mxu0 0.0
  %67 = vmatpush1.msra.mxu0 0.0
  %68 = vmatprep.subr.mxu0 0.0
  %69 = vmatpush1.msra.mxu0 0.0
  %70 = vmatprep.subr.mxu0 0.0
  %71 = vmatpush1.msra.mxu0 0.0
  %72 = vmatprep.subr.mxu0 0.0
  %73 = vmatpush1.msra.mxu0 0.0
  %74 = vmatprep.subr.mxu0 0.0
  %75 = vmatpush1.msra.mxu0 0.0
  %76 = vmatprep.subr.mxu0 0.0
  %77 = vmatpush1.msra.mxu0 0.0
  %78 = vmatprep.subr.mxu0 0.0
  %79 = vmatpush1.msra.mxu0 0.0
  %80 = vmatprep.subr.mxu0 0.0
  %81 = vmatpush1.msra.mxu0 0.0
  %82 = vmatprep.subr.mxu0 0.0
  %83 = vmatpush1.msra.mxu0 0.0
  %84 = vmatprep.subr.mxu0 0.0
  %85 = vmatpush1.msra.mxu0 0.0
  %86 = vmatprep.subr.mxu0 0.0
  %87 = vmatpush1.msra.mxu0 0.0
  %88 = vmatprep.subr.mxu0 0.0
  %89 = vmatpush1.msra.mxu0 0.0
  %90 = vmatprep.subr.mxu0 0.0
  %91 = vmatpush1.msra.mxu0 0.0
  %92 = vmatprep.subr.mxu0 0.0
  %93 = vmatpush1.msra.mxu0 0.0
  %94 = vmatprep.subr.mxu0 0.0
  %95 = vmatpush1.msra.mxu0 0.0
  %96 = vmatprep.mubr.f32.mxu0 0.0
  %97 = vmatmul.mubr.f32.gmra.mrb[0].mxu0 %v30
  %v98 = vpop.f32.mrb[0].mxu0
  %v99 = vadd.f32 0.0, %v98
  %v100 = vpop.f32.mrb[0].mxu0
  %v101 = vadd.f32 0.0, %v100
  %102 = vdwg.mxu0
  %v105 = vcombine.low %v99, %v101
  %107 = vst [vmem:[%s2] sm:$0x77] %v105
  %s108 = scalar_lea.vmem %s0, 4
  %v109 = vld [vmem:[%s108] sm:$0x7]
  %v110 = vld [vmem:[%s1] sm:$0xff]
  %v111 = vld [vmem:[%s1 + $0x8] sm:$0xff]
  %v112 = vld [vmem:[%s1 + $0x10] sm:$0xff]
  %v113 = vld [vmem:[%s1 + $0x18] sm:$0xff]
  %v114 = vld [vmem:[%s1 + $0x20] sm:$0xff]
  %v115 = vld [vmem:[%s1 + $0x28] sm:$0xff]
  %v116 = vld [vmem:[%s1 + $0x30] sm:$0xff]
  %v117 = vld [vmem:[%s1 + $0x38] sm:$0xff]
  %v118 = vld [vmem:[%s1 + $0x40] sm:$0xff]
  %v119 = vld [vmem:[%s1 + $0x48] sm:$0xff]
  %v120 = vld [vmem:[%s1 + $0x50] sm:$0xff]
  %v121 = vld [vmem:[%s1 + $0x58] sm:$0xff]
  %v122 = vld [vmem:[%s1 + $0x60] sm:$0xff]
  %v123 = vld [vmem:[%s1 + $0x68] sm:$0xff]
  %v124 = vld [vmem:[%s1 + $0x70] sm:$0xff]
  %v125 = vld [vmem:[%s1 + $0x78] sm:$0xff]
  %v127 = vsel %vm28, %v109, 0
  %129 = vmatprep.subr.mxu0 %v111
  %130 = vmatpush1.msra.mxu0 %v110
  %131 = vmatprep.subr.mxu0 %v113
  %132 = vmatpush1.msra.mxu0 %v112
  %133 = vmatprep.subr.mxu0 %v115
  %134 = vmatpush1.msra.mxu0 %v114
  %135 = vmatprep.subr.mxu0 %v117
  %136 = vmatpush1.msra.mxu0 %v116
  %137 = vmatprep.subr.mxu0 %v119
  %138 = vmatpush1.msra.mxu0 %v118
  %139 = vmatprep.subr.mxu0 %v121
  %140 = vmatpush1.msra.mxu0 %v120
  %141 = vmatprep.subr.mxu0 %v123
  %142 = vmatpush1.msra.mxu0 %v122
  %143 = vmatprep.subr.mxu0 %v125
  %144 = vmatpush1.msra.mxu0 %v124
  %145 = vmatprep.subr.mxu0 0.0
  %146 = vmatpush1.msra.mxu0 0.0
  %147 = vmatprep.subr.mxu0 0.0
  %148 = vmatpush1.msra.mxu0 0.0
  %149 = vmatprep.subr.mxu0 0.0
  %150 = vmatpush1.msra.mxu0 0.0
  %151 = vmatprep.subr.mxu0 0.0
  %152 = vmatpush1.msra.mxu0 0.0
  %153 = vmatprep.subr.mxu0 0.0
  %154 = vmatpush1.msra.mxu0 0.0
  %155 = vmatprep.subr.mxu0 0.0
  %156 = vmatpush1.msra.mxu0 0.0
  %157 = vmatprep.subr.mxu0 0.0
  %158 = vmatpush1.msra.mxu0 0.0
  %159 = vmatprep.subr.mxu0 0.0
  %160 = vmatpush1.msra.mxu0 0.0
  %161 = vmatprep.subr.mxu0 0.0
  %162 = vmatpush1.msra.mxu0 0.0
  %163 = vmatprep.subr.mxu0 0.0
  %164 = vmatpush1.msra.mxu0 0.0
  %165 = vmatprep.subr.mxu0 0.0
  %166 = vmatpush1.msra.mxu0 0.0
  %167 = vmatprep.subr.mxu0 0.0
  %168 = vmatpush1.msra.mxu0 0.0
  %169 = vmatprep.subr.mxu0 0.0
  %170 = vmatpush1.msra.mxu0 0.0
  %171 = vmatprep.subr.mxu0 0.0
  %172 = vmatpush1.msra.mxu0 0.0
  %173 = vmatprep.subr.mxu0 0.0
  %174 = vmatpush1.msra.mxu0 0.0
  %175 = vmatprep.subr.mxu0 0.0
  %176 = vmatpush1.msra.mxu0 0.0
  %177 = vmatprep.subr.mxu0 0.0
  %178 = vmatpush1.msra.mxu0 0.0
  %179 = vmatprep.subr.mxu0 0.0
  %180 = vmatpush1.msra.mxu0 0.0
  %181 = vmatprep.subr.mxu0 0.0
  %182 = vmatpush1.msra.mxu0 0.0
  %183 = vmatprep.subr.mxu0 0.0
  %184 = vmatpush1.msra.mxu0 0.0
  %185 = vmatprep.subr.mxu0 0.0
  %186 = vmatpush1.msra.mxu0 0.0
  %187 = vmatprep.subr.mxu0 0.0
  %188 = vmatpush1.msra.mxu0 0.0
  %189 = vmatprep.subr.mxu0 0.0
  %190 = vmatpush1.msra.mxu0 0.0
  %191 = vmatprep.subr.mxu0 0.0
  %192 = vmatpush1.msra.mxu0 0.0
  %193 = vmatprep.mubr.f32.mxu0 0.0
  %194 = vmatmul.mubr.f32.gmra.mrb[0].mxu0 %v127
  %v195 = vpop.f32.mrb[0].mxu0
  %v196 = vadd.f32 0.0, %v195
  %v197 = vpop.f32.mrb[0].mxu0
  %v198 = vadd.f32 0.0, %v197
  %199 = vdwg.mxu0
  %v202 = vcombine.low %v196, %v198
  %s204 = scalar_lea.vmem %s2, 8
  %205 = vst [vmem:[%s204] sm:$0x77] %v202
  // Predicated region
  $region10: #{_lambda_.10} parent=0 // pred_check
    _
  $region11: #{_lambda_.10} parent=0 // pred_check_branch
    %207 = sbr.rel (0) target = $region13
  $region12: #{_lambda_.10} parent=0 // pred_region
    _
  $region13: #{_lambda_.10} parent=0 // pred_fallthru
    _
  // Predicated region
  $region14: #{_lambda_.10} parent=0 // pred_check
    _
  $region15: #{_lambda_.10} parent=0 // pred_check_branch
    %209 = sbr.rel (0) target = $region17
  $region16: #{_lambda_.10} parent=0 // pred_region
    _
  $region17: #{_lambda_.10} parent=0 // pred_fallthru
    _

// kernel: _lambda_.8
$region0: #{_lambda_.8}
  #allocation0 [shape = 'u32[]', space=smem, size = 0x4, offset = 0x4, fixed_abs, tag = 'smem constant byte address 0x4 - core index']
  #allocation1 [shape = 'u32[144,128]{1,0:T(1,128)}', space=vmem, size = 0x12000, scoped, tag = 'internal scratch']
  %s0 = inlined_call_operand.vmem [shape: f32[2,32,64], index: 0, kind: input, shape index: {}]
  %s1 = inlined_call_operand.vmem [shape: f32[64,256], index: 1, kind: input, shape index: {}]
  %s2 = inlined_call_operand.vmem [shape: f32[2,32,256], index: 2, kind: output, shape index: {}]
  %s3 = sld [smem:[#allocation0]]
  $region18: #{_lambda_.8} parent=0
    _
  %s5 = ssub.s32 1, %s3
  %s6 = scalar_select 0, %s5, %s3
  // Predicated region
  $region2: #{_lambda_.8} parent=0 // pred_check
    _
  $region3: #{_lambda_.8} parent=0 // pred_check_branch
    %8 = sbr.rel (0) target = $region5
  $region4: #{_lambda_.8} parent=0 // pred_region
    _
  $region5: #{_lambda_.8} parent=0 // pred_fallthru
    _
  // Predicated region
  $region6: #{_lambda_.8} parent=0 // pred_check
    _
  $region7: #{_lambda_.8} parent=0 // pred_check_branch
    %10 = sbr.rel (0) target = $region9
  $region8: #{_lambda_.8} parent=0 // pred_region
    _
  $region9: #{_lambda_.8} parent=0 // pred_fallthru
    _
  %v11 = vld [vmem:[%s0] sm:$0xff]
  %v12 = vld [vmem:[%s0 + $0x8] sm:$0xff]
  %v13 = vld [vmem:[%s0 + $0x10] sm:$0xff]
  %v14 = vld [vmem:[%s0 + $0x18] sm:$0xff]
  %v15 = vld [vmem:[%s1] sm:$0xff]
  %v16 = vld [vmem:[%s1 + $0x8] sm:$0xff]
  %v17 = vld [vmem:[%s1 + $0x10] sm:$0xff]
  %v18 = vld [vmem:[%s1 + $0x18] sm:$0xff]
  %v19 = vld [vmem:[%s1 + $0x20] sm:$0xff]
  %v20 = vld [vmem:[%s1 + $0x28] sm:$0xff]
  %v21 = vld [vmem:[%s1 + $0x30] sm:$0xff]
  %v22 = vld [vmem:[%s1 + $0x38] sm:$0xff]
  %v23 = vld [vmem:[%s1 + $0x40] sm:$0xff]
  %v24 = vld [vmem:[%s1 + $0x48] sm:$0xff]
  %v25 = vld [vmem:[%s1 + $0x50] sm:$0xff]
  %v26 = vld [vmem:[%s1 + $0x58] sm:$0xff]
  %v27 = vld [vmem:[%s1 + $0x60] sm:$0xff]
  %v28 = vld [vmem:[%s1 + $0x68] sm:$0xff]
  %v29 = vld [vmem:[%s1 + $0x70] sm:$0xff]
  %v30 = vld [vmem:[%s1 + $0x78] sm:$0xff]
  %vm31 = vcmask 523264
  %v33 = vsel %vm31, %v11, 0
  %v36 = vsel %vm31, %v12, 0
  %v39 = vsel %vm31, %v13, 0
  %v42 = vsel %vm31, %v14, 0
  %44 = vmatprep.subr.mxu0 %v16
  %45 = vmatpush1.msra.mxu0 %v15
  %46 = vmatprep.subr.mxu0 %v18
  %47 = vmatpush1.msra.mxu0 %v17
  %48 = vmatprep.subr.mxu0 %v20
  %49 = vmatpush1.msra.mxu0 %v19
  %50 = vmatprep.subr.mxu0 %v22
  %51 = vmatpush1.msra.mxu0 %v21
  %52 = vmatprep.subr.mxu0 %v24
  %53 = vmatpush1.msra.mxu0 %v23
  %54 = vmatprep.subr.mxu0 %v26
  %55 = vmatpush1.msra.mxu0 %v25
  %56 = vmatprep.subr.mxu0 %v28
  %57 = vmatpush1.msra.mxu0 %v27
  %58 = vmatprep.subr.mxu0 %v30
  %59 = vmatpush1.msra.mxu0 %v29
  %60 = vmatprep.subr.mxu0 0.0
  %61 = vmatpush1.msra.mxu0 0.0
  %62 = vmatprep.subr.mxu0 0.0
  %63 = vmatpush1.msra.mxu0 0.0
  %64 = vmatprep.subr.mxu0 0.0
  %65 = vmatpush1.msra.mxu0 0.0
  %66 = vmatprep.subr.mxu0 0.0
  %67 = vmatpush1.msra.mxu0 0.0
  %68 = vmatprep.subr.mxu0 0.0
  %69 = vmatpush1.msra.mxu0 0.0
  %70 = vmatprep.subr.mxu0 0.0
  %71 = vmatpush1.msra.mxu0 0.0
  %72 = vmatprep.subr.mxu0 0.0
  %73 = vmatpush1.msra.mxu0 0.0
  %74 = vmatprep.subr.mxu0 0.0
  %75 = vmatpush1.msra.mxu0 0.0
  %76 = vmatprep.subr.mxu0 0.0
  %77 = vmatpush1.msra.mxu0 0.0
  %78 = vmatprep.subr.mxu0 0.0
  %79 = vmatpush1.msra.mxu0 0.0
  %80 = vmatprep.subr.mxu0 0.0
  %81 = vmatpush1.msra.mxu0 0.0
  %82 = vmatprep.subr.mxu0 0.0
  %83 = vmatpush1.msra.mxu0 0.0
  %84 = vmatprep.subr.mxu0 0.0
  %85 = vmatpush1.msra.mxu0 0.0
  %86 = vmatprep.subr.mxu0 0.0
  %87 = vmatpush1.msra.mxu0 0.0
  %88 = vmatprep.subr.mxu0 0.0
  %89 = vmatpush1.msra.mxu0 0.0
  %90 = vmatprep.subr.mxu0 0.0
  %91 = vmatpush1.msra.mxu0 0.0
  %92 = vmatprep.subr.mxu0 0.0
  %93 = vmatpush1.msra.mxu0 0.0
  %94 = vmatprep.subr.mxu0 0.0
  %95 = vmatpush1.msra.mxu0 0.0
  %96 = vmatprep.subr.mxu0 0.0
  %97 = vmatpush1.msra.mxu0 0.0
  %98 = vmatprep.subr.mxu0 0.0
  %99 = vmatpush1.msra.mxu0 0.0
  %100 = vmatprep.subr.mxu0 0.0
  %101 = vmatpush1.msra.mxu0 0.0
  %102 = vmatprep.subr.mxu0 0.0
  %103 = vmatpush1.msra.mxu0 0.0
  %104 = vmatprep.subr.mxu0 0.0
  %105 = vmatpush1.msra.mxu0 0.0
  %106 = vmatprep.subr.mxu0 0.0
  %107 = vmatpush1.msra.mxu0 0.0
  %108 = vmatprep.mubr.f32.mxu0 0.0
  %109 = vmatmul.mubr.f32.gmra.mrb[0].mxu0 %v33
  %v110 = vpop.f32.mrb[0].mxu0
  %v111 = vadd.f32 0.0, %v110
  %v112 = vpop.f32.mrb[0].mxu0
  %v113 = vadd.f32 0.0, %v112
  %114 = vmatprep.mubr.f32.mxu0 0.0
  %115 = vmatmul.mubr.f32.gmra.mrb[0].mxu0 %v36
  %v116 = vpop.f32.mrb[0].mxu0
  %v117 = vadd.f32 0.0, %v116
  %v118 = vpop.f32.mrb[0].mxu0
  %v119 = vadd.f32 0.0, %v118
  %120 = vmatprep.mubr.f32.mxu0 0.0
  %121 = vmatmul.mubr.f32.gmra.mrb[0].mxu0 %v39
  %v122 = vpop.f32.mrb[0].mxu0
  %v123 = vadd.f32 0.0, %v122
  %v124 = vpop.f32.mrb[0].mxu0
  %v125 = vadd.f32 0.0, %v124
  %126 = vmatprep.mubr.f32.mxu0 0.0
  %127 = vmatmul.mubr.f32.gmra.mrb[0].mxu0 %v42
  %v128 = vpop.f32.mrb[0].mxu0
  %v129 = vadd.f32 0.0, %v128
  %v130 = vpop.f32.mrb[0].mxu0
  %v131 = vadd.f32 0.0, %v130
  %132 = vdwg.mxu0
  %133 = vst [vmem:[%s2] sm:$0xff] %v111
  %134 = vst [vmem:[%s2 + $0x8] sm:$0xff] %v113
  %135 = vst [vmem:[%s2 + $0x10] sm:$0xff] %v117
  %136 = vst [vmem:[%s2 + $0x18] sm:$0xff] %v119
  %137 = vst [vmem:[%s2 + $0x20] sm:$0xff] %v123
  %138 = vst [vmem:[%s2 + $0x28] sm:$0xff] %v125
  %139 = vst [vmem:[%s2 + $0x30] sm:$0xff] %v129
  %140 = vst [vmem:[%s2 + $0x38] sm:$0xff] %v131
  %s141 = scalar_lea.vmem %s0, 32
  %v142 = vld [vmem:[%s141] sm:$0xff]
  %v143 = vld [vmem:[%s141 + $0x8] sm:$0xff]
  %v144 = vld [vmem:[%s141 + $0x10] sm:$0xff]
  %v145 = vld [vmem:[%s141 + $0x18] sm:$0xff]
  %v146 = vld [vmem:[%s1] sm:$0xff]
  %v147 = vld [vmem:[%s1 + $0x8] sm:$0xff]
  %v148 = vld [vmem:[%s1 + $0x10] sm:$0xff]
  %v149 = vld [vmem:[%s1 + $0x18] sm:$0xff]
  %v150 = vld [vmem:[%s1 + $0x20] sm:$0xff]
  %v151 = vld [vmem:[%s1 + $0x28] sm:$0xff]
  %v152 = vld [vmem:[%s1 + $0x30] sm:$0xff]
  %v153 = vld [vmem:[%s1 + $0x38] sm:$0xff]
  %v154 = vld [vmem:[%s1 + $0x40] sm:$0xff]
  %v155 = vld [vmem:[%s1 + $0x48] sm:$0xff]
  %v156 = vld [vmem:[%s1 + $0x50] sm:$0xff]
  %v157 = vld [vmem:[%s1 + $0x58] sm:$0xff]
  %v158 = vld [vmem:[%s1 + $0x60] sm:$0xff]
  %v159 = vld [vmem:[%s1 + $0x68] sm:$0xff]
  %v160 = vld [vmem:[%s1 + $0x70] sm:$0xff]
  %v161 = vld [vmem:[%s1 + $0x78] sm:$0xff]
  %v163 = vsel %vm31, %v142, 0
  %v166 = vsel %vm31, %v143, 0
  %v169 = vsel %vm31, %v144, 0
  %v172 = vsel %vm31, %v145, 0
  %174 = vmatprep.subr.mxu0 %v147
  %175 = vmatpush1.msra.mxu0 %v146
  %176 = vmatprep.subr.mxu0 %v149
  %177 = vmatpush1.msra.mxu0 %v148
  %178 = vmatprep.subr.mxu0 %v151
  %179 = vmatpush1.msra.mxu0 %v150
  %180 = vmatprep.subr.mxu0 %v153
  %181 = vmatpush1.msra.mxu0 %v152
  %182 = vmatprep.subr.mxu0 %v155
  %183 = vmatpush1.msra.mxu0 %v154
  %184 = vmatprep.subr.mxu0 %v157
  %185 = vmatpush1.msra.mxu0 %v156
  %186 = vmatprep.subr.mxu0 %v159
  %187 = vmatpush1.msra.mxu0 %v158
  %188 = vmatprep.subr.mxu0 %v161
  %189 = vmatpush1.msra.mxu0 %v160
  %190 = vmatprep.subr.mxu0 0.0
  %191 = vmatpush1.msra.mxu0 0.0
  %192 = vmatprep.subr.mxu0 0.0
  %193 = vmatpush1.msra.mxu0 0.0
  %194 = vmatprep.subr.mxu0 0.0
  %195 = vmatpush1.msra.mxu0 0.0
  %196 = vmatprep.subr.mxu0 0.0
  %197 = vmatpush1.msra.mxu0 0.0
  %198 = vmatprep.subr.mxu0 0.0
  %199 = vmatpush1.msra.mxu0 0.0
  %200 = vmatprep.subr.mxu0 0.0
  %201 = vmatpush1.msra.mxu0 0.0
  %202 = vmatprep.subr.mxu0 0.0
  %203 = vmatpush1.msra.mxu0 0.0
  %204 = vmatprep.subr.mxu0 0.0
  %205 = vmatpush1.msra.mxu0 0.0
  %206 = vmatprep.subr.mxu0 0.0
  %207 = vmatpush1.msra.mxu0 0.0
  %208 = vmatprep.subr.mxu0 0.0
  %209 = vmatpush1.msra.mxu0 0.0
  %210 = vmatprep.subr.mxu0 0.0
  %211 = vmatpush1.msra.mxu0 0.0
  %212 = vmatprep.subr.mxu0 0.0
  %213 = vmatpush1.msra.mxu0 0.0
  %214 = vmatprep.subr.mxu0 0.0
  %215 = vmatpush1.msra.mxu0 0.0
  %216 = vmatprep.subr.mxu0 0.0
  %217 = vmatpush1.msra.mxu0 0.0
  %218 = vmatprep.subr.mxu0 0.0
  %219 = vmatpush1.msra.mxu0 0.0
  %220 = vmatprep.subr.mxu0 0.0
  %221 = vmatpush1.msra.mxu0 0.0
  %222 = vmatprep.subr.mxu0 0.0
  %223 = vmatpush1.msra.mxu0 0.0
  %224 = vmatprep.subr.mxu0 0.0
  %225 = vmatpush1.msra.mxu0 0.0
  %226 = vmatprep.subr.mxu0 0.0
  %227 = vmatpush1.msra.mxu0 0.0
  %228 = vmatprep.subr.mxu0 0.0
  %229 = vmatpush1.msra.mxu0 0.0
  %230 = vmatprep.subr.mxu0 0.0
  %231 = vmatpush1.msra.mxu0 0.0
  %232 = vmatprep.subr.mxu0 0.0
  %233 = vmatpush1.msra.mxu0 0.0
  %234 = vmatprep.subr.mxu0 0.0
  %235 = vmatpush1.msra.mxu0 0.0
  %236 = vmatprep.subr.mxu0 0.0
  %237 = vmatpush1.msra.mxu0 0.0
  %238 = vmatprep.mubr.f32.mxu0 0.0
  %239 = vmatmul.mubr.f32.gmra.mrb[0].mxu0 %v163
  %v240 = vpop.f32.mrb[0].mxu0
  %v241 = vadd.f32 0.0, %v240
  %v242 = vpop.f32.mrb[0].mxu0
  %v243 = vadd.f32 0.0, %v242
  %244 = vmatprep.mubr.f32.mxu0 0.0
  %245 = vmatmul.mubr.f32.gmra.mrb[0].mxu0 %v166
  %v246 = vpop.f32.mrb[0].mxu0
  %v247 = vadd.f32 0.0, %v246
  %v248 = vpop.f32.mrb[0].mxu0
  %v249 = vadd.f32 0.0, %v248
  %250 = vmatprep.mubr.f32.mxu0 0.0
  %251 = vmatmul.mubr.f32.gmra.mrb[0].mxu0 %v169
  %v252 = vpop.f32.mrb[0].mxu0
  %v253 = vadd.f32 0.0, %v252
  %v254 = vpop.f32.mrb[0].mxu0
  %v255 = vadd.f32 0.0, %v254
  %256 = vmatprep.mubr.f32.mxu0 0.0
  %257 = vmatmul.mubr.f32.gmra.mrb[0].mxu0 %v172
  %v258 = vpop.f32.mrb[0].mxu0
  %v259 = vadd.f32 0.0, %v258
  %v260 = vpop.f32.mrb[0].mxu0
  %v261 = vadd.f32 0.0, %v260
  %262 = vdwg.mxu0
  %s263 = scalar_lea.vmem %s2, 64
  %264 = vst [vmem:[%s263] sm:$0xff] %v241
  %265 = vst [vmem:[%s263 + $0x8] sm:$0xff] %v243
  %266 = vst [vmem:[%s263 + $0x10] sm:$0xff] %v247
  %267 = vst [vmem:[%s263 + $0x18] sm:$0xff] %v249
  %268 = vst [vmem:[%s263 + $0x20] sm:$0xff] %v253
  %269 = vst [vmem:[%s263 + $0x28] sm:$0xff] %v255
  %270 = vst [vmem:[%s263 + $0x30] sm:$0xff] %v259
  %271 = vst [vmem:[%s263 + $0x38] sm:$0xff] %v261
  // Predicated region
  $region10: #{_lambda_.8} parent=0 // pred_check
    _
  $region11: #{_lambda_.8} parent=0 // pred_check_branch
    %273 = sbr.rel (0) target = $region13
  $region12: #{_lambda_.8} parent=0 // pred_region
    _
  $region13: #{_lambda_.8} parent=0 // pred_fallthru
    _
  // Predicated region
  $region14: #{_lambda_.8} parent=0 // pred_check
    _
  $region15: #{_lambda_.8} parent=0 // pred_check_branch
    %275 = sbr.rel (0) target = $region17
  $region16: #{_lambda_.8} parent=0 // pred_region
    _
  $region17: #{_lambda_.8} parent=0 // pred_fallthru
    _

// kernel: _lambda_.7
$region0: #{_lambda_.7}
  #allocation0 [shape = 'u32[]', space=smem, size = 0x4, offset = 0x4, fixed_abs, tag = 'smem constant byte address 0x4 - core index']
  #allocation1 [shape = 'u32[144,128]{1,0:T(1,128)}', space=vmem, size = 0x12000, scoped, tag = 'internal scratch']
  %s0 = inlined_call_operand.vmem [shape: f32[2,32,64], index: 0, kind: input, shape index: {}]
  %s1 = inlined_call_operand.vmem [shape: f32[32,2], index: 1, kind: input, shape index: {}]
  %s2 = inlined_call_operand.vmem [shape: f32[32,32], index: 2, kind: input, shape index: {}]
  %s3 = inlined_call_operand.vmem [shape: f32[32,1], index: 3, kind: input, shape index: {}]
  %s4 = inlined_call_operand.vmem [shape: f32[3,32], index: 4, kind: input, shape index: {}]
  %s5 = inlined_call_operand.vmem [shape: f32[3,32], index: 5, kind: input, shape index: {}]
  %s6 = inlined_call_operand.vmem [shape: f32[3,1], index: 6, kind: input, shape index: {}]
  %s7 = inlined_call_operand.vmem [shape: f32[2,3,64], index: 7, kind: output, shape index: {}]
  %s8 = sld [smem:[#allocation0]]
  $region38: #{_lambda_.7} parent=0
    _
  %s10 = ssub.s32 1, %s8
  %s11 = scalar_select 0, %s10, %s8
  // Predicated region
  $region2: #{_lambda_.7} parent=0 // pred_check
    _
  $region3: #{_lambda_.7} parent=0 // pred_check_branch
    %13 = sbr.rel (0) target = $region5
  $region4: #{_lambda_.7} parent=0 // pred_region
    _
  $region5: #{_lambda_.7} parent=0 // pred_fallthru
    _
  // Predicated region
  $region6: #{_lambda_.7} parent=0 // pred_check
    _
  $region7: #{_lambda_.7} parent=0 // pred_check_branch
    %15 = sbr.rel (0) target = $region9
  $region8: #{_lambda_.7} parent=0 // pred_region
    _
  $region9: #{_lambda_.7} parent=0 // pred_fallthru
    _
  // Predicated region
  $region10: #{_lambda_.7} parent=0 // pred_check
    _
  $region11: #{_lambda_.7} parent=0 // pred_check_branch
    %17 = sbr.rel (0) target = $region13
  $region12: #{_lambda_.7} parent=0 // pred_region
    _
  $region13: #{_lambda_.7} parent=0 // pred_fallthru
    _
  // Predicated region
  $region14: #{_lambda_.7} parent=0 // pred_check
    _
  $region15: #{_lambda_.7} parent=0 // pred_check_branch
    %19 = sbr.rel (0) target = $region17
  $region16: #{_lambda_.7} parent=0 // pred_region
    _
  $region17: #{_lambda_.7} parent=0 // pred_fallthru
    _
  // Predicated region
  $region18: #{_lambda_.7} parent=0 // pred_check
    _
  $region19: #{_lambda_.7} parent=0 // pred_check_branch
    %21 = sbr.rel (0) target = $region21
  $region20: #{_lambda_.7} parent=0 // pred_region
    _
  $region21: #{_lambda_.7} parent=0 // pred_fallthru
    _
  // Predicated region
  $region22: #{_lambda_.7} parent=0 // pred_check
    _
  $region23: #{_lambda_.7} parent=0 // pred_check_branch
    %23 = sbr.rel (0) target = $region25
  $region24: #{_lambda_.7} parent=0 // pred_region
    _
  $region25: #{_lambda_.7} parent=0 // pred_fallthru
    _
  // Predicated region
  $region26: #{_lambda_.7} parent=0 // pred_check
    _
  $region27: #{_lambda_.7} parent=0 // pred_check_branch
    %25 = sbr.rel (0) target = $region29
  $region28: #{_lambda_.7} parent=0 // pred_region
    _
  $region29: #{_lambda_.7} parent=0 // pred_fallthru
    _
  %v26 = vld [vmem:[%s2] sm:$0xff]
  %v27 = vld [vmem:[%s2 + $0x8] sm:$0xff]
  %v28 = vld [vmem:[%s2 + $0x10] sm:$0xff]
  %v29 = vld [vmem:[%s2 + $0x18] sm:$0xff]
  %v30 = vld [vmem:[%s1] sm:$0xff]
  %v31 = vld [vmem:[%s1 + $0x8] sm:$0xff]
  %v32 = vld [vmem:[%s1 + $0x10] sm:$0xff]
  %v33 = vld [vmem:[%s1 + $0x18] sm:$0xff]
  %vm34 = vcmask 261120
  %v36 = vsel %vm34, %v26, 0
  %v39 = vsel %vm34, %v27, 0
  %v42 = vsel %vm34, %v28, 0
  %v45 = vsel %vm34, %v29, 0
  %47 = vmatprep.subr.mxu0 0.0
  %48 = vmatpush1.msra.mxu0 %v30
  %49 = vmatprep.subr.mxu0 0.0
  %50 = vmatpush1.msra.mxu0 %v31
  %51 = vmatprep.subr.mxu0 0.0
  %52 = vmatpush1.msra.mxu0 %v32
  %53 = vmatprep.subr.mxu0 0.0
  %54 = vmatpush1.msra.mxu0 %v33
  %55 = vmatprep.subr.mxu0 0.0
  %56 = vmatpush1.msra.mxu0 0.0
  %57 = vmatprep.subr.mxu0 0.0
  %58 = vmatpush1.msra.mxu0 0.0
  %59 = vmatprep.subr.mxu0 0.0
  %60 = vmatpush1.msra.mxu0 0.0
  %61 = vmatprep.subr.mxu0 0.0
  %62 = vmatpush1.msra.mxu0 0.0
  %63 = vmatprep.subr.mxu0 0.0
  %64 = vmatpush1.msra.mxu0 0.0
  %65 = vmatprep.subr.mxu0 0.0
  %66 = vmatpush1.msra.mxu0 0.0
  %67 = vmatprep.subr.mxu0 0.0
  %68 = vmatpush1.msra.mxu0 0.0
  %69 = vmatprep.subr.mxu0 0.0
  %70 = vmatpush1.msra.mxu0 0.0
  %71 = vmatprep.subr.mxu0 0.0
  %72 = vmatpush1.msra.mxu0 0.0
  %73 = vmatprep.subr.mxu0 0.0
  %74 = vmatpush1.msra.mxu0 0.0
  %75 = vmatprep.subr.mxu0 0.0
  %76 = vmatpush1.msra.mxu0 0.0
  %77 = vmatprep.subr.mxu0 0.0
  %78 = vmatpush1.msra.mxu0 0.0
  %79 = vmatprep.subr.mxu0 0.0
  %80 = vmatpush1.msra.mxu0 0.0
  %81 = vmatprep.subr.mxu0 0.0
  %82 = vmatpush1.msra.mxu0 0.0
  %83 = vmatprep.subr.mxu0 0.0
  %84 = vmatpush1.msra.mxu0 0.0
  %85 = vmatprep.subr.mxu0 0.0
  %86 = vmatpush1.msra.mxu0 0.0
  %87 = vmatprep.subr.mxu0 0.0
  %88 = vmatpush1.msra.mxu0 0.0
  %89 = vmatprep.subr.mxu0 0.0
  %90 = vmatpush1.msra.mxu0 0.0
  %91 = vmatprep.subr.mxu0 0.0
  %92 = vmatpush1.msra.mxu0 0.0
  %93 = vmatprep.subr.mxu0 0.0
  %94 = vmatpush1.msra.mxu0 0.0
  %95 = vmatprep.subr.mxu0 0.0
  %96 = vmatpush1.msra.mxu0 0.0
  %97 = vmatprep.subr.mxu0 0.0
  %98 = vmatpush1.msra.mxu0 0.0
  %99 = vmatprep.subr.mxu0 0.0
  %100 = vmatpush1.msra.mxu0 0.0
  %101 = vmatprep.subr.mxu0 0.0
  %102 = vmatpush1.msra.mxu0 0.0
  %103 = vmatprep.subr.mxu0 0.0
  %104 = vmatpush1.msra.mxu0 0.0
  %105 = vmatprep.subr.mxu0 0.0
  %106 = vmatpush1.msra.mxu0 0.0
  %107 = vmatprep.subr.mxu0 0.0
  %108 = vmatpush1.msra.mxu0 0.0
  %109 = vmatprep.subr.mxu0 0.0
  %110 = vmatpush1.msra.mxu0 0.0
  %111 = vmatprep.mubr.f32.mxu0 0.0
  %112 = vmatmul.mubr.f32.gmra.mrb[0].mxu0 %v36
  %v113 = vpop.f32.mrb[0].mxu0
  %v114 = vadd.f32 0.0, %v113
  %v115 = vpop.f32.mrb[0].mxu0
  %116 = vmatprep.mubr.f32.mxu0 0.0
  %117 = vmatmul.mubr.f32.gmra.mrb[0].mxu0 %v39
  %v118 = vpop.f32.mrb[0].mxu0
  %v119 = vadd.f32 0.0, %v118
  %v120 = vpop.f32.mrb[0].mxu0
  %121 = vmatprep.mubr.f32.mxu0 0.0
  %122 = vmatmul.mubr.f32.gmra.mrb[0].mxu0 %v42
  %v123 = vpop.f32.mrb[0].mxu0
  %v124 = vadd.f32 0.0, %v123
  %v125 = vpop.f32.mrb[0].mxu0
  %126 = vmatprep.mubr.f32.mxu0 0.0
  %127 = vmatmul.mubr.f32.gmra.mrb[0].mxu0 %v45
  %v128 = vpop.f32.mrb[0].mxu0
  %v129 = vadd.f32 0.0, %v128
  %v130 = vpop.f32.mrb[0].mxu0
  %131 = vdwg.mxu0
  %v132 = vmul.f32 %v114, 0.17677669
  %v133 = vmul.f32 %v119, 0.17677669
  %v134 = vmul.f32 %v124, 0.17677669
  %v135 = vmul.f32 %v129, 0.17677669
  %v136 = vld [vmem:[%s3] sm:$0xff]
  %v137 = vld [vmem:[%s3 + $0x8] sm:$0xff]
  %v138 = vld [vmem:[%s3 + $0x10] sm:$0xff]
  %v139 = vld [vmem:[%s3 + $0x18] sm:$0xff]
  %141 = vset.pattern.permute.xlu0 0
  %142 = vperm.xlu0 %141, %v136
  %v143 = vpop.permute.xlu0 %142
  %146 = vset.pattern.permute.xlu0 0
  %147 = vperm.xlu0 %146, %v137
  %v148 = vpop.permute.xlu0 %147
  %151 = vset.pattern.permute.xlu0 0
  %152 = vperm.xlu0 %151, %v138
  %v153 = vpop.permute.xlu0 %152
  %156 = vset.pattern.permute.xlu0 0
  %157 = vperm.xlu0 %156, %v139
  %v158 = vpop.permute.xlu0 %157
  %v160 = vadd.f32 %v132, %v143
  %v161 = vadd.f32 %v133, %v148
  %v162 = vadd.f32 %v134, %v153
  %v163 = vadd.f32 %v135, %v158
  %v164 = vld [vmem:[%s5] sm:$0x7]
  %v165 = vmul.f32 %v160, %v160
  %v166 = vmul.f32 %v161, %v161
  %v167 = vmul.f32 %v162, %v162
  %v168 = vmul.f32 %v163, %v163
  %v170 = vsel %vm34, %v164, 0
  %172 = vmatprep.subr.mxu0 0.0
  %173 = vmatpush1.msra.mxu0 %v165
  %174 = vmatprep.subr.mxu0 0.0
  %175 = vmatpush1.msra.mxu0 %v166
  %176 = vmatprep.subr.mxu0 0.0
  %177 = vmatpush1.msra.mxu0 %v167
  %178 = vmatprep.subr.mxu0 0.0
  %179 = vmatpush1.msra.mxu0 %v168
  %180 = vmatprep.subr.mxu0 0.0
  %181 = vmatpush1.msra.mxu0 0.0
  %182 = vmatprep.subr.mxu0 0.0
  %183 = vmatpush1.msra.mxu0 0.0
  %184 = vmatprep.subr.mxu0 0.0
  %185 = vmatpush1.msra.mxu0 0.0
  %186 = vmatprep.subr.mxu0 0.0
  %187 = vmatpush1.msra.mxu0 0.0
  %188 = vmatprep.subr.mxu0 0.0
  %189 = vmatpush1.msra.mxu0 0.0
  %190 = vmatprep.subr.mxu0 0.0
  %191 = vmatpush1.msra.mxu0 0.0
  %192 = vmatprep.subr.mxu0 0.0
  %193 = vmatpush1.msra.mxu0 0.0
  %194 = vmatprep.subr.mxu0 0.0
  %195 = vmatpush1.msra.mxu0 0.0
  %196 = vmatprep.subr.mxu0 0.0
  %197 = vmatpush1.msra.mxu0 0.0
  %198 = vmatprep.subr.mxu0 0.0
  %199 = vmatpush1.msra.mxu0 0.0
  %200 = vmatprep.subr.mxu0 0.0
  %201 = vmatpush1.msra.mxu0 0.0
  %202 = vmatprep.subr.mxu0 0.0
  %203 = vmatpush1.msra.mxu0 0.0
  %204 = vmatprep.subr.mxu0 0.0
  %205 = vmatpush1.msra.mxu0 0.0
  %206 = vmatprep.subr.mxu0 0.0
  %207 = vmatpush1.msra.mxu0 0.0
  %208 = vmatprep.subr.mxu0 0.0
  %209 = vmatpush1.msra.mxu0 0.0
  %210 = vmatprep.subr.mxu0 0.0
  %211 = vmatpush1.msra.mxu0 0.0
  %212 = vmatprep.subr.mxu0 0.0
  %213 = vmatpush1.msra.mxu0 0.0
  %214 = vmatprep.subr.mxu0 0.0
  %215 = vmatpush1.msra.mxu0 0.0
  %216 = vmatprep.subr.mxu0 0.0
  %217 = vmatpush1.msra.mxu0 0.0
  %218 = vmatprep.subr.mxu0 0.0
  %219 = vmatpush1.msra.mxu0 0.0
  %220 = vmatprep.subr.mxu0 0.0
  %221 = vmatpush1.msra.mxu0 0.0
  %222 = vmatprep.subr.mxu0 0.0
  %223 = vmatpush1.msra.mxu0 0.0
  %224 = vmatprep.subr.mxu0 0.0
  %225 = vmatpush1.msra.mxu0 0.0
  %226 = vmatprep.subr.mxu0 0.0
  %227 = vmatpush1.msra.mxu0 0.0
  %228 = vmatprep.subr.mxu0 0.0
  %229 = vmatpush1.msra.mxu0 0.0
  %230 = vmatprep.subr.mxu0 0.0
  %231 = vmatpush1.msra.mxu0 0.0
  %232 = vmatprep.subr.mxu0 0.0
  %233 = vmatpush1.msra.mxu0 0.0
  %234 = vmatprep.subr.mxu0 0.0
  %235 = vmatpush1.msra.mxu0 0.0
  %236 = vmatprep.mubr.f32.mxu0 0.0
  %237 = vmatmul.mubr.f32.gmra.mrb[0].mxu0 %v170
  %v238 = vpop.f32.mrb[0].mxu0
  %v239 = vadd.f32 1e-08, %v238
  %v240 = vpop.f32.mrb[0].mxu0
  %241 = vdwg.mxu0
  %v242 = vrsqrt.pop %v239
  %v243 = vld [vmem:[%s0] sm:$0xff]
  %v244 = vld [vmem:[%s0 + $0x8] sm:$0xff]
  %v245 = vld [vmem:[%s0 + $0x10] sm:$0xff]
  %v246 = vld [vmem:[%s0 + $0x18] sm:$0xff]
  %248 = vset.pattern.permute.xlu0 0
  %249 = vperm.xlu0 %248, %v160
  %v250 = vpop.permute.xlu0 %249
  %253 = vset.pattern.permute.xlu0 0
  %254 = vperm.xlu0 %253, %v161
  %v255 = vpop.permute.xlu0 %254
  %258 = vset.pattern.permute.xlu0 0
  %259 = vperm.xlu0 %258, %v162
  %v260 = vpop.permute.xlu0 %259
  %263 = vset.pattern.permute.xlu0 0
  %264 = vperm.xlu0 %263, %v163
  %v265 = vpop.permute.xlu0 %264
  %v267 = vmul.f32 %v243, %v250
  %v268 = vmul.f32 %v244, %v255
  %v269 = vmul.f32 %v245, %v260
  %v270 = vmul.f32 %v246, %v265
  %v271 = vld [vmem:[%s4] sm:$0x7]
  %v273 = vsel %vm34, %v271, 0
  %275 = vmatprep.subr.mxu0 0.0
  %276 = vmatpush1.msra.mxu0 %v267
  %277 = vmatprep.subr.mxu0 0.0
  %278 = vmatpush1.msra.mxu0 %v268
  %279 = vmatprep.subr.mxu0 0.0
  %280 = vmatpush1.msra.mxu0 %v269
  %281 = vmatprep.subr.mxu0 0.0
  %282 = vmatpush1.msra.mxu0 %v270
  %283 = vmatprep.subr.mxu0 0.0
  %284 = vmatpush1.msra.mxu0 0.0
  %285 = vmatprep.subr.mxu0 0.0
  %286 = vmatpush1.msra.mxu0 0.0
  %287 = vmatprep.subr.mxu0 0.0
  %288 = vmatpush1.msra.mxu0 0.0
  %289 = vmatprep.subr.mxu0 0.0
  %290 = vmatpush1.msra.mxu0 0.0
  %291 = vmatprep.subr.mxu0 0.0
  %292 = vmatpush1.msra.mxu0 0.0
  %293 = vmatprep.subr.mxu0 0.0
  %294 = vmatpush1.msra.mxu0 0.0
  %295 = vmatprep.subr.mxu0 0.0
  %296 = vmatpush1.msra.mxu0 0.0
  %297 = vmatprep.subr.mxu0 0.0
  %298 = vmatpush1.msra.mxu0 0.0
  %299 = vmatprep.subr.mxu0 0.0
  %300 = vmatpush1.msra.mxu0 0.0
  %301 = vmatprep.subr.mxu0 0.0
  %302 = vmatpush1.msra.mxu0 0.0
  %303 = vmatprep.subr.mxu0 0.0
  %304 = vmatpush1.msra.mxu0 0.0
  %305 = vmatprep.subr.mxu0 0.0
  %306 = vmatpush1.msra.mxu0 0.0
  %307 = vmatprep.subr.mxu0 0.0
  %308 = vmatpush1.msra.mxu0 0.0
  %309 = vmatprep.subr.mxu0 0.0
  %310 = vmatpush1.msra.mxu0 0.0
  %311 = vmatprep.subr.mxu0 0.0
  %312 = vmatpush1.msra.mxu0 0.0
  %313 = vmatprep.subr.mxu0 0.0
  %314 = vmatpush1.msra.mxu0 0.0
  %315 = vmatprep.subr.mxu0 0.0
  %316 = vmatpush1.msra.mxu0 0.0
  %317 = vmatprep.subr.mxu0 0.0
  %318 = vmatpush1.msra.mxu0 0.0
  %319 = vmatprep.subr.mxu0 0.0
  %320 = vmatpush1.msra.mxu0 0.0
  %321 = vmatprep.subr.mxu0 0.0
  %322 = vmatpush1.msra.mxu0 0.0
  %323 = vmatprep.subr.mxu0 0.0
  %324 = vmatpush1.msra.mxu0 0.0
  %325 = vmatprep.subr.mxu0 0.0
  %326 = vmatpush1.msra.mxu0 0.0
  %327 = vmatprep.subr.mxu0 0.0
  %328 = vmatpush1.msra.mxu0 0.0
  %329 = vmatprep.subr.mxu0 0.0
  %330 = vmatpush1.msra.mxu0 0.0
  %331 = vmatprep.subr.mxu0 0.0
  %332 = vmatpush1.msra.mxu0 0.0
  %333 = vmatprep.subr.mxu0 0.0
  %334 = vmatpush1.msra.mxu0 0.0
  %335 = vmatprep.subr.mxu0 0.0
  %336 = vmatpush1.msra.mxu0 0.0
  %337 = vmatprep.subr.mxu0 0.0
  %338 = vmatpush1.msra.mxu0 0.0
  %339 = vmatprep.mubr.f32.mxu0 0.0
  %340 = vmatmul.mubr.f32.gmra.mrb[0].mxu0 %v273
  %v341 = vpop.f32.mrb[0].mxu0
  %v342 = vadd.f32 0.0, %v341
  %v343 = vpop.f32.mrb[0].mxu0
  %344 = vdwg.mxu0
  %346 = vset.pattern.permute.xlu0 0
  %347 = vperm.xlu0 %346, %v242
  %v348 = vpop.permute.xlu0 %347
  %v350 = vmul.f32 %v342, %v348
  %v351 = vld [vmem:[%s6] sm:$0x7]
  %353 = vset.pattern.permute.xlu0 0
  %354 = vperm.xlu0 %353, %v351
  %v355 = vpop.permute.xlu0 %354
  %v357 = vadd.f32 %v350, %v355
  %vm358 = vcmask 518144
  %359 = vst.msk [vmem:[%s7] sm:$0x7] %vm358, %v357
  %s360 = scalar_lea.vmem %s0, 32
  %v361 = vld [vmem:[%s360] sm:$0xff]
  %v362 = vld [vmem:[%s360 + $0x8] sm:$0xff]
  %v363 = vld [vmem:[%s360 + $0x10] sm:$0xff]
  %v364 = vld [vmem:[%s360 + $0x18] sm:$0xff]
  %365 = vset.pattern.permute.xlu0 1
  %366 = vperm.xlu0 %365, %v160
  %v367 = vpop.permute.xlu0 %366
  %369 = vset.pattern.permute.xlu0 1
  %370 = vperm.xlu0 %369, %v161
  %v371 = vpop.permute.xlu0 %370
  %373 = vset.pattern.permute.xlu0 1
  %374 = vperm.xlu0 %373, %v162
  %v375 = vpop.permute.xlu0 %374
  %377 = vset.pattern.permute.xlu0 1
  %378 = vperm.xlu0 %377, %v163
  %v379 = vpop.permute.xlu0 %378
  %v381 = vmul.f32 %v361, %v367
  %v382 = vmul.f32 %v362, %v371
  %v383 = vmul.f32 %v363, %v375
  %v384 = vmul.f32 %v364, %v379
  %v385 = vld [vmem:[%s4] sm:$0x7]
  %v387 = vsel %vm34, %v385, 0
  %389 = vmatprep.subr.mxu0 0.0
  %390 = vmatpush1.msra.mxu0 %v381
  %391 = vmatprep.subr.mxu0 0.0
  %392 = vmatpush1.msra.mxu0 %v382
  %393 = vmatprep.subr.mxu0 0.0
  %394 = vmatpush1.msra.mxu0 %v383
  %395 = vmatprep.subr.mxu0 0.0
  %396 = vmatpush1.msra.mxu0 %v384
  %397 = vmatprep.subr.mxu0 0.0
  %398 = vmatpush1.msra.mxu0 0.0
  %399 = vmatprep.subr.mxu0 0.0
  %400 = vmatpush1.msra.mxu0 0.0
  %401 = vmatprep.subr.mxu0 0.0
  %402 = vmatpush1.msra.mxu0 0.0
  %403 = vmatprep.subr.mxu0 0.0
  %404 = vmatpush1.msra.mxu0 0.0
  %405 = vmatprep.subr.mxu0 0.0
  %406 = vmatpush1.msra.mxu0 0.0
  %407 = vmatprep.subr.mxu0 0.0
  %408 = vmatpush1.msra.mxu0 0.0
  %409 = vmatprep.subr.mxu0 0.0
  %410 = vmatpush1.msra.mxu0 0.0
  %411 = vmatprep.subr.mxu0 0.0
  %412 = vmatpush1.msra.mxu0 0.0
  %413 = vmatprep.subr.mxu0 0.0
  %414 = vmatpush1.msra.mxu0 0.0
  %415 = vmatprep.subr.mxu0 0.0
  %416 = vmatpush1.msra.mxu0 0.0
  %417 = vmatprep.subr.mxu0 0.0
  %418 = vmatpush1.msra.mxu0 0.0
  %419 = vmatprep.subr.mxu0 0.0
  %420 = vmatpush1.msra.mxu0 0.0
  %421 = vmatprep.subr.mxu0 0.0
  %422 = vmatpush1.msra.mxu0 0.0
  %423 = vmatprep.subr.mxu0 0.0
  %424 = vmatpush1.msra.mxu0 0.0
  %425 = vmatprep.subr.mxu0 0.0
  %426 = vmatpush1.msra.mxu0 0.0
  %427 = vmatprep.subr.mxu0 0.0
  %428 = vmatpush1.msra.mxu0 0.0
  %429 = vmatprep.subr.mxu0 0.0
  %430 = vmatpush1.msra.mxu0 0.0
  %431 = vmatprep.subr.mxu0 0.0
  %432 = vmatpush1.msra.mxu0 0.0
  %433 = vmatprep.subr.mxu0 0.0
  %434 = vmatpush1.msra.mxu0 0.0
  %435 = vmatprep.subr.mxu0 0.0
  %436 = vmatpush1.msra.mxu0 0.0
  %437 = vmatprep.subr.mxu0 0.0
  %438 = vmatpush1.msra.mxu0 0.0
  %439 = vmatprep.subr.mxu0 0.0
  %440 = vmatpush1.msra.mxu0 0.0
  %441 = vmatprep.subr.mxu0 0.0
  %442 = vmatpush1.msra.mxu0 0.0
  %443 = vmatprep.subr.mxu0 0.0
  %444 = vmatpush1.msra.mxu0 0.0
  %445 = vmatprep.subr.mxu0 0.0
  %446 = vmatpush1.msra.mxu0 0.0
  %447 = vmatprep.subr.mxu0 0.0
  %448 = vmatpush1.msra.mxu0 0.0
  %449 = vmatprep.subr.mxu0 0.0
  %450 = vmatpush1.msra.mxu0 0.0
  %451 = vmatprep.subr.mxu0 0.0
  %452 = vmatpush1.msra.mxu0 0.0
  %453 = vmatprep.mubr.f32.mxu0 0.0
  %454 = vmatmul.mubr.f32.gmra.mrb[0].mxu0 %v387
  %v455 = vpop.f32.mrb[0].mxu0
  %v456 = vadd.f32 0.0, %v455
  %v457 = vpop.f32.mrb[0].mxu0
  %458 = vdwg.mxu0
  %459 = vset.pattern.permute.xlu0 1
  %460 = vperm.xlu0 %459, %v242
  %v461 = vpop.permute.xlu0 %460
  %v463 = vmul.f32 %v456, %v461
  %v464 = vld [vmem:[%s6] sm:$0x7]
  %466 = vset.pattern.permute.xlu0 0
  %467 = vperm.xlu0 %466, %v464
  %v468 = vpop.permute.xlu0 %467
  %v470 = vadd.f32 %v463, %v468
  %s471 = scalar_lea.vmem %s7, 4
  %472 = vst.msk [vmem:[%s471] sm:$0x7] %vm358, %v470
  // Predicated region
  $region30: #{_lambda_.7} parent=0 // pred_check
    _
  $region31: #{_lambda_.7} parent=0 // pred_check_branch
    %474 = sbr.rel (0) target = $region33
  $region32: #{_lambda_.7} parent=0 // pred_region
    _
  $region33: #{_lambda_.7} parent=0 // pred_fallthru
    _
  // Predicated region
  $region34: #{_lambda_.7} parent=0 // pred_check
    _
  $region35: #{_lambda_.7} parent=0 // pred_check_branch
    %476 = sbr.rel (0) target = $region37
  $region36: #{_lambda_.7} parent=0 // pred_region
    _
  $region37: #{_lambda_.7} parent=0 // pred_fallthru
    _

// kernel: _lambda_.11
$region0: #{_lambda_.11}
  #allocation0 [shape = 'u32[]', space=smem, size = 0x4, offset = 0x4, fixed_abs, tag = 'smem constant byte address 0x4 - core index']
  #allocation1 [shape = 'u32[144,128]{1,0:T(1,128)}', space=vmem, size = 0x12000, scoped, tag = 'internal scratch']
  %s0 = inlined_call_operand.vmem [shape: f32[2,32,256], index: 0, kind: input, shape index: {}]
  %s1 = inlined_call_operand.vmem [shape: f32[32,2], index: 1, kind: input, shape index: {}]
  %s2 = inlined_call_operand.vmem [shape: f32[32,32], index: 2, kind: input, shape index: {}]
  %s3 = inlined_call_operand.vmem [shape: f32[32,1], index: 3, kind: input, shape index: {}]
  %s4 = inlined_call_operand.vmem [shape: f32[3,32], index: 4, kind: input, shape index: {}]
  %s5 = inlined_call_operand.vmem [shape: f32[3,32], index: 5, kind: input, shape index: {}]
  %s6 = inlined_call_operand.vmem [shape: f32[3,1], index: 6, kind: input, shape index: {}]
  %s7 = inlined_call_operand.vmem [shape: f32[2,3,256], index: 7, kind: output, shape index: {}]
  %s8 = sld [smem:[#allocation0]]
  $region38: #{_lambda_.11} parent=0
    _
  %s10 = ssub.s32 1, %s8
  %s11 = scalar_select 0, %s10, %s8
  // Predicated region
  $region2: #{_lambda_.11} parent=0 // pred_check
    _
  $region3: #{_lambda_.11} parent=0 // pred_check_branch
    %13 = sbr.rel (0) target = $region5
  $region4: #{_lambda_.11} parent=0 // pred_region
    _
  $region5: #{_lambda_.11} parent=0 // pred_fallthru
    _
  // Predicated region
  $region6: #{_lambda_.11} parent=0 // pred_check
    _
  $region7: #{_lambda_.11} parent=0 // pred_check_branch
    %15 = sbr.rel (0) target = $region9
  $region8: #{_lambda_.11} parent=0 // pred_region
    _
  $region9: #{_lambda_.11} parent=0 // pred_fallthru
    _
  // Predicated region
  $region10: #{_lambda_.11} parent=0 // pred_check
    _
  $region11: #{_lambda_.11} parent=0 // pred_check_branch
    %17 = sbr.rel (0) target = $region13
  $region12: #{_lambda_.11} parent=0 // pred_region
    _
  $region13: #{_lambda_.11} parent=0 // pred_fallthru
    _
  // Predicated region
  $region14: #{_lambda_.11} parent=0 // pred_check
    _
  $region15: #{_lambda_.11} parent=0 // pred_check_branch
    %19 = sbr.rel (0) target = $region17
  $region16: #{_lambda_.11} parent=0 // pred_region
    _
  $region17: #{_lambda_.11} parent=0 // pred_fallthru
    _
  // Predicated region
  $region18: #{_lambda_.11} parent=0 // pred_check
    _
  $region19: #{_lambda_.11} parent=0 // pred_check_branch
    %21 = sbr.rel (0) target = $region21
  $region20: #{_lambda_.11} parent=0 // pred_region
    _
  $region21: #{_lambda_.11} parent=0 // pred_fallthru
    _
  // Predicated region
  $region22: #{_lambda_.11} parent=0 // pred_check
    _
  $region23: #{_lambda_.11} parent=0 // pred_check_branch
    %23 = sbr.rel (0) target = $region25
  $region24: #{_lambda_.11} parent=0 // pred_region
    _
  $region25: #{_lambda_.11} parent=0 // pred_fallthru
    _
  // Predicated region
  $region26: #{_lambda_.11} parent=0 // pred_check
    _
  $region27: #{_lambda_.11} parent=0 // pred_check_branch
    %25 = sbr.rel (0) target = $region29
  $region28: #{_lambda_.11} parent=0 // pred_region
    _
  $region29: #{_lambda_.11} parent=0 // pred_fallthru
    _
  %v26 = vld [vmem:[%s2] sm:$0xff]
  %v27 = vld [vmem:[%s2 + $0x8] sm:$0xff]
  %v28 = vld [vmem:[%s2 + $0x10] sm:$0xff]
  %v29 = vld [vmem:[%s2 + $0x18] sm:$0xff]
  %v30 = vld [vmem:[%s1] sm:$0xff]
  %v31 = vld [vmem:[%s1 + $0x8] sm:$0xff]
  %v32 = vld [vmem:[%s1 + $0x10] sm:$0xff]
  %v33 = vld [vmem:[%s1 + $0x18] sm:$0xff]
  %vm34 = vcmask 261120
  %v36 = vsel %vm34, %v26, 0
  %v39 = vsel %vm34, %v27, 0
  %v42 = vsel %vm34, %v28, 0
  %v45 = vsel %vm34, %v29, 0
  %47 = vmatprep.subr.mxu0 0.0
  %48 = vmatpush1.msra.mxu0 %v30
  %49 = vmatprep.subr.mxu0 0.0
  %50 = vmatpush1.msra.mxu0 %v31
  %51 = vmatprep.subr.mxu0 0.0
  %52 = vmatpush1.msra.mxu0 %v32
  %53 = vmatprep.subr.mxu0 0.0
  %54 = vmatpush1.msra.mxu0 %v33
  %55 = vmatprep.subr.mxu0 0.0
  %56 = vmatpush1.msra.mxu0 0.0
  %57 = vmatprep.subr.mxu0 0.0
  %58 = vmatpush1.msra.mxu0 0.0
  %59 = vmatprep.subr.mxu0 0.0
  %60 = vmatpush1.msra.mxu0 0.0
  %61 = vmatprep.subr.mxu0 0.0
  %62 = vmatpush1.msra.mxu0 0.0
  %63 = vmatprep.subr.mxu0 0.0
  %64 = vmatpush1.msra.mxu0 0.0
  %65 = vmatprep.subr.mxu0 0.0
  %66 = vmatpush1.msra.mxu0 0.0
  %67 = vmatprep.subr.mxu0 0.0
  %68 = vmatpush1.msra.mxu0 0.0
  %69 = vmatprep.subr.mxu0 0.0
  %70 = vmatpush1.msra.mxu0 0.0
  %71 = vmatprep.subr.mxu0 0.0
  %72 = vmatpush1.msra.mxu0 0.0
  %73 = vmatprep.subr.mxu0 0.0
  %74 = vmatpush1.msra.mxu0 0.0
  %75 = vmatprep.subr.mxu0 0.0
  %76 = vmatpush1.msra.mxu0 0.0
  %77 = vmatprep.subr.mxu0 0.0
  %78 = vmatpush1.msra.mxu0 0.0
  %79 = vmatprep.subr.mxu0 0.0
  %80 = vmatpush1.msra.mxu0 0.0
  %81 = vmatprep.subr.mxu0 0.0
  %82 = vmatpush1.msra.mxu0 0.0
  %83 = vmatprep.subr.mxu0 0.0
  %84 = vmatpush1.msra.mxu0 0.0
  %85 = vmatprep.subr.mxu0 0.0
  %86 = vmatpush1.msra.mxu0 0.0
  %87 = vmatprep.subr.mxu0 0.0
  %88 = vmatpush1.msra.mxu0 0.0
  %89 = vmatprep.subr.mxu0 0.0
  %90 = vmatpush1.msra.mxu0 0.0
  %91 = vmatprep.subr.mxu0 0.0
  %92 = vmatpush1.msra.mxu0 0.0
  %93 = vmatprep.subr.mxu0 0.0
  %94 = vmatpush1.msra.mxu0 0.0
  %95 = vmatprep.subr.mxu0 0.0
  %96 = vmatpush1.msra.mxu0 0.0
  %97 = vmatprep.subr.mxu0 0.0
  %98 = vmatpush1.msra.mxu0 0.0
  %99 = vmatprep.subr.mxu0 0.0
  %100 = vmatpush1.msra.mxu0 0.0
  %101 = vmatprep.subr.mxu0 0.0
  %102 = vmatpush1.msra.mxu0 0.0
  %103 = vmatprep.subr.mxu0 0.0
  %104 = vmatpush1.msra.mxu0 0.0
  %105 = vmatprep.subr.mxu0 0.0
  %106 = vmatpush1.msra.mxu0 0.0
  %107 = vmatprep.subr.mxu0 0.0
  %108 = vmatpush1.msra.mxu0 0.0
  %109 = vmatprep.subr.mxu0 0.0
  %110 = vmatpush1.msra.mxu0 0.0
  %111 = vmatprep.mubr.f32.mxu0 0.0
  %112 = vmatmul.mubr.f32.gmra.mrb[0].mxu0 %v36
  %v113 = vpop.f32.mrb[0].mxu0
  %v114 = vadd.f32 0.0, %v113
  %v115 = vpop.f32.mrb[0].mxu0
  %116 = vmatprep.mubr.f32.mxu0 0.0
  %117 = vmatmul.mubr.f32.gmra.mrb[0].mxu0 %v39
  %v118 = vpop.f32.mrb[0].mxu0
  %v119 = vadd.f32 0.0, %v118
  %v120 = vpop.f32.mrb[0].mxu0
  %121 = vmatprep.mubr.f32.mxu0 0.0
  %122 = vmatmul.mubr.f32.gmra.mrb[0].mxu0 %v42
  %v123 = vpop.f32.mrb[0].mxu0
  %v124 = vadd.f32 0.0, %v123
  %v125 = vpop.f32.mrb[0].mxu0
  %126 = vmatprep.mubr.f32.mxu0 0.0
  %127 = vmatmul.mubr.f32.gmra.mrb[0].mxu0 %v45
  %v128 = vpop.f32.mrb[0].mxu0
  %v129 = vadd.f32 0.0, %v128
  %v130 = vpop.f32.mrb[0].mxu0
  %131 = vdwg.mxu0
  %v132 = vmul.f32 %v114, 0.17677669
  %v133 = vmul.f32 %v119, 0.17677669
  %v134 = vmul.f32 %v124, 0.17677669
  %v135 = vmul.f32 %v129, 0.17677669
  %v136 = vld [vmem:[%s3] sm:$0xff]
  %v137 = vld [vmem:[%s3 + $0x8] sm:$0xff]
  %v138 = vld [vmem:[%s3 + $0x10] sm:$0xff]
  %v139 = vld [vmem:[%s3 + $0x18] sm:$0xff]
  %141 = vset.pattern.permute.xlu0 0
  %142 = vperm.xlu0 %141, %v136
  %v143 = vpop.permute.xlu0 %142
  %146 = vset.pattern.permute.xlu0 0
  %147 = vperm.xlu0 %146, %v137
  %v148 = vpop.permute.xlu0 %147
  %151 = vset.pattern.permute.xlu0 0
  %152 = vperm.xlu0 %151, %v138
  %v153 = vpop.permute.xlu0 %152
  %156 = vset.pattern.permute.xlu0 0
  %157 = vperm.xlu0 %156, %v139
  %v158 = vpop.permute.xlu0 %157
  %v160 = vadd.f32 %v132, %v143
  %v161 = vadd.f32 %v133, %v148
  %v162 = vadd.f32 %v134, %v153
  %v163 = vadd.f32 %v135, %v158
  %v164 = vld [vmem:[%s5] sm:$0x7]
  %v165 = vmul.f32 %v160, %v160
  %v166 = vmul.f32 %v161, %v161
  %v167 = vmul.f32 %v162, %v162
  %v168 = vmul.f32 %v163, %v163
  %v170 = vsel %vm34, %v164, 0
  %172 = vmatprep.subr.mxu0 0.0
  %173 = vmatpush1.msra.mxu0 %v165
  %174 = vmatprep.subr.mxu0 0.0
  %175 = vmatpush1.msra.mxu0 %v166
  %176 = vmatprep.subr.mxu0 0.0
  %177 = vmatpush1.msra.mxu0 %v167
  %178 = vmatprep.subr.mxu0 0.0
  %179 = vmatpush1.msra.mxu0 %v168
  %180 = vmatprep.subr.mxu0 0.0
  %181 = vmatpush1.msra.mxu0 0.0
  %182 = vmatprep.subr.mxu0 0.0
  %183 = vmatpush1.msra.mxu0 0.0
  %184 = vmatprep.subr.mxu0 0.0
  %185 = vmatpush1.msra.mxu0 0.0
  %186 = vmatprep.subr.mxu0 0.0
  %187 = vmatpush1.msra.mxu0 0.0
  %188 = vmatprep.subr.mxu0 0.0
  %189 = vmatpush1.msra.mxu0 0.0
  %190 = vmatprep.subr.mxu0 0.0
  %191 = vmatpush1.msra.mxu0 0.0
  %192 = vmatprep.subr.mxu0 0.0
  %193 = vmatpush1.msra.mxu0 0.0
  %194 = vmatprep.subr.mxu0 0.0
  %195 = vmatpush1.msra.mxu0 0.0
  %196 = vmatprep.subr.mxu0 0.0
  %197 = vmatpush1.msra.mxu0 0.0
  %198 = vmatprep.subr.mxu0 0.0
  %199 = vmatpush1.msra.mxu0 0.0
  %200 = vmatprep.subr.mxu0 0.0
  %201 = vmatpush1.msra.mxu0 0.0
  %202 = vmatprep.subr.mxu0 0.0
  %203 = vmatpush1.msra.mxu0 0.0
  %204 = vmatprep.subr.mxu0 0.0
  %205 = vmatpush1.msra.mxu0 0.0
  %206 = vmatprep.subr.mxu0 0.0
  %207 = vmatpush1.msra.mxu0 0.0
  %208 = vmatprep.subr.mxu0 0.0
  %209 = vmatpush1.msra.mxu0 0.0
  %210 = vmatprep.subr.mxu0 0.0
  %211 = vmatpush1.msra.mxu0 0.0
  %212 = vmatprep.subr.mxu0 0.0
  %213 = vmatpush1.msra.mxu0 0.0
  %214 = vmatprep.subr.mxu0 0.0
  %215 = vmatpush1.msra.mxu0 0.0
  %216 = vmatprep.subr.mxu0 0.0
  %217 = vmatpush1.msra.mxu0 0.0
  %218 = vmatprep.subr.mxu0 0.0
  %219 = vmatpush1.msra.mxu0 0.0
  %220 = vmatprep.subr.mxu0 0.0
  %221 = vmatpush1.msra.mxu0 0.0
  %222 = vmatprep.subr.mxu0 0.0
  %223 = vmatpush1.msra.mxu0 0.0
  %224 = vmatprep.subr.mxu0 0.0
  %225 = vmatpush1.msra.mxu0 0.0
  %226 = vmatprep.subr.mxu0 0.0
  %227 = vmatpush1.msra.mxu0 0.0
  %228 = vmatprep.subr.mxu0 0.0
  %229 = vmatpush1.msra.mxu0 0.0
  %230 = vmatprep.subr.mxu0 0.0
  %231 = vmatpush1.msra.mxu0 0.0
  %232 = vmatprep.subr.mxu0 0.0
  %233 = vmatpush1.msra.mxu0 0.0
  %234 = vmatprep.subr.mxu0 0.0
  %235 = vmatpush1.msra.mxu0 0.0
  %236 = vmatprep.mubr.f32.mxu0 0.0
  %237 = vmatmul.mubr.f32.gmra.mrb[0].mxu0 %v170
  %v238 = vpop.f32.mrb[0].mxu0
  %v239 = vadd.f32 1e-08, %v238
  %v240 = vpop.f32.mrb[0].mxu0
  %241 = vdwg.mxu0
  %v242 = vrsqrt.pop %v239
  %v243 = vld [vmem:[%s0] sm:$0xff]
  %v244 = vld [vmem:[%s0 + $0x8] sm:$0xff]
  %v245 = vld [vmem:[%s0 + $0x10] sm:$0xff]
  %v246 = vld [vmem:[%s0 + $0x18] sm:$0xff]
  %v247 = vld [vmem:[%s0 + $0x20] sm:$0xff]
  %v248 = vld [vmem:[%s0 + $0x28] sm:$0xff]
  %v249 = vld [vmem:[%s0 + $0x30] sm:$0xff]
  %v250 = vld [vmem:[%s0 + $0x38] sm:$0xff]
  %252 = vset.pattern.permute.xlu0 0
  %253 = vperm.xlu0 %252, %v160
  %v254 = vpop.permute.xlu0 %253
  %257 = vset.pattern.permute.xlu0 0
  %258 = vperm.xlu0 %257, %v161
  %v259 = vpop.permute.xlu0 %258
  %262 = vset.pattern.permute.xlu0 0
  %263 = vperm.xlu0 %262, %v162
  %v264 = vpop.permute.xlu0 %263
  %267 = vset.pattern.permute.xlu0 0
  %268 = vperm.xlu0 %267, %v163
  %v269 = vpop.permute.xlu0 %268
  %v271 = vmul.f32 %v243, %v254
  %v272 = vmul.f32 %v244, %v254
  %v273 = vmul.f32 %v245, %v259
  %v274 = vmul.f32 %v246, %v259
  %v275 = vmul.f32 %v247, %v264
  %v276 = vmul.f32 %v248, %v264
  %v277 = vmul.f32 %v249, %v269
  %v278 = vmul.f32 %v250, %v269
  %v279 = vld [vmem:[%s4] sm:$0x7]
  %v281 = vsel %vm34, %v279, 0
  %283 = vmatprep.subr.mxu0 %v272
  %284 = vmatpush1.msra.mxu0 %v271
  %285 = vmatprep.subr.mxu0 %v274
  %286 = vmatpush1.msra.mxu0 %v273
  %287 = vmatprep.subr.mxu0 %v276
  %288 = vmatpush1.msra.mxu0 %v275
  %289 = vmatprep.subr.mxu0 %v278
  %290 = vmatpush1.msra.mxu0 %v277
  %291 = vmatprep.subr.mxu0 0.0
  %292 = vmatpush1.msra.mxu0 0.0
  %293 = vmatprep.subr.mxu0 0.0
  %294 = vmatpush1.msra.mxu0 0.0
  %295 = vmatprep.subr.mxu0 0.0
  %296 = vmatpush1.msra.mxu0 0.0
  %297 = vmatprep.subr.mxu0 0.0
  %298 = vmatpush1.msra.mxu0 0.0
  %299 = vmatprep.subr.mxu0 0.0
  %300 = vmatpush1.msra.mxu0 0.0
  %301 = vmatprep.subr.mxu0 0.0
  %302 = vmatpush1.msra.mxu0 0.0
  %303 = vmatprep.subr.mxu0 0.0
  %304 = vmatpush1.msra.mxu0 0.0
  %305 = vmatprep.subr.mxu0 0.0
  %306 = vmatpush1.msra.mxu0 0.0
  %307 = vmatprep.subr.mxu0 0.0
  %308 = vmatpush1.msra.mxu0 0.0
  %309 = vmatprep.subr.mxu0 0.0
  %310 = vmatpush1.msra.mxu0 0.0
  %311 = vmatprep.subr.mxu0 0.0
  %312 = vmatpush1.msra.mxu0 0.0
  %313 = vmatprep.subr.mxu0 0.0
  %314 = vmatpush1.msra.mxu0 0.0
  %315 = vmatprep.subr.mxu0 0.0
  %316 = vmatpush1.msra.mxu0 0.0
  %317 = vmatprep.subr.mxu0 0.0
  %318 = vmatpush1.msra.mxu0 0.0
  %319 = vmatprep.subr.mxu0 0.0
  %320 = vmatpush1.msra.mxu0 0.0
  %321 = vmatprep.subr.mxu0 0.0
  %322 = vmatpush1.msra.mxu0 0.0
  %323 = vmatprep.subr.mxu0 0.0
  %324 = vmatpush1.msra.mxu0 0.0
  %325 = vmatprep.subr.mxu0 0.0
  %326 = vmatpush1.msra.mxu0 0.0
  %327 = vmatprep.subr.mxu0 0.0
  %328 = vmatpush1.msra.mxu0 0.0
  %329 = vmatprep.subr.mxu0 0.0
  %330 = vmatpush1.msra.mxu0 0.0
  %331 = vmatprep.subr.mxu0 0.0
  %332 = vmatpush1.msra.mxu0 0.0
  %333 = vmatprep.subr.mxu0 0.0
  %334 = vmatpush1.msra.mxu0 0.0
  %335 = vmatprep.subr.mxu0 0.0
  %336 = vmatpush1.msra.mxu0 0.0
  %337 = vmatprep.subr.mxu0 0.0
  %338 = vmatpush1.msra.mxu0 0.0
  %339 = vmatprep.subr.mxu0 0.0
  %340 = vmatpush1.msra.mxu0 0.0
  %341 = vmatprep.subr.mxu0 0.0
  %342 = vmatpush1.msra.mxu0 0.0
  %343 = vmatprep.subr.mxu0 0.0
  %344 = vmatpush1.msra.mxu0 0.0
  %345 = vmatprep.subr.mxu0 0.0
  %346 = vmatpush1.msra.mxu0 0.0
  %347 = vmatprep.mubr.f32.mxu0 0.0
  %348 = vmatmul.mubr.f32.gmra.mrb[0].mxu0 %v281
  %v349 = vpop.f32.mrb[0].mxu0
  %v350 = vadd.f32 0.0, %v349
  %v351 = vpop.f32.mrb[0].mxu0
  %v352 = vadd.f32 0.0, %v351
  %353 = vdwg.mxu0
  %355 = vset.pattern.permute.xlu0 0
  %356 = vperm.xlu0 %355, %v242
  %v357 = vpop.permute.xlu0 %356
  %v359 = vmul.f32 %v350, %v357
  %v360 = vmul.f32 %v352, %v357
  %v361 = vld [vmem:[%s6] sm:$0x7]
  %363 = vset.pattern.permute.xlu0 0
  %364 = vperm.xlu0 %363, %v361
  %v365 = vpop.permute.xlu0 %364
  %v367 = vadd.f32 %v359, %v365
  %v368 = vadd.f32 %v360, %v365
  %v371 = vcombine.low %v367, %v368
  %373 = vst [vmem:[%s7] sm:$0x77] %v371
  %s374 = scalar_lea.vmem %s0, 64
  %v375 = vld [vmem:[%s374] sm:$0xff]
  %v376 = vld [vmem:[%s374 + $0x8] sm:$0xff]
  %v377 = vld [vmem:[%s374 + $0x10] sm:$0xff]
  %v378 = vld [vmem:[%s374 + $0x18] sm:$0xff]
  %v379 = vld [vmem:[%s374 + $0x20] sm:$0xff]
  %v380 = vld [vmem:[%s374 + $0x28] sm:$0xff]
  %v381 = vld [vmem:[%s374 + $0x30] sm:$0xff]
  %v382 = vld [vmem:[%s374 + $0x38] sm:$0xff]
  %383 = vset.pattern.permute.xlu0 1
  %384 = vperm.xlu0 %383, %v160
  %v385 = vpop.permute.xlu0 %384
  %387 = vset.pattern.permute.xlu0 1
  %388 = vperm.xlu0 %387, %v161
  %v389 = vpop.permute.xlu0 %388
  %391 = vset.pattern.permute.xlu0 1
  %392 = vperm.xlu0 %391, %v162
  %v393 = vpop.permute.xlu0 %392
  %395 = vset.pattern.permute.xlu0 1
  %396 = vperm.xlu0 %395, %v163
  %v397 = vpop.permute.xlu0 %396
  %v399 = vmul.f32 %v375, %v385
  %v400 = vmul.f32 %v376, %v385
  %v401 = vmul.f32 %v377, %v389
  %v402 = vmul.f32 %v378, %v389
  %v403 = vmul.f32 %v379, %v393
  %v404 = vmul.f32 %v380, %v393
  %v405 = vmul.f32 %v381, %v397
  %v406 = vmul.f32 %v382, %v397
  %v407 = vld [vmem:[%s4] sm:$0x7]
  %v409 = vsel %vm34, %v407, 0
  %411 = vmatprep.subr.mxu0 %v400
  %412 = vmatpush1.msra.mxu0 %v399
  %413 = vmatprep.subr.mxu0 %v402
  %414 = vmatpush1.msra.mxu0 %v401
  %415 = vmatprep.subr.mxu0 %v404
  %416 = vmatpush1.msra.mxu0 %v403
  %417 = vmatprep.subr.mxu0 %v406
  %418 = vmatpush1.msra.mxu0 %v405
  %419 = vmatprep.subr.mxu0 0.0
  %420 = vmatpush1.msra.mxu0 0.0
  %421 = vmatprep.subr.mxu0 0.0
  %422 = vmatpush1.msra.mxu0 0.0
  %423 = vmatprep.subr.mxu0 0.0
  %424 = vmatpush1.msra.mxu0 0.0
  %425 = vmatprep.subr.mxu0 0.0
  %426 = vmatpush1.msra.mxu0 0.0
  %427 = vmatprep.subr.mxu0 0.0
  %428 = vmatpush1.msra.mxu0 0.0
  %429 = vmatprep.subr.mxu0 0.0
  %430 = vmatpush1.msra.mxu0 0.0
  %431 = vmatprep.subr.mxu0 0.0
  %432 = vmatpush1.msra.mxu0 0.0
  %433 = vmatprep.subr.mxu0 0.0
  %434 = vmatpush1.msra.mxu0 0.0
  %435 = vmatprep.subr.mxu0 0.0
  %436 = vmatpush1.msra.mxu0 0.0
  %437 = vmatprep.subr.mxu0 0.0
  %438 = vmatpush1.msra.mxu0 0.0
  %439 = vmatprep.subr.mxu0 0.0
  %440 = vmatpush1.msra.mxu0 0.0
  %441 = vmatprep.subr.mxu0 0.0
  %442 = vmatpush1.msra.mxu0 0.0
  %443 = vmatprep.subr.mxu0 0.0
  %444 = vmatpush1.msra.mxu0 0.0
  %445 = vmatprep.subr.mxu0 0.0
  %446 = vmatpush1.msra.mxu0 0.0
  %447 = vmatprep.subr.mxu0 0.0
  %448 = vmatpush1.msra.mxu0 0.0
  %449 = vmatprep.subr.mxu0 0.0
  %450 = vmatpush1.msra.mxu0 0.0
  %451 = vmatprep.subr.mxu0 0.0
  %452 = vmatpush1.msra.mxu0 0.0
  %453 = vmatprep.subr.mxu0 0.0
  %454 = vmatpush1.msra.mxu0 0.0
  %455 = vmatprep.subr.mxu0 0.0
  %456 = vmatpush1.msra.mxu0 0.0
  %457 = vmatprep.subr.mxu0 0.0
  %458 = vmatpush1.msra.mxu0 0.0
  %459 = vmatprep.subr.mxu0 0.0
  %460 = vmatpush1.msra.mxu0 0.0
  %461 = vmatprep.subr.mxu0 0.0
  %462 = vmatpush1.msra.mxu0 0.0
  %463 = vmatprep.subr.mxu0 0.0
  %464 = vmatpush1.msra.mxu0 0.0
  %465 = vmatprep.subr.mxu0 0.0
  %466 = vmatpush1.msra.mxu0 0.0
  %467 = vmatprep.subr.mxu0 0.0
  %468 = vmatpush1.msra.mxu0 0.0
  %469 = vmatprep.subr.mxu0 0.0
  %470 = vmatpush1.msra.mxu0 0.0
  %471 = vmatprep.subr.mxu0 0.0
  %472 = vmatpush1.msra.mxu0 0.0
  %473 = vmatprep.subr.mxu0 0.0
  %474 = vmatpush1.msra.mxu0 0.0
  %475 = vmatprep.mubr.f32.mxu0 0.0
  %476 = vmatmul.mubr.f32.gmra.mrb[0].mxu0 %v409
  %v477 = vpop.f32.mrb[0].mxu0
  %v478 = vadd.f32 0.0, %v477
  %v479 = vpop.f32.mrb[0].mxu0
  %v480 = vadd.f32 0.0, %v479
  %481 = vdwg.mxu0
  %482 = vset.pattern.permute.xlu0 1
  %483 = vperm.xlu0 %482, %v242
  %v484 = vpop.permute.xlu0 %483
  %v486 = vmul.f32 %v478, %v484
  %v487 = vmul.f32 %v480, %v484
  %v488 = vld [vmem:[%s6] sm:$0x7]
  %490 = vset.pattern.permute.xlu0 0
  %491 = vperm.xlu0 %490, %v488
  %v492 = vpop.permute.xlu0 %491
  %v494 = vadd.f32 %v486, %v492
  %v495 = vadd.f32 %v487, %v492
  %v498 = vcombine.low %v494, %v495
  %s500 = scalar_lea.vmem %s7, 8
  %501 = vst [vmem:[%s500] sm:$0x77] %v498
  // Predicated region
  $region30: #{_lambda_.11} parent=0 // pred_check
    _
  $region31: #{_lambda_.11} parent=0 // pred_check_branch
    %503 = sbr.rel (0) target = $region33
  $region32: #{_lambda_.11} parent=0 // pred_region
    _
  $region33: #{_lambda_.11} parent=0 // pred_fallthru
    _
  // Predicated region
  $region34: #{_lambda_.11} parent=0 // pred_check
    _
  $region35: #{_lambda_.11} parent=0 // pred_check_branch
    %505 = sbr.rel (0) target = $region37
  $region36: #{_lambda_.11} parent=0 // pred_region
    _
  $region37: #{_lambda_.11} parent=0 // pred_fallthru
    _

// kernel: _lambda_.6
$region0: #{_lambda_.6}
  #allocation0 [shape = 'u32[]', space=smem, size = 0x4, offset = 0x4, fixed_abs, tag = 'smem constant byte address 0x4 - core index']
  #allocation1 [shape = 'u32[144,128]{1,0:T(1,128)}', space=vmem, size = 0x12000, scoped, tag = 'internal scratch']
  %s0 = inlined_call_operand.vmem [shape: f32[2,32,64], index: 0, kind: input, shape index: {}]
  %s1 = inlined_call_operand.vmem [shape: f32[32,2], index: 1, kind: input, shape index: {}]
  %s2 = inlined_call_operand.vmem [shape: f32[64,32], index: 2, kind: input, shape index: {}]
  %s3 = inlined_call_operand.vmem [shape: f32[64,1], index: 3, kind: input, shape index: {}]
  %s4 = inlined_call_operand.vmem [shape: f32[96,32], index: 4, kind: input, shape index: {}]
  %s5 = inlined_call_operand.vmem [shape: f32[96,32], index: 5, kind: input, shape index: {}]
  %s6 = inlined_call_operand.vmem [shape: f32[2,32,32], index: 6, kind: input, shape index: {}]
  %s7 = inlined_call_operand.vmem [shape: f32[64,32], index: 7, kind: input, shape index: {}]
  %s8 = inlined_call_operand.vmem [shape: f32[32,1], index: 8, kind: input, shape index: {}]
  %s9 = inlined_call_operand.vmem [shape: f32[2,32,64], index: 9, kind: output, shape index: {}]
  %s10 = sld [smem:[#allocation0]]
  $region46: #{_lambda_.6} parent=0
    _
  %s12 = ssub.s32 1, %s10
  %s13 = scalar_select 0, %s12, %s10
  // Predicated region
  $region2: #{_lambda_.6} parent=0 // pred_check
    _
  $region3: #{_lambda_.6} parent=0 // pred_check_branch
    %15 = sbr.rel (0) target = $region5
  $region4: #{_lambda_.6} parent=0 // pred_region
    _
  $region5: #{_lambda_.6} parent=0 // pred_fallthru
    _
  // Predicated region
  $region6: #{_lambda_.6} parent=0 // pred_check
    _
  $region7: #{_lambda_.6} parent=0 // pred_check_branch
    %17 = sbr.rel (0) target = $region9
  $region8: #{_lambda_.6} parent=0 // pred_region
    _
  $region9: #{_lambda_.6} parent=0 // pred_fallthru
    _
  // Predicated region
  $region10: #{_lambda_.6} parent=0 // pred_check
    _
  $region11: #{_lambda_.6} parent=0 // pred_check_branch
    %19 = sbr.rel (0) target = $region13
  $region12: #{_lambda_.6} parent=0 // pred_region
    _
  $region13: #{_lambda_.6} parent=0 // pred_fallthru
    _
  // Predicated region
  $region14: #{_lambda_.6} parent=0 // pred_check
    _
  $region15: #{_lambda_.6} parent=0 // pred_check_branch
    %21 = sbr.rel (0) target = $region17
  $region16: #{_lambda_.6} parent=0 // pred_region
    _
  $region17: #{_lambda_.6} parent=0 // pred_fallthru
    _
  // Predicated region
  $region18: #{_lambda_.6} parent=0 // pred_check
    _
  $region19: #{_lambda_.6} parent=0 // pred_check_branch
    %23 = sbr.rel (0) target = $region21
  $region20: #{_lambda_.6} parent=0 // pred_region
    _
  $region21: #{_lambda_.6} parent=0 // pred_fallthru
    _
  // Predicated region
  $region22: #{_lambda_.6} parent=0 // pred_check
    _
  $region23: #{_lambda_.6} parent=0 // pred_check_branch
    %25 = sbr.rel (0) target = $region25
  $region24: #{_lambda_.6} parent=0 // pred_region
    _
  $region25: #{_lambda_.6} parent=0 // pred_fallthru
    _
  // Predicated region
  $region26: #{_lambda_.6} parent=0 // pred_check
    _
  $region27: #{_lambda_.6} parent=0 // pred_check_branch
    %27 = sbr.rel (0) target = $region29
  $region28: #{_lambda_.6} parent=0 // pred_region
    _
  $region29: #{_lambda_.6} parent=0 // pred_fallthru
    _
  // Predicated region
  $region30: #{_lambda_.6} parent=0 // pred_check
    _
  $region31: #{_lambda_.6} parent=0 // pred_check_branch
    %29 = sbr.rel (0) target = $region33
  $region32: #{_lambda_.6} parent=0 // pred_region
    _
  $region33: #{_lambda_.6} parent=0 // pred_fallthru
    _
  // Predicated region
  $region34: #{_lambda_.6} parent=0 // pred_check
    _
  $region35: #{_lambda_.6} parent=0 // pred_check_branch
    %31 = sbr.rel (0) target = $region37
  $region36: #{_lambda_.6} parent=0 // pred_region
    _
  $region37: #{_lambda_.6} parent=0 // pred_fallthru
    _
  %v32 = vld [vmem:[%s2] sm:$0xff]
  %v33 = vld [vmem:[%s2 + $0x8] sm:$0xff]
  %v34 = vld [vmem:[%s2 + $0x10] sm:$0xff]
  %v35 = vld [vmem:[%s2 + $0x18] sm:$0xff]
  %v36 = vld [vmem:[%s2 + $0x20] sm:$0xff]
  %v37 = vld [vmem:[%s2 + $0x28] sm:$0xff]
  %v38 = vld [vmem:[%s2 + $0x30] sm:$0xff]
  %v39 = vld [vmem:[%s2 + $0x38] sm:$0xff]
  %v40 = vld [vmem:[%s1] sm:$0xff]
  %v41 = vld [vmem:[%s1 + $0x8] sm:$0xff]
  %v42 = vld [vmem:[%s1 + $0x10] sm:$0xff]
  %v43 = vld [vmem:[%s1 + $0x18] sm:$0xff]
  %vm44 = vcmask 261120
  %v46 = vsel %vm44, %v32, 0
  %v49 = vsel %vm44, %v33, 0
  %v52 = vsel %vm44, %v34, 0
  %v55 = vsel %vm44, %v35, 0
  %v58 = vsel %vm44, %v36, 0
  %v61 = vsel %vm44, %v37, 0
  %v64 = vsel %vm44, %v38, 0
  %v67 = vsel %vm44, %v39, 0
  %69 = vmatprep.subr.mxu0 0.0
  %70 = vmatpush1.msra.mxu0 %v40
  %71 = vmatprep.subr.mxu0 0.0
  %72 = vmatpush1.msra.mxu0 %v41
  %73 = vmatprep.subr.mxu0 0.0
  %74 = vmatpush1.msra.mxu0 %v42
  %75 = vmatprep.subr.mxu0 0.0
  %76 = vmatpush1.msra.mxu0 %v43
  %77 = vmatprep.subr.mxu0 0.0
  %78 = vmatpush1.msra.mxu0 0.0
  %79 = vmatprep.subr.mxu0 0.0
  %80 = vmatpush1.msra.mxu0 0.0
  %81 = vmatprep.subr.mxu0 0.0
  %82 = vmatpush1.msra.mxu0 0.0
  %83 = vmatprep.subr.mxu0 0.0
  %84 = vmatpush1.msra.mxu0 0.0
  %85 = vmatprep.subr.mxu0 0.0
  %86 = vmatpush1.msra.mxu0 0.0
  %87 = vmatprep.subr.mxu0 0.0
  %88 = vmatpush1.msra.mxu0 0.0
  %89 = vmatprep.subr.mxu0 0.0
  %90 = vmatpush1.msra.mxu0 0.0
  %91 = vmatprep.subr.mxu0 0.0
  %92 = vmatpush1.msra.mxu0 0.0
  %93 = vmatprep.subr.mxu0 0.0
  %94 = vmatpush1.msra.mxu0 0.0
  %95 = vmatprep.subr.mxu0 0.0
  %96 = vmatpush1.msra.mxu0 0.0
  %97 = vmatprep.subr.mxu0 0.0
  %98 = vmatpush1.msra.mxu0 0.0
  %99 = vmatprep.subr.mxu0 0.0
  %100 = vmatpush1.msra.mxu0 0.0
  %101 = vmatprep.subr.mxu0 0.0
  %102 = vmatpush1.msra.mxu0 0.0
  %103 = vmatprep.subr.mxu0 0.0
  %104 = vmatpush1.msra.mxu0 0.0
  %105 = vmatprep.subr.mxu0 0.0
  %106 = vmatpush1.msra.mxu0 0.0
  %107 = vmatprep.subr.mxu0 0.0
  %108 = vmatpush1.msra.mxu0 0.0
  %109 = vmatprep.subr.mxu0 0.0
  %110 = vmatpush1.msra.mxu0 0.0
  %111 = vmatprep.subr.mxu0 0.0
  %112 = vmatpush1.msra.mxu0 0.0
  %113 = vmatprep.subr.mxu0 0.0
  %114 = vmatpush1.msra.mxu0 0.0
  %115 = vmatprep.subr.mxu0 0.0
  %116 = vmatpush1.msra.mxu0 0.0
  %117 = vmatprep.subr.mxu0 0.0
  %118 = vmatpush1.msra.mxu0 0.0
  %119 = vmatprep.subr.mxu0 0.0
  %120 = vmatpush1.msra.mxu0 0.0
  %121 = vmatprep.subr.mxu0 0.0
  %122 = vmatpush1.msra.mxu0 0.0
  %123 = vmatprep.subr.mxu0 0.0
  %124 = vmatpush1.msra.mxu0 0.0
  %125 = vmatprep.subr.mxu0 0.0
  %126 = vmatpush1.msra.mxu0 0.0
  %127 = vmatprep.subr.mxu0 0.0
  %128 = vmatpush1.msra.mxu0 0.0
  %129 = vmatprep.subr.mxu0 0.0
  %130 = vmatpush1.msra.mxu0 0.0
  %131 = vmatprep.subr.mxu0 0.0
  %132 = vmatpush1.msra.mxu0 0.0
  %133 = vmatprep.mubr.f32.mxu0 0.0
  %134 = vmatmul.mubr.f32.gmra.mrb[0].mxu0 %v46
  %v135 = vpop.f32.mrb[0].mxu0
  %v136 = vadd.f32 0.0, %v135
  %v137 = vpop.f32.mrb[0].mxu0
  %138 = vmatprep.mubr.f32.mxu0 0.0
  %139 = vmatmul.mubr.f32.gmra.mrb[0].mxu0 %v49
  %v140 = vpop.f32.mrb[0].mxu0
  %v141 = vadd.f32 0.0, %v140
  %v142 = vpop.f32.mrb[0].mxu0
  %143 = vmatprep.mubr.f32.mxu0 0.0
  %144 = vmatmul.mubr.f32.gmra.mrb[0].mxu0 %v52
  %v145 = vpop.f32.mrb[0].mxu0
  %v146 = vadd.f32 0.0, %v145
  %v147 = vpop.f32.mrb[0].mxu0
  %148 = vmatprep.mubr.f32.mxu0 0.0
  %149 = vmatmul.mubr.f32.gmra.mrb[0].mxu0 %v55
  %v150 = vpop.f32.mrb[0].mxu0
  %v151 = vadd.f32 0.0, %v150
  %v152 = vpop.f32.mrb[0].mxu0
  %153 = vmatprep.mubr.f32.mxu0 0.0
  %154 = vmatmul.mubr.f32.gmra.mrb[0].mxu0 %v58
  %v155 = vpop.f32.mrb[0].mxu0
  %v156 = vadd.f32 0.0, %v155
  %v157 = vpop.f32.mrb[0].mxu0
  %158 = vmatprep.mubr.f32.mxu0 0.0
  %159 = vmatmul.mubr.f32.gmra.mrb[0].mxu0 %v61
  %v160 = vpop.f32.mrb[0].mxu0
  %v161 = vadd.f32 0.0, %v160
  %v162 = vpop.f32.mrb[0].mxu0
  %163 = vmatprep.mubr.f32.mxu0 0.0
  %164 = vmatmul.mubr.f32.gmra.mrb[0].mxu0 %v64
  %v165 = vpop.f32.mrb[0].mxu0
  %v166 = vadd.f32 0.0, %v165
  %v167 = vpop.f32.mrb[0].mxu0
  %168 = vmatprep.mubr.f32.mxu0 0.0
  %169 = vmatmul.mubr.f32.gmra.mrb[0].mxu0 %v67
  %v170 = vpop.f32.mrb[0].mxu0
  %v171 = vadd.f32 0.0, %v170
  %v172 = vpop.f32.mrb[0].mxu0
  %173 = vdwg.mxu0
  %v174 = vmul.f32 %v136, 0.17677669
  %v175 = vmul.f32 %v141, 0.17677669
  %v176 = vmul.f32 %v146, 0.17677669
  %v177 = vmul.f32 %v151, 0.17677669
  %v178 = vmul.f32 %v156, 0.17677669
  %v179 = vmul.f32 %v161, 0.17677669
  %v180 = vmul.f32 %v166, 0.17677669
  %v181 = vmul.f32 %v171, 0.17677669
  %v182 = vld [vmem:[%s3] sm:$0xff]
  %v183 = vld [vmem:[%s3 + $0x8] sm:$0xff]
  %v184 = vld [vmem:[%s3 + $0x10] sm:$0xff]
  %v185 = vld [vmem:[%s3 + $0x18] sm:$0xff]
  %v186 = vld [vmem:[%s3 + $0x20] sm:$0xff]
  %v187 = vld [vmem:[%s3 + $0x28] sm:$0xff]
  %v188 = vld [vmem:[%s3 + $0x30] sm:$0xff]
  %v189 = vld [vmem:[%s3 + $0x38] sm:$0xff]
  %191 = vset.pattern.permute.xlu0 0
  %192 = vperm.xlu0 %191, %v182
  %v193 = vpop.permute.xlu0 %192
  %196 = vset.pattern.permute.xlu0 0
  %197 = vperm.xlu0 %196, %v183
  %v198 = vpop.permute.xlu0 %197
  %201 = vset.pattern.permute.xlu0 0
  %202 = vperm.xlu0 %201, %v184
  %v203 = vpop.permute.xlu0 %202
  %206 = vset.pattern.permute.xlu0 0
  %207 = vperm.xlu0 %206, %v185
  %v208 = vpop.permute.xlu0 %207
  %211 = vset.pattern.permute.xlu0 0
  %212 = vperm.xlu0 %211, %v186
  %v213 = vpop.permute.xlu0 %212
  %216 = vset.pattern.permute.xlu0 0
  %217 = vperm.xlu0 %216, %v187
  %v218 = vpop.permute.xlu0 %217
  %221 = vset.pattern.permute.xlu0 0
  %222 = vperm.xlu0 %221, %v188
  %v223 = vpop.permute.xlu0 %222
  %226 = vset.pattern.permute.xlu0 0
  %227 = vperm.xlu0 %226, %v189
  %v228 = vpop.permute.xlu0 %227
  %v230 = vadd.f32 %v174, %v193
  %v231 = vadd.f32 %v175, %v198
  %v232 = vadd.f32 %v176, %v203
  %v233 = vadd.f32 %v177, %v208
  %v234 = vadd.f32 %v178, %v213
  %v235 = vadd.f32 %v179, %v218
  %v236 = vadd.f32 %v180, %v223
  %v237 = vadd.f32 %v181, %v228
  %v238 = vld [vmem:[%s5] sm:$0xff]
  %v239 = vld [vmem:[%s5 + $0x8] sm:$0xff]
  %v240 = vld [vmem:[%s5 + $0x10] sm:$0xff]
  %v241 = vld [vmem:[%s5 + $0x18] sm:$0xff]
  %v242 = vld [vmem:[%s5 + $0x20] sm:$0xff]
  %v243 = vld [vmem:[%s5 + $0x28] sm:$0xff]
  %v244 = vld [vmem:[%s5 + $0x30] sm:$0xff]
  %v245 = vld [vmem:[%s5 + $0x38] sm:$0xff]
  %v246 = vld [vmem:[%s5 + $0x40] sm:$0xff]
  %v247 = vld [vmem:[%s5 + $0x48] sm:$0xff]
  %v248 = vld [vmem:[%s5 + $0x50] sm:$0xff]
  %v249 = vld [vmem:[%s5 + $0x58] sm:$0xff]
  %v250 = vmul.f32 %v230, %v230
  %v251 = vmul.f32 %v231, %v231
  %v252 = vmul.f32 %v232, %v232
  %v253 = vmul.f32 %v233, %v233
  %v255 = vsel %vm44, %v238, 0
  %v258 = vsel %vm44, %v239, 0
  %v261 = vsel %vm44, %v240, 0
  %v264 = vsel %vm44, %v241, 0
  %v267 = vsel %vm44, %v242, 0
  %v270 = vsel %vm44, %v243, 0
  %v273 = vsel %vm44, %v244, 0
  %v276 = vsel %vm44, %v245, 0
  %v279 = vsel %vm44, %v246, 0
  %v282 = vsel %vm44, %v247, 0
  %v285 = vsel %vm44, %v248, 0
  %v288 = vsel %vm44, %v249, 0
  %290 = vmatprep.subr.mxu0 0.0
  %291 = vmatpush1.msra.mxu0 %v250
  %292 = vmatprep.subr.mxu0 0.0
  %293 = vmatpush1.msra.mxu0 %v251
  %294 = vmatprep.subr.mxu0 0.0
  %295 = vmatpush1.msra.mxu0 %v252
  %296 = vmatprep.subr.mxu0 0.0
  %297 = vmatpush1.msra.mxu0 %v253
  %298 = vmatprep.subr.mxu0 0.0
  %299 = vmatpush1.msra.mxu0 0.0
  %300 = vmatprep.subr.mxu0 0.0
  %301 = vmatpush1.msra.mxu0 0.0
  %302 = vmatprep.subr.mxu0 0.0
  %303 = vmatpush1.msra.mxu0 0.0
  %304 = vmatprep.subr.mxu0 0.0
  %305 = vmatpush1.msra.mxu0 0.0
  %306 = vmatprep.subr.mxu0 0.0
  %307 = vmatpush1.msra.mxu0 0.0
  %308 = vmatprep.subr.mxu0 0.0
  %309 = vmatpush1.msra.mxu0 0.0
  %310 = vmatprep.subr.mxu0 0.0
  %311 = vmatpush1.msra.mxu0 0.0
  %312 = vmatprep.subr.mxu0 0.0
  %313 = vmatpush1.msra.mxu0 0.0
  %314 = vmatprep.subr.mxu0 0.0
  %315 = vmatpush1.msra.mxu0 0.0
  %316 = vmatprep.subr.mxu0 0.0
  %317 = vmatpush1.msra.mxu0 0.0
  %318 = vmatprep.subr.mxu0 0.0
  %319 = vmatpush1.msra.mxu0 0.0
  %320 = vmatprep.subr.mxu0 0.0
  %321 = vmatpush1.msra.mxu0 0.0
  %322 = vmatprep.subr.mxu0 0.0
  %323 = vmatpush1.msra.mxu0 0.0
  %324 = vmatprep.subr.mxu0 0.0
  %325 = vmatpush1.msra.mxu0 0.0
  %326 = vmatprep.subr.mxu0 0.0
  %327 = vmatpush1.msra.mxu0 0.0
  %328 = vmatprep.subr.mxu0 0.0
  %329 = vmatpush1.msra.mxu0 0.0
  %330 = vmatprep.subr.mxu0 0.0
  %331 = vmatpush1.msra.mxu0 0.0
  %332 = vmatprep.subr.mxu0 0.0
  %333 = vmatpush1.msra.mxu0 0.0
  %334 = vmatprep.subr.mxu0 0.0
  %335 = vmatpush1.msra.mxu0 0.0
  %336 = vmatprep.subr.mxu0 0.0
  %337 = vmatpush1.msra.mxu0 0.0
  %338 = vmatprep.subr.mxu0 0.0
  %339 = vmatpush1.msra.mxu0 0.0
  %340 = vmatprep.subr.mxu0 0.0
  %341 = vmatpush1.msra.mxu0 0.0
  %342 = vmatprep.subr.mxu0 0.0
  %343 = vmatpush1.msra.mxu0 0.0
  %344 = vmatprep.subr.mxu0 0.0
  %345 = vmatpush1.msra.mxu0 0.0
  %346 = vmatprep.subr.mxu0 0.0
  %347 = vmatpush1.msra.mxu0 0.0
  %348 = vmatprep.subr.mxu0 0.0
  %349 = vmatpush1.msra.mxu0 0.0
  %350 = vmatprep.subr.mxu0 0.0
  %351 = vmatpush1.msra.mxu0 0.0
  %352 = vmatprep.subr.mxu0 0.0
  %353 = vmatpush1.msra.mxu0 0.0
  %354 = vmatprep.mubr.f32.mxu0 0.0
  %355 = vmatmul.mubr.f32.gmra.mrb[0].mxu0 %v255
  %v356 = vpop.f32.mrb[0].mxu0
  %v357 = vadd.f32 1e-08, %v356
  %v358 = vpop.f32.mrb[0].mxu0
  %359 = vmatprep.mubr.f32.mxu0 0.0
  %360 = vmatmul.mubr.f32.gmra.mrb[0].mxu0 %v258
  %v361 = vpop.f32.mrb[0].mxu0
  %v362 = vadd.f32 1e-08, %v361
  %v363 = vpop.f32.mrb[0].mxu0
  %364 = vmatprep.mubr.f32.mxu0 0.0
  %365 = vmatmul.mubr.f32.gmra.mrb[0].mxu0 %v261
  %v366 = vpop.f32.mrb[0].mxu0
  %v367 = vadd.f32 1e-08, %v366
  %v368 = vpop.f32.mrb[0].mxu0
  %369 = vmatprep.mubr.f32.mxu0 0.0
  %370 = vmatmul.mubr.f32.gmra.mrb[0].mxu0 %v264
  %v371 = vpop.f32.mrb[0].mxu0
  %v372 = vadd.f32 1e-08, %v371
  %v373 = vpop.f32.mrb[0].mxu0
  %374 = vmatprep.mubr.f32.mxu0 0.0
  %375 = vmatmul.mubr.f32.gmra.mrb[0].mxu0 %v267
  %v376 = vpop.f32.mrb[0].mxu0
  %v377 = vadd.f32 1e-08, %v376
  %v378 = vpop.f32.mrb[0].mxu0
  %379 = vmatprep.mubr.f32.mxu0 0.0
  %380 = vmatmul.mubr.f32.gmra.mrb[0].mxu0 %v270
  %v381 = vpop.f32.mrb[0].mxu0
  %v382 = vadd.f32 1e-08, %v381
  %v383 = vpop.f32.mrb[0].mxu0
  %384 = vmatprep.mubr.f32.mxu0 0.0
  %385 = vmatmul.mubr.f32.gmra.mrb[0].mxu0 %v273
  %v386 = vpop.f32.mrb[0].mxu0
  %v387 = vadd.f32 1e-08, %v386
  %v388 = vpop.f32.mrb[0].mxu0
  %389 = vmatprep.mubr.f32.mxu0 0.0
  %390 = vmatmul.mubr.f32.gmra.mrb[0].mxu0 %v276
  %v391 = vpop.f32.mrb[0].mxu0
  %v392 = vadd.f32 1e-08, %v391
  %v393 = vpop.f32.mrb[0].mxu0
  %394 = vmatprep.mubr.f32.mxu0 0.0
  %395 = vmatmul.mubr.f32.gmra.mrb[0].mxu0 %v279
  %v396 = vpop.f32.mrb[0].mxu0
  %v397 = vadd.f32 1e-08, %v396
  %v398 = vpop.f32.mrb[0].mxu0
  %399 = vmatprep.mubr.f32.mxu0 0.0
  %400 = vmatmul.mubr.f32.gmra.mrb[0].mxu0 %v282
  %v401 = vpop.f32.mrb[0].mxu0
  %v402 = vadd.f32 1e-08, %v401
  %v403 = vpop.f32.mrb[0].mxu0
  %404 = vmatprep.mubr.f32.mxu0 0.0
  %405 = vmatmul.mubr.f32.gmra.mrb[0].mxu0 %v285
  %v406 = vpop.f32.mrb[0].mxu0
  %v407 = vadd.f32 1e-08, %v406
  %v408 = vpop.f32.mrb[0].mxu0
  %409 = vmatprep.mubr.f32.mxu0 0.0
  %410 = vmatmul.mubr.f32.gmra.mrb[0].mxu0 %v288
  %v411 = vpop.f32.mrb[0].mxu0
  %v412 = vadd.f32 1e-08, %v411
  %v413 = vpop.f32.mrb[0].mxu0
  %414 = vdwg.mxu0
  %v415 = vrsqrt.pop %v357
  %v416 = vrsqrt.pop %v362
  %v417 = vrsqrt.pop %v367
  %v418 = vrsqrt.pop %v372
  %v419 = vrsqrt.pop %v377
  %v420 = vrsqrt.pop %v382
  %v421 = vrsqrt.pop %v387
  %v422 = vrsqrt.pop %v392
  %v423 = vrsqrt.pop %v397
  %v424 = vrsqrt.pop %v402
  %v425 = vrsqrt.pop %v407
  %v426 = vrsqrt.pop %v412
  %v427 = vld [vmem:[%s7] sm:$0xff]
  %v428 = vld [vmem:[%s7 + $0x8] sm:$0xff]
  %v429 = vld [vmem:[%s7 + $0x10] sm:$0xff]
  %v430 = vld [vmem:[%s7 + $0x18] sm:$0xff]
  %v431 = vld [vmem:[%s7 + $0x20] sm:$0xff]
  %v432 = vld [vmem:[%s7 + $0x28] sm:$0xff]
  %v433 = vld [vmem:[%s7 + $0x30] sm:$0xff]
  %v434 = vld [vmem:[%s7 + $0x38] sm:$0xff]
  %v435 = vmul.f32 %v234, %v234
  %v436 = vmul.f32 %v235, %v235
  %v437 = vmul.f32 %v236, %v236
  %v438 = vmul.f32 %v237, %v237
  %v440 = vsel %vm44, %v427, 0
  %v443 = vsel %vm44, %v428, 0
  %v446 = vsel %vm44, %v429, 0
  %v449 = vsel %vm44, %v430, 0
  %v452 = vsel %vm44, %v431, 0
  %v455 = vsel %vm44, %v432, 0
  %v458 = vsel %vm44, %v433, 0
  %v461 = vsel %vm44, %v434, 0
  %463 = vmatprep.subr.mxu0 0.0
  %464 = vmatpush1.msra.mxu0 %v435
  %465 = vmatprep.subr.mxu0 0.0
  %466 = vmatpush1.msra.mxu0 %v436
  %467 = vmatprep.subr.mxu0 0.0
  %468 = vmatpush1.msra.mxu0 %v437
  %469 = vmatprep.subr.mxu0 0.0
  %470 = vmatpush1.msra.mxu0 %v438
  %471 = vmatprep.subr.mxu0 0.0
  %472 = vmatpush1.msra.mxu0 0.0
  %473 = vmatprep.subr.mxu0 0.0
  %474 = vmatpush1.msra.mxu0 0.0
  %475 = vmatprep.subr.mxu0 0.0
  %476 = vmatpush1.msra.mxu0 0.0
  %477 = vmatprep.subr.mxu0 0.0
  %478 = vmatpush1.msra.mxu0 0.0
  %479 = vmatprep.subr.mxu0 0.0
  %480 = vmatpush1.msra.mxu0 0.0
  %481 = vmatprep.subr.mxu0 0.0
  %482 = vmatpush1.msra.mxu0 0.0
  %483 = vmatprep.subr.mxu0 0.0
  %484 = vmatpush1.msra.mxu0 0.0
  %485 = vmatprep.subr.mxu0 0.0
  %486 = vmatpush1.msra.mxu0 0.0
  %487 = vmatprep.subr.mxu0 0.0
  %488 = vmatpush1.msra.mxu0 0.0
  %489 = vmatprep.subr.mxu0 0.0
  %490 = vmatpush1.msra.mxu0 0.0
  %491 = vmatprep.subr.mxu0 0.0
  %492 = vmatpush1.msra.mxu0 0.0
  %493 = vmatprep.subr.mxu0 0.0
  %494 = vmatpush1.msra.mxu0 0.0
  %495 = vmatprep.subr.mxu0 0.0
  %496 = vmatpush1.msra.mxu0 0.0
  %497 = vmatprep.subr.mxu0 0.0
  %498 = vmatpush1.msra.mxu0 0.0
  %499 = vmatprep.subr.mxu0 0.0
  %500 = vmatpush1.msra.mxu0 0.0
  %501 = vmatprep.subr.mxu0 0.0
  %502 = vmatpush1.msra.mxu0 0.0
  %503 = vmatprep.subr.mxu0 0.0
  %504 = vmatpush1.msra.mxu0 0.0
  %505 = vmatprep.subr.mxu0 0.0
  %506 = vmatpush1.msra.mxu0 0.0
  %507 = vmatprep.subr.mxu0 0.0
  %508 = vmatpush1.msra.mxu0 0.0
  %509 = vmatprep.subr.mxu0 0.0
  %510 = vmatpush1.msra.mxu0 0.0
  %511 = vmatprep.subr.mxu0 0.0
  %512 = vmatpush1.msra.mxu0 0.0
  %513 = vmatprep.subr.mxu0 0.0
  %514 = vmatpush1.msra.mxu0 0.0
  %515 = vmatprep.subr.mxu0 0.0
  %516 = vmatpush1.msra.mxu0 0.0
  %517 = vmatprep.subr.mxu0 0.0
  %518 = vmatpush1.msra.mxu0 0.0
  %519 = vmatprep.subr.mxu0 0.0
  %520 = vmatpush1.msra.mxu0 0.0
  %521 = vmatprep.subr.mxu0 0.0
  %522 = vmatpush1.msra.mxu0 0.0
  %523 = vmatprep.subr.mxu0 0.0
  %524 = vmatpush1.msra.mxu0 0.0
  %525 = vmatprep.subr.mxu0 0.0
  %526 = vmatpush1.msra.mxu0 0.0
  %527 = vmatprep.mubr.f32.mxu0 0.0
  %528 = vmatmul.mubr.f32.gmra.mrb[0].mxu0 %v440
  %v529 = vpop.f32.mrb[0].mxu0
  %v530 = vadd.f32 1e-08, %v529
  %v531 = vpop.f32.mrb[0].mxu0
  %532 = vmatprep.mubr.f32.mxu0 0.0
  %533 = vmatmul.mubr.f32.gmra.mrb[0].mxu0 %v443
  %v534 = vpop.f32.mrb[0].mxu0
  %v535 = vadd.f32 1e-08, %v534
  %v536 = vpop.f32.mrb[0].mxu0
  %537 = vmatprep.mubr.f32.mxu0 0.0
  %538 = vmatmul.mubr.f32.gmra.mrb[0].mxu0 %v446
  %v539 = vpop.f32.mrb[0].mxu0
  %v540 = vadd.f32 1e-08, %v539
  %v541 = vpop.f32.mrb[0].mxu0
  %542 = vmatprep.mubr.f32.mxu0 0.0
  %543 = vmatmul.mubr.f32.gmra.mrb[0].mxu0 %v449
  %v544 = vpop.f32.mrb[0].mxu0
  %v545 = vadd.f32 1e-08, %v544
  %v546 = vpop.f32.mrb[0].mxu0
  %547 = vmatprep.mubr.f32.mxu0 0.0
  %548 = vmatmul.mubr.f32.gmra.mrb[0].mxu0 %v452
  %v549 = vpop.f32.mrb[0].mxu0
  %v550 = vadd.f32 1e-08, %v549
  %v551 = vpop.f32.mrb[0].mxu0
  %552 = vmatprep.mubr.f32.mxu0 0.0
  %553 = vmatmul.mubr.f32.gmra.mrb[0].mxu0 %v455
  %v554 = vpop.f32.mrb[0].mxu0
  %v555 = vadd.f32 1e-08, %v554
  %v556 = vpop.f32.mrb[0].mxu0
  %557 = vmatprep.mubr.f32.mxu0 0.0
  %558 = vmatmul.mubr.f32.gmra.mrb[0].mxu0 %v458
  %v559 = vpop.f32.mrb[0].mxu0
  %v560 = vadd.f32 1e-08, %v559
  %v561 = vpop.f32.mrb[0].mxu0
  %562 = vmatprep.mubr.f32.mxu0 0.0
  %563 = vmatmul.mubr.f32.gmra.mrb[0].mxu0 %v461
  %v564 = vpop.f32.mrb[0].mxu0
  %v565 = vadd.f32 1e-08, %v564
  %v566 = vpop.f32.mrb[0].mxu0
  %567 = vdwg.mxu0
  %v568 = vrsqrt.pop %v530
  %v569 = vrsqrt.pop %v535
  %v570 = vrsqrt.pop %v540
  %v571 = vrsqrt.pop %v545
  %v572 = vrsqrt.pop %v550
  %v573 = vrsqrt.pop %v555
  %v574 = vrsqrt.pop %v560
  %v575 = vrsqrt.pop %v565
  %v576 = vld [vmem:[%s0] sm:$0xff]
  %v577 = vld [vmem:[%s0 + $0x8] sm:$0xff]
  %v578 = vld [vmem:[%s0 + $0x10] sm:$0xff]
  %v579 = vld [vmem:[%s0 + $0x18] sm:$0xff]
  %581 = vset.pattern.permute.xlu0 0
  %582 = vperm.xlu0 %581, %v230
  %v583 = vpop.permute.xlu0 %582
  %586 = vset.pattern.permute.xlu0 0
  %587 = vperm.xlu0 %586, %v231
  %v588 = vpop.permute.xlu0 %587
  %591 = vset.pattern.permute.xlu0 0
  %592 = vperm.xlu0 %591, %v232
  %v593 = vpop.permute.xlu0 %592
  %596 = vset.pattern.permute.xlu0 0
  %597 = vperm.xlu0 %596, %v233
  %v598 = vpop.permute.xlu0 %597
  %v600 = vmul.f32 %v576, %v583
  %v601 = vmul.f32 %v577, %v588
  %v602 = vmul.f32 %v578, %v593
  %v603 = vmul.f32 %v579, %v598
  %vm604 = vcmask 523264
  %v605 = vsel %vm604, %v600, 0.0
  %v606 = vsel %vm604, %v601, 0.0
  %v607 = vadd.f32 %v605, %v606
  %v608 = vsel %vm604, %v602, 0.0
  %v609 = vadd.f32 %v607, %v608
  %v610 = vsel %vm604, %v603, 0.0
  %v611 = vadd.f32 %v609, %v610
  %v612 = vrot.slane %v611, 4
  %v613 = vadd.f32 %v611, %v612
  %v614 = vrot.slane %v613, 2
  %v615 = vadd.f32 %v613, %v614
  %v616 = vrot.slane %v615, 1
  %v617 = vadd.f32 %v615, %v616
  %v618 = vrcp.pop 32.0
  %v619 = vmul.f32 %v617, %v618
  %v620 = vsub.f32 %v600, %v619
  %v621 = vsub.f32 %v601, %v619
  %v622 = vsub.f32 %v602, %v619
  %v623 = vsub.f32 %v603, %v619
  %v624 = vmul.f32 %v620, %v620
  %v625 = vmul.f32 %v621, %v621
  %v626 = vmul.f32 %v622, %v622
  %v627 = vmul.f32 %v623, %v623
  %v628 = vsel %vm604, %v624, 0.0
  %v629 = vsel %vm604, %v625, 0.0
  %v630 = vadd.f32 %v628, %v629
  %v631 = vsel %vm604, %v626, 0.0
  %v632 = vadd.f32 %v630, %v631
  %v633 = vsel %vm604, %v627, 0.0
  %v634 = vadd.f32 %v632, %v633
  %v635 = vrot.slane %v634, 4
  %v636 = vadd.f32 %v634, %v635
  %v637 = vrot.slane %v636, 2
  %v638 = vadd.f32 %v636, %v637
  %v639 = vrot.slane %v638, 1
  %v640 = vadd.f32 %v638, %v639
  %v641 = vmul.f32 %v640, %v618
  %v642 = vadd.f32 %v641, 1e-05
  %v643 = vrsqrt.pop %v642
  %v644 = vmul.f32 %v620, %v643
  %v645 = vmul.f32 %v621, %v643
  %v646 = vmul.f32 %v622, %v643
  %v647 = vmul.f32 %v623, %v643
  %v648 = vld [vmem:[%s4] sm:$0xff]
  %v649 = vld [vmem:[%s4 + $0x8] sm:$0xff]
  %v650 = vld [vmem:[%s4 + $0x10] sm:$0xff]
  %v651 = vld [vmem:[%s4 + $0x18] sm:$0xff]
  %v652 = vld [vmem:[%s4 + $0x20] sm:$0xff]
  %v653 = vld [vmem:[%s4 + $0x28] sm:$0xff]
  %v654 = vld [vmem:[%s4 + $0x30] sm:$0xff]
  %v655 = vld [vmem:[%s4 + $0x38] sm:$0xff]
  %v656 = vld [vmem:[%s4 + $0x40] sm:$0xff]
  %v657 = vld [vmem:[%s4 + $0x48] sm:$0xff]
  %v658 = vld [vmem:[%s4 + $0x50] sm:$0xff]
  %v659 = vld [vmem:[%s4 + $0x58] sm:$0xff]
  %v661 = vsel %vm44, %v648, 0
  %v664 = vsel %vm44, %v649, 0
  %v667 = vsel %vm44, %v650, 0
  %v670 = vsel %vm44, %v651, 0
  %v673 = vsel %vm44, %v652, 0
  %v676 = vsel %vm44, %v653, 0
  %v679 = vsel %vm44, %v654, 0
  %v682 = vsel %vm44, %v655, 0
  %v685 = vsel %vm44, %v656, 0
  %v688 = vsel %vm44, %v657, 0
  %v691 = vsel %vm44, %v658, 0
  %v694 = vsel %vm44, %v659, 0
  %696 = vmatprep.subr.mxu0 0.0
  %697 = vmatpush1.msra.mxu0 %v644
  %698 = vmatprep.subr.mxu0 0.0
  %699 = vmatpush1.msra.mxu0 %v645
  %700 = vmatprep.subr.mxu0 0.0
  %701 = vmatpush1.msra.mxu0 %v646
  %702 = vmatprep.subr.mxu0 0.0
  %703 = vmatpush1.msra.mxu0 %v647
  %704 = vmatprep.subr.mxu0 0.0
  %705 = vmatpush1.msra.mxu0 0.0
  %706 = vmatprep.subr.mxu0 0.0
  %707 = vmatpush1.msra.mxu0 0.0
  %708 = vmatprep.subr.mxu0 0.0
  %709 = vmatpush1.msra.mxu0 0.0
  %710 = vmatprep.subr.mxu0 0.0
  %711 = vmatpush1.msra.mxu0 0.0
  %712 = vmatprep.subr.mxu0 0.0
  %713 = vmatpush1.msra.mxu0 0.0
  %714 = vmatprep.subr.mxu0 0.0
  %715 = vmatpush1.msra.mxu0 0.0
  %716 = vmatprep.subr.mxu0 0.0
  %717 = vmatpush1.msra.mxu0 0.0
  %718 = vmatprep.subr.mxu0 0.0
  %719 = vmatpush1.msra.mxu0 0.0
  %720 = vmatprep.subr.mxu0 0.0
  %721 = vmatpush1.msra.mxu0 0.0
  %722 = vmatprep.subr.mxu0 0.0
  %723 = vmatpush1.msra.mxu0 0.0
  %724 = vmatprep.subr.mxu0 0.0
  %725 = vmatpush1.msra.mxu0 0.0
  %726 = vmatprep.subr.mxu0 0.0
  %727 = vmatpush1.msra.mxu0 0.0
  %728 = vmatprep.subr.mxu0 0.0
  %729 = vmatpush1.msra.mxu0 0.0
  %730 = vmatprep.subr.mxu0 0.0
  %731 = vmatpush1.msra.mxu0 0.0
  %732 = vmatprep.subr.mxu0 0.0
  %733 = vmatpush1.msra.mxu0 0.0
  %734 = vmatprep.subr.mxu0 0.0
  %735 = vmatpush1.msra.mxu0 0.0
  %736 = vmatprep.subr.mxu0 0.0
  %737 = vmatpush1.msra.mxu0 0.0
  %738 = vmatprep.subr.mxu0 0.0
  %739 = vmatpush1.msra.mxu0 0.0
  %740 = vmatprep.subr.mxu0 0.0
  %741 = vmatpush1.msra.mxu0 0.0
  %742 = vmatprep.subr.mxu0 0.0
  %743 = vmatpush1.msra.mxu0 0.0
  %744 = vmatprep.subr.mxu0 0.0
  %745 = vmatpush1.msra.mxu0 0.0
  %746 = vmatprep.subr.mxu0 0.0
  %747 = vmatpush1.msra.mxu0 0.0
  %748 = vmatprep.subr.mxu0 0.0
  %749 = vmatpush1.msra.mxu0 0.0
  %750 = vmatprep.subr.mxu0 0.0
  %751 = vmatpush1.msra.mxu0 0.0
  %752 = vmatprep.subr.mxu0 0.0
  %753 = vmatpush1.msra.mxu0 0.0
  %754 = vmatprep.subr.mxu0 0.0
  %755 = vmatpush1.msra.mxu0 0.0
  %756 = vmatprep.subr.mxu0 0.0
  %757 = vmatpush1.msra.mxu0 0.0
  %758 = vmatprep.subr.mxu0 0.0
  %759 = vmatpush1.msra.mxu0 0.0
  %760 = vmatprep.mubr.f32.mxu0 0.0
  %761 = vmatmul.mubr.f32.gmra.mrb[0].mxu0 %v661
  %v762 = vpop.f32.mrb[0].mxu0
  %v763 = vadd.f32 0.0, %v762
  %v764 = vpop.f32.mrb[0].mxu0
  %765 = vmatprep.mubr.f32.mxu0 0.0
  %766 = vmatmul.mubr.f32.gmra.mrb[0].mxu0 %v664
  %v767 = vpop.f32.mrb[0].mxu0
  %v768 = vadd.f32 0.0, %v767
  %v769 = vpop.f32.mrb[0].mxu0
  %770 = vmatprep.mubr.f32.mxu0 0.0
  %771 = vmatmul.mubr.f32.gmra.mrb[0].mxu0 %v667
  %v772 = vpop.f32.mrb[0].mxu0
  %v773 = vadd.f32 0.0, %v772
  %v774 = vpop.f32.mrb[0].mxu0
  %775 = vmatprep.mubr.f32.mxu0 0.0
  %776 = vmatmul.mubr.f32.gmra.mrb[0].mxu0 %v670
  %v777 = vpop.f32.mrb[0].mxu0
  %v778 = vadd.f32 0.0, %v777
  %v779 = vpop.f32.mrb[0].mxu0
  %780 = vmatprep.mubr.f32.mxu0 0.0
  %781 = vmatmul.mubr.f32.gmra.mrb[0].mxu0 %v673
  %v782 = vpop.f32.mrb[0].mxu0
  %v783 = vadd.f32 0.0, %v782
  %v784 = vpop.f32.mrb[0].mxu0
  %785 = vmatprep.mubr.f32.mxu0 0.0
  %786 = vmatmul.mubr.f32.gmra.mrb[0].mxu0 %v676
  %v787 = vpop.f32.mrb[0].mxu0
  %v788 = vadd.f32 0.0, %v787
  %v789 = vpop.f32.mrb[0].mxu0
  %790 = vmatprep.mubr.f32.mxu0 0.0
  %791 = vmatmul.mubr.f32.gmra.mrb[0].mxu0 %v679
  %v792 = vpop.f32.mrb[0].mxu0
  %v793 = vadd.f32 0.0, %v792
  %v794 = vpop.f32.mrb[0].mxu0
  %795 = vmatprep.mubr.f32.mxu0 0.0
  %796 = vmatmul.mubr.f32.gmra.mrb[0].mxu0 %v682
  %v797 = vpop.f32.mrb[0].mxu0
  %v798 = vadd.f32 0.0, %v797
  %v799 = vpop.f32.mrb[0].mxu0
  %800 = vmatprep.mubr.f32.mxu0 0.0
  %801 = vmatmul.mubr.f32.gmra.mrb[0].mxu0 %v685
  %v802 = vpop.f32.mrb[0].mxu0
  %v803 = vadd.f32 0.0, %v802
  %v804 = vpop.f32.mrb[0].mxu0
  %805 = vmatprep.mubr.f32.mxu0 0.0
  %806 = vmatmul.mubr.f32.gmra.mrb[0].mxu0 %v688
  %v807 = vpop.f32.mrb[0].mxu0
  %v808 = vadd.f32 0.0, %v807
  %v809 = vpop.f32.mrb[0].mxu0
  %810 = vmatprep.mubr.f32.mxu0 0.0
  %811 = vmatmul.mubr.f32.gmra.mrb[0].mxu0 %v691
  %v812 = vpop.f32.mrb[0].mxu0
  %v813 = vadd.f32 0.0, %v812
  %v814 = vpop.f32.mrb[0].mxu0
  %815 = vmatprep.mubr.f32.mxu0 0.0
  %816 = vmatmul.mubr.f32.gmra.mrb[0].mxu0 %v694
  %v817 = vpop.f32.mrb[0].mxu0
  %v818 = vadd.f32 0.0, %v817
  %v819 = vpop.f32.mrb[0].mxu0
  %820 = vdwg.mxu0
  %822 = vset.pattern.permute.xlu0 0
  %823 = vperm.xlu0 %822, %v415
  %v824 = vpop.permute.xlu0 %823
  %827 = vset.pattern.permute.xlu0 0
  %828 = vperm.xlu0 %827, %v416
  %v829 = vpop.permute.xlu0 %828
  %832 = vset.pattern.permute.xlu0 0
  %833 = vperm.xlu0 %832, %v417
  %v834 = vpop.permute.xlu0 %833
  %837 = vset.pattern.permute.xlu0 0
  %838 = vperm.xlu0 %837, %v418
  %v839 = vpop.permute.xlu0 %838
  %842 = vset.pattern.permute.xlu0 0
  %843 = vperm.xlu0 %842, %v419
  %v844 = vpop.permute.xlu0 %843
  %847 = vset.pattern.permute.xlu0 0
  %848 = vperm.xlu0 %847, %v420
  %v849 = vpop.permute.xlu0 %848
  %852 = vset.pattern.permute.xlu0 0
  %853 = vperm.xlu0 %852, %v421
  %v854 = vpop.permute.xlu0 %853
  %857 = vset.pattern.permute.xlu0 0
  %858 = vperm.xlu0 %857, %v422
  %v859 = vpop.permute.xlu0 %858
  %862 = vset.pattern.permute.xlu0 0
  %863 = vperm.xlu0 %862, %v423
  %v864 = vpop.permute.xlu0 %863
  %867 = vset.pattern.permute.xlu0 0
  %868 = vperm.xlu0 %867, %v424
  %v869 = vpop.permute.xlu0 %868
  %872 = vset.pattern.permute.xlu0 0
  %873 = vperm.xlu0 %872, %v425
  %v874 = vpop.permute.xlu0 %873
  %877 = vset.pattern.permute.xlu0 0
  %878 = vperm.xlu0 %877, %v426
  %v879 = vpop.permute.xlu0 %878
  %v881 = vmul.f32 %v763, %v824
  %v882 = vmul.f32 %v768, %v829
  %v883 = vmul.f32 %v773, %v834
  %v884 = vmul.f32 %v778, %v839
  %v885 = vmul.f32 %v783, %v844
  %v886 = vmul.f32 %v788, %v849
  %v887 = vmul.f32 %v793, %v854
  %v888 = vmul.f32 %v798, %v859
  %v889 = vmul.f32 %v803, %v864
  %v890 = vmul.f32 %v808, %v869
  %v891 = vmul.f32 %v813, %v874
  %v892 = vmul.f32 %v818, %v879
  %894 = vset.pattern.permute.xlu0 0
  %895 = vperm.xlu0 %894, %v234
  %v896 = vpop.permute.xlu0 %895
  %899 = vset.pattern.permute.xlu0 0
  %900 = vperm.xlu0 %899, %v235
  %v901 = vpop.permute.xlu0 %900
  %904 = vset.pattern.permute.xlu0 0
  %905 = vperm.xlu0 %904, %v236
  %v906 = vpop.permute.xlu0 %905
  %909 = vset.pattern.permute.xlu0 0
  %910 = vperm.xlu0 %909, %v237
  %v911 = vpop.permute.xlu0 %910
  %v913 = vmul.f32 %v889, %v896
  %v914 = vmul.f32 %v890, %v901
  %v915 = vmul.f32 %v891, %v906
  %v916 = vmul.f32 %v892, %v911
  %917 = vxpose.xlu0.b32.start [1/16] %v881, 128
  %918 = vxpose.xlu0.b32.cont [2/16] %v882, 128
  %919 = vxpose.xlu0.b32.cont [3/16] 0.0, 128
  %920 = vxpose.xlu0.b32.cont [4/16] 0.0, 128
  %921 = vxpose.xlu0.b32.cont [5/16] 0.0, 128
  %922 = vxpose.xlu0.b32.cont [6/16] 0.0, 128
  %923 = vxpose.xlu0.b32.cont [7/16] 0.0, 128
  %924 = vxpose.xlu0.b32.cont [8/16] 0.0, 128
  %925 = vxpose.xlu0.b32.cont [9/16] 0.0, 128
  %926 = vxpose.xlu0.b32.cont [10/16] 0.0, 128
  %927 = vxpose.xlu0.b32.cont [11/16] 0.0, 128
  %928 = vxpose.xlu0.b32.cont [12/16] 0.0, 128
  %929 = vxpose.xlu0.b32.cont [13/16] 0.0, 128
  %930 = vxpose.xlu0.b32.cont [14/16] 0.0, 128
  %931 = vxpose.xlu0.b32.cont [15/16] 0.0, 128
  %932 = vxpose.xlu0.b32.end [16/16] 0.0, 128
  %v933 = vpop.trf.xlu0
  %v934 = vpop.trf.xlu0
  %v935 = vpop.trf.xlu0
  %v936 = vpop.trf.xlu0
  %v937 = vpop.trf.xlu0
  %v938 = vpop.trf.xlu0
  %v939 = vpop.trf.xlu0
  %v940 = vpop.trf.xlu0
  %v941 = vpop.trf.xlu0
  %v942 = vpop.trf.xlu0
  %v943 = vpop.trf.xlu0
  %v944 = vpop.trf.xlu0
  %v945 = vpop.trf.xlu0
  %v946 = vpop.trf.xlu0
  %v947 = vpop.trf.xlu0
  %v948 = vpop.trf.xlu0
  %vm949 = vcmask 130048
  %v951 = vsel %vm949, %v933, 0
  %v954 = vsel %vm949, %v934, 0
  %v957 = vsel %vm949, %v935, 0
  %v960 = vsel %vm949, %v936, 0
  %v963 = vsel %vm949, %v937, 0
  %v966 = vsel %vm949, %v938, 0
  %v969 = vsel %vm949, %v939, 0
  %v972 = vsel %vm949, %v940, 0
  %974 = vmatprep.subr.mxu0 0.0
  %975 = vmatpush1.msra.mxu0 %v885
  %976 = vmatprep.subr.mxu0 0.0
  %977 = vmatpush1.msra.mxu0 %v886
  %978 = vmatprep.subr.mxu0 0.0
  %979 = vmatpush1.msra.mxu0 0.0
  %980 = vmatprep.subr.mxu0 0.0
  %981 = vmatpush1.msra.mxu0 0.0
  %982 = vmatprep.subr.mxu0 0.0
  %983 = vmatpush1.msra.mxu0 0.0
  %984 = vmatprep.subr.mxu0 0.0
  %985 = vmatpush1.msra.mxu0 0.0
  %986 = vmatprep.subr.mxu0 0.0
  %987 = vmatpush1.msra.mxu0 0.0
  %988 = vmatprep.subr.mxu0 0.0
  %989 = vmatpush1.msra.mxu0 0.0
  %990 = vmatprep.subr.mxu0 0.0
  %991 = vmatpush1.msra.mxu0 0.0
  %992 = vmatprep.subr.mxu0 0.0
  %993 = vmatpush1.msra.mxu0 0.0
  %994 = vmatprep.subr.mxu0 0.0
  %995 = vmatpush1.msra.mxu0 0.0
  %996 = vmatprep.subr.mxu0 0.0
  %997 = vmatpush1.msra.mxu0 0.0
  %998 = vmatprep.subr.mxu0 0.0
  %999 = vmatpush1.msra.mxu0 0.0
  %1000 = vmatprep.subr.mxu0 0.0
  %1001 = vmatpush1.msra.mxu0 0.0
  %1002 = vmatprep.subr.mxu0 0.0
  %1003 = vmatpush1.msra.mxu0 0.0
  %1004 = vmatprep.subr.mxu0 0.0
  %1005 = vmatpush1.msra.mxu0 0.0
  %1006 = vmatprep.subr.mxu0 0.0
  %1007 = vmatpush1.msra.mxu0 0.0
  %1008 = vmatprep.subr.mxu0 0.0
  %1009 = vmatpush1.msra.mxu0 0.0
  %1010 = vmatprep.subr.mxu0 0.0
  %1011 = vmatpush1.msra.mxu0 0.0
  %1012 = vmatprep.subr.mxu0 0.0
  %1013 = vmatpush1.msra.mxu0 0.0
  %1014 = vmatprep.subr.mxu0 0.0
  %1015 = vmatpush1.msra.mxu0 0.0
  %1016 = vmatprep.subr.mxu0 0.0
  %1017 = vmatpush1.msra.mxu0 0.0
  %1018 = vmatprep.subr.mxu0 0.0
  %1019 = vmatpush1.msra.mxu0 0.0
  %1020 = vmatprep.subr.mxu0 0.0
  %1021 = vmatpush1.msra.mxu0 0.0
  %1022 = vmatprep.subr.mxu0 0.0
  %1023 = vmatpush1.msra.mxu0 0.0
  %1024 = vmatprep.subr.mxu0 0.0
  %1025 = vmatpush1.msra.mxu0 0.0
  %1026 = vmatprep.subr.mxu0 0.0
  %1027 = vmatpush1.msra.mxu0 0.0
  %1028 = vmatprep.subr.mxu0 0.0
  %1029 = vmatpush1.msra.mxu0 0.0
  %1030 = vmatprep.subr.mxu0 0.0
  %1031 = vmatpush1.msra.mxu0 0.0
  %1032 = vmatprep.subr.mxu0 0.0
  %1033 = vmatpush1.msra.mxu0 0.0
  %1034 = vmatprep.subr.mxu0 0.0
  %1035 = vmatpush1.msra.mxu0 0.0
  %1036 = vmatprep.subr.mxu0 0.0
  %1037 = vmatpush1.msra.mxu0 0.0
  %1038 = vmatprep.mubr.f32.mxu0 0.0
  %1039 = vmatmul.mubr.f32.gmra.mrb[0].mxu0 %v951
  %v1040 = vpop.f32.mrb[0].mxu0
  %v1041 = vadd.f32 0.0, %v1040
  %v1042 = vpop.f32.mrb[0].mxu0
  %1043 = vmatprep.mubr.f32.mxu0 0.0
  %1044 = vmatmul.mubr.f32.gmra.mrb[0].mxu0 %v954
  %v1045 = vpop.f32.mrb[0].mxu0
  %v1046 = vadd.f32 0.0, %v1045
  %v1047 = vpop.f32.mrb[0].mxu0
  %1048 = vmatprep.mubr.f32.mxu0 0.0
  %1049 = vmatmul.mubr.f32.gmra.mrb[0].mxu0 %v957
  %v1050 = vpop.f32.mrb[0].mxu0
  %v1051 = vadd.f32 0.0, %v1050
  %v1052 = vpop.f32.mrb[0].mxu0
  %1053 = vmatprep.mubr.f32.mxu0 0.0
  %1054 = vmatmul.mubr.f32.gmra.mrb[0].mxu0 %v960
  %v1055 = vpop.f32.mrb[0].mxu0
  %v1056 = vadd.f32 0.0, %v1055
  %v1057 = vpop.f32.mrb[0].mxu0
  %1058 = vmatprep.mubr.f32.mxu0 0.0
  %1059 = vmatmul.mubr.f32.gmra.mrb[0].mxu0 %v963
  %v1060 = vpop.f32.mrb[0].mxu0
  %v1061 = vadd.f32 0.0, %v1060
  %v1062 = vpop.f32.mrb[0].mxu0
  %1063 = vmatprep.mubr.f32.mxu0 0.0
  %1064 = vmatmul.mubr.f32.gmra.mrb[0].mxu0 %v966
  %v1065 = vpop.f32.mrb[0].mxu0
  %v1066 = vadd.f32 0.0, %v1065
  %v1067 = vpop.f32.mrb[0].mxu0
  %1068 = vmatprep.mubr.f32.mxu0 0.0
  %1069 = vmatmul.mubr.f32.gmra.mrb[0].mxu0 %v969
  %v1070 = vpop.f32.mrb[0].mxu0
  %v1071 = vadd.f32 0.0, %v1070
  %v1072 = vpop.f32.mrb[0].mxu0
  %1073 = vmatprep.mubr.f32.mxu0 0.0
  %1074 = vmatmul.mubr.f32.gmra.mrb[0].mxu0 %v972
  %v1075 = vpop.f32.mrb[0].mxu0
  %v1076 = vadd.f32 0.0, %v1075
  %v1077 = vpop.f32.mrb[0].mxu0
  %1078 = vdwg.mxu0
  %v1079 = vmul.f32 %v1041, 0.25
  %v1080 = vmul.f32 %v1046, 0.25
  %v1081 = vmul.f32 %v1051, 0.25
  %v1082 = vmul.f32 %v1056, 0.25
  %v1083 = vmul.f32 %v1061, 0.25
  %v1084 = vmul.f32 %v1066, 0.25
  %v1085 = vmul.f32 %v1071, 0.25
  %v1086 = vmul.f32 %v1076, 0.25
  %v1087 = vsel %vm604, %v1079, -inf
  %1088 = vmax.xlane.f32.xlu0 %v1087
  %v1089 = vpop.xlane.xlu0 %1088
  %v1090 = vsel %vm604, %v1080, -inf
  %1091 = vmax.xlane.f32.xlu0 %v1090
  %v1092 = vpop.xlane.xlu0 %1091
  %v1093 = vsel %vm604, %v1081, -inf
  %1094 = vmax.xlane.f32.xlu0 %v1093
  %v1095 = vpop.xlane.xlu0 %1094
  %v1096 = vsel %vm604, %v1082, -inf
  %1097 = vmax.xlane.f32.xlu0 %v1096
  %v1098 = vpop.xlane.xlu0 %1097
  %v1099 = vsel %vm604, %v1083, -inf
  %1100 = vmax.xlane.f32.xlu0 %v1099
  %v1101 = vpop.xlane.xlu0 %1100
  %v1102 = vsel %vm604, %v1084, -inf
  %1103 = vmax.xlane.f32.xlu0 %v1102
  %v1104 = vpop.xlane.xlu0 %1103
  %v1105 = vsel %vm604, %v1085, -inf
  %1106 = vmax.xlane.f32.xlu0 %v1105
  %v1107 = vpop.xlane.xlu0 %1106
  %v1108 = vsel %vm604, %v1086, -inf
  %1109 = vmax.xlane.f32.xlu0 %v1108
  %v1110 = vpop.xlane.xlu0 %1109
  %v1111 = vsub.f32 %v1079, %v1089
  %v1112 = vsub.f32 %v1080, %v1092
  %v1113 = vsub.f32 %v1081, %v1095
  %v1114 = vsub.f32 %v1082, %v1098
  %v1115 = vsub.f32 %v1083, %v1101
  %v1116 = vsub.f32 %v1084, %v1104
  %v1117 = vsub.f32 %v1085, %v1107
  %v1118 = vsub.f32 %v1086, %v1110
  %v1119 = vmul.f32 %v1111, 1.442695
  %v1120 = vpow.pop %v1119
  %v1121 = vmul.f32 %v1112, 1.442695
  %v1122 = vpow.pop %v1121
  %v1123 = vmul.f32 %v1113, 1.442695
  %v1124 = vpow.pop %v1123
  %v1125 = vmul.f32 %v1114, 1.442695
  %v1126 = vpow.pop %v1125
  %v1127 = vmul.f32 %v1115, 1.442695
  %v1128 = vpow.pop %v1127
  %v1129 = vmul.f32 %v1116, 1.442695
  %v1130 = vpow.pop %v1129
  %v1131 = vmul.f32 %v1117, 1.442695
  %v1132 = vpow.pop %v1131
  %v1133 = vmul.f32 %v1118, 1.442695
  %v1134 = vpow.pop %v1133
  %v1135 = vsel %vm604, %v1120, 0.0
  %1136 = vadd.xlane.f32.xlu0 %v1135
  %v1137 = vpop.xlane.xlu0 %1136
  %v1138 = vsel %vm604, %v1122, 0.0
  %1139 = vadd.xlane.f32.xlu0 %v1138
  %v1140 = vpop.xlane.xlu0 %1139
  %v1141 = vsel %vm604, %v1124, 0.0
  %1142 = vadd.xlane.f32.xlu0 %v1141
  %v1143 = vpop.xlane.xlu0 %1142
  %v1144 = vsel %vm604, %v1126, 0.0
  %1145 = vadd.xlane.f32.xlu0 %v1144
  %v1146 = vpop.xlane.xlu0 %1145
  %v1147 = vsel %vm604, %v1128, 0.0
  %1148 = vadd.xlane.f32.xlu0 %v1147
  %v1149 = vpop.xlane.xlu0 %1148
  %v1150 = vsel %vm604, %v1130, 0.0
  %1151 = vadd.xlane.f32.xlu0 %v1150
  %v1152 = vpop.xlane.xlu0 %1151
  %v1153 = vsel %vm604, %v1132, 0.0
  %1154 = vadd.xlane.f32.xlu0 %v1153
  %v1155 = vpop.xlane.xlu0 %1154
  %v1156 = vsel %vm604, %v1134, 0.0
  %1157 = vadd.xlane.f32.xlu0 %v1156
  %v1158 = vpop.xlane.xlu0 %1157
  %v1159 = vrcp.pop %v1137
  %v1160 = vrcp.pop %v1140
  %v1161 = vrcp.pop %v1143
  %v1162 = vrcp.pop %v1146
  %v1163 = vrcp.pop %v1149
  %v1164 = vrcp.pop %v1152
  %v1165 = vrcp.pop %v1155
  %v1166 = vrcp.pop %v1158
  %v1167 = vmul.f32 %v1120, %v1159
  %v1168 = vmul.f32 %v1122, %v1160
  %v1169 = vmul.f32 %v1124, %v1161
  %v1170 = vmul.f32 %v1126, %v1162
  %v1171 = vmul.f32 %v1128, %v1163
  %v1172 = vmul.f32 %v1130, %v1164
  %v1173 = vmul.f32 %v1132, %v1165
  %v1174 = vmul.f32 %v1134, %v1166
  %v1176 = vsel %vm604, %v913, 0
  %v1179 = vsel %vm604, %v914, 0
  %v1182 = vsel %vm604, %v1167, 0
  %v1185 = vsel %vm604, %v1168, 0
  %v1188 = vsel %vm604, %v1169, 0
  %v1191 = vsel %vm604, %v1170, 0
  %v1194 = vsel %vm604, %v1171, 0
  %v1197 = vsel %vm604, %v1172, 0
  %v1200 = vsel %vm604, %v1173, 0
  %v1203 = vsel %vm604, %v1174, 0
  %1205 = vmatprep.subr.mxu0 0.0
  %1206 = vmatpush1.xpose.msra.mxu0 %v1182
  %1207 = vmatprep.subr.mxu0 0.0
  %1208 = vmatpush1.xpose.msra.mxu0 %v1185
  %1209 = vmatprep.subr.mxu0 0.0
  %1210 = vmatpush1.xpose.msra.mxu0 %v1188
  %1211 = vmatprep.subr.mxu0 0.0
  %1212 = vmatpush1.xpose.msra.mxu0 %v1191
  %1213 = vmatprep.subr.mxu0 0.0
  %1214 = vmatpush1.xpose.msra.mxu0 %v1194
  %1215 = vmatprep.subr.mxu0 0.0
  %1216 = vmatpush1.xpose.msra.mxu0 %v1197
  %1217 = vmatprep.subr.mxu0 0.0
  %1218 = vmatpush1.xpose.msra.mxu0 %v1200
  %1219 = vmatprep.subr.mxu0 0.0
  %1220 = vmatpush1.xpose.msra.mxu0 %v1203
  %1221 = vmatprep.subr.mxu0 0.0
  %1222 = vmatpush1.xpose.msra.mxu0 0.0
  %1223 = vmatprep.subr.mxu0 0.0
  %1224 = vmatpush1.xpose.msra.mxu0 0.0
  %1225 = vmatprep.subr.mxu0 0.0
  %1226 = vmatpush1.xpose.msra.mxu0 0.0
  %1227 = vmatprep.subr.mxu0 0.0
  %1228 = vmatpush1.xpose.msra.mxu0 0.0
  %1229 = vmatprep.subr.mxu0 0.0
  %1230 = vmatpush1.xpose.msra.mxu0 0.0
  %1231 = vmatprep.subr.mxu0 0.0
  %1232 = vmatpush1.xpose.msra.mxu0 0.0
  %1233 = vmatprep.subr.mxu0 0.0
  %1234 = vmatpush1.xpose.msra.mxu0 0.0
  %1235 = vmatprep.subr.mxu0 0.0
  %1236 = vmatpush1.xpose.msra.mxu0 0.0
  %1237 = vmatprep.subr.mxu0 0.0
  %1238 = vmatpush1.xpose.msra.mxu0 0.0
  %1239 = vmatprep.subr.mxu0 0.0
  %1240 = vmatpush1.xpose.msra.mxu0 0.0
  %1241 = vmatprep.subr.mxu0 0.0
  %1242 = vmatpush1.xpose.msra.mxu0 0.0
  %1243 = vmatprep.subr.mxu0 0.0
  %1244 = vmatpush1.xpose.msra.mxu0 0.0
  %1245 = vmatprep.subr.mxu0 0.0
  %1246 = vmatpush1.xpose.msra.mxu0 0.0
  %1247 = vmatprep.subr.mxu0 0.0
  %1248 = vmatpush1.xpose.msra.mxu0 0.0
  %1249 = vmatprep.subr.mxu0 0.0
  %1250 = vmatpush1.xpose.msra.mxu0 0.0
  %1251 = vmatprep.subr.mxu0 0.0
  %1252 = vmatpush1.xpose.msra.mxu0 0.0
  %1253 = vmatprep.subr.mxu0 0.0
  %1254 = vmatpush1.xpose.msra.mxu0 0.0
  %1255 = vmatprep.subr.mxu0 0.0
  %1256 = vmatpush1.xpose.msra.mxu0 0.0
  %1257 = vmatprep.subr.mxu0 0.0
  %1258 = vmatpush1.xpose.msra.mxu0 0.0
  %1259 = vmatprep.subr.mxu0 0.0
  %1260 = vmatpush1.xpose.msra.mxu0 0.0
  %1261 = vmatprep.subr.mxu0 0.0
  %1262 = vmatpush1.xpose.msra.mxu0 0.0
  %1263 = vmatprep.subr.mxu0 0.0
  %1264 = vmatpush1.xpose.msra.mxu0 0.0
  %1265 = vmatprep.subr.mxu0 0.0
  %1266 = vmatpush1.xpose.msra.mxu0 0.0
  %1267 = vmatprep.subr.mxu0 0.0
  %1268 = vmatpush1.xpose.msra.mxu0 0.0
  %1269 = vmatprep.mubr.f32.mxu0 0.0
  %1270 = vmatmul.mubr.f32.gmra.mrb[0].mxu0 %v1176
  %v1271 = vpop.f32.mrb[0].mxu0
  %v1272 = vadd.f32 0.0, %v1271
  %v1273 = vpop.f32.mrb[0].mxu0
  %1274 = vmatprep.mubr.f32.mxu0 0.0
  %1275 = vmatmul.mubr.f32.gmra.mrb[0].mxu0 %v1179
  %v1276 = vpop.f32.mrb[0].mxu0
  %v1277 = vadd.f32 0.0, %v1276
  %v1278 = vpop.f32.mrb[0].mxu0
  %1279 = vdwg.mxu0
  %1280 = vxpose.xlu0.b32.start [1/16] %v883, 128
  %1281 = vxpose.xlu0.b32.cont [2/16] %v884, 128
  %1282 = vxpose.xlu0.b32.cont [3/16] 0.0, 128
  %1283 = vxpose.xlu0.b32.cont [4/16] 0.0, 128
  %1284 = vxpose.xlu0.b32.cont [5/16] 0.0, 128
  %1285 = vxpose.xlu0.b32.cont [6/16] 0.0, 128
  %1286 = vxpose.xlu0.b32.cont [7/16] 0.0, 128
  %1287 = vxpose.xlu0.b32.cont [8/16] 0.0, 128
  %1288 = vxpose.xlu0.b32.cont [9/16] 0.0, 128
  %1289 = vxpose.xlu0.b32.cont [10/16] 0.0, 128
  %1290 = vxpose.xlu0.b32.cont [11/16] 0.0, 128
  %1291 = vxpose.xlu0.b32.cont [12/16] 0.0, 128
  %1292 = vxpose.xlu0.b32.cont [13/16] 0.0, 128
  %1293 = vxpose.xlu0.b32.cont [14/16] 0.0, 128
  %1294 = vxpose.xlu0.b32.cont [15/16] 0.0, 128
  %1295 = vxpose.xlu0.b32.end [16/16] 0.0, 128
  %v1296 = vpop.trf.xlu0
  %v1297 = vpop.trf.xlu0
  %v1298 = vpop.trf.xlu0
  %v1299 = vpop.trf.xlu0
  %v1300 = vpop.trf.xlu0
  %v1301 = vpop.trf.xlu0
  %v1302 = vpop.trf.xlu0
  %v1303 = vpop.trf.xlu0
  %v1304 = vpop.trf.xlu0
  %v1305 = vpop.trf.xlu0
  %v1306 = vpop.trf.xlu0
  %v1307 = vpop.trf.xlu0
  %v1308 = vpop.trf.xlu0
  %v1309 = vpop.trf.xlu0
  %v1310 = vpop.trf.xlu0
  %v1311 = vpop.trf.xlu0
  %v1313 = vsel %vm949, %v1296, 0
  %v1316 = vsel %vm949, %v1297, 0
  %v1319 = vsel %vm949, %v1298, 0
  %v1322 = vsel %vm949, %v1299, 0
  %v1325 = vsel %vm949, %v1300, 0
  %v1328 = vsel %vm949, %v1301, 0
  %v1331 = vsel %vm949, %v1302, 0
  %v1334 = vsel %vm949, %v1303, 0
  %1336 = vmatprep.subr.mxu0 0.0
  %1337 = vmatpush1.msra.mxu0 %v887
  %1338 = vmatprep.subr.mxu0 0.0
  %1339 = vmatpush1.msra.mxu0 %v888
  %1340 = vmatprep.subr.mxu0 0.0
  %1341 = vmatpush1.msra.mxu0 0.0
  %1342 = vmatprep.subr.mxu0 0.0
  %1343 = vmatpush1.msra.mxu0 0.0
  %1344 = vmatprep.subr.mxu0 0.0
  %1345 = vmatpush1.msra.mxu0 0.0
  %1346 = vmatprep.subr.mxu0 0.0
  %1347 = vmatpush1.msra.mxu0 0.0
  %1348 = vmatprep.subr.mxu0 0.0
  %1349 = vmatpush1.msra.mxu0 0.0
  %1350 = vmatprep.subr.mxu0 0.0
  %1351 = vmatpush1.msra.mxu0 0.0
  %1352 = vmatprep.subr.mxu0 0.0
  %1353 = vmatpush1.msra.mxu0 0.0
  %1354 = vmatprep.subr.mxu0 0.0
  %1355 = vmatpush1.msra.mxu0 0.0
  %1356 = vmatprep.subr.mxu0 0.0
  %1357 = vmatpush1.msra.mxu0 0.0
  %1358 = vmatprep.subr.mxu0 0.0
  %1359 = vmatpush1.msra.mxu0 0.0
  %1360 = vmatprep.subr.mxu0 0.0
  %1361 = vmatpush1.msra.mxu0 0.0
  %1362 = vmatprep.subr.mxu0 0.0
  %1363 = vmatpush1.msra.mxu0 0.0
  %1364 = vmatprep.subr.mxu0 0.0
  %1365 = vmatpush1.msra.mxu0 0.0
  %1366 = vmatprep.subr.mxu0 0.0
  %1367 = vmatpush1.msra.mxu0 0.0
  %1368 = vmatprep.subr.mxu0 0.0
  %1369 = vmatpush1.msra.mxu0 0.0
  %1370 = vmatprep.subr.mxu0 0.0
  %1371 = vmatpush1.msra.mxu0 0.0
  %1372 = vmatprep.subr.mxu0 0.0
  %1373 = vmatpush1.msra.mxu0 0.0
  %1374 = vmatprep.subr.mxu0 0.0
  %1375 = vmatpush1.msra.mxu0 0.0
  %1376 = vmatprep.subr.mxu0 0.0
  %1377 = vmatpush1.msra.mxu0 0.0
  %1378 = vmatprep.subr.mxu0 0.0
  %1379 = vmatpush1.msra.mxu0 0.0
  %1380 = vmatprep.subr.mxu0 0.0
  %1381 = vmatpush1.msra.mxu0 0.0
  %1382 = vmatprep.subr.mxu0 0.0
  %1383 = vmatpush1.msra.mxu0 0.0
  %1384 = vmatprep.subr.mxu0 0.0
  %1385 = vmatpush1.msra.mxu0 0.0
  %1386 = vmatprep.subr.mxu0 0.0
  %1387 = vmatpush1.msra.mxu0 0.0
  %1388 = vmatprep.subr.mxu0 0.0
  %1389 = vmatpush1.msra.mxu0 0.0
  %1390 = vmatprep.subr.mxu0 0.0
  %1391 = vmatpush1.msra.mxu0 0.0
  %1392 = vmatprep.subr.mxu0 0.0
  %1393 = vmatpush1.msra.mxu0 0.0
  %1394 = vmatprep.subr.mxu0 0.0
  %1395 = vmatpush1.msra.mxu0 0.0
  %1396 = vmatprep.subr.mxu0 0.0
  %1397 = vmatpush1.msra.mxu0 0.0
  %1398 = vmatprep.subr.mxu0 0.0
  %1399 = vmatpush1.msra.mxu0 0.0
  %1400 = vmatprep.mubr.f32.mxu0 0.0
  %1401 = vmatmul.mubr.f32.gmra.mrb[0].mxu0 %v1313
  %v1402 = vpop.f32.mrb[0].mxu0
  %v1403 = vadd.f32 0.0, %v1402
  %v1404 = vpop.f32.mrb[0].mxu0
  %1405 = vmatprep.mubr.f32.mxu0 0.0
  %1406 = vmatmul.mubr.f32.gmra.mrb[0].mxu0 %v1316
  %v1407 = vpop.f32.mrb[0].mxu0
  %v1408 = vadd.f32 0.0, %v1407
  %v1409 = vpop.f32.mrb[0].mxu0
  %1410 = vmatprep.mubr.f32.mxu0 0.0
  %1411 = vmatmul.mubr.f32.gmra.mrb[0].mxu0 %v1319
  %v1412 = vpop.f32.mrb[0].mxu0
  %v1413 = vadd.f32 0.0, %v1412
  %v1414 = vpop.f32.mrb[0].mxu0
  %1415 = vmatprep.mubr.f32.mxu0 0.0
  %1416 = vmatmul.mubr.f32.gmra.mrb[0].mxu0 %v1322
  %v1417 = vpop.f32.mrb[0].mxu0
  %v1418 = vadd.f32 0.0, %v1417
  %v1419 = vpop.f32.mrb[0].mxu0
  %1420 = vmatprep.mubr.f32.mxu0 0.0
  %1421 = vmatmul.mubr.f32.gmra.mrb[0].mxu0 %v1325
  %v1422 = vpop.f32.mrb[0].mxu0
  %v1423 = vadd.f32 0.0, %v1422
  %v1424 = vpop.f32.mrb[0].mxu0
  %1425 = vmatprep.mubr.f32.mxu0 0.0
  %1426 = vmatmul.mubr.f32.gmra.mrb[0].mxu0 %v1328
  %v1427 = vpop.f32.mrb[0].mxu0
  %v1428 = vadd.f32 0.0, %v1427
  %v1429 = vpop.f32.mrb[0].mxu0
  %1430 = vmatprep.mubr.f32.mxu0 0.0
  %1431 = vmatmul.mubr.f32.gmra.mrb[0].mxu0 %v1331
  %v1432 = vpop.f32.mrb[0].mxu0
  %v1433 = vadd.f32 0.0, %v1432
  %v1434 = vpop.f32.mrb[0].mxu0
  %1435 = vmatprep.mubr.f32.mxu0 0.0
  %1436 = vmatmul.mubr.f32.gmra.mrb[0].mxu0 %v1334
  %v1437 = vpop.f32.mrb[0].mxu0
  %v1438 = vadd.f32 0.0, %v1437
  %v1439 = vpop.f32.mrb[0].mxu0
  %1440 = vdwg.mxu0
  %v1441 = vmul.f32 %v1403, 0.25
  %v1442 = vmul.f32 %v1408, 0.25
  %v1443 = vmul.f32 %v1413, 0.25
  %v1444 = vmul.f32 %v1418, 0.25
  %v1445 = vmul.f32 %v1423, 0.25
  %v1446 = vmul.f32 %v1428, 0.25
  %v1447 = vmul.f32 %v1433, 0.25
  %v1448 = vmul.f32 %v1438, 0.25
  %v1449 = vsel %vm604, %v1441, -inf
  %1450 = vmax.xlane.f32.xlu0 %v1449
  %v1451 = vpop.xlane.xlu0 %1450
  %v1452 = vsel %vm604, %v1442, -inf
  %1453 = vmax.xlane.f32.xlu0 %v1452
  %v1454 = vpop.xlane.xlu0 %1453
  %v1455 = vsel %vm604, %v1443, -inf
  %1456 = vmax.xlane.f32.xlu0 %v1455
  %v1457 = vpop.xlane.xlu0 %1456
  %v1458 = vsel %vm604, %v1444, -inf
  %1459 = vmax.xlane.f32.xlu0 %v1458
  %v1460 = vpop.xlane.xlu0 %1459
  %v1461 = vsel %vm604, %v1445, -inf
  %1462 = vmax.xlane.f32.xlu0 %v1461
  %v1463 = vpop.xlane.xlu0 %1462
  %v1464 = vsel %vm604, %v1446, -inf
  %1465 = vmax.xlane.f32.xlu0 %v1464
  %v1466 = vpop.xlane.xlu0 %1465
  %v1467 = vsel %vm604, %v1447, -inf
  %1468 = vmax.xlane.f32.xlu0 %v1467
  %v1469 = vpop.xlane.xlu0 %1468
  %v1470 = vsel %vm604, %v1448, -inf
  %1471 = vmax.xlane.f32.xlu0 %v1470
  %v1472 = vpop.xlane.xlu0 %1471
  %v1473 = vsub.f32 %v1441, %v1451
  %v1474 = vsub.f32 %v1442, %v1454
  %v1475 = vsub.f32 %v1443, %v1457
  %v1476 = vsub.f32 %v1444, %v1460
  %v1477 = vsub.f32 %v1445, %v1463
  %v1478 = vsub.f32 %v1446, %v1466
  %v1479 = vsub.f32 %v1447, %v1469
  %v1480 = vsub.f32 %v1448, %v1472
  %v1481 = vmul.f32 %v1473, 1.442695
  %v1482 = vpow.pop %v1481
  %v1483 = vmul.f32 %v1474, 1.442695
  %v1484 = vpow.pop %v1483
  %v1485 = vmul.f32 %v1475, 1.442695
  %v1486 = vpow.pop %v1485
  %v1487 = vmul.f32 %v1476, 1.442695
  %v1488 = vpow.pop %v1487
  %v1489 = vmul.f32 %v1477, 1.442695
  %v1490 = vpow.pop %v1489
  %v1491 = vmul.f32 %v1478, 1.442695
  %v1492 = vpow.pop %v1491
  %v1493 = vmul.f32 %v1479, 1.442695
  %v1494 = vpow.pop %v1493
  %v1495 = vmul.f32 %v1480, 1.442695
  %v1496 = vpow.pop %v1495
  %v1497 = vsel %vm604, %v1482, 0.0
  %1498 = vadd.xlane.f32.xlu0 %v1497
  %v1499 = vpop.xlane.xlu0 %1498
  %v1500 = vsel %vm604, %v1484, 0.0
  %1501 = vadd.xlane.f32.xlu0 %v1500
  %v1502 = vpop.xlane.xlu0 %1501
  %v1503 = vsel %vm604, %v1486, 0.0
  %1504 = vadd.xlane.f32.xlu0 %v1503
  %v1505 = vpop.xlane.xlu0 %1504
  %v1506 = vsel %vm604, %v1488, 0.0
  %1507 = vadd.xlane.f32.xlu0 %v1506
  %v1508 = vpop.xlane.xlu0 %1507
  %v1509 = vsel %vm604, %v1490, 0.0
  %1510 = vadd.xlane.f32.xlu0 %v1509
  %v1511 = vpop.xlane.xlu0 %1510
  %v1512 = vsel %vm604, %v1492, 0.0
  %1513 = vadd.xlane.f32.xlu0 %v1512
  %v1514 = vpop.xlane.xlu0 %1513
  %v1515 = vsel %vm604, %v1494, 0.0
  %1516 = vadd.xlane.f32.xlu0 %v1515
  %v1517 = vpop.xlane.xlu0 %1516
  %v1518 = vsel %vm604, %v1496, 0.0
  %1519 = vadd.xlane.f32.xlu0 %v1518
  %v1520 = vpop.xlane.xlu0 %1519
  %v1521 = vrcp.pop %v1499
  %v1522 = vrcp.pop %v1502
  %v1523 = vrcp.pop %v1505
  %v1524 = vrcp.pop %v1508
  %v1525 = vrcp.pop %v1511
  %v1526 = vrcp.pop %v1514
  %v1527 = vrcp.pop %v1517
  %v1528 = vrcp.pop %v1520
  %v1529 = vmul.f32 %v1482, %v1521
  %v1530 = vmul.f32 %v1484, %v1522
  %v1531 = vmul.f32 %v1486, %v1523
  %v1532 = vmul.f32 %v1488, %v1524
  %v1533 = vmul.f32 %v1490, %v1525
  %v1534 = vmul.f32 %v1492, %v1526
  %v1535 = vmul.f32 %v1494, %v1527
  %v1536 = vmul.f32 %v1496, %v1528
  %v1538 = vsel %vm604, %v915, 0
  %v1541 = vsel %vm604, %v916, 0
  %v1544 = vsel %vm604, %v1529, 0
  %v1547 = vsel %vm604, %v1530, 0
  %v1550 = vsel %vm604, %v1531, 0
  %v1553 = vsel %vm604, %v1532, 0
  %v1556 = vsel %vm604, %v1533, 0
  %v1559 = vsel %vm604, %v1534, 0
  %v1562 = vsel %vm604, %v1535, 0
  %v1565 = vsel %vm604, %v1536, 0
  %1567 = vmatprep.subr.mxu0 0.0
  %1568 = vmatpush1.xpose.msra.mxu0 %v1544
  %1569 = vmatprep.subr.mxu0 0.0
  %1570 = vmatpush1.xpose.msra.mxu0 %v1547
  %1571 = vmatprep.subr.mxu0 0.0
  %1572 = vmatpush1.xpose.msra.mxu0 %v1550
  %1573 = vmatprep.subr.mxu0 0.0
  %1574 = vmatpush1.xpose.msra.mxu0 %v1553
  %1575 = vmatprep.subr.mxu0 0.0
  %1576 = vmatpush1.xpose.msra.mxu0 %v1556
  %1577 = vmatprep.subr.mxu0 0.0
  %1578 = vmatpush1.xpose.msra.mxu0 %v1559
  %1579 = vmatprep.subr.mxu0 0.0
  %1580 = vmatpush1.xpose.msra.mxu0 %v1562
  %1581 = vmatprep.subr.mxu0 0.0
  %1582 = vmatpush1.xpose.msra.mxu0 %v1565
  %1583 = vmatprep.subr.mxu0 0.0
  %1584 = vmatpush1.xpose.msra.mxu0 0.0
  %1585 = vmatprep.subr.mxu0 0.0
  %1586 = vmatpush1.xpose.msra.mxu0 0.0
  %1587 = vmatprep.subr.mxu0 0.0
  %1588 = vmatpush1.xpose.msra.mxu0 0.0
  %1589 = vmatprep.subr.mxu0 0.0
  %1590 = vmatpush1.xpose.msra.mxu0 0.0
  %1591 = vmatprep.subr.mxu0 0.0
  %1592 = vmatpush1.xpose.msra.mxu0 0.0
  %1593 = vmatprep.subr.mxu0 0.0
  %1594 = vmatpush1.xpose.msra.mxu0 0.0
  %1595 = vmatprep.subr.mxu0 0.0
  %1596 = vmatpush1.xpose.msra.mxu0 0.0
  %1597 = vmatprep.subr.mxu0 0.0
  %1598 = vmatpush1.xpose.msra.mxu0 0.0
  %1599 = vmatprep.subr.mxu0 0.0
  %1600 = vmatpush1.xpose.msra.mxu0 0.0
  %1601 = vmatprep.subr.mxu0 0.0
  %1602 = vmatpush1.xpose.msra.mxu0 0.0
  %1603 = vmatprep.subr.mxu0 0.0
  %1604 = vmatpush1.xpose.msra.mxu0 0.0
  %1605 = vmatprep.subr.mxu0 0.0
  %1606 = vmatpush1.xpose.msra.mxu0 0.0
  %1607 = vmatprep.subr.mxu0 0.0
  %1608 = vmatpush1.xpose.msra.mxu0 0.0
  %1609 = vmatprep.subr.mxu0 0.0
  %1610 = vmatpush1.xpose.msra.mxu0 0.0
  %1611 = vmatprep.subr.mxu0 0.0
  %1612 = vmatpush1.xpose.msra.mxu0 0.0
  %1613 = vmatprep.subr.mxu0 0.0
  %1614 = vmatpush1.xpose.msra.mxu0 0.0
  %1615 = vmatprep.subr.mxu0 0.0
  %1616 = vmatpush1.xpose.msra.mxu0 0.0
  %1617 = vmatprep.subr.mxu0 0.0
  %1618 = vmatpush1.xpose.msra.mxu0 0.0
  %1619 = vmatprep.subr.mxu0 0.0
  %1620 = vmatpush1.xpose.msra.mxu0 0.0
  %1621 = vmatprep.subr.mxu0 0.0
  %1622 = vmatpush1.xpose.msra.mxu0 0.0
  %1623 = vmatprep.subr.mxu0 0.0
  %1624 = vmatpush1.xpose.msra.mxu0 0.0
  %1625 = vmatprep.subr.mxu0 0.0
  %1626 = vmatpush1.xpose.msra.mxu0 0.0
  %1627 = vmatprep.subr.mxu0 0.0
  %1628 = vmatpush1.xpose.msra.mxu0 0.0
  %1629 = vmatprep.subr.mxu0 0.0
  %1630 = vmatpush1.xpose.msra.mxu0 0.0
  %1631 = vmatprep.mubr.f32.mxu0 0.0
  %1632 = vmatmul.mubr.f32.gmra.mrb[0].mxu0 %v1538
  %v1633 = vpop.f32.mrb[0].mxu0
  %v1634 = vadd.f32 0.0, %v1633
  %v1635 = vpop.f32.mrb[0].mxu0
  %1636 = vmatprep.mubr.f32.mxu0 0.0
  %1637 = vmatmul.mubr.f32.gmra.mrb[0].mxu0 %v1541
  %v1638 = vpop.f32.mrb[0].mxu0
  %v1639 = vadd.f32 0.0, %v1638
  %v1640 = vpop.f32.mrb[0].mxu0
  %1641 = vdwg.mxu0
  %v1642 = vld [vmem:[%s6] sm:$0xff]
  %v1643 = vld [vmem:[%s6 + $0x8] sm:$0xff]
  %v1644 = vld [vmem:[%s6 + $0x10] sm:$0xff]
  %v1645 = vld [vmem:[%s6 + $0x18] sm:$0xff]
  %1647 = vset.pattern.permute.xlu0 0
  %1648 = vperm.xlu0 %1647, %v568
  %v1649 = vpop.permute.xlu0 %1648
  %1652 = vset.pattern.permute.xlu0 0
  %1653 = vperm.xlu0 %1652, %v569
  %v1654 = vpop.permute.xlu0 %1653
  %1657 = vset.pattern.permute.xlu0 0
  %1658 = vperm.xlu0 %1657, %v570
  %v1659 = vpop.permute.xlu0 %1658
  %1662 = vset.pattern.permute.xlu0 0
  %1663 = vperm.xlu0 %1662, %v571
  %v1664 = vpop.permute.xlu0 %1663
  %v1666 = vmul.f32 %v1642, %v1649
  %v1667 = vmul.f32 %v1643, %v1654
  %v1668 = vmul.f32 %v1644, %v1659
  %v1669 = vmul.f32 %v1645, %v1664
  %s1670 = scalar_lea.vmem %s6, 32
  %v1671 = vld [vmem:[%s1670] sm:$0xff]
  %v1672 = vld [vmem:[%s1670 + $0x8] sm:$0xff]
  %v1673 = vld [vmem:[%s1670 + $0x10] sm:$0xff]
  %v1674 = vld [vmem:[%s1670 + $0x18] sm:$0xff]
  %1676 = vset.pattern.permute.xlu0 0
  %1677 = vperm.xlu0 %1676, %v572
  %v1678 = vpop.permute.xlu0 %1677
  %1681 = vset.pattern.permute.xlu0 0
  %1682 = vperm.xlu0 %1681, %v573
  %v1683 = vpop.permute.xlu0 %1682
  %1686 = vset.pattern.permute.xlu0 0
  %1687 = vperm.xlu0 %1686, %v574
  %v1688 = vpop.permute.xlu0 %1687
  %1691 = vset.pattern.permute.xlu0 0
  %1692 = vperm.xlu0 %1691, %v575
  %v1693 = vpop.permute.xlu0 %1692
  %v1695 = vmul.f32 %v1671, %v1678
  %v1696 = vmul.f32 %v1672, %v1683
  %v1697 = vmul.f32 %v1673, %v1688
  %v1698 = vmul.f32 %v1674, %v1693
  %1703 = vrot.lane.b32.xlu0 %v1695, 32
  %v1704 = vpop.permute.xlu0 %1703
  %1705 = vrot.lane.b32.xlu0 %v1696, 32
  %v1706 = vpop.permute.xlu0 %1705
  %1707 = vrot.lane.b32.xlu0 %v1697, 32
  %v1708 = vpop.permute.xlu0 %1707
  %1709 = vrot.lane.b32.xlu0 %v1698, 32
  %v1710 = vpop.permute.xlu0 %1709
  %v1715 = vsel %vm44, %v1666, %v1704
  %v1716 = vsel %vm44, %v1667, %v1706
  %v1717 = vsel %vm44, %v1668, %v1708
  %v1718 = vsel %vm44, %v1669, %v1710
  %v1719 = vld [vmem:[%s8] sm:$0xff]
  %v1720 = vld [vmem:[%s8 + $0x8] sm:$0xff]
  %v1721 = vld [vmem:[%s8 + $0x10] sm:$0xff]
  %v1722 = vld [vmem:[%s8 + $0x18] sm:$0xff]
  %1724 = vset.pattern.permute.xlu0 0
  %1725 = vperm.xlu0 %1724, %v1719
  %v1726 = vpop.permute.xlu0 %1725
  %1729 = vset.pattern.permute.xlu0 0
  %1730 = vperm.xlu0 %1729, %v1720
  %v1731 = vpop.permute.xlu0 %1730
  %1734 = vset.pattern.permute.xlu0 0
  %1735 = vperm.xlu0 %1734, %v1721
  %v1736 = vpop.permute.xlu0 %1735
  %1739 = vset.pattern.permute.xlu0 0
  %1740 = vperm.xlu0 %1739, %v1722
  %v1741 = vpop.permute.xlu0 %1740
  %v1744 = vsel %vm604, %v1715, 0
  %v1747 = vsel %vm604, %v1716, 0
  %v1750 = vsel %vm604, %v1717, 0
  %v1753 = vsel %vm604, %v1718, 0
  %1755 = vmatprep.subr.mxu0 0.0
  %1756 = vmatpush1.msra.mxu0 %v1272
  %1757 = vmatprep.subr.mxu0 0.0
  %1758 = vmatpush1.msra.mxu0 %v1277
  %1759 = vmatprep.subr.mxu0 0.0
  %1760 = vmatpush1.msra.mxu0 %v1634
  %1761 = vmatprep.subr.mxu0 0.0
  %1762 = vmatpush1.msra.mxu0 %v1639
  %1763 = vmatprep.subr.mxu0 0.0
  %1764 = vmatpush1.msra.mxu0 %v913
  %1765 = vmatprep.subr.mxu0 0.0
  %1766 = vmatpush1.msra.mxu0 %v914
  %1767 = vmatprep.subr.mxu0 0.0
  %1768 = vmatpush1.msra.mxu0 %v915
  %1769 = vmatprep.subr.mxu0 0.0
  %1770 = vmatpush1.msra.mxu0 %v916
  %1771 = vmatprep.subr.mxu0 0.0
  %1772 = vmatpush1.msra.mxu0 0.0
  %1773 = vmatprep.subr.mxu0 0.0
  %1774 = vmatpush1.msra.mxu0 0.0
  %1775 = vmatprep.subr.mxu0 0.0
  %1776 = vmatpush1.msra.mxu0 0.0
  %1777 = vmatprep.subr.mxu0 0.0
  %1778 = vmatpush1.msra.mxu0 0.0
  %1779 = vmatprep.subr.mxu0 0.0
  %1780 = vmatpush1.msra.mxu0 0.0
  %1781 = vmatprep.subr.mxu0 0.0
  %1782 = vmatpush1.msra.mxu0 0.0
  %1783 = vmatprep.subr.mxu0 0.0
  %1784 = vmatpush1.msra.mxu0 0.0
  %1785 = vmatprep.subr.mxu0 0.0
  %1786 = vmatpush1.msra.mxu0 0.0
  %1787 = vmatprep.subr.mxu0 0.0
  %1788 = vmatpush1.msra.mxu0 0.0
  %1789 = vmatprep.subr.mxu0 0.0
  %1790 = vmatpush1.msra.mxu0 0.0
  %1791 = vmatprep.subr.mxu0 0.0
  %1792 = vmatpush1.msra.mxu0 0.0
  %1793 = vmatprep.subr.mxu0 0.0
  %1794 = vmatpush1.msra.mxu0 0.0
  %1795 = vmatprep.subr.mxu0 0.0
  %1796 = vmatpush1.msra.mxu0 0.0
  %1797 = vmatprep.subr.mxu0 0.0
  %1798 = vmatpush1.msra.mxu0 0.0
  %1799 = vmatprep.subr.mxu0 0.0
  %1800 = vmatpush1.msra.mxu0 0.0
  %1801 = vmatprep.subr.mxu0 0.0
  %1802 = vmatpush1.msra.mxu0 0.0
  %1803 = vmatprep.subr.mxu0 0.0
  %1804 = vmatpush1.msra.mxu0 0.0
  %1805 = vmatprep.subr.mxu0 0.0
  %1806 = vmatpush1.msra.mxu0 0.0
  %1807 = vmatprep.subr.mxu0 0.0
  %1808 = vmatpush1.msra.mxu0 0.0
  %1809 = vmatprep.subr.mxu0 0.0
  %1810 = vmatpush1.msra.mxu0 0.0
  %1811 = vmatprep.subr.mxu0 0.0
  %1812 = vmatpush1.msra.mxu0 0.0
  %1813 = vmatprep.subr.mxu0 0.0
  %1814 = vmatpush1.msra.mxu0 0.0
  %1815 = vmatprep.subr.mxu0 0.0
  %1816 = vmatpush1.msra.mxu0 0.0
  %1817 = vmatprep.subr.mxu0 0.0
  %1818 = vmatpush1.msra.mxu0 0.0
  %1819 = vmatprep.mubr.f32.mxu0 0.0
  %1820 = vmatmul.mubr.f32.gmra.mrb[0].mxu0 %v1744
  %v1821 = vpop.f32.mrb[0].mxu0
  %v1822 = vadd.f32 %v1726, %v1821
  %v1823 = vpop.f32.mrb[0].mxu0
  %1824 = vmatprep.mubr.f32.mxu0 0.0
  %1825 = vmatmul.mubr.f32.gmra.mrb[0].mxu0 %v1747
  %v1826 = vpop.f32.mrb[0].mxu0
  %v1827 = vadd.f32 %v1731, %v1826
  %v1828 = vpop.f32.mrb[0].mxu0
  %1829 = vmatprep.mubr.f32.mxu0 0.0
  %1830 = vmatmul.mubr.f32.gmra.mrb[0].mxu0 %v1750
  %v1831 = vpop.f32.mrb[0].mxu0
  %v1832 = vadd.f32 %v1736, %v1831
  %v1833 = vpop.f32.mrb[0].mxu0
  %1834 = vmatprep.mubr.f32.mxu0 0.0
  %1835 = vmatmul.mubr.f32.gmra.mrb[0].mxu0 %v1753
  %v1836 = vpop.f32.mrb[0].mxu0
  %v1837 = vadd.f32 %v1741, %v1836
  %v1838 = vpop.f32.mrb[0].mxu0
  %1839 = vdwg.mxu0
  %vm1840 = vcmp.ge.f32.partialorder %v1822, 0.0
  %vm1841 = vcmp.ge.f32.partialorder %v1827, 0.0
  %vm1842 = vcmp.ge.f32.partialorder %v1832, 0.0
  %vm1843 = vcmp.ge.f32.partialorder %v1837, 0.0
  %v1844 = vmul.f32 %v1822, 0.2
  %v1845 = vmul.f32 %v1827, 0.2
  %v1846 = vmul.f32 %v1832, 0.2
  %v1847 = vmul.f32 %v1837, 0.2
  %v1848 = vsel %vm1840, %v1822, %v1844
  %v1849 = vsel %vm1841, %v1827, %v1845
  %v1850 = vsel %vm1842, %v1832, %v1846
  %v1851 = vsel %vm1843, %v1837, %v1847
  %v1852 = vmax.f32 %v1848, -256.0
  %v1853 = vmax.f32 %v1849, -256.0
  %v1854 = vmax.f32 %v1850, -256.0
  %v1855 = vmax.f32 %v1851, -256.0
  %v1856 = vmin.f32 %v1852, 256.0
  %v1857 = vmin.f32 %v1853, 256.0
  %v1858 = vmin.f32 %v1854, 256.0
  %v1859 = vmin.f32 %v1855, 256.0
  %1860 = vst.msk [vmem:[%s9] sm:$0xff] %vm604, %v1856
  %1861 = vst.msk [vmem:[%s9 + $0x8] sm:$0xff] %vm604, %v1857
  %1862 = vst.msk [vmem:[%s9 + $0x10] sm:$0xff] %vm604, %v1858
  %1863 = vst.msk [vmem:[%s9 + $0x18] sm:$0xff] %vm604, %v1859
  %s1864 = scalar_lea.vmem %s0, 32
  %v1865 = vld [vmem:[%s1864] sm:$0xff]
  %v1866 = vld [vmem:[%s1864 + $0x8] sm:$0xff]
  %v1867 = vld [vmem:[%s1864 + $0x10] sm:$0xff]
  %v1868 = vld [vmem:[%s1864 + $0x18] sm:$0xff]
  %1869 = vset.pattern.permute.xlu0 1
  %1870 = vperm.xlu0 %1869, %v230
  %v1871 = vpop.permute.xlu0 %1870
  %1873 = vset.pattern.permute.xlu0 1
  %1874 = vperm.xlu0 %1873, %v231
  %v1875 = vpop.permute.xlu0 %1874
  %1877 = vset.pattern.permute.xlu0 1
  %1878 = vperm.xlu0 %1877, %v232
  %v1879 = vpop.permute.xlu0 %1878
  %1881 = vset.pattern.permute.xlu0 1
  %1882 = vperm.xlu0 %1881, %v233
  %v1883 = vpop.permute.xlu0 %1882
  %v1885 = vmul.f32 %v1865, %v1871
  %v1886 = vmul.f32 %v1866, %v1875
  %v1887 = vmul.f32 %v1867, %v1879
  %v1888 = vmul.f32 %v1868, %v1883
  %v1889 = vsel %vm604, %v1885, 0.0
  %v1890 = vsel %vm604, %v1886, 0.0
  %v1891 = vadd.f32 %v1889, %v1890
  %v1892 = vsel %vm604, %v1887, 0.0
  %v1893 = vadd.f32 %v1891, %v1892
  %v1894 = vsel %vm604, %v1888, 0.0
  %v1895 = vadd.f32 %v1893, %v1894
  %v1896 = vrot.slane %v1895, 4
  %v1897 = vadd.f32 %v1895, %v1896
  %v1898 = vrot.slane %v1897, 2
  %v1899 = vadd.f32 %v1897, %v1898
  %v1900 = vrot.slane %v1899, 1
  %v1901 = vadd.f32 %v1899, %v1900
  %v1902 = vmul.f32 %v1901, %v618
  %v1903 = vsub.f32 %v1885, %v1902
  %v1904 = vsub.f32 %v1886, %v1902
  %v1905 = vsub.f32 %v1887, %v1902
  %v1906 = vsub.f32 %v1888, %v1902
  %v1907 = vmul.f32 %v1903, %v1903
  %v1908 = vmul.f32 %v1904, %v1904
  %v1909 = vmul.f32 %v1905, %v1905
  %v1910 = vmul.f32 %v1906, %v1906
  %v1911 = vsel %vm604, %v1907, 0.0
  %v1912 = vsel %vm604, %v1908, 0.0
  %v1913 = vadd.f32 %v1911, %v1912
  %v1914 = vsel %vm604, %v1909, 0.0
  %v1915 = vadd.f32 %v1913, %v1914
  %v1916 = vsel %vm604, %v1910, 0.0
  %v1917 = vadd.f32 %v1915, %v1916
  %v1918 = vrot.slane %v1917, 4
  %v1919 = vadd.f32 %v1917, %v1918
  %v1920 = vrot.slane %v1919, 2
  %v1921 = vadd.f32 %v1919, %v1920
  %v1922 = vrot.slane %v1921, 1
  %v1923 = vadd.f32 %v1921, %v1922
  %v1924 = vmul.f32 %v1923, %v618
  %v1925 = vadd.f32 %v1924, 1e-05
  %v1926 = vrsqrt.pop %v1925
  %v1927 = vmul.f32 %v1903, %v1926
  %v1928 = vmul.f32 %v1904, %v1926
  %v1929 = vmul.f32 %v1905, %v1926
  %v1930 = vmul.f32 %v1906, %v1926
  %v1931 = vld [vmem:[%s4] sm:$0xff]
  %v1932 = vld [vmem:[%s4 + $0x8] sm:$0xff]
  %v1933 = vld [vmem:[%s4 + $0x10] sm:$0xff]
  %v1934 = vld [vmem:[%s4 + $0x18] sm:$0xff]
  %v1935 = vld [vmem:[%s4 + $0x20] sm:$0xff]
  %v1936 = vld [vmem:[%s4 + $0x28] sm:$0xff]
  %v1937 = vld [vmem:[%s4 + $0x30] sm:$0xff]
  %v1938 = vld [vmem:[%s4 + $0x38] sm:$0xff]
  %v1939 = vld [vmem:[%s4 + $0x40] sm:$0xff]
  %v1940 = vld [vmem:[%s4 + $0x48] sm:$0xff]
  %v1941 = vld [vmem:[%s4 + $0x50] sm:$0xff]
  %v1942 = vld [vmem:[%s4 + $0x58] sm:$0xff]
  %v1944 = vsel %vm44, %v1931, 0
  %v1947 = vsel %vm44, %v1932, 0
  %v1950 = vsel %vm44, %v1933, 0
  %v1953 = vsel %vm44, %v1934, 0
  %v1956 = vsel %vm44, %v1935, 0
  %v1959 = vsel %vm44, %v1936, 0
  %v1962 = vsel %vm44, %v1937, 0
  %v1965 = vsel %vm44, %v1938, 0
  %v1968 = vsel %vm44, %v1939, 0
  %v1971 = vsel %vm44, %v1940, 0
  %v1974 = vsel %vm44, %v1941, 0
  %v1977 = vsel %vm44, %v1942, 0
  %1979 = vmatprep.subr.mxu0 0.0
  %1980 = vmatpush1.msra.mxu0 %v1927
  %1981 = vmatprep.subr.mxu0 0.0
  %1982 = vmatpush1.msra.mxu0 %v1928
  %1983 = vmatprep.subr.mxu0 0.0
  %1984 = vmatpush1.msra.mxu0 %v1929
  %1985 = vmatprep.subr.mxu0 0.0
  %1986 = vmatpush1.msra.mxu0 %v1930
  %1987 = vmatprep.subr.mxu0 0.0
  %1988 = vmatpush1.msra.mxu0 0.0
  %1989 = vmatprep.subr.mxu0 0.0
  %1990 = vmatpush1.msra.mxu0 0.0
  %1991 = vmatprep.subr.mxu0 0.0
  %1992 = vmatpush1.msra.mxu0 0.0
  %1993 = vmatprep.subr.mxu0 0.0
  %1994 = vmatpush1.msra.mxu0 0.0
  %1995 = vmatprep.subr.mxu0 0.0
  %1996 = vmatpush1.msra.mxu0 0.0
  %1997 = vmatprep.subr.mxu0 0.0
  %1998 = vmatpush1.msra.mxu0 0.0
  %1999 = vmatprep.subr.mxu0 0.0
  %2000 = vmatpush1.msra.mxu0 0.0
  %2001 = vmatprep.subr.mxu0 0.0
  %2002 = vmatpush1.msra.mxu0 0.0
  %2003 = vmatprep.subr.mxu0 0.0
  %2004 = vmatpush1.msra.mxu0 0.0
  %2005 = vmatprep.subr.mxu0 0.0
  %2006 = vmatpush1.msra.mxu0 0.0
  %2007 = vmatprep.subr.mxu0 0.0
  %2008 = vmatpush1.msra.mxu0 0.0
  %2009 = vmatprep.subr.mxu0 0.0
  %2010 = vmatpush1.msra.mxu0 0.0
  %2011 = vmatprep.subr.mxu0 0.0
  %2012 = vmatpush1.msra.mxu0 0.0
  %2013 = vmatprep.subr.mxu0 0.0
  %2014 = vmatpush1.msra.mxu0 0.0
  %2015 = vmatprep.subr.mxu0 0.0
  %2016 = vmatpush1.msra.mxu0 0.0
  %2017 = vmatprep.subr.mxu0 0.0
  %2018 = vmatpush1.msra.mxu0 0.0
  %2019 = vmatprep.subr.mxu0 0.0
  %2020 = vmatpush1.msra.mxu0 0.0
  %2021 = vmatprep.subr.mxu0 0.0
  %2022 = vmatpush1.msra.mxu0 0.0
  %2023 = vmatprep.subr.mxu0 0.0
  %2024 = vmatpush1.msra.mxu0 0.0
  %2025 = vmatprep.subr.mxu0 0.0
  %2026 = vmatpush1.msra.mxu0 0.0
  %2027 = vmatprep.subr.mxu0 0.0
  %2028 = vmatpush1.msra.mxu0 0.0
  %2029 = vmatprep.subr.mxu0 0.0
  %2030 = vmatpush1.msra.mxu0 0.0
  %2031 = vmatprep.subr.mxu0 0.0
  %2032 = vmatpush1.msra.mxu0 0.0
  %2033 = vmatprep.subr.mxu0 0.0
  %2034 = vmatpush1.msra.mxu0 0.0
  %2035 = vmatprep.subr.mxu0 0.0
  %2036 = vmatpush1.msra.mxu0 0.0
  %2037 = vmatprep.subr.mxu0 0.0
  %2038 = vmatpush1.msra.mxu0 0.0
  %2039 = vmatprep.subr.mxu0 0.0
  %2040 = vmatpush1.msra.mxu0 0.0
  %2041 = vmatprep.subr.mxu0 0.0
  %2042 = vmatpush1.msra.mxu0 0.0
  %2043 = vmatprep.mubr.f32.mxu0 0.0
  %2044 = vmatmul.mubr.f32.gmra.mrb[0].mxu0 %v1944
  %v2045 = vpop.f32.mrb[0].mxu0
  %v2046 = vadd.f32 0.0, %v2045
  %v2047 = vpop.f32.mrb[0].mxu0
  %2048 = vmatprep.mubr.f32.mxu0 0.0
  %2049 = vmatmul.mubr.f32.gmra.mrb[0].mxu0 %v1947
  %v2050 = vpop.f32.mrb[0].mxu0
  %v2051 = vadd.f32 0.0, %v2050
  %v2052 = vpop.f32.mrb[0].mxu0
  %2053 = vmatprep.mubr.f32.mxu0 0.0
  %2054 = vmatmul.mubr.f32.gmra.mrb[0].mxu0 %v1950
  %v2055 = vpop.f32.mrb[0].mxu0
  %v2056 = vadd.f32 0.0, %v2055
  %v2057 = vpop.f32.mrb[0].mxu0
  %2058 = vmatprep.mubr.f32.mxu0 0.0
  %2059 = vmatmul.mubr.f32.gmra.mrb[0].mxu0 %v1953
  %v2060 = vpop.f32.mrb[0].mxu0
  %v2061 = vadd.f32 0.0, %v2060
  %v2062 = vpop.f32.mrb[0].mxu0
  %2063 = vmatprep.mubr.f32.mxu0 0.0
  %2064 = vmatmul.mubr.f32.gmra.mrb[0].mxu0 %v1956
  %v2065 = vpop.f32.mrb[0].mxu0
  %v2066 = vadd.f32 0.0, %v2065
  %v2067 = vpop.f32.mrb[0].mxu0
  %2068 = vmatprep.mubr.f32.mxu0 0.0
  %2069 = vmatmul.mubr.f32.gmra.mrb[0].mxu0 %v1959
  %v2070 = vpop.f32.mrb[0].mxu0
  %v2071 = vadd.f32 0.0, %v2070
  %v2072 = vpop.f32.mrb[0].mxu0
  %2073 = vmatprep.mubr.f32.mxu0 0.0
  %2074 = vmatmul.mubr.f32.gmra.mrb[0].mxu0 %v1962
  %v2075 = vpop.f32.mrb[0].mxu0
  %v2076 = vadd.f32 0.0, %v2075
  %v2077 = vpop.f32.mrb[0].mxu0
  %2078 = vmatprep.mubr.f32.mxu0 0.0
  %2079 = vmatmul.mubr.f32.gmra.mrb[0].mxu0 %v1965
  %v2080 = vpop.f32.mrb[0].mxu0
  %v2081 = vadd.f32 0.0, %v2080
  %v2082 = vpop.f32.mrb[0].mxu0
  %2083 = vmatprep.mubr.f32.mxu0 0.0
  %2084 = vmatmul.mubr.f32.gmra.mrb[0].mxu0 %v1968
  %v2085 = vpop.f32.mrb[0].mxu0
  %v2086 = vadd.f32 0.0, %v2085
  %v2087 = vpop.f32.mrb[0].mxu0
  %2088 = vmatprep.mubr.f32.mxu0 0.0
  %2089 = vmatmul.mubr.f32.gmra.mrb[0].mxu0 %v1971
  %v2090 = vpop.f32.mrb[0].mxu0
  %v2091 = vadd.f32 0.0, %v2090
  %v2092 = vpop.f32.mrb[0].mxu0
  %2093 = vmatprep.mubr.f32.mxu0 0.0
  %2094 = vmatmul.mubr.f32.gmra.mrb[0].mxu0 %v1974
  %v2095 = vpop.f32.mrb[0].mxu0
  %v2096 = vadd.f32 0.0, %v2095
  %v2097 = vpop.f32.mrb[0].mxu0
  %2098 = vmatprep.mubr.f32.mxu0 0.0
  %2099 = vmatmul.mubr.f32.gmra.mrb[0].mxu0 %v1977
  %v2100 = vpop.f32.mrb[0].mxu0
  %v2101 = vadd.f32 0.0, %v2100
  %v2102 = vpop.f32.mrb[0].mxu0
  %2103 = vdwg.mxu0
  %2104 = vset.pattern.permute.xlu0 1
  %2105 = vperm.xlu0 %2104, %v415
  %v2106 = vpop.permute.xlu0 %2105
  %2108 = vset.pattern.permute.xlu0 1
  %2109 = vperm.xlu0 %2108, %v416
  %v2110 = vpop.permute.xlu0 %2109
  %2112 = vset.pattern.permute.xlu0 1
  %2113 = vperm.xlu0 %2112, %v417
  %v2114 = vpop.permute.xlu0 %2113
  %2116 = vset.pattern.permute.xlu0 1
  %2117 = vperm.xlu0 %2116, %v418
  %v2118 = vpop.permute.xlu0 %2117
  %2120 = vset.pattern.permute.xlu0 1
  %2121 = vperm.xlu0 %2120, %v419
  %v2122 = vpop.permute.xlu0 %2121
  %2124 = vset.pattern.permute.xlu0 1
  %2125 = vperm.xlu0 %2124, %v420
  %v2126 = vpop.permute.xlu0 %2125
  %2128 = vset.pattern.permute.xlu0 1
  %2129 = vperm.xlu0 %2128, %v421
  %v2130 = vpop.permute.xlu0 %2129
  %2132 = vset.pattern.permute.xlu0 1
  %2133 = vperm.xlu0 %2132, %v422
  %v2134 = vpop.permute.xlu0 %2133
  %2136 = vset.pattern.permute.xlu0 1
  %2137 = vperm.xlu0 %2136, %v423
  %v2138 = vpop.permute.xlu0 %2137
  %2140 = vset.pattern.permute.xlu0 1
  %2141 = vperm.xlu0 %2140, %v424
  %v2142 = vpop.permute.xlu0 %2141
  %2144 = vset.pattern.permute.xlu0 1
  %2145 = vperm.xlu0 %2144, %v425
  %v2146 = vpop.permute.xlu0 %2145
  %2148 = vset.pattern.permute.xlu0 1
  %2149 = vperm.xlu0 %2148, %v426
  %v2150 = vpop.permute.xlu0 %2149
  %v2152 = vmul.f32 %v2046, %v2106
  %v2153 = vmul.f32 %v2051, %v2110
  %v2154 = vmul.f32 %v2056, %v2114
  %v2155 = vmul.f32 %v2061, %v2118
  %v2156 = vmul.f32 %v2066, %v2122
  %v2157 = vmul.f32 %v2071, %v2126
  %v2158 = vmul.f32 %v2076, %v2130
  %v2159 = vmul.f32 %v2081, %v2134
  %v2160 = vmul.f32 %v2086, %v2138
  %v2161 = vmul.f32 %v2091, %v2142
  %v2162 = vmul.f32 %v2096, %v2146
  %v2163 = vmul.f32 %v2101, %v2150
  %2164 = vset.pattern.permute.xlu0 1
  %2165 = vperm.xlu0 %2164, %v234
  %v2166 = vpop.permute.xlu0 %2165
  %2168 = vset.pattern.permute.xlu0 1
  %2169 = vperm.xlu0 %2168, %v235
  %v2170 = vpop.permute.xlu0 %2169
  %2172 = vset.pattern.permute.xlu0 1
  %2173 = vperm.xlu0 %2172, %v236
  %v2174 = vpop.permute.xlu0 %2173
  %2176 = vset.pattern.permute.xlu0 1
  %2177 = vperm.xlu0 %2176, %v237
  %v2178 = vpop.permute.xlu0 %2177
  %v2180 = vmul.f32 %v2160, %v2166
  %v2181 = vmul.f32 %v2161, %v2170
  %v2182 = vmul.f32 %v2162, %v2174
  %v2183 = vmul.f32 %v2163, %v2178
  %2184 = vxpose.xlu0.b32.start [1/16] %v2152, 128
  %2185 = vxpose.xlu0.b32.cont [2/16] %v2153, 128
  %2186 = vxpose.xlu0.b32.cont [3/16] 0.0, 128
  %2187 = vxpose.xlu0.b32.cont [4/16] 0.0, 128
  %2188 = vxpose.xlu0.b32.cont [5/16] 0.0, 128
  %2189 = vxpose.xlu0.b32.cont [6/16] 0.0, 128
  %2190 = vxpose.xlu0.b32.cont [7/16] 0.0, 128
  %2191 = vxpose.xlu0.b32.cont [8/16] 0.0, 128
  %2192 = vxpose.xlu0.b32.cont [9/16] 0.0, 128
  %2193 = vxpose.xlu0.b32.cont [10/16] 0.0, 128
  %2194 = vxpose.xlu0.b32.cont [11/16] 0.0, 128
  %2195 = vxpose.xlu0.b32.cont [12/16] 0.0, 128
  %2196 = vxpose.xlu0.b32.cont [13/16] 0.0, 128
  %2197 = vxpose.xlu0.b32.cont [14/16] 0.0, 128
  %2198 = vxpose.xlu0.b32.cont [15/16] 0.0, 128
  %2199 = vxpose.xlu0.b32.end [16/16] 0.0, 128
  %v2200 = vpop.trf.xlu0
  %v2201 = vpop.trf.xlu0
  %v2202 = vpop.trf.xlu0
  %v2203 = vpop.trf.xlu0
  %v2204 = vpop.trf.xlu0
  %v2205 = vpop.trf.xlu0
  %v2206 = vpop.trf.xlu0
  %v2207 = vpop.trf.xlu0
  %v2208 = vpop.trf.xlu0
  %v2209 = vpop.trf.xlu0
  %v2210 = vpop.trf.xlu0
  %v2211 = vpop.trf.xlu0
  %v2212 = vpop.trf.xlu0
  %v2213 = vpop.trf.xlu0
  %v2214 = vpop.trf.xlu0
  %v2215 = vpop.trf.xlu0
  %v2217 = vsel %vm949, %v2200, 0
  %v2220 = vsel %vm949, %v2201, 0
  %v2223 = vsel %vm949, %v2202, 0
  %v2226 = vsel %vm949, %v2203, 0
  %v2229 = vsel %vm949, %v2204, 0
  %v2232 = vsel %vm949, %v2205, 0
  %v2235 = vsel %vm949, %v2206, 0
  %v2238 = vsel %vm949, %v2207, 0
  %2240 = vmatprep.subr.mxu0 0.0
  %2241 = vmatpush1.msra.mxu0 %v2156
  %2242 = vmatprep.subr.mxu0 0.0
  %2243 = vmatpush1.msra.mxu0 %v2157
  %2244 = vmatprep.subr.mxu0 0.0
  %2245 = vmatpush1.msra.mxu0 0.0
  %2246 = vmatprep.subr.mxu0 0.0
  %2247 = vmatpush1.msra.mxu0 0.0
  %2248 = vmatprep.subr.mxu0 0.0
  %2249 = vmatpush1.msra.mxu0 0.0
  %2250 = vmatprep.subr.mxu0 0.0
  %2251 = vmatpush1.msra.mxu0 0.0
  %2252 = vmatprep.subr.mxu0 0.0
  %2253 = vmatpush1.msra.mxu0 0.0
  %2254 = vmatprep.subr.mxu0 0.0
  %2255 = vmatpush1.msra.mxu0 0.0
  %2256 = vmatprep.subr.mxu0 0.0
  %2257 = vmatpush1.msra.mxu0 0.0
  %2258 = vmatprep.subr.mxu0 0.0
  %2259 = vmatpush1.msra.mxu0 0.0
  %2260 = vmatprep.subr.mxu0 0.0
  %2261 = vmatpush1.msra.mxu0 0.0
  %2262 = vmatprep.subr.mxu0 0.0
  %2263 = vmatpush1.msra.mxu0 0.0
  %2264 = vmatprep.subr.mxu0 0.0
  %2265 = vmatpush1.msra.mxu0 0.0
  %2266 = vmatprep.subr.mxu0 0.0
  %2267 = vmatpush1.msra.mxu0 0.0
  %2268 = vmatprep.subr.mxu0 0.0
  %2269 = vmatpush1.msra.mxu0 0.0
  %2270 = vmatprep.subr.mxu0 0.0
  %2271 = vmatpush1.msra.mxu0 0.0
  %2272 = vmatprep.subr.mxu0 0.0
  %2273 = vmatpush1.msra.mxu0 0.0
  %2274 = vmatprep.subr.mxu0 0.0
  %2275 = vmatpush1.msra.mxu0 0.0
  %2276 = vmatprep.subr.mxu0 0.0
  %2277 = vmatpush1.msra.mxu0 0.0
  %2278 = vmatprep.subr.mxu0 0.0
  %2279 = vmatpush1.msra.mxu0 0.0
  %2280 = vmatprep.subr.mxu0 0.0
  %2281 = vmatpush1.msra.mxu0 0.0
  %2282 = vmatprep.subr.mxu0 0.0
  %2283 = vmatpush1.msra.mxu0 0.0
  %2284 = vmatprep.subr.mxu0 0.0
  %2285 = vmatpush1.msra.mxu0 0.0
  %2286 = vmatprep.subr.mxu0 0.0
  %2287 = vmatpush1.msra.mxu0 0.0
  %2288 = vmatprep.subr.mxu0 0.0
  %2289 = vmatpush1.msra.mxu0 0.0
  %2290 = vmatprep.subr.mxu0 0.0
  %2291 = vmatpush1.msra.mxu0 0.0
  %2292 = vmatprep.subr.mxu0 0.0
  %2293 = vmatpush1.msra.mxu0 0.0
  %2294 = vmatprep.subr.mxu0 0.0
  %2295 = vmatpush1.msra.mxu0 0.0
  %2296 = vmatprep.subr.mxu0 0.0
  %2297 = vmatpush1.msra.mxu0 0.0
  %2298 = vmatprep.subr.mxu0 0.0
  %2299 = vmatpush1.msra.mxu0 0.0
  %2300 = vmatprep.subr.mxu0 0.0
  %2301 = vmatpush1.msra.mxu0 0.0
  %2302 = vmatprep.subr.mxu0 0.0
  %2303 = vmatpush1.msra.mxu0 0.0
  %2304 = vmatprep.mubr.f32.mxu0 0.0
  %2305 = vmatmul.mubr.f32.gmra.mrb[0].mxu0 %v2217
  %v2306 = vpop.f32.mrb[0].mxu0
  %v2307 = vadd.f32 0.0, %v2306
  %v2308 = vpop.f32.mrb[0].mxu0
  %2309 = vmatprep.mubr.f32.mxu0 0.0
  %2310 = vmatmul.mubr.f32.gmra.mrb[0].mxu0 %v2220
  %v2311 = vpop.f32.mrb[0].mxu0
  %v2312 = vadd.f32 0.0, %v2311
  %v2313 = vpop.f32.mrb[0].mxu0
  %2314 = vmatprep.mubr.f32.mxu0 0.0
  %2315 = vmatmul.mubr.f32.gmra.mrb[0].mxu0 %v2223
  %v2316 = vpop.f32.mrb[0].mxu0
  %v2317 = vadd.f32 0.0, %v2316
  %v2318 = vpop.f32.mrb[0].mxu0
  %2319 = vmatprep.mubr.f32.mxu0 0.0
  %2320 = vmatmul.mubr.f32.gmra.mrb[0].mxu0 %v2226
  %v2321 = vpop.f32.mrb[0].mxu0
  %v2322 = vadd.f32 0.0, %v2321
  %v2323 = vpop.f32.mrb[0].mxu0
  %2324 = vmatprep.mubr.f32.mxu0 0.0
  %2325 = vmatmul.mubr.f32.gmra.mrb[0].mxu0 %v2229
  %v2326 = vpop.f32.mrb[0].mxu0
  %v2327 = vadd.f32 0.0, %v2326
  %v2328 = vpop.f32.mrb[0].mxu0
  %2329 = vmatprep.mubr.f32.mxu0 0.0
  %2330 = vmatmul.mubr.f32.gmra.mrb[0].mxu0 %v2232
  %v2331 = vpop.f32.mrb[0].mxu0
  %v2332 = vadd.f32 0.0, %v2331
  %v2333 = vpop.f32.mrb[0].mxu0
  %2334 = vmatprep.mubr.f32.mxu0 0.0
  %2335 = vmatmul.mubr.f32.gmra.mrb[0].mxu0 %v2235
  %v2336 = vpop.f32.mrb[0].mxu0
  %v2337 = vadd.f32 0.0, %v2336
  %v2338 = vpop.f32.mrb[0].mxu0
  %2339 = vmatprep.mubr.f32.mxu0 0.0
  %2340 = vmatmul.mubr.f32.gmra.mrb[0].mxu0 %v2238
  %v2341 = vpop.f32.mrb[0].mxu0
  %v2342 = vadd.f32 0.0, %v2341
  %v2343 = vpop.f32.mrb[0].mxu0
  %2344 = vdwg.mxu0
  %v2345 = vmul.f32 %v2307, 0.25
  %v2346 = vmul.f32 %v2312, 0.25
  %v2347 = vmul.f32 %v2317, 0.25
  %v2348 = vmul.f32 %v2322, 0.25
  %v2349 = vmul.f32 %v2327, 0.25
  %v2350 = vmul.f32 %v2332, 0.25
  %v2351 = vmul.f32 %v2337, 0.25
  %v2352 = vmul.f32 %v2342, 0.25
  %v2353 = vsel %vm604, %v2345, -inf
  %2354 = vmax.xlane.f32.xlu0 %v2353
  %v2355 = vpop.xlane.xlu0 %2354
  %v2356 = vsel %vm604, %v2346, -inf
  %2357 = vmax.xlane.f32.xlu0 %v2356
  %v2358 = vpop.xlane.xlu0 %2357
  %v2359 = vsel %vm604, %v2347, -inf
  %2360 = vmax.xlane.f32.xlu0 %v2359
  %v2361 = vpop.xlane.xlu0 %2360
  %v2362 = vsel %vm604, %v2348, -inf
  %2363 = vmax.xlane.f32.xlu0 %v2362
  %v2364 = vpop.xlane.xlu0 %2363
  %v2365 = vsel %vm604, %v2349, -inf
  %2366 = vmax.xlane.f32.xlu0 %v2365
  %v2367 = vpop.xlane.xlu0 %2366
  %v2368 = vsel %vm604, %v2350, -inf
  %2369 = vmax.xlane.f32.xlu0 %v2368
  %v2370 = vpop.xlane.xlu0 %2369
  %v2371 = vsel %vm604, %v2351, -inf
  %2372 = vmax.xlane.f32.xlu0 %v2371
  %v2373 = vpop.xlane.xlu0 %2372
  %v2374 = vsel %vm604, %v2352, -inf
  %2375 = vmax.xlane.f32.xlu0 %v2374
  %v2376 = vpop.xlane.xlu0 %2375
  %v2377 = vsub.f32 %v2345, %v2355
  %v2378 = vsub.f32 %v2346, %v2358
  %v2379 = vsub.f32 %v2347, %v2361
  %v2380 = vsub.f32 %v2348, %v2364
  %v2381 = vsub.f32 %v2349, %v2367
  %v2382 = vsub.f32 %v2350, %v2370
  %v2383 = vsub.f32 %v2351, %v2373
  %v2384 = vsub.f32 %v2352, %v2376
  %v2385 = vmul.f32 %v2377, 1.442695
  %v2386 = vpow.pop %v2385
  %v2387 = vmul.f32 %v2378, 1.442695
  %v2388 = vpow.pop %v2387
  %v2389 = vmul.f32 %v2379, 1.442695
  %v2390 = vpow.pop %v2389
  %v2391 = vmul.f32 %v2380, 1.442695
  %v2392 = vpow.pop %v2391
  %v2393 = vmul.f32 %v2381, 1.442695
  %v2394 = vpow.pop %v2393
  %v2395 = vmul.f32 %v2382, 1.442695
  %v2396 = vpow.pop %v2395
  %v2397 = vmul.f32 %v2383, 1.442695
  %v2398 = vpow.pop %v2397
  %v2399 = vmul.f32 %v2384, 1.442695
  %v2400 = vpow.pop %v2399
  %v2401 = vsel %vm604, %v2386, 0.0
  %2402 = vadd.xlane.f32.xlu0 %v2401
  %v2403 = vpop.xlane.xlu0 %2402
  %v2404 = vsel %vm604, %v2388, 0.0
  %2405 = vadd.xlane.f32.xlu0 %v2404
  %v2406 = vpop.xlane.xlu0 %2405
  %v2407 = vsel %vm604, %v2390, 0.0
  %2408 = vadd.xlane.f32.xlu0 %v2407
  %v2409 = vpop.xlane.xlu0 %2408
  %v2410 = vsel %vm604, %v2392, 0.0
  %2411 = vadd.xlane.f32.xlu0 %v2410
  %v2412 = vpop.xlane.xlu0 %2411
  %v2413 = vsel %vm604, %v2394, 0.0
  %2414 = vadd.xlane.f32.xlu0 %v2413
  %v2415 = vpop.xlane.xlu0 %2414
  %v2416 = vsel %vm604, %v2396, 0.0
  %2417 = vadd.xlane.f32.xlu0 %v2416
  %v2418 = vpop.xlane.xlu0 %2417
  %v2419 = vsel %vm604, %v2398, 0.0
  %2420 = vadd.xlane.f32.xlu0 %v2419
  %v2421 = vpop.xlane.xlu0 %2420
  %v2422 = vsel %vm604, %v2400, 0.0
  %2423 = vadd.xlane.f32.xlu0 %v2422
  %v2424 = vpop.xlane.xlu0 %2423
  %v2425 = vrcp.pop %v2403
  %v2426 = vrcp.pop %v2406
  %v2427 = vrcp.pop %v2409
  %v2428 = vrcp.pop %v2412
  %v2429 = vrcp.pop %v2415
  %v2430 = vrcp.pop %v2418
  %v2431 = vrcp.pop %v2421
  %v2432 = vrcp.pop %v2424
  %v2433 = vmul.f32 %v2386, %v2425
  %v2434 = vmul.f32 %v2388, %v2426
  %v2435 = vmul.f32 %v2390, %v2427
  %v2436 = vmul.f32 %v2392, %v2428
  %v2437 = vmul.f32 %v2394, %v2429
  %v2438 = vmul.f32 %v2396, %v2430
  %v2439 = vmul.f32 %v2398, %v2431
  %v2440 = vmul.f32 %v2400, %v2432
  %v2442 = vsel %vm604, %v2180, 0
  %v2445 = vsel %vm604, %v2181, 0
  %v2448 = vsel %vm604, %v2433, 0
  %v2451 = vsel %vm604, %v2434, 0
  %v2454 = vsel %vm604, %v2435, 0
  %v2457 = vsel %vm604, %v2436, 0
  %v2460 = vsel %vm604, %v2437, 0
  %v2463 = vsel %vm604, %v2438, 0
  %v2466 = vsel %vm604, %v2439, 0
  %v2469 = vsel %vm604, %v2440, 0
  %2471 = vmatprep.subr.mxu0 0.0
  %2472 = vmatpush1.xpose.msra.mxu0 %v2448
  %2473 = vmatprep.subr.mxu0 0.0
  %2474 = vmatpush1.xpose.msra.mxu0 %v2451
  %2475 = vmatprep.subr.mxu0 0.0
  %2476 = vmatpush1.xpose.msra.mxu0 %v2454
  %2477 = vmatprep.subr.mxu0 0.0
  %2478 = vmatpush1.xpose.msra.mxu0 %v2457
  %2479 = vmatprep.subr.mxu0 0.0
  %2480 = vmatpush1.xpose.msra.mxu0 %v2460
  %2481 = vmatprep.subr.mxu0 0.0
  %2482 = vmatpush1.xpose.msra.mxu0 %v2463
  %2483 = vmatprep.subr.mxu0 0.0
  %2484 = vmatpush1.xpose.msra.mxu0 %v2466
  %2485 = vmatprep.subr.mxu0 0.0
  %2486 = vmatpush1.xpose.msra.mxu0 %v2469
  %2487 = vmatprep.subr.mxu0 0.0
  %2488 = vmatpush1.xpose.msra.mxu0 0.0
  %2489 = vmatprep.subr.mxu0 0.0
  %2490 = vmatpush1.xpose.msra.mxu0 0.0
  %2491 = vmatprep.subr.mxu0 0.0
  %2492 = vmatpush1.xpose.msra.mxu0 0.0
  %2493 = vmatprep.subr.mxu0 0.0
  %2494 = vmatpush1.xpose.msra.mxu0 0.0
  %2495 = vmatprep.subr.mxu0 0.0
  %2496 = vmatpush1.xpose.msra.mxu0 0.0
  %2497 = vmatprep.subr.mxu0 0.0
  %2498 = vmatpush1.xpose.msra.mxu0 0.0
  %2499 = vmatprep.subr.mxu0 0.0
  %2500 = vmatpush1.xpose.msra.mxu0 0.0
  %2501 = vmatprep.subr.mxu0 0.0
  %2502 = vmatpush1.xpose.msra.mxu0 0.0
  %2503 = vmatprep.subr.mxu0 0.0
  %2504 = vmatpush1.xpose.msra.mxu0 0.0
  %2505 = vmatprep.subr.mxu0 0.0
  %2506 = vmatpush1.xpose.msra.mxu0 0.0
  %2507 = vmatprep.subr.mxu0 0.0
  %2508 = vmatpush1.xpose.msra.mxu0 0.0
  %2509 = vmatprep.subr.mxu0 0.0
  %2510 = vmatpush1.xpose.msra.mxu0 0.0
  %2511 = vmatprep.subr.mxu0 0.0
  %2512 = vmatpush1.xpose.msra.mxu0 0.0
  %2513 = vmatprep.subr.mxu0 0.0
  %2514 = vmatpush1.xpose.msra.mxu0 0.0
  %2515 = vmatprep.subr.mxu0 0.0
  %2516 = vmatpush1.xpose.msra.mxu0 0.0
  %2517 = vmatprep.subr.mxu0 0.0
  %2518 = vmatpush1.xpose.msra.mxu0 0.0
  %2519 = vmatprep.subr.mxu0 0.0
  %2520 = vmatpush1.xpose.msra.mxu0 0.0
  %2521 = vmatprep.subr.mxu0 0.0
  %2522 = vmatpush1.xpose.msra.mxu0 0.0
  %2523 = vmatprep.subr.mxu0 0.0
  %2524 = vmatpush1.xpose.msra.mxu0 0.0
  %2525 = vmatprep.subr.mxu0 0.0
  %2526 = vmatpush1.xpose.msra.mxu0 0.0
  %2527 = vmatprep.subr.mxu0 0.0
  %2528 = vmatpush1.xpose.msra.mxu0 0.0
  %2529 = vmatprep.subr.mxu0 0.0
  %2530 = vmatpush1.xpose.msra.mxu0 0.0
  %2531 = vmatprep.subr.mxu0 0.0
  %2532 = vmatpush1.xpose.msra.mxu0 0.0
  %2533 = vmatprep.subr.mxu0 0.0
  %2534 = vmatpush1.xpose.msra.mxu0 0.0
  %2535 = vmatprep.mubr.f32.mxu0 0.0
  %2536 = vmatmul.mubr.f32.gmra.mrb[0].mxu0 %v2442
  %v2537 = vpop.f32.mrb[0].mxu0
  %v2538 = vadd.f32 0.0, %v2537
  %v2539 = vpop.f32.mrb[0].mxu0
  %2540 = vmatprep.mubr.f32.mxu0 0.0
  %2541 = vmatmul.mubr.f32.gmra.mrb[0].mxu0 %v2445
  %v2542 = vpop.f32.mrb[0].mxu0
  %v2543 = vadd.f32 0.0, %v2542
  %v2544 = vpop.f32.mrb[0].mxu0
  %2545 = vdwg.mxu0
  %2546 = vxpose.xlu0.b32.start [1/16] %v2154, 128
  %2547 = vxpose.xlu0.b32.cont [2/16] %v2155, 128
  %2548 = vxpose.xlu0.b32.cont [3/16] 0.0, 128
  %2549 = vxpose.xlu0.b32.cont [4/16] 0.0, 128
  %2550 = vxpose.xlu0.b32.cont [5/16] 0.0, 128
  %2551 = vxpose.xlu0.b32.cont [6/16] 0.0, 128
  %2552 = vxpose.xlu0.b32.cont [7/16] 0.0, 128
  %2553 = vxpose.xlu0.b32.cont [8/16] 0.0, 128
  %2554 = vxpose.xlu0.b32.cont [9/16] 0.0, 128
  %2555 = vxpose.xlu0.b32.cont [10/16] 0.0, 128
  %2556 = vxpose.xlu0.b32.cont [11/16] 0.0, 128
  %2557 = vxpose.xlu0.b32.cont [12/16] 0.0, 128
  %2558 = vxpose.xlu0.b32.cont [13/16] 0.0, 128
  %2559 = vxpose.xlu0.b32.cont [14/16] 0.0, 128
  %2560 = vxpose.xlu0.b32.cont [15/16] 0.0, 128
  %2561 = vxpose.xlu0.b32.end [16/16] 0.0, 128
  %v2562 = vpop.trf.xlu0
  %v2563 = vpop.trf.xlu0
  %v2564 = vpop.trf.xlu0
  %v2565 = vpop.trf.xlu0
  %v2566 = vpop.trf.xlu0
  %v2567 = vpop.trf.xlu0
  %v2568 = vpop.trf.xlu0
  %v2569 = vpop.trf.xlu0
  %v2570 = vpop.trf.xlu0
  %v2571 = vpop.trf.xlu0
  %v2572 = vpop.trf.xlu0
  %v2573 = vpop.trf.xlu0
  %v2574 = vpop.trf.xlu0
  %v2575 = vpop.trf.xlu0
  %v2576 = vpop.trf.xlu0
  %v2577 = vpop.trf.xlu0
  %v2579 = vsel %vm949, %v2562, 0
  %v2582 = vsel %vm949, %v2563, 0
  %v2585 = vsel %vm949, %v2564, 0
  %v2588 = vsel %vm949, %v2565, 0
  %v2591 = vsel %vm949, %v2566, 0
  %v2594 = vsel %vm949, %v2567, 0
  %v2597 = vsel %vm949, %v2568, 0
  %v2600 = vsel %vm949, %v2569, 0
  %2602 = vmatprep.subr.mxu0 0.0
  %2603 = vmatpush1.msra.mxu0 %v2158
  %2604 = vmatprep.subr.mxu0 0.0
  %2605 = vmatpush1.msra.mxu0 %v2159
  %2606 = vmatprep.subr.mxu0 0.0
  %2607 = vmatpush1.msra.mxu0 0.0
  %2608 = vmatprep.subr.mxu0 0.0
  %2609 = vmatpush1.msra.mxu0 0.0
  %2610 = vmatprep.subr.mxu0 0.0
  %2611 = vmatpush1.msra.mxu0 0.0
  %2612 = vmatprep.subr.mxu0 0.0
  %2613 = vmatpush1.msra.mxu0 0.0
  %2614 = vmatprep.subr.mxu0 0.0
  %2615 = vmatpush1.msra.mxu0 0.0
  %2616 = vmatprep.subr.mxu0 0.0
  %2617 = vmatpush1.msra.mxu0 0.0
  %2618 = vmatprep.subr.mxu0 0.0
  %2619 = vmatpush1.msra.mxu0 0.0
  %2620 = vmatprep.subr.mxu0 0.0
  %2621 = vmatpush1.msra.mxu0 0.0
  %2622 = vmatprep.subr.mxu0 0.0
  %2623 = vmatpush1.msra.mxu0 0.0
  %2624 = vmatprep.subr.mxu0 0.0
  %2625 = vmatpush1.msra.mxu0 0.0
  %2626 = vmatprep.subr.mxu0 0.0
  %2627 = vmatpush1.msra.mxu0 0.0
  %2628 = vmatprep.subr.mxu0 0.0
  %2629 = vmatpush1.msra.mxu0 0.0
  %2630 = vmatprep.subr.mxu0 0.0
  %2631 = vmatpush1.msra.mxu0 0.0
  %2632 = vmatprep.subr.mxu0 0.0
  %2633 = vmatpush1.msra.mxu0 0.0
  %2634 = vmatprep.subr.mxu0 0.0
  %2635 = vmatpush1.msra.mxu0 0.0
  %2636 = vmatprep.subr.mxu0 0.0
  %2637 = vmatpush1.msra.mxu0 0.0
  %2638 = vmatprep.subr.mxu0 0.0
  %2639 = vmatpush1.msra.mxu0 0.0
  %2640 = vmatprep.subr.mxu0 0.0
  %2641 = vmatpush1.msra.mxu0 0.0
  %2642 = vmatprep.subr.mxu0 0.0
  %2643 = vmatpush1.msra.mxu0 0.0
  %2644 = vmatprep.subr.mxu0 0.0
  %2645 = vmatpush1.msra.mxu0 0.0
  %2646 = vmatprep.subr.mxu0 0.0
  %2647 = vmatpush1.msra.mxu0 0.0
  %2648 = vmatprep.subr.mxu0 0.0
  %2649 = vmatpush1.msra.mxu0 0.0
  %2650 = vmatprep.subr.mxu0 0.0
  %2651 = vmatpush1.msra.mxu0 0.0
  %2652 = vmatprep.subr.mxu0 0.0
  %2653 = vmatpush1.msra.mxu0 0.0
  %2654 = vmatprep.subr.mxu0 0.0
  %2655 = vmatpush1.msra.mxu0 0.0
  %2656 = vmatprep.subr.mxu0 0.0
  %2657 = vmatpush1.msra.mxu0 0.0
  %2658 = vmatprep.subr.mxu0 0.0
  %2659 = vmatpush1.msra.mxu0 0.0
  %2660 = vmatprep.subr.mxu0 0.0
  %2661 = vmatpush1.msra.mxu0 0.0
  %2662 = vmatprep.subr.mxu0 0.0
  %2663 = vmatpush1.msra.mxu0 0.0
  %2664 = vmatprep.subr.mxu0 0.0
  %2665 = vmatpush1.msra.mxu0 0.0
  %2666 = vmatprep.mubr.f32.mxu0 0.0
  %2667 = vmatmul.mubr.f32.gmra.mrb[0].mxu0 %v2579
  %v2668 = vpop.f32.mrb[0].mxu0
  %v2669 = vadd.f32 0.0, %v2668
  %v2670 = vpop.f32.mrb[0].mxu0
  %2671 = vmatprep.mubr.f32.mxu0 0.0
  %2672 = vmatmul.mubr.f32.gmra.mrb[0].mxu0 %v2582
  %v2673 = vpop.f32.mrb[0].mxu0
  %v2674 = vadd.f32 0.0, %v2673
  %v2675 = vpop.f32.mrb[0].mxu0
  %2676 = vmatprep.mubr.f32.mxu0 0.0
  %2677 = vmatmul.mubr.f32.gmra.mrb[0].mxu0 %v2585
  %v2678 = vpop.f32.mrb[0].mxu0
  %v2679 = vadd.f32 0.0, %v2678
  %v2680 = vpop.f32.mrb[0].mxu0
  %2681 = vmatprep.mubr.f32.mxu0 0.0
  %2682 = vmatmul.mubr.f32.gmra.mrb[0].mxu0 %v2588
  %v2683 = vpop.f32.mrb[0].mxu0
  %v2684 = vadd.f32 0.0, %v2683
  %v2685 = vpop.f32.mrb[0].mxu0
  %2686 = vmatprep.mubr.f32.mxu0 0.0
  %2687 = vmatmul.mubr.f32.gmra.mrb[0].mxu0 %v2591
  %v2688 = vpop.f32.mrb[0].mxu0
  %v2689 = vadd.f32 0.0, %v2688
  %v2690 = vpop.f32.mrb[0].mxu0
  %2691 = vmatprep.mubr.f32.mxu0 0.0
  %2692 = vmatmul.mubr.f32.gmra.mrb[0].mxu0 %v2594
  %v2693 = vpop.f32.mrb[0].mxu0
  %v2694 = vadd.f32 0.0, %v2693
  %v2695 = vpop.f32.mrb[0].mxu0
  %2696 = vmatprep.mubr.f32.mxu0 0.0
  %2697 = vmatmul.mubr.f32.gmra.mrb[0].mxu0 %v2597
  %v2698 = vpop.f32.mrb[0].mxu0
  %v2699 = vadd.f32 0.0, %v2698
  %v2700 = vpop.f32.mrb[0].mxu0
  %2701 = vmatprep.mubr.f32.mxu0 0.0
  %2702 = vmatmul.mubr.f32.gmra.mrb[0].mxu0 %v2600
  %v2703 = vpop.f32.mrb[0].mxu0
  %v2704 = vadd.f32 0.0, %v2703
  %v2705 = vpop.f32.mrb[0].mxu0
  %2706 = vdwg.mxu0
  %v2707 = vmul.f32 %v2669, 0.25
  %v2708 = vmul.f32 %v2674, 0.25
  %v2709 = vmul.f32 %v2679, 0.25
  %v2710 = vmul.f32 %v2684, 0.25
  %v2711 = vmul.f32 %v2689, 0.25
  %v2712 = vmul.f32 %v2694, 0.25
  %v2713 = vmul.f32 %v2699, 0.25
  %v2714 = vmul.f32 %v2704, 0.25
  %v2715 = vsel %vm604, %v2707, -inf
  %2716 = vmax.xlane.f32.xlu0 %v2715
  %v2717 = vpop.xlane.xlu0 %2716
  %v2718 = vsel %vm604, %v2708, -inf
  %2719 = vmax.xlane.f32.xlu0 %v2718
  %v2720 = vpop.xlane.xlu0 %2719
  %v2721 = vsel %vm604, %v2709, -inf
  %2722 = vmax.xlane.f32.xlu0 %v2721
  %v2723 = vpop.xlane.xlu0 %2722
  %v2724 = vsel %vm604, %v2710, -inf
  %2725 = vmax.xlane.f32.xlu0 %v2724
  %v2726 = vpop.xlane.xlu0 %2725
  %v2727 = vsel %vm604, %v2711, -inf
  %2728 = vmax.xlane.f32.xlu0 %v2727
  %v2729 = vpop.xlane.xlu0 %2728
  %v2730 = vsel %vm604, %v2712, -inf
  %2731 = vmax.xlane.f32.xlu0 %v2730
  %v2732 = vpop.xlane.xlu0 %2731
  %v2733 = vsel %vm604, %v2713, -inf
  %2734 = vmax.xlane.f32.xlu0 %v2733
  %v2735 = vpop.xlane.xlu0 %2734
  %v2736 = vsel %vm604, %v2714, -inf
  %2737 = vmax.xlane.f32.xlu0 %v2736
  %v2738 = vpop.xlane.xlu0 %2737
  %v2739 = vsub.f32 %v2707, %v2717
  %v2740 = vsub.f32 %v2708, %v2720
  %v2741 = vsub.f32 %v2709, %v2723
  %v2742 = vsub.f32 %v2710, %v2726
  %v2743 = vsub.f32 %v2711, %v2729
  %v2744 = vsub.f32 %v2712, %v2732
  %v2745 = vsub.f32 %v2713, %v2735
  %v2746 = vsub.f32 %v2714, %v2738
  %v2747 = vmul.f32 %v2739, 1.442695
  %v2748 = vpow.pop %v2747
  %v2749 = vmul.f32 %v2740, 1.442695
  %v2750 = vpow.pop %v2749
  %v2751 = vmul.f32 %v2741, 1.442695
  %v2752 = vpow.pop %v2751
  %v2753 = vmul.f32 %v2742, 1.442695
  %v2754 = vpow.pop %v2753
  %v2755 = vmul.f32 %v2743, 1.442695
  %v2756 = vpow.pop %v2755
  %v2757 = vmul.f32 %v2744, 1.442695
  %v2758 = vpow.pop %v2757
  %v2759 = vmul.f32 %v2745, 1.442695
  %v2760 = vpow.pop %v2759
  %v2761 = vmul.f32 %v2746, 1.442695
  %v2762 = vpow.pop %v2761
  %v2763 = vsel %vm604, %v2748, 0.0
  %2764 = vadd.xlane.f32.xlu0 %v2763
  %v2765 = vpop.xlane.xlu0 %2764
  %v2766 = vsel %vm604, %v2750, 0.0
  %2767 = vadd.xlane.f32.xlu0 %v2766
  %v2768 = vpop.xlane.xlu0 %2767
  %v2769 = vsel %vm604, %v2752, 0.0
  %2770 = vadd.xlane.f32.xlu0 %v2769
  %v2771 = vpop.xlane.xlu0 %2770
  %v2772 = vsel %vm604, %v2754, 0.0
  %2773 = vadd.xlane.f32.xlu0 %v2772
  %v2774 = vpop.xlane.xlu0 %2773
  %v2775 = vsel %vm604, %v2756, 0.0
  %2776 = vadd.xlane.f32.xlu0 %v2775
  %v2777 = vpop.xlane.xlu0 %2776
  %v2778 = vsel %vm604, %v2758, 0.0
  %2779 = vadd.xlane.f32.xlu0 %v2778
  %v2780 = vpop.xlane.xlu0 %2779
  %v2781 = vsel %vm604, %v2760, 0.0
  %2782 = vadd.xlane.f32.xlu0 %v2781
  %v2783 = vpop.xlane.xlu0 %2782
  %v2784 = vsel %vm604, %v2762, 0.0
  %2785 = vadd.xlane.f32.xlu0 %v2784
  %v2786 = vpop.xlane.xlu0 %2785
  %v2787 = vrcp.pop %v2765
  %v2788 = vrcp.pop %v2768
  %v2789 = vrcp.pop %v2771
  %v2790 = vrcp.pop %v2774
  %v2791 = vrcp.pop %v2777
  %v2792 = vrcp.pop %v2780
  %v2793 = vrcp.pop %v2783
  %v2794 = vrcp.pop %v2786
  %v2795 = vmul.f32 %v2748, %v2787
  %v2796 = vmul.f32 %v2750, %v2788
  %v2797 = vmul.f32 %v2752, %v2789
  %v2798 = vmul.f32 %v2754, %v2790
  %v2799 = vmul.f32 %v2756, %v2791
  %v2800 = vmul.f32 %v2758, %v2792
  %v2801 = vmul.f32 %v2760, %v2793
  %v2802 = vmul.f32 %v2762, %v2794
  %v2804 = vsel %vm604, %v2182, 0
  %v2807 = vsel %vm604, %v2183, 0
  %v2810 = vsel %vm604, %v2795, 0
  %v2813 = vsel %vm604, %v2796, 0
  %v2816 = vsel %vm604, %v2797, 0
  %v2819 = vsel %vm604, %v2798, 0
  %v2822 = vsel %vm604, %v2799, 0
  %v2825 = vsel %vm604, %v2800, 0
  %v2828 = vsel %vm604, %v2801, 0
  %v2831 = vsel %vm604, %v2802, 0
  %2833 = vmatprep.subr.mxu0 0.0
  %2834 = vmatpush1.xpose.msra.mxu0 %v2810
  %2835 = vmatprep.subr.mxu0 0.0
  %2836 = vmatpush1.xpose.msra.mxu0 %v2813
  %2837 = vmatprep.subr.mxu0 0.0
  %2838 = vmatpush1.xpose.msra.mxu0 %v2816
  %2839 = vmatprep.subr.mxu0 0.0
  %2840 = vmatpush1.xpose.msra.mxu0 %v2819
  %2841 = vmatprep.subr.mxu0 0.0
  %2842 = vmatpush1.xpose.msra.mxu0 %v2822
  %2843 = vmatprep.subr.mxu0 0.0
  %2844 = vmatpush1.xpose.msra.mxu0 %v2825
  %2845 = vmatprep.subr.mxu0 0.0
  %2846 = vmatpush1.xpose.msra.mxu0 %v2828
  %2847 = vmatprep.subr.mxu0 0.0
  %2848 = vmatpush1.xpose.msra.mxu0 %v2831
  %2849 = vmatprep.subr.mxu0 0.0
  %2850 = vmatpush1.xpose.msra.mxu0 0.0
  %2851 = vmatprep.subr.mxu0 0.0
  %2852 = vmatpush1.xpose.msra.mxu0 0.0
  %2853 = vmatprep.subr.mxu0 0.0
  %2854 = vmatpush1.xpose.msra.mxu0 0.0
  %2855 = vmatprep.subr.mxu0 0.0
  %2856 = vmatpush1.xpose.msra.mxu0 0.0
  %2857 = vmatprep.subr.mxu0 0.0
  %2858 = vmatpush1.xpose.msra.mxu0 0.0
  %2859 = vmatprep.subr.mxu0 0.0
  %2860 = vmatpush1.xpose.msra.mxu0 0.0
  %2861 = vmatprep.subr.mxu0 0.0
  %2862 = vmatpush1.xpose.msra.mxu0 0.0
  %2863 = vmatprep.subr.mxu0 0.0
  %2864 = vmatpush1.xpose.msra.mxu0 0.0
  %2865 = vmatprep.subr.mxu0 0.0
  %2866 = vmatpush1.xpose.msra.mxu0 0.0
  %2867 = vmatprep.subr.mxu0 0.0
  %2868 = vmatpush1.xpose.msra.mxu0 0.0
  %2869 = vmatprep.subr.mxu0 0.0
  %2870 = vmatpush1.xpose.msra.mxu0 0.0
  %2871 = vmatprep.subr.mxu0 0.0
  %2872 = vmatpush1.xpose.msra.mxu0 0.0
  %2873 = vmatprep.subr.mxu0 0.0
  %2874 = vmatpush1.xpose.msra.mxu0 0.0
  %2875 = vmatprep.subr.mxu0 0.0
  %2876 = vmatpush1.xpose.msra.mxu0 0.0
  %2877 = vmatprep.subr.mxu0 0.0
  %2878 = vmatpush1.xpose.msra.mxu0 0.0
  %2879 = vmatprep.subr.mxu0 0.0
  %2880 = vmatpush1.xpose.msra.mxu0 0.0
  %2881 = vmatprep.subr.mxu0 0.0
  %2882 = vmatpush1.xpose.msra.mxu0 0.0
  %2883 = vmatprep.subr.mxu0 0.0
  %2884 = vmatpush1.xpose.msra.mxu0 0.0
  %2885 = vmatprep.subr.mxu0 0.0
  %2886 = vmatpush1.xpose.msra.mxu0 0.0
  %2887 = vmatprep.subr.mxu0 0.0
  %2888 = vmatpush1.xpose.msra.mxu0 0.0
  %2889 = vmatprep.subr.mxu0 0.0
  %2890 = vmatpush1.xpose.msra.mxu0 0.0
  %2891 = vmatprep.subr.mxu0 0.0
  %2892 = vmatpush1.xpose.msra.mxu0 0.0
  %2893 = vmatprep.subr.mxu0 0.0
  %2894 = vmatpush1.xpose.msra.mxu0 0.0
  %2895 = vmatprep.subr.mxu0 0.0
  %2896 = vmatpush1.xpose.msra.mxu0 0.0
  %2897 = vmatprep.mubr.f32.mxu0 0.0
  %2898 = vmatmul.mubr.f32.gmra.mrb[0].mxu0 %v2804
  %v2899 = vpop.f32.mrb[0].mxu0
  %v2900 = vadd.f32 0.0, %v2899
  %v2901 = vpop.f32.mrb[0].mxu0
  %2902 = vmatprep.mubr.f32.mxu0 0.0
  %2903 = vmatmul.mubr.f32.gmra.mrb[0].mxu0 %v2807
  %v2904 = vpop.f32.mrb[0].mxu0
  %v2905 = vadd.f32 0.0, %v2904
  %v2906 = vpop.f32.mrb[0].mxu0
  %2907 = vdwg.mxu0
  %v2908 = vld [vmem:[%s6] sm:$0xff]
  %v2909 = vld [vmem:[%s6 + $0x8] sm:$0xff]
  %v2910 = vld [vmem:[%s6 + $0x10] sm:$0xff]
  %v2911 = vld [vmem:[%s6 + $0x18] sm:$0xff]
  %2912 = vset.pattern.permute.xlu0 1
  %2913 = vperm.xlu0 %2912, %v568
  %v2914 = vpop.permute.xlu0 %2913
  %2916 = vset.pattern.permute.xlu0 1
  %2917 = vperm.xlu0 %2916, %v569
  %v2918 = vpop.permute.xlu0 %2917
  %2920 = vset.pattern.permute.xlu0 1
  %2921 = vperm.xlu0 %2920, %v570
  %v2922 = vpop.permute.xlu0 %2921
  %2924 = vset.pattern.permute.xlu0 1
  %2925 = vperm.xlu0 %2924, %v571
  %v2926 = vpop.permute.xlu0 %2925
  %v2928 = vmul.f32 %v2908, %v2914
  %v2929 = vmul.f32 %v2909, %v2918
  %v2930 = vmul.f32 %v2910, %v2922
  %v2931 = vmul.f32 %v2911, %v2926
  %v2932 = vld [vmem:[%s1670] sm:$0xff]
  %v2933 = vld [vmem:[%s1670 + $0x8] sm:$0xff]
  %v2934 = vld [vmem:[%s1670 + $0x10] sm:$0xff]
  %v2935 = vld [vmem:[%s1670 + $0x18] sm:$0xff]
  %2936 = vset.pattern.permute.xlu0 1
  %2937 = vperm.xlu0 %2936, %v572
  %v2938 = vpop.permute.xlu0 %2937
  %2940 = vset.pattern.permute.xlu0 1
  %2941 = vperm.xlu0 %2940, %v573
  %v2942 = vpop.permute.xlu0 %2941
  %2944 = vset.pattern.permute.xlu0 1
  %2945 = vperm.xlu0 %2944, %v574
  %v2946 = vpop.permute.xlu0 %2945
  %2948 = vset.pattern.permute.xlu0 1
  %2949 = vperm.xlu0 %2948, %v575
  %v2950 = vpop.permute.xlu0 %2949
  %v2952 = vmul.f32 %v2932, %v2938
  %v2953 = vmul.f32 %v2933, %v2942
  %v2954 = vmul.f32 %v2934, %v2946
  %v2955 = vmul.f32 %v2935, %v2950
  %2960 = vrot.lane.b32.xlu0 %v2952, 32
  %v2961 = vpop.permute.xlu0 %2960
  %2962 = vrot.lane.b32.xlu0 %v2953, 32
  %v2963 = vpop.permute.xlu0 %2962
  %2964 = vrot.lane.b32.xlu0 %v2954, 32
  %v2965 = vpop.permute.xlu0 %2964
  %2966 = vrot.lane.b32.xlu0 %v2955, 32
  %v2967 = vpop.permute.xlu0 %2966
  %v2972 = vsel %vm44, %v2928, %v2961
  %v2973 = vsel %vm44, %v2929, %v2963
  %v2974 = vsel %vm44, %v2930, %v2965
  %v2975 = vsel %vm44, %v2931, %v2967
  %v2976 = vld [vmem:[%s8] sm:$0xff]
  %v2977 = vld [vmem:[%s8 + $0x8] sm:$0xff]
  %v2978 = vld [vmem:[%s8 + $0x10] sm:$0xff]
  %v2979 = vld [vmem:[%s8 + $0x18] sm:$0xff]
  %2981 = vset.pattern.permute.xlu0 0
  %2982 = vperm.xlu0 %2981, %v2976
  %v2983 = vpop.permute.xlu0 %2982
  %2986 = vset.pattern.permute.xlu0 0
  %2987 = vperm.xlu0 %2986, %v2977
  %v2988 = vpop.permute.xlu0 %2987
  %2991 = vset.pattern.permute.xlu0 0
  %2992 = vperm.xlu0 %2991, %v2978
  %v2993 = vpop.permute.xlu0 %2992
  %2996 = vset.pattern.permute.xlu0 0
  %2997 = vperm.xlu0 %2996, %v2979
  %v2998 = vpop.permute.xlu0 %2997
  %v3001 = vsel %vm604, %v2972, 0
  %v3004 = vsel %vm604, %v2973, 0
  %v3007 = vsel %vm604, %v2974, 0
  %v3010 = vsel %vm604, %v2975, 0
  %3012 = vmatprep.subr.mxu0 0.0
  %3013 = vmatpush1.msra.mxu0 %v2538
  %3014 = vmatprep.subr.mxu0 0.0
  %3015 = vmatpush1.msra.mxu0 %v2543
  %3016 = vmatprep.subr.mxu0 0.0
  %3017 = vmatpush1.msra.mxu0 %v2900
  %3018 = vmatprep.subr.mxu0 0.0
  %3019 = vmatpush1.msra.mxu0 %v2905
  %3020 = vmatprep.subr.mxu0 0.0
  %3021 = vmatpush1.msra.mxu0 %v2180
  %3022 = vmatprep.subr.mxu0 0.0
  %3023 = vmatpush1.msra.mxu0 %v2181
  %3024 = vmatprep.subr.mxu0 0.0
  %3025 = vmatpush1.msra.mxu0 %v2182
  %3026 = vmatprep.subr.mxu0 0.0
  %3027 = vmatpush1.msra.mxu0 %v2183
  %3028 = vmatprep.subr.mxu0 0.0
  %3029 = vmatpush1.msra.mxu0 0.0
  %3030 = vmatprep.subr.mxu0 0.0
  %3031 = vmatpush1.msra.mxu0 0.0
  %3032 = vmatprep.subr.mxu0 0.0
  %3033 = vmatpush1.msra.mxu0 0.0
  %3034 = vmatprep.subr.mxu0 0.0
  %3035 = vmatpush1.msra.mxu0 0.0
  %3036 = vmatprep.subr.mxu0 0.0
  %3037 = vmatpush1.msra.mxu0 0.0
  %3038 = vmatprep.subr.mxu0 0.0
  %3039 = vmatpush1.msra.mxu0 0.0
  %3040 = vmatprep.subr.mxu0 0.0
  %3041 = vmatpush1.msra.mxu0 0.0
  %3042 = vmatprep.subr.mxu0 0.0
  %3043 = vmatpush1.msra.mxu0 0.0
  %3044 = vmatprep.subr.mxu0 0.0
  %3045 = vmatpush1.msra.mxu0 0.0
  %3046 = vmatprep.subr.mxu0 0.0
  %3047 = vmatpush1.msra.mxu0 0.0
  %3048 = vmatprep.subr.mxu0 0.0
  %3049 = vmatpush1.msra.mxu0 0.0
  %3050 = vmatprep.subr.mxu0 0.0
  %3051 = vmatpush1.msra.mxu0 0.0
  %3052 = vmatprep.subr.mxu0 0.0
  %3053 = vmatpush1.msra.mxu0 0.0
  %3054 = vmatprep.subr.mxu0 0.0
  %3055 = vmatpush1.msra.mxu0 0.0
  %3056 = vmatprep.subr.mxu0 0.0
  %3057 = vmatpush1.msra.mxu0 0.0
  %3058 = vmatprep.subr.mxu0 0.0
  %3059 = vmatpush1.msra.mxu0 0.0
  %3060 = vmatprep.subr.mxu0 0.0
  %3061 = vmatpush1.msra.mxu0 0.0
  %3062 = vmatprep.subr.mxu0 0.0
  %3063 = vmatpush1.msra.mxu0 0.0
  %3064 = vmatprep.subr.mxu0 0.0
  %3065 = vmatpush1.msra.mxu0 0.0
  %3066 = vmatprep.subr.mxu0 0.0
  %3067 = vmatpush1.msra.mxu0 0.0
  %3068 = vmatprep.subr.mxu0 0.0
  %3069 = vmatpush1.msra.mxu0 0.0
  %3070 = vmatprep.subr.mxu0 0.0
  %3071 = vmatpush1.msra.mxu0 0.0
  %3072 = vmatprep.subr.mxu0 0.0
  %3073 = vmatpush1.msra.mxu0 0.0
  %3074 = vmatprep.subr.mxu0 0.0
  %3075 = vmatpush1.msra.mxu0 0.0
  %3076 = vmatprep.mubr.f32.mxu0 0.0
  %3077 = vmatmul.mubr.f32.gmra.mrb[0].mxu0 %v3001
  %v3078 = vpop.f32.mrb[0].mxu0
  %v3079 = vadd.f32 %v2983, %v3078
  %v3080 = vpop.f32.mrb[0].mxu0
  %3081 = vmatprep.mubr.f32.mxu0 0.0
  %3082 = vmatmul.mubr.f32.gmra.mrb[0].mxu0 %v3004
  %v3083 = vpop.f32.mrb[0].mxu0
  %v3084 = vadd.f32 %v2988, %v3083
  %v3085 = vpop.f32.mrb[0].mxu0
  %3086 = vmatprep.mubr.f32.mxu0 0.0
  %3087 = vmatmul.mubr.f32.gmra.mrb[0].mxu0 %v3007
  %v3088 = vpop.f32.mrb[0].mxu0
  %v3089 = vadd.f32 %v2993, %v3088
  %v3090 = vpop.f32.mrb[0].mxu0
  %3091 = vmatprep.mubr.f32.mxu0 0.0
  %3092 = vmatmul.mubr.f32.gmra.mrb[0].mxu0 %v3010
  %v3093 = vpop.f32.mrb[0].mxu0
  %v3094 = vadd.f32 %v2998, %v3093
  %v3095 = vpop.f32.mrb[0].mxu0
  %3096 = vdwg.mxu0
  %vm3097 = vcmp.ge.f32.partialorder %v3079, 0.0
  %vm3098 = vcmp.ge.f32.partialorder %v3084, 0.0
  %vm3099 = vcmp.ge.f32.partialorder %v3089, 0.0
  %vm3100 = vcmp.ge.f32.partialorder %v3094, 0.0
  %v3101 = vmul.f32 %v3079, 0.2
  %v3102 = vmul.f32 %v3084, 0.2
  %v3103 = vmul.f32 %v3089, 0.2
  %v3104 = vmul.f32 %v3094, 0.2
  %v3105 = vsel %vm3097, %v3079, %v3101
  %v3106 = vsel %vm3098, %v3084, %v3102
  %v3107 = vsel %vm3099, %v3089, %v3103
  %v3108 = vsel %vm3100, %v3094, %v3104
  %v3109 = vmax.f32 %v3105, -256.0
  %v3110 = vmax.f32 %v3106, -256.0
  %v3111 = vmax.f32 %v3107, -256.0
  %v3112 = vmax.f32 %v3108, -256.0
  %v3113 = vmin.f32 %v3109, 256.0
  %v3114 = vmin.f32 %v3110, 256.0
  %v3115 = vmin.f32 %v3111, 256.0
  %v3116 = vmin.f32 %v3112, 256.0
  %s3117 = scalar_lea.vmem %s9, 32
  %3118 = vst.msk [vmem:[%s3117] sm:$0xff] %vm604, %v3113
  %3119 = vst.msk [vmem:[%s3117 + $0x8] sm:$0xff] %vm604, %v3114
  %3120 = vst.msk [vmem:[%s3117 + $0x10] sm:$0xff] %vm604, %v3115
  %3121 = vst.msk [vmem:[%s3117 + $0x18] sm:$0xff] %vm604, %v3116
  // Predicated region
  $region38: #{_lambda_.6} parent=0 // pred_check
    _
  $region39: #{_lambda_.6} parent=0 // pred_check_branch
    %3123 = sbr.rel (0) target = $region41
  $region40: #{_lambda_.6} parent=0 // pred_region
    _
  $region41: #{_lambda_.6} parent=0 // pred_fallthru
    _
  // Predicated region
  $region42: #{_lambda_.6} parent=0 // pred_check
    _
  $region43: #{_lambda_.6} parent=0 // pred_check_branch
    %3125 = sbr.rel (0) target = $region45
  $region44: #{_lambda_.6} parent=0 // pred_region
    _
  $region45: #{_lambda_.6} parent=0 // pred_fallthru
    _

// kernel: _lambda_.9
$region0: #{_lambda_.9}
  #allocation0 [shape = 'u32[]', space=smem, size = 0x4, offset = 0x4, fixed_abs, tag = 'smem constant byte address 0x4 - core index']
  #allocation1 [shape = 'u32[144,128]{1,0:T(1,128)}', space=vmem, size = 0x12000, scoped, tag = 'internal scratch']
  %s0 = inlined_call_operand.vmem [shape: f32[2,32,256], index: 0, kind: input, shape index: {}]
  %s1 = inlined_call_operand.vmem [shape: f32[32,2], index: 1, kind: input, shape index: {}]
  %s2 = inlined_call_operand.vmem [shape: f32[64,32], index: 2, kind: input, shape index: {}]
  %s3 = inlined_call_operand.vmem [shape: f32[64,1], index: 3, kind: input, shape index: {}]
  %s4 = inlined_call_operand.vmem [shape: f32[96,32], index: 4, kind: input, shape index: {}]
  %s5 = inlined_call_operand.vmem [shape: f32[96,32], index: 5, kind: input, shape index: {}]
  %s6 = inlined_call_operand.vmem [shape: f32[2,32,32], index: 6, kind: input, shape index: {}]
  %s7 = inlined_call_operand.vmem [shape: f32[64,32], index: 7, kind: input, shape index: {}]
  %s8 = inlined_call_operand.vmem [shape: f32[32,1], index: 8, kind: input, shape index: {}]
  %s9 = inlined_call_operand.vmem [shape: f32[2,32,256], index: 9, kind: output, shape index: {}]
  %s10 = sld [smem:[#allocation0]]
  $region46: #{_lambda_.9} parent=0
    _
  %s12 = ssub.s32 1, %s10
  %s13 = scalar_select 0, %s12, %s10
  // Predicated region
  $region2: #{_lambda_.9} parent=0 // pred_check
    _
  $region3: #{_lambda_.9} parent=0 // pred_check_branch
    %15 = sbr.rel (0) target = $region5
  $region4: #{_lambda_.9} parent=0 // pred_region
    _
  $region5: #{_lambda_.9} parent=0 // pred_fallthru
    _
  // Predicated region
  $region6: #{_lambda_.9} parent=0 // pred_check
    _
  $region7: #{_lambda_.9} parent=0 // pred_check_branch
    %17 = sbr.rel (0) target = $region9
  $region8: #{_lambda_.9} parent=0 // pred_region
    _
  $region9: #{_lambda_.9} parent=0 // pred_fallthru
    _
  // Predicated region
  $region10: #{_lambda_.9} parent=0 // pred_check
    _
  $region11: #{_lambda_.9} parent=0 // pred_check_branch
    %19 = sbr.rel (0) target = $region13
  $region12: #{_lambda_.9} parent=0 // pred_region
    _
  $region13: #{_lambda_.9} parent=0 // pred_fallthru
    _
  // Predicated region
  $region14: #{_lambda_.9} parent=0 // pred_check
    _
  $region15: #{_lambda_.9} parent=0 // pred_check_branch
    %21 = sbr.rel (0) target = $region17
  $region16: #{_lambda_.9} parent=0 // pred_region
    _
  $region17: #{_lambda_.9} parent=0 // pred_fallthru
    _
  // Predicated region
  $region18: #{_lambda_.9} parent=0 // pred_check
    _
  $region19: #{_lambda_.9} parent=0 // pred_check_branch
    %23 = sbr.rel (0) target = $region21
  $region20: #{_lambda_.9} parent=0 // pred_region
    _
  $region21: #{_lambda_.9} parent=0 // pred_fallthru
    _
  // Predicated region
  $region22: #{_lambda_.9} parent=0 // pred_check
    _
  $region23: #{_lambda_.9} parent=0 // pred_check_branch
    %25 = sbr.rel (0) target = $region25
  $region24: #{_lambda_.9} parent=0 // pred_region
    _
  $region25: #{_lambda_.9} parent=0 // pred_fallthru
    _
  // Predicated region
  $region26: #{_lambda_.9} parent=0 // pred_check
    _
  $region27: #{_lambda_.9} parent=0 // pred_check_branch
    %27 = sbr.rel (0) target = $region29
  $region28: #{_lambda_.9} parent=0 // pred_region
    _
  $region29: #{_lambda_.9} parent=0 // pred_fallthru
    _
  // Predicated region
  $region30: #{_lambda_.9} parent=0 // pred_check
    _
  $region31: #{_lambda_.9} parent=0 // pred_check_branch
    %29 = sbr.rel (0) target = $region33
  $region32: #{_lambda_.9} parent=0 // pred_region
    _
  $region33: #{_lambda_.9} parent=0 // pred_fallthru
    _
  // Predicated region
  $region34: #{_lambda_.9} parent=0 // pred_check
    _
  $region35: #{_lambda_.9} parent=0 // pred_check_branch
    %31 = sbr.rel (0) target = $region37
  $region36: #{_lambda_.9} parent=0 // pred_region
    _
  $region37: #{_lambda_.9} parent=0 // pred_fallthru
    _
  %v32 = vld [vmem:[%s2] sm:$0xff]
  %v33 = vld [vmem:[%s2 + $0x8] sm:$0xff]
  %v34 = vld [vmem:[%s2 + $0x10] sm:$0xff]
  %v35 = vld [vmem:[%s2 + $0x18] sm:$0xff]
  %v36 = vld [vmem:[%s2 + $0x20] sm:$0xff]
  %v37 = vld [vmem:[%s2 + $0x28] sm:$0xff]
  %v38 = vld [vmem:[%s2 + $0x30] sm:$0xff]
  %v39 = vld [vmem:[%s2 + $0x38] sm:$0xff]
  %v40 = vld [vmem:[%s1] sm:$0xff]
  %v41 = vld [vmem:[%s1 + $0x8] sm:$0xff]
  %v42 = vld [vmem:[%s1 + $0x10] sm:$0xff]
  %v43 = vld [vmem:[%s1 + $0x18] sm:$0xff]
  %vm44 = vcmask 261120
  %v46 = vsel %vm44, %v32, 0
  %v49 = vsel %vm44, %v33, 0
  %v52 = vsel %vm44, %v34, 0
  %v55 = vsel %vm44, %v35, 0
  %v58 = vsel %vm44, %v36, 0
  %v61 = vsel %vm44, %v37, 0
  %v64 = vsel %vm44, %v38, 0
  %v67 = vsel %vm44, %v39, 0
  %69 = vmatprep.subr.mxu0 0.0
  %70 = vmatpush1.msra.mxu0 %v40
  %71 = vmatprep.subr.mxu0 0.0
  %72 = vmatpush1.msra.mxu0 %v41
  %73 = vmatprep.subr.mxu0 0.0
  %74 = vmatpush1.msra.mxu0 %v42
  %75 = vmatprep.subr.mxu0 0.0
  %76 = vmatpush1.msra.mxu0 %v43
  %77 = vmatprep.subr.mxu0 0.0
  %78 = vmatpush1.msra.mxu0 0.0
  %79 = vmatprep.subr.mxu0 0.0
  %80 = vmatpush1.msra.mxu0 0.0
  %81 = vmatprep.subr.mxu0 0.0
  %82 = vmatpush1.msra.mxu0 0.0
  %83 = vmatprep.subr.mxu0 0.0
  %84 = vmatpush1.msra.mxu0 0.0
  %85 = vmatprep.subr.mxu0 0.0
  %86 = vmatpush1.msra.mxu0 0.0
  %87 = vmatprep.subr.mxu0 0.0
  %88 = vmatpush1.msra.mxu0 0.0
  %89 = vmatprep.subr.mxu0 0.0
  %90 = vmatpush1.msra.mxu0 0.0
  %91 = vmatprep.subr.mxu0 0.0
  %92 = vmatpush1.msra.mxu0 0.0
  %93 = vmatprep.subr.mxu0 0.0
  %94 = vmatpush1.msra.mxu0 0.0
  %95 = vmatprep.subr.mxu0 0.0
  %96 = vmatpush1.msra.mxu0 0.0
  %97 = vmatprep.subr.mxu0 0.0
  %98 = vmatpush1.msra.mxu0 0.0
  %99 = vmatprep.subr.mxu0 0.0
  %100 = vmatpush1.msra.mxu0 0.0
  %101 = vmatprep.subr.mxu0 0.0
  %102 = vmatpush1.msra.mxu0 0.0
  %103 = vmatprep.subr.mxu0 0.0
  %104 = vmatpush1.msra.mxu0 0.0
  %105 = vmatprep.subr.mxu0 0.0
  %106 = vmatpush1.msra.mxu0 0.0
  %107 = vmatprep.subr.mxu0 0.0
  %108 = vmatpush1.msra.mxu0 0.0
  %109 = vmatprep.subr.mxu0 0.0
  %110 = vmatpush1.msra.mxu0 0.0
  %111 = vmatprep.subr.mxu0 0.0
  %112 = vmatpush1.msra.mxu0 0.0
  %113 = vmatprep.subr.mxu0 0.0
  %114 = vmatpush1.msra.mxu0 0.0
  %115 = vmatprep.subr.mxu0 0.0
  %116 = vmatpush1.msra.mxu0 0.0
  %117 = vmatprep.subr.mxu0 0.0
  %118 = vmatpush1.msra.mxu0 0.0
  %119 = vmatprep.subr.mxu0 0.0
  %120 = vmatpush1.msra.mxu0 0.0
  %121 = vmatprep.subr.mxu0 0.0
  %122 = vmatpush1.msra.mxu0 0.0
  %123 = vmatprep.subr.mxu0 0.0
  %124 = vmatpush1.msra.mxu0 0.0
  %125 = vmatprep.subr.mxu0 0.0
  %126 = vmatpush1.msra.mxu0 0.0
  %127 = vmatprep.subr.mxu0 0.0
  %128 = vmatpush1.msra.mxu0 0.0
  %129 = vmatprep.subr.mxu0 0.0
  %130 = vmatpush1.msra.mxu0 0.0
  %131 = vmatprep.subr.mxu0 0.0
  %132 = vmatpush1.msra.mxu0 0.0
  %133 = vmatprep.mubr.f32.mxu0 0.0
  %134 = vmatmul.mubr.f32.gmra.mrb[0].mxu0 %v46
  %v135 = vpop.f32.mrb[0].mxu0
  %v136 = vadd.f32 0.0, %v135
  %v137 = vpop.f32.mrb[0].mxu0
  %138 = vmatprep.mubr.f32.mxu0 0.0
  %139 = vmatmul.mubr.f32.gmra.mrb[0].mxu0 %v49
  %v140 = vpop.f32.mrb[0].mxu0
  %v141 = vadd.f32 0.0, %v140
  %v142 = vpop.f32.mrb[0].mxu0
  %143 = vmatprep.mubr.f32.mxu0 0.0
  %144 = vmatmul.mubr.f32.gmra.mrb[0].mxu0 %v52
  %v145 = vpop.f32.mrb[0].mxu0
  %v146 = vadd.f32 0.0, %v145
  %v147 = vpop.f32.mrb[0].mxu0
  %148 = vmatprep.mubr.f32.mxu0 0.0
  %149 = vmatmul.mubr.f32.gmra.mrb[0].mxu0 %v55
  %v150 = vpop.f32.mrb[0].mxu0
  %v151 = vadd.f32 0.0, %v150
  %v152 = vpop.f32.mrb[0].mxu0
  %153 = vmatprep.mubr.f32.mxu0 0.0
  %154 = vmatmul.mubr.f32.gmra.mrb[0].mxu0 %v58
  %v155 = vpop.f32.mrb[0].mxu0
  %v156 = vadd.f32 0.0, %v155
  %v157 = vpop.f32.mrb[0].mxu0
  %158 = vmatprep.mubr.f32.mxu0 0.0
  %159 = vmatmul.mubr.f32.gmra.mrb[0].mxu0 %v61
  %v160 = vpop.f32.mrb[0].mxu0
  %v161 = vadd.f32 0.0, %v160
  %v162 = vpop.f32.mrb[0].mxu0
  %163 = vmatprep.mubr.f32.mxu0 0.0
  %164 = vmatmul.mubr.f32.gmra.mrb[0].mxu0 %v64
  %v165 = vpop.f32.mrb[0].mxu0
  %v166 = vadd.f32 0.0, %v165
  %v167 = vpop.f32.mrb[0].mxu0
  %168 = vmatprep.mubr.f32.mxu0 0.0
  %169 = vmatmul.mubr.f32.gmra.mrb[0].mxu0 %v67
  %v170 = vpop.f32.mrb[0].mxu0
  %v171 = vadd.f32 0.0, %v170
  %v172 = vpop.f32.mrb[0].mxu0
  %173 = vdwg.mxu0
  %v174 = vmul.f32 %v136, 0.17677669
  %v175 = vmul.f32 %v141, 0.17677669
  %v176 = vmul.f32 %v146, 0.17677669
  %v177 = vmul.f32 %v151, 0.17677669
  %v178 = vmul.f32 %v156, 0.17677669
  %v179 = vmul.f32 %v161, 0.17677669
  %v180 = vmul.f32 %v166, 0.17677669
  %v181 = vmul.f32 %v171, 0.17677669
  %v182 = vld [vmem:[%s3] sm:$0xff]
  %v183 = vld [vmem:[%s3 + $0x8] sm:$0xff]
  %v184 = vld [vmem:[%s3 + $0x10] sm:$0xff]
  %v185 = vld [vmem:[%s3 + $0x18] sm:$0xff]
  %v186 = vld [vmem:[%s3 + $0x20] sm:$0xff]
  %v187 = vld [vmem:[%s3 + $0x28] sm:$0xff]
  %v188 = vld [vmem:[%s3 + $0x30] sm:$0xff]
  %v189 = vld [vmem:[%s3 + $0x38] sm:$0xff]
  %191 = vset.pattern.permute.xlu0 0
  %192 = vperm.xlu0 %191, %v182
  %v193 = vpop.permute.xlu0 %192
  %196 = vset.pattern.permute.xlu0 0
  %197 = vperm.xlu0 %196, %v183
  %v198 = vpop.permute.xlu0 %197
  %201 = vset.pattern.permute.xlu0 0
  %202 = vperm.xlu0 %201, %v184
  %v203 = vpop.permute.xlu0 %202
  %206 = vset.pattern.permute.xlu0 0
  %207 = vperm.xlu0 %206, %v185
  %v208 = vpop.permute.xlu0 %207
  %211 = vset.pattern.permute.xlu0 0
  %212 = vperm.xlu0 %211, %v186
  %v213 = vpop.permute.xlu0 %212
  %216 = vset.pattern.permute.xlu0 0
  %217 = vperm.xlu0 %216, %v187
  %v218 = vpop.permute.xlu0 %217
  %221 = vset.pattern.permute.xlu0 0
  %222 = vperm.xlu0 %221, %v188
  %v223 = vpop.permute.xlu0 %222
  %226 = vset.pattern.permute.xlu0 0
  %227 = vperm.xlu0 %226, %v189
  %v228 = vpop.permute.xlu0 %227
  %v230 = vadd.f32 %v174, %v193
  %v231 = vadd.f32 %v175, %v198
  %v232 = vadd.f32 %v176, %v203
  %v233 = vadd.f32 %v177, %v208
  %v234 = vadd.f32 %v178, %v213
  %v235 = vadd.f32 %v179, %v218
  %v236 = vadd.f32 %v180, %v223
  %v237 = vadd.f32 %v181, %v228
  %v238 = vld [vmem:[%s5] sm:$0xff]
  %v239 = vld [vmem:[%s5 + $0x8] sm:$0xff]
  %v240 = vld [vmem:[%s5 + $0x10] sm:$0xff]
  %v241 = vld [vmem:[%s5 + $0x18] sm:$0xff]
  %v242 = vld [vmem:[%s5 + $0x20] sm:$0xff]
  %v243 = vld [vmem:[%s5 + $0x28] sm:$0xff]
  %v244 = vld [vmem:[%s5 + $0x30] sm:$0xff]
  %v245 = vld [vmem:[%s5 + $0x38] sm:$0xff]
  %v246 = vld [vmem:[%s5 + $0x40] sm:$0xff]
  %v247 = vld [vmem:[%s5 + $0x48] sm:$0xff]
  %v248 = vld [vmem:[%s5 + $0x50] sm:$0xff]
  %v249 = vld [vmem:[%s5 + $0x58] sm:$0xff]
  %v250 = vmul.f32 %v230, %v230
  %v251 = vmul.f32 %v231, %v231
  %v252 = vmul.f32 %v232, %v232
  %v253 = vmul.f32 %v233, %v233
  %v255 = vsel %vm44, %v238, 0
  %v258 = vsel %vm44, %v239, 0
  %v261 = vsel %vm44, %v240, 0
  %v264 = vsel %vm44, %v241, 0
  %v267 = vsel %vm44, %v242, 0
  %v270 = vsel %vm44, %v243, 0
  %v273 = vsel %vm44, %v244, 0
  %v276 = vsel %vm44, %v245, 0
  %v279 = vsel %vm44, %v246, 0
  %v282 = vsel %vm44, %v247, 0
  %v285 = vsel %vm44, %v248, 0
  %v288 = vsel %vm44, %v249, 0
  %290 = vmatprep.subr.mxu0 0.0
  %291 = vmatpush1.msra.mxu0 %v250
  %292 = vmatprep.subr.mxu0 0.0
  %293 = vmatpush1.msra.mxu0 %v251
  %294 = vmatprep.subr.mxu0 0.0
  %295 = vmatpush1.msra.mxu0 %v252
  %296 = vmatprep.subr.mxu0 0.0
  %297 = vmatpush1.msra.mxu0 %v253
  %298 = vmatprep.subr.mxu0 0.0
  %299 = vmatpush1.msra.mxu0 0.0
  %300 = vmatprep.subr.mxu0 0.0
  %301 = vmatpush1.msra.mxu0 0.0
  %302 = vmatprep.subr.mxu0 0.0
  %303 = vmatpush1.msra.mxu0 0.0
  %304 = vmatprep.subr.mxu0 0.0
  %305 = vmatpush1.msra.mxu0 0.0
  %306 = vmatprep.subr.mxu0 0.0
  %307 = vmatpush1.msra.mxu0 0.0
  %308 = vmatprep.subr.mxu0 0.0
  %309 = vmatpush1.msra.mxu0 0.0
  %310 = vmatprep.subr.mxu0 0.0
  %311 = vmatpush1.msra.mxu0 0.0
  %312 = vmatprep.subr.mxu0 0.0
  %313 = vmatpush1.msra.mxu0 0.0
  %314 = vmatprep.subr.mxu0 0.0
  %315 = vmatpush1.msra.mxu0 0.0
  %316 = vmatprep.subr.mxu0 0.0
  %317 = vmatpush1.msra.mxu0 0.0
  %318 = vmatprep.subr.mxu0 0.0
  %319 = vmatpush1.msra.mxu0 0.0
  %320 = vmatprep.subr.mxu0 0.0
  %321 = vmatpush1.msra.mxu0 0.0
  %322 = vmatprep.subr.mxu0 0.0
  %323 = vmatpush1.msra.mxu0 0.0
  %324 = vmatprep.subr.mxu0 0.0
  %325 = vmatpush1.msra.mxu0 0.0
  %326 = vmatprep.subr.mxu0 0.0
  %327 = vmatpush1.msra.mxu0 0.0
  %328 = vmatprep.subr.mxu0 0.0
  %329 = vmatpush1.msra.mxu0 0.0
  %330 = vmatprep.subr.mxu0 0.0
  %331 = vmatpush1.msra.mxu0 0.0
  %332 = vmatprep.subr.mxu0 0.0
  %333 = vmatpush1.msra.mxu0 0.0
  %334 = vmatprep.subr.mxu0 0.0
  %335 = vmatpush1.msra.mxu0 0.0
  %336 = vmatprep.subr.mxu0 0.0
  %337 = vmatpush1.msra.mxu0 0.0
  %338 = vmatprep.subr.mxu0 0.0
  %339 = vmatpush1.msra.mxu0 0.0
  %340 = vmatprep.subr.mxu0 0.0
  %341 = vmatpush1.msra.mxu0 0.0
  %342 = vmatprep.subr.mxu0 0.0
  %343 = vmatpush1.msra.mxu0 0.0
  %344 = vmatprep.subr.mxu0 0.0
  %345 = vmatpush1.msra.mxu0 0.0
  %346 = vmatprep.subr.mxu0 0.0
  %347 = vmatpush1.msra.mxu0 0.0
  %348 = vmatprep.subr.mxu0 0.0
  %349 = vmatpush1.msra.mxu0 0.0
  %350 = vmatprep.subr.mxu0 0.0
  %351 = vmatpush1.msra.mxu0 0.0
  %352 = vmatprep.subr.mxu0 0.0
  %353 = vmatpush1.msra.mxu0 0.0
  %354 = vmatprep.mubr.f32.mxu0 0.0
  %355 = vmatmul.mubr.f32.gmra.mrb[0].mxu0 %v255
  %v356 = vpop.f32.mrb[0].mxu0
  %v357 = vadd.f32 1e-08, %v356
  %v358 = vpop.f32.mrb[0].mxu0
  %359 = vmatprep.mubr.f32.mxu0 0.0
  %360 = vmatmul.mubr.f32.gmra.mrb[0].mxu0 %v258
  %v361 = vpop.f32.mrb[0].mxu0
  %v362 = vadd.f32 1e-08, %v361
  %v363 = vpop.f32.mrb[0].mxu0
  %364 = vmatprep.mubr.f32.mxu0 0.0
  %365 = vmatmul.mubr.f32.gmra.mrb[0].mxu0 %v261
  %v366 = vpop.f32.mrb[0].mxu0
  %v367 = vadd.f32 1e-08, %v366
  %v368 = vpop.f32.mrb[0].mxu0
  %369 = vmatprep.mubr.f32.mxu0 0.0
  %370 = vmatmul.mubr.f32.gmra.mrb[0].mxu0 %v264
  %v371 = vpop.f32.mrb[0].mxu0
  %v372 = vadd.f32 1e-08, %v371
  %v373 = vpop.f32.mrb[0].mxu0
  %374 = vmatprep.mubr.f32.mxu0 0.0
  %375 = vmatmul.mubr.f32.gmra.mrb[0].mxu0 %v267
  %v376 = vpop.f32.mrb[0].mxu0
  %v377 = vadd.f32 1e-08, %v376
  %v378 = vpop.f32.mrb[0].mxu0
  %379 = vmatprep.mubr.f32.mxu0 0.0
  %380 = vmatmul.mubr.f32.gmra.mrb[0].mxu0 %v270
  %v381 = vpop.f32.mrb[0].mxu0
  %v382 = vadd.f32 1e-08, %v381
  %v383 = vpop.f32.mrb[0].mxu0
  %384 = vmatprep.mubr.f32.mxu0 0.0
  %385 = vmatmul.mubr.f32.gmra.mrb[0].mxu0 %v273
  %v386 = vpop.f32.mrb[0].mxu0
  %v387 = vadd.f32 1e-08, %v386
  %v388 = vpop.f32.mrb[0].mxu0
  %389 = vmatprep.mubr.f32.mxu0 0.0
  %390 = vmatmul.mubr.f32.gmra.mrb[0].mxu0 %v276
  %v391 = vpop.f32.mrb[0].mxu0
  %v392 = vadd.f32 1e-08, %v391
  %v393 = vpop.f32.mrb[0].mxu0
  %394 = vmatprep.mubr.f32.mxu0 0.0
  %395 = vmatmul.mubr.f32.gmra.mrb[0].mxu0 %v279
  %v396 = vpop.f32.mrb[0].mxu0
  %v397 = vadd.f32 1e-08, %v396
  %v398 = vpop.f32.mrb[0].mxu0
  %399 = vmatprep.mubr.f32.mxu0 0.0
  %400 = vmatmul.mubr.f32.gmra.mrb[0].mxu0 %v282
  %v401 = vpop.f32.mrb[0].mxu0
  %v402 = vadd.f32 1e-08, %v401
  %v403 = vpop.f32.mrb[0].mxu0
  %404 = vmatprep.mubr.f32.mxu0 0.0
  %405 = vmatmul.mubr.f32.gmra.mrb[0].mxu0 %v285
  %v406 = vpop.f32.mrb[0].mxu0
  %v407 = vadd.f32 1e-08, %v406
  %v408 = vpop.f32.mrb[0].mxu0
  %409 = vmatprep.mubr.f32.mxu0 0.0
  %410 = vmatmul.mubr.f32.gmra.mrb[0].mxu0 %v288
  %v411 = vpop.f32.mrb[0].mxu0
  %v412 = vadd.f32 1e-08, %v411
  %v413 = vpop.f32.mrb[0].mxu0
  %414 = vdwg.mxu0
  %v415 = vrsqrt.pop %v357
  %v416 = vrsqrt.pop %v362
  %v417 = vrsqrt.pop %v367
  %v418 = vrsqrt.pop %v372
  %v419 = vrsqrt.pop %v377
  %v420 = vrsqrt.pop %v382
  %v421 = vrsqrt.pop %v387
  %v422 = vrsqrt.pop %v392
  %v423 = vrsqrt.pop %v397
  %v424 = vrsqrt.pop %v402
  %v425 = vrsqrt.pop %v407
  %v426 = vrsqrt.pop %v412
  %v427 = vld [vmem:[%s7] sm:$0xff]
  %v428 = vld [vmem:[%s7 + $0x8] sm:$0xff]
  %v429 = vld [vmem:[%s7 + $0x10] sm:$0xff]
  %v430 = vld [vmem:[%s7 + $0x18] sm:$0xff]
  %v431 = vld [vmem:[%s7 + $0x20] sm:$0xff]
  %v432 = vld [vmem:[%s7 + $0x28] sm:$0xff]
  %v433 = vld [vmem:[%s7 + $0x30] sm:$0xff]
  %v434 = vld [vmem:[%s7 + $0x38] sm:$0xff]
  %v435 = vmul.f32 %v234, %v234
  %v436 = vmul.f32 %v235, %v235
  %v437 = vmul.f32 %v236, %v236
  %v438 = vmul.f32 %v237, %v237
  %v440 = vsel %vm44, %v427, 0
  %v443 = vsel %vm44, %v428, 0
  %v446 = vsel %vm44, %v429, 0
  %v449 = vsel %vm44, %v430, 0
  %v452 = vsel %vm44, %v431, 0
  %v455 = vsel %vm44, %v432, 0
  %v458 = vsel %vm44, %v433, 0
  %v461 = vsel %vm44, %v434, 0
  %463 = vmatprep.subr.mxu0 0.0
  %464 = vmatpush1.msra.mxu0 %v435
  %465 = vmatprep.subr.mxu0 0.0
  %466 = vmatpush1.msra.mxu0 %v436
  %467 = vmatprep.subr.mxu0 0.0
  %468 = vmatpush1.msra.mxu0 %v437
  %469 = vmatprep.subr.mxu0 0.0
  %470 = vmatpush1.msra.mxu0 %v438
  %471 = vmatprep.subr.mxu0 0.0
  %472 = vmatpush1.msra.mxu0 0.0
  %473 = vmatprep.subr.mxu0 0.0
  %474 = vmatpush1.msra.mxu0 0.0
  %475 = vmatprep.subr.mxu0 0.0
  %476 = vmatpush1.msra.mxu0 0.0
  %477 = vmatprep.subr.mxu0 0.0
  %478 = vmatpush1.msra.mxu0 0.0
  %479 = vmatprep.subr.mxu0 0.0
  %480 = vmatpush1.msra.mxu0 0.0
  %481 = vmatprep.subr.mxu0 0.0
  %482 = vmatpush1.msra.mxu0 0.0
  %483 = vmatprep.subr.mxu0 0.0
  %484 = vmatpush1.msra.mxu0 0.0
  %485 = vmatprep.subr.mxu0 0.0
  %486 = vmatpush1.msra.mxu0 0.0
  %487 = vmatprep.subr.mxu0 0.0
  %488 = vmatpush1.msra.mxu0 0.0
  %489 = vmatprep.subr.mxu0 0.0
  %490 = vmatpush1.msra.mxu0 0.0
  %491 = vmatprep.subr.mxu0 0.0
  %492 = vmatpush1.msra.mxu0 0.0
  %493 = vmatprep.subr.mxu0 0.0
  %494 = vmatpush1.msra.mxu0 0.0
  %495 = vmatprep.subr.mxu0 0.0
  %496 = vmatpush1.msra.mxu0 0.0
  %497 = vmatprep.subr.mxu0 0.0
  %498 = vmatpush1.msra.mxu0 0.0
  %499 = vmatprep.subr.mxu0 0.0
  %500 = vmatpush1.msra.mxu0 0.0
  %501 = vmatprep.subr.mxu0 0.0
  %502 = vmatpush1.msra.mxu0 0.0
  %503 = vmatprep.subr.mxu0 0.0
  %504 = vmatpush1.msra.mxu0 0.0
  %505 = vmatprep.subr.mxu0 0.0
  %506 = vmatpush1.msra.mxu0 0.0
  %507 = vmatprep.subr.mxu0 0.0
  %508 = vmatpush1.msra.mxu0 0.0
  %509 = vmatprep.subr.mxu0 0.0
  %510 = vmatpush1.msra.mxu0 0.0
  %511 = vmatprep.subr.mxu0 0.0
  %512 = vmatpush1.msra.mxu0 0.0
  %513 = vmatprep.subr.mxu0 0.0
  %514 = vmatpush1.msra.mxu0 0.0
  %515 = vmatprep.subr.mxu0 0.0
  %516 = vmatpush1.msra.mxu0 0.0
  %517 = vmatprep.subr.mxu0 0.0
  %518 = vmatpush1.msra.mxu0 0.0
  %519 = vmatprep.subr.mxu0 0.0
  %520 = vmatpush1.msra.mxu0 0.0
  %521 = vmatprep.subr.mxu0 0.0
  %522 = vmatpush1.msra.mxu0 0.0
  %523 = vmatprep.subr.mxu0 0.0
  %524 = vmatpush1.msra.mxu0 0.0
  %525 = vmatprep.subr.mxu0 0.0
  %526 = vmatpush1.msra.mxu0 0.0
  %527 = vmatprep.mubr.f32.mxu0 0.0
  %528 = vmatmul.mubr.f32.gmra.mrb[0].mxu0 %v440
  %v529 = vpop.f32.mrb[0].mxu0
  %v530 = vadd.f32 1e-08, %v529
  %v531 = vpop.f32.mrb[0].mxu0
  %532 = vmatprep.mubr.f32.mxu0 0.0
  %533 = vmatmul.mubr.f32.gmra.mrb[0].mxu0 %v443
  %v534 = vpop.f32.mrb[0].mxu0
  %v535 = vadd.f32 1e-08, %v534
  %v536 = vpop.f32.mrb[0].mxu0
  %537 = vmatprep.mubr.f32.mxu0 0.0
  %538 = vmatmul.mubr.f32.gmra.mrb[0].mxu0 %v446
  %v539 = vpop.f32.mrb[0].mxu0
  %v540 = vadd.f32 1e-08, %v539
  %v541 = vpop.f32.mrb[0].mxu0
  %542 = vmatprep.mubr.f32.mxu0 0.0
  %543 = vmatmul.mubr.f32.gmra.mrb[0].mxu0 %v449
  %v544 = vpop.f32.mrb[0].mxu0
  %v545 = vadd.f32 1e-08, %v544
  %v546 = vpop.f32.mrb[0].mxu0
  %547 = vmatprep.mubr.f32.mxu0 0.0
  %548 = vmatmul.mubr.f32.gmra.mrb[0].mxu0 %v452
  %v549 = vpop.f32.mrb[0].mxu0
  %v550 = vadd.f32 1e-08, %v549
  %v551 = vpop.f32.mrb[0].mxu0
  %552 = vmatprep.mubr.f32.mxu0 0.0
  %553 = vmatmul.mubr.f32.gmra.mrb[0].mxu0 %v455
  %v554 = vpop.f32.mrb[0].mxu0
  %v555 = vadd.f32 1e-08, %v554
  %v556 = vpop.f32.mrb[0].mxu0
  %557 = vmatprep.mubr.f32.mxu0 0.0
  %558 = vmatmul.mubr.f32.gmra.mrb[0].mxu0 %v458
  %v559 = vpop.f32.mrb[0].mxu0
  %v560 = vadd.f32 1e-08, %v559
  %v561 = vpop.f32.mrb[0].mxu0
  %562 = vmatprep.mubr.f32.mxu0 0.0
  %563 = vmatmul.mubr.f32.gmra.mrb[0].mxu0 %v461
  %v564 = vpop.f32.mrb[0].mxu0
  %v565 = vadd.f32 1e-08, %v564
  %v566 = vpop.f32.mrb[0].mxu0
  %567 = vdwg.mxu0
  %v568 = vrsqrt.pop %v530
  %v569 = vrsqrt.pop %v535
  %v570 = vrsqrt.pop %v540
  %v571 = vrsqrt.pop %v545
  %v572 = vrsqrt.pop %v550
  %v573 = vrsqrt.pop %v555
  %v574 = vrsqrt.pop %v560
  %v575 = vrsqrt.pop %v565
  %v576 = vld [vmem:[%s0] sm:$0xff]
  %v577 = vld [vmem:[%s0 + $0x8] sm:$0xff]
  %v578 = vld [vmem:[%s0 + $0x10] sm:$0xff]
  %v579 = vld [vmem:[%s0 + $0x18] sm:$0xff]
  %v580 = vld [vmem:[%s0 + $0x20] sm:$0xff]
  %v581 = vld [vmem:[%s0 + $0x28] sm:$0xff]
  %v582 = vld [vmem:[%s0 + $0x30] sm:$0xff]
  %v583 = vld [vmem:[%s0 + $0x38] sm:$0xff]
  %585 = vset.pattern.permute.xlu0 0
  %586 = vperm.xlu0 %585, %v230
  %v587 = vpop.permute.xlu0 %586
  %590 = vset.pattern.permute.xlu0 0
  %591 = vperm.xlu0 %590, %v231
  %v592 = vpop.permute.xlu0 %591
  %595 = vset.pattern.permute.xlu0 0
  %596 = vperm.xlu0 %595, %v232
  %v597 = vpop.permute.xlu0 %596
  %600 = vset.pattern.permute.xlu0 0
  %601 = vperm.xlu0 %600, %v233
  %v602 = vpop.permute.xlu0 %601
  %v604 = vmul.f32 %v576, %v587
  %v605 = vmul.f32 %v577, %v587
  %v606 = vmul.f32 %v578, %v592
  %v607 = vmul.f32 %v579, %v592
  %v608 = vmul.f32 %v580, %v597
  %v609 = vmul.f32 %v581, %v597
  %v610 = vmul.f32 %v582, %v602
  %v611 = vmul.f32 %v583, %v602
  %v612 = vadd.f32 %v604, %v606
  %v613 = vadd.f32 %v612, %v608
  %v614 = vadd.f32 %v613, %v610
  %v615 = vrot.slane %v614, 4
  %v616 = vadd.f32 %v614, %v615
  %v617 = vrot.slane %v616, 2
  %v618 = vadd.f32 %v616, %v617
  %v619 = vrot.slane %v618, 1
  %v620 = vadd.f32 %v618, %v619
  %v621 = vadd.f32 %v605, %v607
  %v622 = vadd.f32 %v621, %v609
  %v623 = vadd.f32 %v622, %v611
  %v624 = vrot.slane %v623, 4
  %v625 = vadd.f32 %v623, %v624
  %v626 = vrot.slane %v625, 2
  %v627 = vadd.f32 %v625, %v626
  %v628 = vrot.slane %v627, 1
  %v629 = vadd.f32 %v627, %v628
  %v630 = vrcp.pop 32.0
  %v631 = vmul.f32 %v620, %v630
  %v632 = vmul.f32 %v629, %v630
  %v633 = vsub.f32 %v604, %v631
  %v634 = vsub.f32 %v605, %v632
  %v635 = vsub.f32 %v606, %v631
  %v636 = vsub.f32 %v607, %v632
  %v637 = vsub.f32 %v608, %v631
  %v638 = vsub.f32 %v609, %v632
  %v639 = vsub.f32 %v610, %v631
  %v640 = vsub.f32 %v611, %v632
  %v641 = vmul.f32 %v633, %v633
  %v642 = vmul.f32 %v634, %v634
  %v643 = vmul.f32 %v635, %v635
  %v644 = vmul.f32 %v636, %v636
  %v645 = vmul.f32 %v637, %v637
  %v646 = vmul.f32 %v638, %v638
  %v647 = vmul.f32 %v639, %v639
  %v648 = vmul.f32 %v640, %v640
  %v649 = vadd.f32 %v641, %v643
  %v650 = vadd.f32 %v649, %v645
  %v651 = vadd.f32 %v650, %v647
  %v652 = vrot.slane %v651, 4
  %v653 = vadd.f32 %v651, %v652
  %v654 = vrot.slane %v653, 2
  %v655 = vadd.f32 %v653, %v654
  %v656 = vrot.slane %v655, 1
  %v657 = vadd.f32 %v655, %v656
  %v658 = vadd.f32 %v642, %v644
  %v659 = vadd.f32 %v658, %v646
  %v660 = vadd.f32 %v659, %v648
  %v661 = vrot.slane %v660, 4
  %v662 = vadd.f32 %v660, %v661
  %v663 = vrot.slane %v662, 2
  %v664 = vadd.f32 %v662, %v663
  %v665 = vrot.slane %v664, 1
  %v666 = vadd.f32 %v664, %v665
  %v667 = vmul.f32 %v657, %v630
  %v668 = vmul.f32 %v666, %v630
  %v669 = vadd.f32 %v667, 1e-05
  %v670 = vadd.f32 %v668, 1e-05
  %v671 = vrsqrt.pop %v669
  %v672 = vrsqrt.pop %v670
  %v673 = vmul.f32 %v633, %v671
  %v674 = vmul.f32 %v634, %v672
  %v675 = vmul.f32 %v635, %v671
  %v676 = vmul.f32 %v636, %v672
  %v677 = vmul.f32 %v637, %v671
  %v678 = vmul.f32 %v638, %v672
  %v679 = vmul.f32 %v639, %v671
  %v680 = vmul.f32 %v640, %v672
  %v681 = vld [vmem:[%s4] sm:$0xff]
  %v682 = vld [vmem:[%s4 + $0x8] sm:$0xff]
  %v683 = vld [vmem:[%s4 + $0x10] sm:$0xff]
  %v684 = vld [vmem:[%s4 + $0x18] sm:$0xff]
  %v685 = vld [vmem:[%s4 + $0x20] sm:$0xff]
  %v686 = vld [vmem:[%s4 + $0x28] sm:$0xff]
  %v687 = vld [vmem:[%s4 + $0x30] sm:$0xff]
  %v688 = vld [vmem:[%s4 + $0x38] sm:$0xff]
  %v689 = vld [vmem:[%s4 + $0x40] sm:$0xff]
  %v690 = vld [vmem:[%s4 + $0x48] sm:$0xff]
  %v691 = vld [vmem:[%s4 + $0x50] sm:$0xff]
  %v692 = vld [vmem:[%s4 + $0x58] sm:$0xff]
  %v694 = vsel %vm44, %v681, 0
  %v697 = vsel %vm44, %v682, 0
  %v700 = vsel %vm44, %v683, 0
  %v703 = vsel %vm44, %v684, 0
  %v706 = vsel %vm44, %v685, 0
  %v709 = vsel %vm44, %v686, 0
  %v712 = vsel %vm44, %v687, 0
  %v715 = vsel %vm44, %v688, 0
  %v718 = vsel %vm44, %v689, 0
  %v721 = vsel %vm44, %v690, 0
  %v724 = vsel %vm44, %v691, 0
  %v727 = vsel %vm44, %v692, 0
  %729 = vmatprep.subr.mxu0 %v674
  %730 = vmatpush1.msra.mxu0 %v673
  %731 = vmatprep.subr.mxu0 %v676
  %732 = vmatpush1.msra.mxu0 %v675
  %733 = vmatprep.subr.mxu0 %v678
  %734 = vmatpush1.msra.mxu0 %v677
  %735 = vmatprep.subr.mxu0 %v680
  %736 = vmatpush1.msra.mxu0 %v679
  %737 = vmatprep.subr.mxu0 0.0
  %738 = vmatpush1.msra.mxu0 0.0
  %739 = vmatprep.subr.mxu0 0.0
  %740 = vmatpush1.msra.mxu0 0.0
  %741 = vmatprep.subr.mxu0 0.0
  %742 = vmatpush1.msra.mxu0 0.0
  %743 = vmatprep.subr.mxu0 0.0
  %744 = vmatpush1.msra.mxu0 0.0
  %745 = vmatprep.subr.mxu0 0.0
  %746 = vmatpush1.msra.mxu0 0.0
  %747 = vmatprep.subr.mxu0 0.0
  %748 = vmatpush1.msra.mxu0 0.0
  %749 = vmatprep.subr.mxu0 0.0
  %750 = vmatpush1.msra.mxu0 0.0
  %751 = vmatprep.subr.mxu0 0.0
  %752 = vmatpush1.msra.mxu0 0.0
  %753 = vmatprep.subr.mxu0 0.0
  %754 = vmatpush1.msra.mxu0 0.0
  %755 = vmatprep.subr.mxu0 0.0
  %756 = vmatpush1.msra.mxu0 0.0
  %757 = vmatprep.subr.mxu0 0.0
  %758 = vmatpush1.msra.mxu0 0.0
  %759 = vmatprep.subr.mxu0 0.0
  %760 = vmatpush1.msra.mxu0 0.0
  %761 = vmatprep.subr.mxu0 0.0
  %762 = vmatpush1.msra.mxu0 0.0
  %763 = vmatprep.subr.mxu0 0.0
  %764 = vmatpush1.msra.mxu0 0.0
  %765 = vmatprep.subr.mxu0 0.0
  %766 = vmatpush1.msra.mxu0 0.0
  %767 = vmatprep.subr.mxu0 0.0
  %768 = vmatpush1.msra.mxu0 0.0
  %769 = vmatprep.subr.mxu0 0.0
  %770 = vmatpush1.msra.mxu0 0.0
  %771 = vmatprep.subr.mxu0 0.0
  %772 = vmatpush1.msra.mxu0 0.0
  %773 = vmatprep.subr.mxu0 0.0
  %774 = vmatpush1.msra.mxu0 0.0
  %775 = vmatprep.subr.mxu0 0.0
  %776 = vmatpush1.msra.mxu0 0.0
  %777 = vmatprep.subr.mxu0 0.0
  %778 = vmatpush1.msra.mxu0 0.0
  %779 = vmatprep.subr.mxu0 0.0
  %780 = vmatpush1.msra.mxu0 0.0
  %781 = vmatprep.subr.mxu0 0.0
  %782 = vmatpush1.msra.mxu0 0.0
  %783 = vmatprep.subr.mxu0 0.0
  %784 = vmatpush1.msra.mxu0 0.0
  %785 = vmatprep.subr.mxu0 0.0
  %786 = vmatpush1.msra.mxu0 0.0
  %787 = vmatprep.subr.mxu0 0.0
  %788 = vmatpush1.msra.mxu0 0.0
  %789 = vmatprep.subr.mxu0 0.0
  %790 = vmatpush1.msra.mxu0 0.0
  %791 = vmatprep.subr.mxu0 0.0
  %792 = vmatpush1.msra.mxu0 0.0
  %793 = vmatprep.mubr.f32.mxu0 0.0
  %794 = vmatmul.mubr.f32.gmra.mrb[0].mxu0 %v694
  %v795 = vpop.f32.mrb[0].mxu0
  %v796 = vadd.f32 0.0, %v795
  %v797 = vpop.f32.mrb[0].mxu0
  %v798 = vadd.f32 0.0, %v797
  %799 = vmatprep.mubr.f32.mxu0 0.0
  %800 = vmatmul.mubr.f32.gmra.mrb[0].mxu0 %v697
  %v801 = vpop.f32.mrb[0].mxu0
  %v802 = vadd.f32 0.0, %v801
  %v803 = vpop.f32.mrb[0].mxu0
  %v804 = vadd.f32 0.0, %v803
  %805 = vmatprep.mubr.f32.mxu0 0.0
  %806 = vmatmul.mubr.f32.gmra.mrb[0].mxu0 %v700
  %v807 = vpop.f32.mrb[0].mxu0
  %v808 = vadd.f32 0.0, %v807
  %v809 = vpop.f32.mrb[0].mxu0
  %v810 = vadd.f32 0.0, %v809
  %811 = vmatprep.mubr.f32.mxu0 0.0
  %812 = vmatmul.mubr.f32.gmra.mrb[0].mxu0 %v703
  %v813 = vpop.f32.mrb[0].mxu0
  %v814 = vadd.f32 0.0, %v813
  %v815 = vpop.f32.mrb[0].mxu0
  %v816 = vadd.f32 0.0, %v815
  %817 = vmatprep.mubr.f32.mxu0 0.0
  %818 = vmatmul.mubr.f32.gmra.mrb[0].mxu0 %v706
  %v819 = vpop.f32.mrb[0].mxu0
  %v820 = vadd.f32 0.0, %v819
  %v821 = vpop.f32.mrb[0].mxu0
  %v822 = vadd.f32 0.0, %v821
  %823 = vmatprep.mubr.f32.mxu0 0.0
  %824 = vmatmul.mubr.f32.gmra.mrb[0].mxu0 %v709
  %v825 = vpop.f32.mrb[0].mxu0
  %v826 = vadd.f32 0.0, %v825
  %v827 = vpop.f32.mrb[0].mxu0
  %v828 = vadd.f32 0.0, %v827
  %829 = vmatprep.mubr.f32.mxu0 0.0
  %830 = vmatmul.mubr.f32.gmra.mrb[0].mxu0 %v712
  %v831 = vpop.f32.mrb[0].mxu0
  %v832 = vadd.f32 0.0, %v831
  %v833 = vpop.f32.mrb[0].mxu0
  %v834 = vadd.f32 0.0, %v833
  %835 = vmatprep.mubr.f32.mxu0 0.0
  %836 = vmatmul.mubr.f32.gmra.mrb[0].mxu0 %v715
  %v837 = vpop.f32.mrb[0].mxu0
  %v838 = vadd.f32 0.0, %v837
  %v839 = vpop.f32.mrb[0].mxu0
  %v840 = vadd.f32 0.0, %v839
  %841 = vmatprep.mubr.f32.mxu0 0.0
  %842 = vmatmul.mubr.f32.gmra.mrb[0].mxu0 %v718
  %v843 = vpop.f32.mrb[0].mxu0
  %v844 = vadd.f32 0.0, %v843
  %v845 = vpop.f32.mrb[0].mxu0
  %v846 = vadd.f32 0.0, %v845
  %847 = vmatprep.mubr.f32.mxu0 0.0
  %848 = vmatmul.mubr.f32.gmra.mrb[0].mxu0 %v721
  %v849 = vpop.f32.mrb[0].mxu0
  %v850 = vadd.f32 0.0, %v849
  %v851 = vpop.f32.mrb[0].mxu0
  %v852 = vadd.f32 0.0, %v851
  %853 = vmatprep.mubr.f32.mxu0 0.0
  %854 = vmatmul.mubr.f32.gmra.mrb[0].mxu0 %v724
  %v855 = vpop.f32.mrb[0].mxu0
  %v856 = vadd.f32 0.0, %v855
  %v857 = vpop.f32.mrb[0].mxu0
  %v858 = vadd.f32 0.0, %v857
  %859 = vmatprep.mubr.f32.mxu0 0.0
  %860 = vmatmul.mubr.f32.gmra.mrb[0].mxu0 %v727
  %v861 = vpop.f32.mrb[0].mxu0
  %v862 = vadd.f32 0.0, %v861
  %v863 = vpop.f32.mrb[0].mxu0
  %v864 = vadd.f32 0.0, %v863
  %865 = vdwg.mxu0
  %867 = vset.pattern.permute.xlu0 0
  %868 = vperm.xlu0 %867, %v415
  %v869 = vpop.permute.xlu0 %868
  %872 = vset.pattern.permute.xlu0 0
  %873 = vperm.xlu0 %872, %v416
  %v874 = vpop.permute.xlu0 %873
  %877 = vset.pattern.permute.xlu0 0
  %878 = vperm.xlu0 %877, %v417
  %v879 = vpop.permute.xlu0 %878
  %882 = vset.pattern.permute.xlu0 0
  %883 = vperm.xlu0 %882, %v418
  %v884 = vpop.permute.xlu0 %883
  %887 = vset.pattern.permute.xlu0 0
  %888 = vperm.xlu0 %887, %v419
  %v889 = vpop.permute.xlu0 %888
  %892 = vset.pattern.permute.xlu0 0
  %893 = vperm.xlu0 %892, %v420
  %v894 = vpop.permute.xlu0 %893
  %897 = vset.pattern.permute.xlu0 0
  %898 = vperm.xlu0 %897, %v421
  %v899 = vpop.permute.xlu0 %898
  %902 = vset.pattern.permute.xlu0 0
  %903 = vperm.xlu0 %902, %v422
  %v904 = vpop.permute.xlu0 %903
  %907 = vset.pattern.permute.xlu0 0
  %908 = vperm.xlu0 %907, %v423
  %v909 = vpop.permute.xlu0 %908
  %912 = vset.pattern.permute.xlu0 0
  %913 = vperm.xlu0 %912, %v424
  %v914 = vpop.permute.xlu0 %913
  %917 = vset.pattern.permute.xlu0 0
  %918 = vperm.xlu0 %917, %v425
  %v919 = vpop.permute.xlu0 %918
  %922 = vset.pattern.permute.xlu0 0
  %923 = vperm.xlu0 %922, %v426
  %v924 = vpop.permute.xlu0 %923
  %v926 = vmul.f32 %v796, %v869
  %v927 = vmul.f32 %v798, %v869
  %v928 = vmul.f32 %v802, %v874
  %v929 = vmul.f32 %v804, %v874
  %v930 = vmul.f32 %v808, %v879
  %v931 = vmul.f32 %v810, %v879
  %v932 = vmul.f32 %v814, %v884
  %v933 = vmul.f32 %v816, %v884
  %v934 = vmul.f32 %v820, %v889
  %v935 = vmul.f32 %v822, %v889
  %v936 = vmul.f32 %v826, %v894
  %v937 = vmul.f32 %v828, %v894
  %v938 = vmul.f32 %v832, %v899
  %v939 = vmul.f32 %v834, %v899
  %v940 = vmul.f32 %v838, %v904
  %v941 = vmul.f32 %v840, %v904
  %v942 = vmul.f32 %v844, %v909
  %v943 = vmul.f32 %v846, %v909
  %v944 = vmul.f32 %v850, %v914
  %v945 = vmul.f32 %v852, %v914
  %v946 = vmul.f32 %v856, %v919
  %v947 = vmul.f32 %v858, %v919
  %v948 = vmul.f32 %v862, %v924
  %v949 = vmul.f32 %v864, %v924
  %951 = vset.pattern.permute.xlu0 0
  %952 = vperm.xlu0 %951, %v234
  %v953 = vpop.permute.xlu0 %952
  %956 = vset.pattern.permute.xlu0 0
  %957 = vperm.xlu0 %956, %v235
  %v958 = vpop.permute.xlu0 %957
  %961 = vset.pattern.permute.xlu0 0
  %962 = vperm.xlu0 %961, %v236
  %v963 = vpop.permute.xlu0 %962
  %966 = vset.pattern.permute.xlu0 0
  %967 = vperm.xlu0 %966, %v237
  %v968 = vpop.permute.xlu0 %967
  %v970 = vmul.f32 %v942, %v953
  %v971 = vmul.f32 %v943, %v953
  %v972 = vmul.f32 %v944, %v958
  %v973 = vmul.f32 %v945, %v958
  %v974 = vmul.f32 %v946, %v963
  %v975 = vmul.f32 %v947, %v963
  %v976 = vmul.f32 %v948, %v968
  %v977 = vmul.f32 %v949, %v968
  %978 = vxpose.xlu0.b32.start [1/16] %v926, 128
  %979 = vxpose.xlu0.b32.cont [2/16] %v928, 128
  %980 = vxpose.xlu0.b32.cont [3/16] 0.0, 128
  %981 = vxpose.xlu0.b32.cont [4/16] 0.0, 128
  %982 = vxpose.xlu0.b32.cont [5/16] 0.0, 128
  %983 = vxpose.xlu0.b32.cont [6/16] 0.0, 128
  %984 = vxpose.xlu0.b32.cont [7/16] 0.0, 128
  %985 = vxpose.xlu0.b32.cont [8/16] 0.0, 128
  %986 = vxpose.xlu0.b32.cont [9/16] 0.0, 128
  %987 = vxpose.xlu0.b32.cont [10/16] 0.0, 128
  %988 = vxpose.xlu0.b32.cont [11/16] 0.0, 128
  %989 = vxpose.xlu0.b32.cont [12/16] 0.0, 128
  %990 = vxpose.xlu0.b32.cont [13/16] 0.0, 128
  %991 = vxpose.xlu0.b32.cont [14/16] 0.0, 128
  %992 = vxpose.xlu0.b32.cont [15/16] 0.0, 128
  %993 = vxpose.xlu0.b32.end [16/16] 0.0, 128
  %v994 = vpop.trf.xlu0
  %v995 = vpop.trf.xlu0
  %v996 = vpop.trf.xlu0
  %v997 = vpop.trf.xlu0
  %v998 = vpop.trf.xlu0
  %v999 = vpop.trf.xlu0
  %v1000 = vpop.trf.xlu0
  %v1001 = vpop.trf.xlu0
  %v1002 = vpop.trf.xlu0
  %v1003 = vpop.trf.xlu0
  %v1004 = vpop.trf.xlu0
  %v1005 = vpop.trf.xlu0
  %v1006 = vpop.trf.xlu0
  %v1007 = vpop.trf.xlu0
  %v1008 = vpop.trf.xlu0
  %v1009 = vpop.trf.xlu0
  %1010 = vxpose.xlu0.b32.start [1/16] %v927, 128
  %1011 = vxpose.xlu0.b32.cont [2/16] %v929, 128
  %1012 = vxpose.xlu0.b32.cont [3/16] 0.0, 128
  %1013 = vxpose.xlu0.b32.cont [4/16] 0.0, 128
  %1014 = vxpose.xlu0.b32.cont [5/16] 0.0, 128
  %1015 = vxpose.xlu0.b32.cont [6/16] 0.0, 128
  %1016 = vxpose.xlu0.b32.cont [7/16] 0.0, 128
  %1017 = vxpose.xlu0.b32.cont [8/16] 0.0, 128
  %1018 = vxpose.xlu0.b32.cont [9/16] 0.0, 128
  %1019 = vxpose.xlu0.b32.cont [10/16] 0.0, 128
  %1020 = vxpose.xlu0.b32.cont [11/16] 0.0, 128
  %1021 = vxpose.xlu0.b32.cont [12/16] 0.0, 128
  %1022 = vxpose.xlu0.b32.cont [13/16] 0.0, 128
  %1023 = vxpose.xlu0.b32.cont [14/16] 0.0, 128
  %1024 = vxpose.xlu0.b32.cont [15/16] 0.0, 128
  %1025 = vxpose.xlu0.b32.end [16/16] 0.0, 128
  %v1026 = vpop.trf.xlu0
  %v1027 = vpop.trf.xlu0
  %v1028 = vpop.trf.xlu0
  %v1029 = vpop.trf.xlu0
  %v1030 = vpop.trf.xlu0
  %v1031 = vpop.trf.xlu0
  %v1032 = vpop.trf.xlu0
  %v1033 = vpop.trf.xlu0
  %v1034 = vpop.trf.xlu0
  %v1035 = vpop.trf.xlu0
  %v1036 = vpop.trf.xlu0
  %v1037 = vpop.trf.xlu0
  %v1038 = vpop.trf.xlu0
  %v1039 = vpop.trf.xlu0
  %v1040 = vpop.trf.xlu0
  %v1041 = vpop.trf.xlu0
  %vm1042 = vcmask 130048
  %v1044 = vsel %vm1042, %v994, 0
  %v1047 = vsel %vm1042, %v995, 0
  %v1050 = vsel %vm1042, %v996, 0
  %v1053 = vsel %vm1042, %v997, 0
  %v1056 = vsel %vm1042, %v998, 0
  %v1059 = vsel %vm1042, %v999, 0
  %v1062 = vsel %vm1042, %v1000, 0
  %v1065 = vsel %vm1042, %v1001, 0
  %v1068 = vsel %vm1042, %v1002, 0
  %v1071 = vsel %vm1042, %v1003, 0
  %v1074 = vsel %vm1042, %v1004, 0
  %v1077 = vsel %vm1042, %v1005, 0
  %v1080 = vsel %vm1042, %v1006, 0
  %v1083 = vsel %vm1042, %v1007, 0
  %v1086 = vsel %vm1042, %v1008, 0
  %v1089 = vsel %vm1042, %v1009, 0
  %v1092 = vsel %vm1042, %v1026, 0
  %v1095 = vsel %vm1042, %v1027, 0
  %v1098 = vsel %vm1042, %v1028, 0
  %v1101 = vsel %vm1042, %v1029, 0
  %v1104 = vsel %vm1042, %v1030, 0
  %v1107 = vsel %vm1042, %v1031, 0
  %v1110 = vsel %vm1042, %v1032, 0
  %v1113 = vsel %vm1042, %v1033, 0
  %v1116 = vsel %vm1042, %v1034, 0
  %v1119 = vsel %vm1042, %v1035, 0
  %v1122 = vsel %vm1042, %v1036, 0
  %v1125 = vsel %vm1042, %v1037, 0
  %v1128 = vsel %vm1042, %v1038, 0
  %v1131 = vsel %vm1042, %v1039, 0
  %v1134 = vsel %vm1042, %v1040, 0
  %v1137 = vsel %vm1042, %v1041, 0
  %1139 = vmatprep.subr.mxu0 %v935
  %1140 = vmatpush1.msra.mxu0 %v934
  %1141 = vmatprep.subr.mxu0 %v937
  %1142 = vmatpush1.msra.mxu0 %v936
  %1143 = vmatprep.subr.mxu0 0.0
  %1144 = vmatpush1.msra.mxu0 0.0
  %1145 = vmatprep.subr.mxu0 0.0
  %1146 = vmatpush1.msra.mxu0 0.0
  %1147 = vmatprep.subr.mxu0 0.0
  %1148 = vmatpush1.msra.mxu0 0.0
  %1149 = vmatprep.subr.mxu0 0.0
  %1150 = vmatpush1.msra.mxu0 0.0
  %1151 = vmatprep.subr.mxu0 0.0
  %1152 = vmatpush1.msra.mxu0 0.0
  %1153 = vmatprep.subr.mxu0 0.0
  %1154 = vmatpush1.msra.mxu0 0.0
  %1155 = vmatprep.subr.mxu0 0.0
  %1156 = vmatpush1.msra.mxu0 0.0
  %1157 = vmatprep.subr.mxu0 0.0
  %1158 = vmatpush1.msra.mxu0 0.0
  %1159 = vmatprep.subr.mxu0 0.0
  %1160 = vmatpush1.msra.mxu0 0.0
  %1161 = vmatprep.subr.mxu0 0.0
  %1162 = vmatpush1.msra.mxu0 0.0
  %1163 = vmatprep.subr.mxu0 0.0
  %1164 = vmatpush1.msra.mxu0 0.0
  %1165 = vmatprep.subr.mxu0 0.0
  %1166 = vmatpush1.msra.mxu0 0.0
  %1167 = vmatprep.subr.mxu0 0.0
  %1168 = vmatpush1.msra.mxu0 0.0
  %1169 = vmatprep.subr.mxu0 0.0
  %1170 = vmatpush1.msra.mxu0 0.0
  %1171 = vmatprep.subr.mxu0 0.0
  %1172 = vmatpush1.msra.mxu0 0.0
  %1173 = vmatprep.subr.mxu0 0.0
  %1174 = vmatpush1.msra.mxu0 0.0
  %1175 = vmatprep.subr.mxu0 0.0
  %1176 = vmatpush1.msra.mxu0 0.0
  %1177 = vmatprep.subr.mxu0 0.0
  %1178 = vmatpush1.msra.mxu0 0.0
  %1179 = vmatprep.subr.mxu0 0.0
  %1180 = vmatpush1.msra.mxu0 0.0
  %1181 = vmatprep.subr.mxu0 0.0
  %1182 = vmatpush1.msra.mxu0 0.0
  %1183 = vmatprep.subr.mxu0 0.0
  %1184 = vmatpush1.msra.mxu0 0.0
  %1185 = vmatprep.subr.mxu0 0.0
  %1186 = vmatpush1.msra.mxu0 0.0
  %1187 = vmatprep.subr.mxu0 0.0
  %1188 = vmatpush1.msra.mxu0 0.0
  %1189 = vmatprep.subr.mxu0 0.0
  %1190 = vmatpush1.msra.mxu0 0.0
  %1191 = vmatprep.subr.mxu0 0.0
  %1192 = vmatpush1.msra.mxu0 0.0
  %1193 = vmatprep.subr.mxu0 0.0
  %1194 = vmatpush1.msra.mxu0 0.0
  %1195 = vmatprep.subr.mxu0 0.0
  %1196 = vmatpush1.msra.mxu0 0.0
  %1197 = vmatprep.subr.mxu0 0.0
  %1198 = vmatpush1.msra.mxu0 0.0
  %1199 = vmatprep.subr.mxu0 0.0
  %1200 = vmatpush1.msra.mxu0 0.0
  %1201 = vmatprep.subr.mxu0 0.0
  %1202 = vmatpush1.msra.mxu0 0.0
  %1203 = vmatprep.mubr.f32.mxu0 0.0
  %1204 = vmatmul.mubr.f32.gmra.mrb[0].mxu0 %v1044
  %v1205 = vpop.f32.mrb[0].mxu0
  %v1206 = vadd.f32 0.0, %v1205
  %v1207 = vpop.f32.mrb[0].mxu0
  %v1208 = vadd.f32 0.0, %v1207
  %1209 = vmatprep.mubr.f32.mxu0 0.0
  %1210 = vmatmul.mubr.f32.gmra.mrb[0].mxu0 %v1047
  %v1211 = vpop.f32.mrb[0].mxu0
  %v1212 = vadd.f32 0.0, %v1211
  %v1213 = vpop.f32.mrb[0].mxu0
  %v1214 = vadd.f32 0.0, %v1213
  %1215 = vmatprep.mubr.f32.mxu0 0.0
  %1216 = vmatmul.mubr.f32.gmra.mrb[0].mxu0 %v1050
  %v1217 = vpop.f32.mrb[0].mxu0
  %v1218 = vadd.f32 0.0, %v1217
  %v1219 = vpop.f32.mrb[0].mxu0
  %v1220 = vadd.f32 0.0, %v1219
  %1221 = vmatprep.mubr.f32.mxu0 0.0
  %1222 = vmatmul.mubr.f32.gmra.mrb[0].mxu0 %v1053
  %v1223 = vpop.f32.mrb[0].mxu0
  %v1224 = vadd.f32 0.0, %v1223
  %v1225 = vpop.f32.mrb[0].mxu0
  %v1226 = vadd.f32 0.0, %v1225
  %1227 = vmatprep.mubr.f32.mxu0 0.0
  %1228 = vmatmul.mubr.f32.gmra.mrb[0].mxu0 %v1056
  %v1229 = vpop.f32.mrb[0].mxu0
  %v1230 = vadd.f32 0.0, %v1229
  %v1231 = vpop.f32.mrb[0].mxu0
  %v1232 = vadd.f32 0.0, %v1231
  %1233 = vmatprep.mubr.f32.mxu0 0.0
  %1234 = vmatmul.mubr.f32.gmra.mrb[0].mxu0 %v1059
  %v1235 = vpop.f32.mrb[0].mxu0
  %v1236 = vadd.f32 0.0, %v1235
  %v1237 = vpop.f32.mrb[0].mxu0
  %v1238 = vadd.f32 0.0, %v1237
  %1239 = vmatprep.mubr.f32.mxu0 0.0
  %1240 = vmatmul.mubr.f32.gmra.mrb[0].mxu0 %v1062
  %v1241 = vpop.f32.mrb[0].mxu0
  %v1242 = vadd.f32 0.0, %v1241
  %v1243 = vpop.f32.mrb[0].mxu0
  %v1244 = vadd.f32 0.0, %v1243
  %1245 = vmatprep.mubr.f32.mxu0 0.0
  %1246 = vmatmul.mubr.f32.gmra.mrb[0].mxu0 %v1065
  %v1247 = vpop.f32.mrb[0].mxu0
  %v1248 = vadd.f32 0.0, %v1247
  %v1249 = vpop.f32.mrb[0].mxu0
  %v1250 = vadd.f32 0.0, %v1249
  %1251 = vmatprep.mubr.f32.mxu0 0.0
  %1252 = vmatmul.mubr.f32.gmra.mrb[0].mxu0 %v1068
  %v1253 = vpop.f32.mrb[0].mxu0
  %v1254 = vadd.f32 0.0, %v1253
  %v1255 = vpop.f32.mrb[0].mxu0
  %v1256 = vadd.f32 0.0, %v1255
  %1257 = vmatprep.mubr.f32.mxu0 0.0
  %1258 = vmatmul.mubr.f32.gmra.mrb[0].mxu0 %v1071
  %v1259 = vpop.f32.mrb[0].mxu0
  %v1260 = vadd.f32 0.0, %v1259
  %v1261 = vpop.f32.mrb[0].mxu0
  %v1262 = vadd.f32 0.0, %v1261
  %1263 = vmatprep.mubr.f32.mxu0 0.0
  %1264 = vmatmul.mubr.f32.gmra.mrb[0].mxu0 %v1074
  %v1265 = vpop.f32.mrb[0].mxu0
  %v1266 = vadd.f32 0.0, %v1265
  %v1267 = vpop.f32.mrb[0].mxu0
  %v1268 = vadd.f32 0.0, %v1267
  %1269 = vmatprep.mubr.f32.mxu0 0.0
  %1270 = vmatmul.mubr.f32.gmra.mrb[0].mxu0 %v1077
  %v1271 = vpop.f32.mrb[0].mxu0
  %v1272 = vadd.f32 0.0, %v1271
  %v1273 = vpop.f32.mrb[0].mxu0
  %v1274 = vadd.f32 0.0, %v1273
  %1275 = vmatprep.mubr.f32.mxu0 0.0
  %1276 = vmatmul.mubr.f32.gmra.mrb[0].mxu0 %v1080
  %v1277 = vpop.f32.mrb[0].mxu0
  %v1278 = vadd.f32 0.0, %v1277
  %v1279 = vpop.f32.mrb[0].mxu0
  %v1280 = vadd.f32 0.0, %v1279
  %1281 = vmatprep.mubr.f32.mxu0 0.0
  %1282 = vmatmul.mubr.f32.gmra.mrb[0].mxu0 %v1083
  %v1283 = vpop.f32.mrb[0].mxu0
  %v1284 = vadd.f32 0.0, %v1283
  %v1285 = vpop.f32.mrb[0].mxu0
  %v1286 = vadd.f32 0.0, %v1285
  %1287 = vmatprep.mubr.f32.mxu0 0.0
  %1288 = vmatmul.mubr.f32.gmra.mrb[0].mxu0 %v1086
  %v1289 = vpop.f32.mrb[0].mxu0
  %v1290 = vadd.f32 0.0, %v1289
  %v1291 = vpop.f32.mrb[0].mxu0
  %v1292 = vadd.f32 0.0, %v1291
  %1293 = vmatprep.mubr.f32.mxu0 0.0
  %1294 = vmatmul.mubr.f32.gmra.mrb[0].mxu0 %v1089
  %v1295 = vpop.f32.mrb[0].mxu0
  %v1296 = vadd.f32 0.0, %v1295
  %v1297 = vpop.f32.mrb[0].mxu0
  %v1298 = vadd.f32 0.0, %v1297
  %1299 = vmatprep.mubr.f32.mxu0 0.0
  %1300 = vmatmul.mubr.f32.gmra.mrb[0].mxu0 %v1092
  %v1301 = vpop.f32.mrb[0].mxu0
  %v1302 = vadd.f32 0.0, %v1301
  %v1303 = vpop.f32.mrb[0].mxu0
  %v1304 = vadd.f32 0.0, %v1303
  %1305 = vmatprep.mubr.f32.mxu0 0.0
  %1306 = vmatmul.mubr.f32.gmra.mrb[0].mxu0 %v1095
  %v1307 = vpop.f32.mrb[0].mxu0
  %v1308 = vadd.f32 0.0, %v1307
  %v1309 = vpop.f32.mrb[0].mxu0
  %v1310 = vadd.f32 0.0, %v1309
  %1311 = vmatprep.mubr.f32.mxu0 0.0
  %1312 = vmatmul.mubr.f32.gmra.mrb[0].mxu0 %v1098
  %v1313 = vpop.f32.mrb[0].mxu0
  %v1314 = vadd.f32 0.0, %v1313
  %v1315 = vpop.f32.mrb[0].mxu0
  %v1316 = vadd.f32 0.0, %v1315
  %1317 = vmatprep.mubr.f32.mxu0 0.0
  %1318 = vmatmul.mubr.f32.gmra.mrb[0].mxu0 %v1101
  %v1319 = vpop.f32.mrb[0].mxu0
  %v1320 = vadd.f32 0.0, %v1319
  %v1321 = vpop.f32.mrb[0].mxu0
  %v1322 = vadd.f32 0.0, %v1321
  %1323 = vmatprep.mubr.f32.mxu0 0.0
  %1324 = vmatmul.mubr.f32.gmra.mrb[0].mxu0 %v1104
  %v1325 = vpop.f32.mrb[0].mxu0
  %v1326 = vadd.f32 0.0, %v1325
  %v1327 = vpop.f32.mrb[0].mxu0
  %v1328 = vadd.f32 0.0, %v1327
  %1329 = vmatprep.mubr.f32.mxu0 0.0
  %1330 = vmatmul.mubr.f32.gmra.mrb[0].mxu0 %v1107
  %v1331 = vpop.f32.mrb[0].mxu0
  %v1332 = vadd.f32 0.0, %v1331
  %v1333 = vpop.f32.mrb[0].mxu0
  %v1334 = vadd.f32 0.0, %v1333
  %1335 = vmatprep.mubr.f32.mxu0 0.0
  %1336 = vmatmul.mubr.f32.gmra.mrb[0].mxu0 %v1110
  %v1337 = vpop.f32.mrb[0].mxu0
  %v1338 = vadd.f32 0.0, %v1337
  %v1339 = vpop.f32.mrb[0].mxu0
  %v1340 = vadd.f32 0.0, %v1339
  %1341 = vmatprep.mubr.f32.mxu0 0.0
  %1342 = vmatmul.mubr.f32.gmra.mrb[0].mxu0 %v1113
  %v1343 = vpop.f32.mrb[0].mxu0
  %v1344 = vadd.f32 0.0, %v1343
  %v1345 = vpop.f32.mrb[0].mxu0
  %v1346 = vadd.f32 0.0, %v1345
  %1347 = vmatprep.mubr.f32.mxu0 0.0
  %1348 = vmatmul.mubr.f32.gmra.mrb[0].mxu0 %v1116
  %v1349 = vpop.f32.mrb[0].mxu0
  %v1350 = vadd.f32 0.0, %v1349
  %v1351 = vpop.f32.mrb[0].mxu0
  %v1352 = vadd.f32 0.0, %v1351
  %1353 = vmatprep.mubr.f32.mxu0 0.0
  %1354 = vmatmul.mubr.f32.gmra.mrb[0].mxu0 %v1119
  %v1355 = vpop.f32.mrb[0].mxu0
  %v1356 = vadd.f32 0.0, %v1355
  %v1357 = vpop.f32.mrb[0].mxu0
  %v1358 = vadd.f32 0.0, %v1357
  %1359 = vmatprep.mubr.f32.mxu0 0.0
  %1360 = vmatmul.mubr.f32.gmra.mrb[0].mxu0 %v1122
  %v1361 = vpop.f32.mrb[0].mxu0
  %v1362 = vadd.f32 0.0, %v1361
  %v1363 = vpop.f32.mrb[0].mxu0
  %v1364 = vadd.f32 0.0, %v1363
  %1365 = vmatprep.mubr.f32.mxu0 0.0
  %1366 = vmatmul.mubr.f32.gmra.mrb[0].mxu0 %v1125
  %v1367 = vpop.f32.mrb[0].mxu0
  %v1368 = vadd.f32 0.0, %v1367
  %v1369 = vpop.f32.mrb[0].mxu0
  %v1370 = vadd.f32 0.0, %v1369
  %1371 = vmatprep.mubr.f32.mxu0 0.0
  %1372 = vmatmul.mubr.f32.gmra.mrb[0].mxu0 %v1128
  %v1373 = vpop.f32.mrb[0].mxu0
  %v1374 = vadd.f32 0.0, %v1373
  %v1375 = vpop.f32.mrb[0].mxu0
  %v1376 = vadd.f32 0.0, %v1375
  %1377 = vmatprep.mubr.f32.mxu0 0.0
  %1378 = vmatmul.mubr.f32.gmra.mrb[0].mxu0 %v1131
  %v1379 = vpop.f32.mrb[0].mxu0
  %v1380 = vadd.f32 0.0, %v1379
  %v1381 = vpop.f32.mrb[0].mxu0
  %v1382 = vadd.f32 0.0, %v1381
  %1383 = vmatprep.mubr.f32.mxu0 0.0
  %1384 = vmatmul.mubr.f32.gmra.mrb[0].mxu0 %v1134
  %v1385 = vpop.f32.mrb[0].mxu0
  %v1386 = vadd.f32 0.0, %v1385
  %v1387 = vpop.f32.mrb[0].mxu0
  %v1388 = vadd.f32 0.0, %v1387
  %1389 = vmatprep.mubr.f32.mxu0 0.0
  %1390 = vmatmul.mubr.f32.gmra.mrb[0].mxu0 %v1137
  %v1391 = vpop.f32.mrb[0].mxu0
  %v1392 = vadd.f32 0.0, %v1391
  %v1393 = vpop.f32.mrb[0].mxu0
  %v1394 = vadd.f32 0.0, %v1393
  %1395 = vdwg.mxu0
  %v1396 = vmul.f32 %v1206, 0.25
  %v1397 = vmul.f32 %v1208, 0.25
  %v1398 = vmul.f32 %v1212, 0.25
  %v1399 = vmul.f32 %v1214, 0.25
  %v1400 = vmul.f32 %v1218, 0.25
  %v1401 = vmul.f32 %v1220, 0.25
  %v1402 = vmul.f32 %v1224, 0.25
  %v1403 = vmul.f32 %v1226, 0.25
  %v1404 = vmul.f32 %v1230, 0.25
  %v1405 = vmul.f32 %v1232, 0.25
  %v1406 = vmul.f32 %v1236, 0.25
  %v1407 = vmul.f32 %v1238, 0.25
  %v1408 = vmul.f32 %v1242, 0.25
  %v1409 = vmul.f32 %v1244, 0.25
  %v1410 = vmul.f32 %v1248, 0.25
  %v1411 = vmul.f32 %v1250, 0.25
  %v1412 = vmul.f32 %v1254, 0.25
  %v1413 = vmul.f32 %v1256, 0.25
  %v1414 = vmul.f32 %v1260, 0.25
  %v1415 = vmul.f32 %v1262, 0.25
  %v1416 = vmul.f32 %v1266, 0.25
  %v1417 = vmul.f32 %v1268, 0.25
  %v1418 = vmul.f32 %v1272, 0.25
  %v1419 = vmul.f32 %v1274, 0.25
  %v1420 = vmul.f32 %v1278, 0.25
  %v1421 = vmul.f32 %v1280, 0.25
  %v1422 = vmul.f32 %v1284, 0.25
  %v1423 = vmul.f32 %v1286, 0.25
  %v1424 = vmul.f32 %v1290, 0.25
  %v1425 = vmul.f32 %v1292, 0.25
  %v1426 = vmul.f32 %v1296, 0.25
  %v1427 = vmul.f32 %v1298, 0.25
  %v1428 = vmul.f32 %v1302, 0.25
  %v1429 = vmul.f32 %v1304, 0.25
  %v1430 = vmul.f32 %v1308, 0.25
  %v1431 = vmul.f32 %v1310, 0.25
  %v1432 = vmul.f32 %v1314, 0.25
  %v1433 = vmul.f32 %v1316, 0.25
  %v1434 = vmul.f32 %v1320, 0.25
  %v1435 = vmul.f32 %v1322, 0.25
  %v1436 = vmul.f32 %v1326, 0.25
  %v1437 = vmul.f32 %v1328, 0.25
  %v1438 = vmul.f32 %v1332, 0.25
  %v1439 = vmul.f32 %v1334, 0.25
  %v1440 = vmul.f32 %v1338, 0.25
  %v1441 = vmul.f32 %v1340, 0.25
  %v1442 = vmul.f32 %v1344, 0.25
  %v1443 = vmul.f32 %v1346, 0.25
  %v1444 = vmul.f32 %v1350, 0.25
  %v1445 = vmul.f32 %v1352, 0.25
  %v1446 = vmul.f32 %v1356, 0.25
  %v1447 = vmul.f32 %v1358, 0.25
  %v1448 = vmul.f32 %v1362, 0.25
  %v1449 = vmul.f32 %v1364, 0.25
  %v1450 = vmul.f32 %v1368, 0.25
  %v1451 = vmul.f32 %v1370, 0.25
  %v1452 = vmul.f32 %v1374, 0.25
  %v1453 = vmul.f32 %v1376, 0.25
  %v1454 = vmul.f32 %v1380, 0.25
  %v1455 = vmul.f32 %v1382, 0.25
  %v1456 = vmul.f32 %v1386, 0.25
  %v1457 = vmul.f32 %v1388, 0.25
  %v1458 = vmul.f32 %v1392, 0.25
  %v1459 = vmul.f32 %v1394, 0.25
  %v1460 = vmax.f32 %v1396, %v1397
  %1461 = vmax.xlane.f32.xlu0 %v1460
  %v1462 = vpop.xlane.xlu0 %1461
  %v1463 = vmax.f32 %v1398, %v1399
  %1464 = vmax.xlane.f32.xlu0 %v1463
  %v1465 = vpop.xlane.xlu0 %1464
  %v1466 = vmax.f32 %v1400, %v1401
  %1467 = vmax.xlane.f32.xlu0 %v1466
  %v1468 = vpop.xlane.xlu0 %1467
  %v1469 = vmax.f32 %v1402, %v1403
  %1470 = vmax.xlane.f32.xlu0 %v1469
  %v1471 = vpop.xlane.xlu0 %1470
  %v1472 = vmax.f32 %v1404, %v1405
  %1473 = vmax.xlane.f32.xlu0 %v1472
  %v1474 = vpop.xlane.xlu0 %1473
  %v1475 = vmax.f32 %v1406, %v1407
  %1476 = vmax.xlane.f32.xlu0 %v1475
  %v1477 = vpop.xlane.xlu0 %1476
  %v1478 = vmax.f32 %v1408, %v1409
  %1479 = vmax.xlane.f32.xlu0 %v1478
  %v1480 = vpop.xlane.xlu0 %1479
  %v1481 = vmax.f32 %v1410, %v1411
  %1482 = vmax.xlane.f32.xlu0 %v1481
  %v1483 = vpop.xlane.xlu0 %1482
  %v1484 = vmax.f32 %v1412, %v1413
  %1485 = vmax.xlane.f32.xlu0 %v1484
  %v1486 = vpop.xlane.xlu0 %1485
  %v1487 = vmax.f32 %v1414, %v1415
  %1488 = vmax.xlane.f32.xlu0 %v1487
  %v1489 = vpop.xlane.xlu0 %1488
  %v1490 = vmax.f32 %v1416, %v1417
  %1491 = vmax.xlane.f32.xlu0 %v1490
  %v1492 = vpop.xlane.xlu0 %1491
  %v1493 = vmax.f32 %v1418, %v1419
  %1494 = vmax.xlane.f32.xlu0 %v1493
  %v1495 = vpop.xlane.xlu0 %1494
  %v1496 = vmax.f32 %v1420, %v1421
  %1497 = vmax.xlane.f32.xlu0 %v1496
  %v1498 = vpop.xlane.xlu0 %1497
  %v1499 = vmax.f32 %v1422, %v1423
  %1500 = vmax.xlane.f32.xlu0 %v1499
  %v1501 = vpop.xlane.xlu0 %1500
  %v1502 = vmax.f32 %v1424, %v1425
  %1503 = vmax.xlane.f32.xlu0 %v1502
  %v1504 = vpop.xlane.xlu0 %1503
  %v1505 = vmax.f32 %v1426, %v1427
  %1506 = vmax.xlane.f32.xlu0 %v1505
  %v1507 = vpop.xlane.xlu0 %1506
  %v1508 = vmax.f32 %v1428, %v1429
  %1509 = vmax.xlane.f32.xlu0 %v1508
  %v1510 = vpop.xlane.xlu0 %1509
  %v1511 = vmax.f32 %v1430, %v1431
  %1512 = vmax.xlane.f32.xlu0 %v1511
  %v1513 = vpop.xlane.xlu0 %1512
  %v1514 = vmax.f32 %v1432, %v1433
  %1515 = vmax.xlane.f32.xlu0 %v1514
  %v1516 = vpop.xlane.xlu0 %1515
  %v1517 = vmax.f32 %v1434, %v1435
  %1518 = vmax.xlane.f32.xlu0 %v1517
  %v1519 = vpop.xlane.xlu0 %1518
  %v1520 = vmax.f32 %v1436, %v1437
  %1521 = vmax.xlane.f32.xlu0 %v1520
  %v1522 = vpop.xlane.xlu0 %1521
  %v1523 = vmax.f32 %v1438, %v1439
  %1524 = vmax.xlane.f32.xlu0 %v1523
  %v1525 = vpop.xlane.xlu0 %1524
  %v1526 = vmax.f32 %v1440, %v1441
  %1527 = vmax.xlane.f32.xlu0 %v1526
  %v1528 = vpop.xlane.xlu0 %1527
  %v1529 = vmax.f32 %v1442, %v1443
  %1530 = vmax.xlane.f32.xlu0 %v1529
  %v1531 = vpop.xlane.xlu0 %1530
  %v1532 = vmax.f32 %v1444, %v1445
  %1533 = vmax.xlane.f32.xlu0 %v1532
  %v1534 = vpop.xlane.xlu0 %1533
  %v1535 = vmax.f32 %v1446, %v1447
  %1536 = vmax.xlane.f32.xlu0 %v1535
  %v1537 = vpop.xlane.xlu0 %1536
  %v1538 = vmax.f32 %v1448, %v1449
  %1539 = vmax.xlane.f32.xlu0 %v1538
  %v1540 = vpop.xlane.xlu0 %1539
  %v1541 = vmax.f32 %v1450, %v1451
  %1542 = vmax.xlane.f32.xlu0 %v1541
  %v1543 = vpop.xlane.xlu0 %1542
  %v1544 = vmax.f32 %v1452, %v1453
  %1545 = vmax.xlane.f32.xlu0 %v1544
  %v1546 = vpop.xlane.xlu0 %1545
  %v1547 = vmax.f32 %v1454, %v1455
  %1548 = vmax.xlane.f32.xlu0 %v1547
  %v1549 = vpop.xlane.xlu0 %1548
  %v1550 = vmax.f32 %v1456, %v1457
  %1551 = vmax.xlane.f32.xlu0 %v1550
  %v1552 = vpop.xlane.xlu0 %1551
  %v1553 = vmax.f32 %v1458, %v1459
  %1554 = vmax.xlane.f32.xlu0 %v1553
  %v1555 = vpop.xlane.xlu0 %1554
  %v1556 = vsub.f32 %v1396, %v1462
  %v1557 = vsub.f32 %v1397, %v1462
  %v1558 = vsub.f32 %v1398, %v1465
  %v1559 = vsub.f32 %v1399, %v1465
  %v1560 = vsub.f32 %v1400, %v1468
  %v1561 = vsub.f32 %v1401, %v1468
  %v1562 = vsub.f32 %v1402, %v1471
  %v1563 = vsub.f32 %v1403, %v1471
  %v1564 = vsub.f32 %v1404, %v1474
  %v1565 = vsub.f32 %v1405, %v1474
  %v1566 = vsub.f32 %v1406, %v1477
  %v1567 = vsub.f32 %v1407, %v1477
  %v1568 = vsub.f32 %v1408, %v1480
  %v1569 = vsub.f32 %v1409, %v1480
  %v1570 = vsub.f32 %v1410, %v1483
  %v1571 = vsub.f32 %v1411, %v1483
  %v1572 = vsub.f32 %v1412, %v1486
  %v1573 = vsub.f32 %v1413, %v1486
  %v1574 = vsub.f32 %v1414, %v1489
  %v1575 = vsub.f32 %v1415, %v1489
  %v1576 = vsub.f32 %v1416, %v1492
  %v1577 = vsub.f32 %v1417, %v1492
  %v1578 = vsub.f32 %v1418, %v1495
  %v1579 = vsub.f32 %v1419, %v1495
  %v1580 = vsub.f32 %v1420, %v1498
  %v1581 = vsub.f32 %v1421, %v1498
  %v1582 = vsub.f32 %v1422, %v1501
  %v1583 = vsub.f32 %v1423, %v1501
  %v1584 = vsub.f32 %v1424, %v1504
  %v1585 = vsub.f32 %v1425, %v1504
  %v1586 = vsub.f32 %v1426, %v1507
  %v1587 = vsub.f32 %v1427, %v1507
  %v1588 = vsub.f32 %v1428, %v1510
  %v1589 = vsub.f32 %v1429, %v1510
  %v1590 = vsub.f32 %v1430, %v1513
  %v1591 = vsub.f32 %v1431, %v1513
  %v1592 = vsub.f32 %v1432, %v1516
  %v1593 = vsub.f32 %v1433, %v1516
  %v1594 = vsub.f32 %v1434, %v1519
  %v1595 = vsub.f32 %v1435, %v1519
  %v1596 = vsub.f32 %v1436, %v1522
  %v1597 = vsub.f32 %v1437, %v1522
  %v1598 = vsub.f32 %v1438, %v1525
  %v1599 = vsub.f32 %v1439, %v1525
  %v1600 = vsub.f32 %v1440, %v1528
  %v1601 = vsub.f32 %v1441, %v1528
  %v1602 = vsub.f32 %v1442, %v1531
  %v1603 = vsub.f32 %v1443, %v1531
  %v1604 = vsub.f32 %v1444, %v1534
  %v1605 = vsub.f32 %v1445, %v1534
  %v1606 = vsub.f32 %v1446, %v1537
  %v1607 = vsub.f32 %v1447, %v1537
  %v1608 = vsub.f32 %v1448, %v1540
  %v1609 = vsub.f32 %v1449, %v1540
  %v1610 = vsub.f32 %v1450, %v1543
  %v1611 = vsub.f32 %v1451, %v1543
  %v1612 = vsub.f32 %v1452, %v1546
  %v1613 = vsub.f32 %v1453, %v1546
  %v1614 = vsub.f32 %v1454, %v1549
  %v1615 = vsub.f32 %v1455, %v1549
  %v1616 = vsub.f32 %v1456, %v1552
  %v1617 = vsub.f32 %v1457, %v1552
  %v1618 = vsub.f32 %v1458, %v1555
  %v1619 = vsub.f32 %v1459, %v1555
  %v1620 = vmul.f32 %v1556, 1.442695
  %v1621 = vpow.pop %v1620
  %v1622 = vmul.f32 %v1557, 1.442695
  %v1623 = vpow.pop %v1622
  %v1624 = vmul.f32 %v1558, 1.442695
  %v1625 = vpow.pop %v1624
  %v1626 = vmul.f32 %v1559, 1.442695
  %v1627 = vpow.pop %v1626
  %v1628 = vmul.f32 %v1560, 1.442695
  %v1629 = vpow.pop %v1628
  %v1630 = vmul.f32 %v1561, 1.442695
  %v1631 = vpow.pop %v1630
  %v1632 = vmul.f32 %v1562, 1.442695
  %v1633 = vpow.pop %v1632
  %v1634 = vmul.f32 %v1563, 1.442695
  %v1635 = vpow.pop %v1634
  %v1636 = vmul.f32 %v1564, 1.442695
  %v1637 = vpow.pop %v1636
  %v1638 = vmul.f32 %v1565, 1.442695
  %v1639 = vpow.pop %v1638
  %v1640 = vmul.f32 %v1566, 1.442695
  %v1641 = vpow.pop %v1640
  %v1642 = vmul.f32 %v1567, 1.442695
  %v1643 = vpow.pop %v1642
  %v1644 = vmul.f32 %v1568, 1.442695
  %v1645 = vpow.pop %v1644
  %v1646 = vmul.f32 %v1569, 1.442695
  %v1647 = vpow.pop %v1646
  %v1648 = vmul.f32 %v1570, 1.442695
  %v1649 = vpow.pop %v1648
  %v1650 = vmul.f32 %v1571, 1.442695
  %v1651 = vpow.pop %v1650
  %v1652 = vmul.f32 %v1572, 1.442695
  %v1653 = vpow.pop %v1652
  %v1654 = vmul.f32 %v1573, 1.442695
  %v1655 = vpow.pop %v1654
  %v1656 = vmul.f32 %v1574, 1.442695
  %v1657 = vpow.pop %v1656
  %v1658 = vmul.f32 %v1575, 1.442695
  %v1659 = vpow.pop %v1658
  %v1660 = vmul.f32 %v1576, 1.442695
  %v1661 = vpow.pop %v1660
  %v1662 = vmul.f32 %v1577, 1.442695
  %v1663 = vpow.pop %v1662
  %v1664 = vmul.f32 %v1578, 1.442695
  %v1665 = vpow.pop %v1664
  %v1666 = vmul.f32 %v1579, 1.442695
  %v1667 = vpow.pop %v1666
  %v1668 = vmul.f32 %v1580, 1.442695
  %v1669 = vpow.pop %v1668
  %v1670 = vmul.f32 %v1581, 1.442695
  %v1671 = vpow.pop %v1670
  %v1672 = vmul.f32 %v1582, 1.442695
  %v1673 = vpow.pop %v1672
  %v1674 = vmul.f32 %v1583, 1.442695
  %v1675 = vpow.pop %v1674
  %v1676 = vmul.f32 %v1584, 1.442695
  %v1677 = vpow.pop %v1676
  %v1678 = vmul.f32 %v1585, 1.442695
  %v1679 = vpow.pop %v1678
  %v1680 = vmul.f32 %v1586, 1.442695
  %v1681 = vpow.pop %v1680
  %v1682 = vmul.f32 %v1587, 1.442695
  %v1683 = vpow.pop %v1682
  %v1684 = vmul.f32 %v1588, 1.442695
  %v1685 = vpow.pop %v1684
  %v1686 = vmul.f32 %v1589, 1.442695
  %v1687 = vpow.pop %v1686
  %v1688 = vmul.f32 %v1590, 1.442695
  %v1689 = vpow.pop %v1688
  %v1690 = vmul.f32 %v1591, 1.442695
  %v1691 = vpow.pop %v1690
  %v1692 = vmul.f32 %v1592, 1.442695
  %v1693 = vpow.pop %v1692
  %v1694 = vmul.f32 %v1593, 1.442695
  %v1695 = vpow.pop %v1694
  %v1696 = vmul.f32 %v1594, 1.442695
  %v1697 = vpow.pop %v1696
  %v1698 = vmul.f32 %v1595, 1.442695
  %v1699 = vpow.pop %v1698
  %v1700 = vmul.f32 %v1596, 1.442695
  %v1701 = vpow.pop %v1700
  %v1702 = vmul.f32 %v1597, 1.442695
  %v1703 = vpow.pop %v1702
  %v1704 = vmul.f32 %v1598, 1.442695
  %v1705 = vpow.pop %v1704
  %v1706 = vmul.f32 %v1599, 1.442695
  %v1707 = vpow.pop %v1706
  %v1708 = vmul.f32 %v1600, 1.442695
  %v1709 = vpow.pop %v1708
  %v1710 = vmul.f32 %v1601, 1.442695
  %v1711 = vpow.pop %v1710
  %v1712 = vmul.f32 %v1602, 1.442695
  %v1713 = vpow.pop %v1712
  %v1714 = vmul.f32 %v1603, 1.442695
  %v1715 = vpow.pop %v1714
  %v1716 = vmul.f32 %v1604, 1.442695
  %v1717 = vpow.pop %v1716
  %v1718 = vmul.f32 %v1605, 1.442695
  %v1719 = vpow.pop %v1718
  %v1720 = vmul.f32 %v1606, 1.442695
  %v1721 = vpow.pop %v1720
  %v1722 = vmul.f32 %v1607, 1.442695
  %v1723 = vpow.pop %v1722
  %v1724 = vmul.f32 %v1608, 1.442695
  %v1725 = vpow.pop %v1724
  %v1726 = vmul.f32 %v1609, 1.442695
  %v1727 = vpow.pop %v1726
  %v1728 = vmul.f32 %v1610, 1.442695
  %v1729 = vpow.pop %v1728
  %v1730 = vmul.f32 %v1611, 1.442695
  %v1731 = vpow.pop %v1730
  %v1732 = vmul.f32 %v1612, 1.442695
  %v1733 = vpow.pop %v1732
  %v1734 = vmul.f32 %v1613, 1.442695
  %v1735 = vpow.pop %v1734
  %v1736 = vmul.f32 %v1614, 1.442695
  %v1737 = vpow.pop %v1736
  %v1738 = vmul.f32 %v1615, 1.442695
  %v1739 = vpow.pop %v1738
  %v1740 = vmul.f32 %v1616, 1.442695
  %v1741 = vpow.pop %v1740
  %v1742 = vmul.f32 %v1617, 1.442695
  %v1743 = vpow.pop %v1742
  %v1744 = vmul.f32 %v1618, 1.442695
  %v1745 = vpow.pop %v1744
  %v1746 = vmul.f32 %v1619, 1.442695
  %v1747 = vpow.pop %v1746
  %v1748 = vadd.f32 %v1621, %v1623
  %1749 = vadd.xlane.f32.xlu0 %v1748
  %v1750 = vpop.xlane.xlu0 %1749
  %v1751 = vadd.f32 %v1625, %v1627
  %1752 = vadd.xlane.f32.xlu0 %v1751
  %v1753 = vpop.xlane.xlu0 %1752
  %v1754 = vadd.f32 %v1629, %v1631
  %1755 = vadd.xlane.f32.xlu0 %v1754
  %v1756 = vpop.xlane.xlu0 %1755
  %v1757 = vadd.f32 %v1633, %v1635
  %1758 = vadd.xlane.f32.xlu0 %v1757
  %v1759 = vpop.xlane.xlu0 %1758
  %v1760 = vadd.f32 %v1637, %v1639
  %1761 = vadd.xlane.f32.xlu0 %v1760
  %v1762 = vpop.xlane.xlu0 %1761
  %v1763 = vadd.f32 %v1641, %v1643
  %1764 = vadd.xlane.f32.xlu0 %v1763
  %v1765 = vpop.xlane.xlu0 %1764
  %v1766 = vadd.f32 %v1645, %v1647
  %1767 = vadd.xlane.f32.xlu0 %v1766
  %v1768 = vpop.xlane.xlu0 %1767
  %v1769 = vadd.f32 %v1649, %v1651
  %1770 = vadd.xlane.f32.xlu0 %v1769
  %v1771 = vpop.xlane.xlu0 %1770
  %v1772 = vadd.f32 %v1653, %v1655
  %1773 = vadd.xlane.f32.xlu0 %v1772
  %v1774 = vpop.xlane.xlu0 %1773
  %v1775 = vadd.f32 %v1657, %v1659
  %1776 = vadd.xlane.f32.xlu0 %v1775
  %v1777 = vpop.xlane.xlu0 %1776
  %v1778 = vadd.f32 %v1661, %v1663
  %1779 = vadd.xlane.f32.xlu0 %v1778
  %v1780 = vpop.xlane.xlu0 %1779
  %v1781 = vadd.f32 %v1665, %v1667
  %1782 = vadd.xlane.f32.xlu0 %v1781
  %v1783 = vpop.xlane.xlu0 %1782
  %v1784 = vadd.f32 %v1669, %v1671
  %1785 = vadd.xlane.f32.xlu0 %v1784
  %v1786 = vpop.xlane.xlu0 %1785
  %v1787 = vadd.f32 %v1673, %v1675
  %1788 = vadd.xlane.f32.xlu0 %v1787
  %v1789 = vpop.xlane.xlu0 %1788
  %v1790 = vadd.f32 %v1677, %v1679
  %1791 = vadd.xlane.f32.xlu0 %v1790
  %v1792 = vpop.xlane.xlu0 %1791
  %v1793 = vadd.f32 %v1681, %v1683
  %1794 = vadd.xlane.f32.xlu0 %v1793
  %v1795 = vpop.xlane.xlu0 %1794
  %v1796 = vadd.f32 %v1685, %v1687
  %1797 = vadd.xlane.f32.xlu0 %v1796
  %v1798 = vpop.xlane.xlu0 %1797
  %v1799 = vadd.f32 %v1689, %v1691
  %1800 = vadd.xlane.f32.xlu0 %v1799
  %v1801 = vpop.xlane.xlu0 %1800
  %v1802 = vadd.f32 %v1693, %v1695
  %1803 = vadd.xlane.f32.xlu0 %v1802
  %v1804 = vpop.xlane.xlu0 %1803
  %v1805 = vadd.f32 %v1697, %v1699
  %1806 = vadd.xlane.f32.xlu0 %v1805
  %v1807 = vpop.xlane.xlu0 %1806
  %v1808 = vadd.f32 %v1701, %v1703
  %1809 = vadd.xlane.f32.xlu0 %v1808
  %v1810 = vpop.xlane.xlu0 %1809
  %v1811 = vadd.f32 %v1705, %v1707
  %1812 = vadd.xlane.f32.xlu0 %v1811
  %v1813 = vpop.xlane.xlu0 %1812
  %v1814 = vadd.f32 %v1709, %v1711
  %1815 = vadd.xlane.f32.xlu0 %v1814
  %v1816 = vpop.xlane.xlu0 %1815
  %v1817 = vadd.f32 %v1713, %v1715
  %1818 = vadd.xlane.f32.xlu0 %v1817
  %v1819 = vpop.xlane.xlu0 %1818
  %v1820 = vadd.f32 %v1717, %v1719
  %1821 = vadd.xlane.f32.xlu0 %v1820
  %v1822 = vpop.xlane.xlu0 %1821
  %v1823 = vadd.f32 %v1721, %v1723
  %1824 = vadd.xlane.f32.xlu0 %v1823
  %v1825 = vpop.xlane.xlu0 %1824
  %v1826 = vadd.f32 %v1725, %v1727
  %1827 = vadd.xlane.f32.xlu0 %v1826
  %v1828 = vpop.xlane.xlu0 %1827
  %v1829 = vadd.f32 %v1729, %v1731
  %1830 = vadd.xlane.f32.xlu0 %v1829
  %v1831 = vpop.xlane.xlu0 %1830
  %v1832 = vadd.f32 %v1733, %v1735
  %1833 = vadd.xlane.f32.xlu0 %v1832
  %v1834 = vpop.xlane.xlu0 %1833
  %v1835 = vadd.f32 %v1737, %v1739
  %1836 = vadd.xlane.f32.xlu0 %v1835
  %v1837 = vpop.xlane.xlu0 %1836
  %v1838 = vadd.f32 %v1741, %v1743
  %1839 = vadd.xlane.f32.xlu0 %v1838
  %v1840 = vpop.xlane.xlu0 %1839
  %v1841 = vadd.f32 %v1745, %v1747
  %1842 = vadd.xlane.f32.xlu0 %v1841
  %v1843 = vpop.xlane.xlu0 %1842
  %v1844 = vrcp.pop %v1750
  %v1845 = vrcp.pop %v1753
  %v1846 = vrcp.pop %v1756
  %v1847 = vrcp.pop %v1759
  %v1848 = vrcp.pop %v1762
  %v1849 = vrcp.pop %v1765
  %v1850 = vrcp.pop %v1768
  %v1851 = vrcp.pop %v1771
  %v1852 = vrcp.pop %v1774
  %v1853 = vrcp.pop %v1777
  %v1854 = vrcp.pop %v1780
  %v1855 = vrcp.pop %v1783
  %v1856 = vrcp.pop %v1786
  %v1857 = vrcp.pop %v1789
  %v1858 = vrcp.pop %v1792
  %v1859 = vrcp.pop %v1795
  %v1860 = vrcp.pop %v1798
  %v1861 = vrcp.pop %v1801
  %v1862 = vrcp.pop %v1804
  %v1863 = vrcp.pop %v1807
  %v1864 = vrcp.pop %v1810
  %v1865 = vrcp.pop %v1813
  %v1866 = vrcp.pop %v1816
  %v1867 = vrcp.pop %v1819
  %v1868 = vrcp.pop %v1822
  %v1869 = vrcp.pop %v1825
  %v1870 = vrcp.pop %v1828
  %v1871 = vrcp.pop %v1831
  %v1872 = vrcp.pop %v1834
  %v1873 = vrcp.pop %v1837
  %v1874 = vrcp.pop %v1840
  %v1875 = vrcp.pop %v1843
  %v1876 = vmul.f32 %v1621, %v1844
  %v1877 = vmul.f32 %v1623, %v1844
  %v1878 = vmul.f32 %v1625, %v1845
  %v1879 = vmul.f32 %v1627, %v1845
  %v1880 = vmul.f32 %v1629, %v1846
  %v1881 = vmul.f32 %v1631, %v1846
  %v1882 = vmul.f32 %v1633, %v1847
  %v1883 = vmul.f32 %v1635, %v1847
  %v1884 = vmul.f32 %v1637, %v1848
  %v1885 = vmul.f32 %v1639, %v1848
  %v1886 = vmul.f32 %v1641, %v1849
  %v1887 = vmul.f32 %v1643, %v1849
  %v1888 = vmul.f32 %v1645, %v1850
  %v1889 = vmul.f32 %v1647, %v1850
  %v1890 = vmul.f32 %v1649, %v1851
  %v1891 = vmul.f32 %v1651, %v1851
  %v1892 = vmul.f32 %v1653, %v1852
  %v1893 = vmul.f32 %v1655, %v1852
  %v1894 = vmul.f32 %v1657, %v1853
  %v1895 = vmul.f32 %v1659, %v1853
  %v1896 = vmul.f32 %v1661, %v1854
  %v1897 = vmul.f32 %v1663, %v1854
  %v1898 = vmul.f32 %v1665, %v1855
  %v1899 = vmul.f32 %v1667, %v1855
  %v1900 = vmul.f32 %v1669, %v1856
  %v1901 = vmul.f32 %v1671, %v1856
  %v1902 = vmul.f32 %v1673, %v1857
  %v1903 = vmul.f32 %v1675, %v1857
  %v1904 = vmul.f32 %v1677, %v1858
  %v1905 = vmul.f32 %v1679, %v1858
  %v1906 = vmul.f32 %v1681, %v1859
  %v1907 = vmul.f32 %v1683, %v1859
  %v1908 = vmul.f32 %v1685, %v1860
  %v1909 = vmul.f32 %v1687, %v1860
  %v1910 = vmul.f32 %v1689, %v1861
  %v1911 = vmul.f32 %v1691, %v1861
  %v1912 = vmul.f32 %v1693, %v1862
  %v1913 = vmul.f32 %v1695, %v1862
  %v1914 = vmul.f32 %v1697, %v1863
  %v1915 = vmul.f32 %v1699, %v1863
  %v1916 = vmul.f32 %v1701, %v1864
  %v1917 = vmul.f32 %v1703, %v1864
  %v1918 = vmul.f32 %v1705, %v1865
  %v1919 = vmul.f32 %v1707, %v1865
  %v1920 = vmul.f32 %v1709, %v1866
  %v1921 = vmul.f32 %v1711, %v1866
  %v1922 = vmul.f32 %v1713, %v1867
  %v1923 = vmul.f32 %v1715, %v1867
  %v1924 = vmul.f32 %v1717, %v1868
  %v1925 = vmul.f32 %v1719, %v1868
  %v1926 = vmul.f32 %v1721, %v1869
  %v1927 = vmul.f32 %v1723, %v1869
  %v1928 = vmul.f32 %v1725, %v1870
  %v1929 = vmul.f32 %v1727, %v1870
  %v1930 = vmul.f32 %v1729, %v1871
  %v1931 = vmul.f32 %v1731, %v1871
  %v1932 = vmul.f32 %v1733, %v1872
  %v1933 = vmul.f32 %v1735, %v1872
  %v1934 = vmul.f32 %v1737, %v1873
  %v1935 = vmul.f32 %v1739, %v1873
  %v1936 = vmul.f32 %v1741, %v1874
  %v1937 = vmul.f32 %v1743, %v1874
  %v1938 = vmul.f32 %v1745, %v1875
  %v1939 = vmul.f32 %v1747, %v1875
  %1940 = vmatprep.subr.mxu0 %v1877
  %1941 = vmatpush1.xpose.msra.mxu0 %v1876
  %1942 = vmatprep.subr.mxu0 %v1879
  %1943 = vmatpush1.xpose.msra.mxu0 %v1878
  %1944 = vmatprep.subr.mxu0 %v1881
  %1945 = vmatpush1.xpose.msra.mxu0 %v1880
  %1946 = vmatprep.subr.mxu0 %v1883
  %1947 = vmatpush1.xpose.msra.mxu0 %v1882
  %1948 = vmatprep.subr.mxu0 %v1885
  %1949 = vmatpush1.xpose.msra.mxu0 %v1884
  %1950 = vmatprep.subr.mxu0 %v1887
  %1951 = vmatpush1.xpose.msra.mxu0 %v1886
  %1952 = vmatprep.subr.mxu0 %v1889
  %1953 = vmatpush1.xpose.msra.mxu0 %v1888
  %1954 = vmatprep.subr.mxu0 %v1891
  %1955 = vmatpush1.xpose.msra.mxu0 %v1890
  %1956 = vmatprep.subr.mxu0 %v1893
  %1957 = vmatpush1.xpose.msra.mxu0 %v1892
  %1958 = vmatprep.subr.mxu0 %v1895
  %1959 = vmatpush1.xpose.msra.mxu0 %v1894
  %1960 = vmatprep.subr.mxu0 %v1897
  %1961 = vmatpush1.xpose.msra.mxu0 %v1896
  %1962 = vmatprep.subr.mxu0 %v1899
  %1963 = vmatpush1.xpose.msra.mxu0 %v1898
  %1964 = vmatprep.subr.mxu0 %v1901
  %1965 = vmatpush1.xpose.msra.mxu0 %v1900
  %1966 = vmatprep.subr.mxu0 %v1903
  %1967 = vmatpush1.xpose.msra.mxu0 %v1902
  %1968 = vmatprep.subr.mxu0 %v1905
  %1969 = vmatpush1.xpose.msra.mxu0 %v1904
  %1970 = vmatprep.subr.mxu0 %v1907
  %1971 = vmatpush1.xpose.msra.mxu0 %v1906
  %1972 = vmatprep.subr.mxu0 %v1909
  %1973 = vmatpush1.xpose.msra.mxu0 %v1908
  %1974 = vmatprep.subr.mxu0 %v1911
  %1975 = vmatpush1.xpose.msra.mxu0 %v1910
  %1976 = vmatprep.subr.mxu0 %v1913
  %1977 = vmatpush1.xpose.msra.mxu0 %v1912
  %1978 = vmatprep.subr.mxu0 %v1915
  %1979 = vmatpush1.xpose.msra.mxu0 %v1914
  %1980 = vmatprep.subr.mxu0 %v1917
  %1981 = vmatpush1.xpose.msra.mxu0 %v1916
  %1982 = vmatprep.subr.mxu0 %v1919
  %1983 = vmatpush1.xpose.msra.mxu0 %v1918
  %1984 = vmatprep.subr.mxu0 %v1921
  %1985 = vmatpush1.xpose.msra.mxu0 %v1920
  %1986 = vmatprep.subr.mxu0 %v1923
  %1987 = vmatpush1.xpose.msra.mxu0 %v1922
  %1988 = vmatprep.subr.mxu0 %v1925
  %1989 = vmatpush1.xpose.msra.mxu0 %v1924
  %1990 = vmatprep.subr.mxu0 %v1927
  %1991 = vmatpush1.xpose.msra.mxu0 %v1926
  %1992 = vmatprep.subr.mxu0 %v1929
  %1993 = vmatpush1.xpose.msra.mxu0 %v1928
  %1994 = vmatprep.subr.mxu0 %v1931
  %1995 = vmatpush1.xpose.msra.mxu0 %v1930
  %1996 = vmatprep.subr.mxu0 %v1933
  %1997 = vmatpush1.xpose.msra.mxu0 %v1932
  %1998 = vmatprep.subr.mxu0 %v1935
  %1999 = vmatpush1.xpose.msra.mxu0 %v1934
  %2000 = vmatprep.subr.mxu0 %v1937
  %2001 = vmatpush1.xpose.msra.mxu0 %v1936
  %2002 = vmatprep.subr.mxu0 %v1939
  %2003 = vmatpush1.xpose.msra.mxu0 %v1938
  %2004 = vmatprep.mubr.f32.mxu0 %v971
  %2005 = vmatmul.mubr.f32.gmra.mrb[0].mxu0 %v970
  %v2006 = vpop.f32.mrb[0].mxu0
  %v2007 = vadd.f32 0.0, %v2006
  %v2008 = vpop.f32.mrb[0].mxu0
  %v2009 = vadd.f32 0.0, %v2008
  %2010 = vmatprep.mubr.f32.mxu0 %v973
  %2011 = vmatmul.mubr.f32.gmra.mrb[0].mxu0 %v972
  %v2012 = vpop.f32.mrb[0].mxu0
  %v2013 = vadd.f32 0.0, %v2012
  %v2014 = vpop.f32.mrb[0].mxu0
  %v2015 = vadd.f32 0.0, %v2014
  %2016 = vdwg.mxu0
  %2017 = vxpose.xlu0.b32.start [1/16] %v930, 128
  %2018 = vxpose.xlu0.b32.cont [2/16] %v932, 128
  %2019 = vxpose.xlu0.b32.cont [3/16] 0.0, 128
  %2020 = vxpose.xlu0.b32.cont [4/16] 0.0, 128
  %2021 = vxpose.xlu0.b32.cont [5/16] 0.0, 128
  %2022 = vxpose.xlu0.b32.cont [6/16] 0.0, 128
  %2023 = vxpose.xlu0.b32.cont [7/16] 0.0, 128
  %2024 = vxpose.xlu0.b32.cont [8/16] 0.0, 128
  %2025 = vxpose.xlu0.b32.cont [9/16] 0.0, 128
  %2026 = vxpose.xlu0.b32.cont [10/16] 0.0, 128
  %2027 = vxpose.xlu0.b32.cont [11/16] 0.0, 128
  %2028 = vxpose.xlu0.b32.cont [12/16] 0.0, 128
  %2029 = vxpose.xlu0.b32.cont [13/16] 0.0, 128
  %2030 = vxpose.xlu0.b32.cont [14/16] 0.0, 128
  %2031 = vxpose.xlu0.b32.cont [15/16] 0.0, 128
  %2032 = vxpose.xlu0.b32.end [16/16] 0.0, 128
  %v2033 = vpop.trf.xlu0
  %v2034 = vpop.trf.xlu0
  %v2035 = vpop.trf.xlu0
  %v2036 = vpop.trf.xlu0
  %v2037 = vpop.trf.xlu0
  %v2038 = vpop.trf.xlu0
  %v2039 = vpop.trf.xlu0
  %v2040 = vpop.trf.xlu0
  %v2041 = vpop.trf.xlu0
  %v2042 = vpop.trf.xlu0
  %v2043 = vpop.trf.xlu0
  %v2044 = vpop.trf.xlu0
  %v2045 = vpop.trf.xlu0
  %v2046 = vpop.trf.xlu0
  %v2047 = vpop.trf.xlu0
  %v2048 = vpop.trf.xlu0
  %2049 = vxpose.xlu0.b32.start [1/16] %v931, 128
  %2050 = vxpose.xlu0.b32.cont [2/16] %v933, 128
  %2051 = vxpose.xlu0.b32.cont [3/16] 0.0, 128
  %2052 = vxpose.xlu0.b32.cont [4/16] 0.0, 128
  %2053 = vxpose.xlu0.b32.cont [5/16] 0.0, 128
  %2054 = vxpose.xlu0.b32.cont [6/16] 0.0, 128
  %2055 = vxpose.xlu0.b32.cont [7/16] 0.0, 128
  %2056 = vxpose.xlu0.b32.cont [8/16] 0.0, 128
  %2057 = vxpose.xlu0.b32.cont [9/16] 0.0, 128
  %2058 = vxpose.xlu0.b32.cont [10/16] 0.0, 128
  %2059 = vxpose.xlu0.b32.cont [11/16] 0.0, 128
  %2060 = vxpose.xlu0.b32.cont [12/16] 0.0, 128
  %2061 = vxpose.xlu0.b32.cont [13/16] 0.0, 128
  %2062 = vxpose.xlu0.b32.cont [14/16] 0.0, 128
  %2063 = vxpose.xlu0.b32.cont [15/16] 0.0, 128
  %2064 = vxpose.xlu0.b32.end [16/16] 0.0, 128
  %v2065 = vpop.trf.xlu0
  %v2066 = vpop.trf.xlu0
  %v2067 = vpop.trf.xlu0
  %v2068 = vpop.trf.xlu0
  %v2069 = vpop.trf.xlu0
  %v2070 = vpop.trf.xlu0
  %v2071 = vpop.trf.xlu0
  %v2072 = vpop.trf.xlu0
  %v2073 = vpop.trf.xlu0
  %v2074 = vpop.trf.xlu0
  %v2075 = vpop.trf.xlu0
  %v2076 = vpop.trf.xlu0
  %v2077 = vpop.trf.xlu0
  %v2078 = vpop.trf.xlu0
  %v2079 = vpop.trf.xlu0
  %v2080 = vpop.trf.xlu0
  %v2082 = vsel %vm1042, %v2033, 0
  %v2085 = vsel %vm1042, %v2034, 0
  %v2088 = vsel %vm1042, %v2035, 0
  %v2091 = vsel %vm1042, %v2036, 0
  %v2094 = vsel %vm1042, %v2037, 0
  %v2097 = vsel %vm1042, %v2038, 0
  %v2100 = vsel %vm1042, %v2039, 0
  %v2103 = vsel %vm1042, %v2040, 0
  %v2106 = vsel %vm1042, %v2041, 0
  %v2109 = vsel %vm1042, %v2042, 0
  %v2112 = vsel %vm1042, %v2043, 0
  %v2115 = vsel %vm1042, %v2044, 0
  %v2118 = vsel %vm1042, %v2045, 0
  %v2121 = vsel %vm1042, %v2046, 0
  %v2124 = vsel %vm1042, %v2047, 0
  %v2127 = vsel %vm1042, %v2048, 0
  %v2130 = vsel %vm1042, %v2065, 0
  %v2133 = vsel %vm1042, %v2066, 0
  %v2136 = vsel %vm1042, %v2067, 0
  %v2139 = vsel %vm1042, %v2068, 0
  %v2142 = vsel %vm1042, %v2069, 0
  %v2145 = vsel %vm1042, %v2070, 0
  %v2148 = vsel %vm1042, %v2071, 0
  %v2151 = vsel %vm1042, %v2072, 0
  %v2154 = vsel %vm1042, %v2073, 0
  %v2157 = vsel %vm1042, %v2074, 0
  %v2160 = vsel %vm1042, %v2075, 0
  %v2163 = vsel %vm1042, %v2076, 0
  %v2166 = vsel %vm1042, %v2077, 0
  %v2169 = vsel %vm1042, %v2078, 0
  %v2172 = vsel %vm1042, %v2079, 0
  %v2175 = vsel %vm1042, %v2080, 0
  %2177 = vmatprep.subr.mxu0 %v939
  %2178 = vmatpush1.msra.mxu0 %v938
  %2179 = vmatprep.subr.mxu0 %v941
  %2180 = vmatpush1.msra.mxu0 %v940
  %2181 = vmatprep.subr.mxu0 0.0
  %2182 = vmatpush1.msra.mxu0 0.0
  %2183 = vmatprep.subr.mxu0 0.0
  %2184 = vmatpush1.msra.mxu0 0.0
  %2185 = vmatprep.subr.mxu0 0.0
  %2186 = vmatpush1.msra.mxu0 0.0
  %2187 = vmatprep.subr.mxu0 0.0
  %2188 = vmatpush1.msra.mxu0 0.0
  %2189 = vmatprep.subr.mxu0 0.0
  %2190 = vmatpush1.msra.mxu0 0.0
  %2191 = vmatprep.subr.mxu0 0.0
  %2192 = vmatpush1.msra.mxu0 0.0
  %2193 = vmatprep.subr.mxu0 0.0
  %2194 = vmatpush1.msra.mxu0 0.0
  %2195 = vmatprep.subr.mxu0 0.0
  %2196 = vmatpush1.msra.mxu0 0.0
  %2197 = vmatprep.subr.mxu0 0.0
  %2198 = vmatpush1.msra.mxu0 0.0
  %2199 = vmatprep.subr.mxu0 0.0
  %2200 = vmatpush1.msra.mxu0 0.0
  %2201 = vmatprep.subr.mxu0 0.0
  %2202 = vmatpush1.msra.mxu0 0.0
  %2203 = vmatprep.subr.mxu0 0.0
  %2204 = vmatpush1.msra.mxu0 0.0
  %2205 = vmatprep.subr.mxu0 0.0
  %2206 = vmatpush1.msra.mxu0 0.0
  %2207 = vmatprep.subr.mxu0 0.0
  %2208 = vmatpush1.msra.mxu0 0.0
  %2209 = vmatprep.subr.mxu0 0.0
  %2210 = vmatpush1.msra.mxu0 0.0
  %2211 = vmatprep.subr.mxu0 0.0
  %2212 = vmatpush1.msra.mxu0 0.0
  %2213 = vmatprep.subr.mxu0 0.0
  %2214 = vmatpush1.msra.mxu0 0.0
  %2215 = vmatprep.subr.mxu0 0.0
  %2216 = vmatpush1.msra.mxu0 0.0
  %2217 = vmatprep.subr.mxu0 0.0
  %2218 = vmatpush1.msra.mxu0 0.0
  %2219 = vmatprep.subr.mxu0 0.0
  %2220 = vmatpush1.msra.mxu0 0.0
  %2221 = vmatprep.subr.mxu0 0.0
  %2222 = vmatpush1.msra.mxu0 0.0
  %2223 = vmatprep.subr.mxu0 0.0
  %2224 = vmatpush1.msra.mxu0 0.0
  %2225 = vmatprep.subr.mxu0 0.0
  %2226 = vmatpush1.msra.mxu0 0.0
  %2227 = vmatprep.subr.mxu0 0.0
  %2228 = vmatpush1.msra.mxu0 0.0
  %2229 = vmatprep.subr.mxu0 0.0
  %2230 = vmatpush1.msra.mxu0 0.0
  %2231 = vmatprep.subr.mxu0 0.0
  %2232 = vmatpush1.msra.mxu0 0.0
  %2233 = vmatprep.subr.mxu0 0.0
  %2234 = vmatpush1.msra.mxu0 0.0
  %2235 = vmatprep.subr.mxu0 0.0
  %2236 = vmatpush1.msra.mxu0 0.0
  %2237 = vmatprep.subr.mxu0 0.0
  %2238 = vmatpush1.msra.mxu0 0.0
  %2239 = vmatprep.subr.mxu0 0.0
  %2240 = vmatpush1.msra.mxu0 0.0
  %2241 = vmatprep.mubr.f32.mxu0 0.0
  %2242 = vmatmul.mubr.f32.gmra.mrb[0].mxu0 %v2082
  %v2243 = vpop.f32.mrb[0].mxu0
  %v2244 = vadd.f32 0.0, %v2243
  %v2245 = vpop.f32.mrb[0].mxu0
  %v2246 = vadd.f32 0.0, %v2245
  %2247 = vmatprep.mubr.f32.mxu0 0.0
  %2248 = vmatmul.mubr.f32.gmra.mrb[0].mxu0 %v2085
  %v2249 = vpop.f32.mrb[0].mxu0
  %v2250 = vadd.f32 0.0, %v2249
  %v2251 = vpop.f32.mrb[0].mxu0
  %v2252 = vadd.f32 0.0, %v2251
  %2253 = vmatprep.mubr.f32.mxu0 0.0
  %2254 = vmatmul.mubr.f32.gmra.mrb[0].mxu0 %v2088
  %v2255 = vpop.f32.mrb[0].mxu0
  %v2256 = vadd.f32 0.0, %v2255
  %v2257 = vpop.f32.mrb[0].mxu0
  %v2258 = vadd.f32 0.0, %v2257
  %2259 = vmatprep.mubr.f32.mxu0 0.0
  %2260 = vmatmul.mubr.f32.gmra.mrb[0].mxu0 %v2091
  %v2261 = vpop.f32.mrb[0].mxu0
  %v2262 = vadd.f32 0.0, %v2261
  %v2263 = vpop.f32.mrb[0].mxu0
  %v2264 = vadd.f32 0.0, %v2263
  %2265 = vmatprep.mubr.f32.mxu0 0.0
  %2266 = vmatmul.mubr.f32.gmra.mrb[0].mxu0 %v2094
  %v2267 = vpop.f32.mrb[0].mxu0
  %v2268 = vadd.f32 0.0, %v2267
  %v2269 = vpop.f32.mrb[0].mxu0
  %v2270 = vadd.f32 0.0, %v2269
  %2271 = vmatprep.mubr.f32.mxu0 0.0
  %2272 = vmatmul.mubr.f32.gmra.mrb[0].mxu0 %v2097
  %v2273 = vpop.f32.mrb[0].mxu0
  %v2274 = vadd.f32 0.0, %v2273
  %v2275 = vpop.f32.mrb[0].mxu0
  %v2276 = vadd.f32 0.0, %v2275
  %2277 = vmatprep.mubr.f32.mxu0 0.0
  %2278 = vmatmul.mubr.f32.gmra.mrb[0].mxu0 %v2100
  %v2279 = vpop.f32.mrb[0].mxu0
  %v2280 = vadd.f32 0.0, %v2279
  %v2281 = vpop.f32.mrb[0].mxu0
  %v2282 = vadd.f32 0.0, %v2281
  %2283 = vmatprep.mubr.f32.mxu0 0.0
  %2284 = vmatmul.mubr.f32.gmra.mrb[0].mxu0 %v2103
  %v2285 = vpop.f32.mrb[0].mxu0
  %v2286 = vadd.f32 0.0, %v2285
  %v2287 = vpop.f32.mrb[0].mxu0
  %v2288 = vadd.f32 0.0, %v2287
  %2289 = vmatprep.mubr.f32.mxu0 0.0
  %2290 = vmatmul.mubr.f32.gmra.mrb[0].mxu0 %v2106
  %v2291 = vpop.f32.mrb[0].mxu0
  %v2292 = vadd.f32 0.0, %v2291
  %v2293 = vpop.f32.mrb[0].mxu0
  %v2294 = vadd.f32 0.0, %v2293
  %2295 = vmatprep.mubr.f32.mxu0 0.0
  %2296 = vmatmul.mubr.f32.gmra.mrb[0].mxu0 %v2109
  %v2297 = vpop.f32.mrb[0].mxu0
  %v2298 = vadd.f32 0.0, %v2297
  %v2299 = vpop.f32.mrb[0].mxu0
  %v2300 = vadd.f32 0.0, %v2299
  %2301 = vmatprep.mubr.f32.mxu0 0.0
  %2302 = vmatmul.mubr.f32.gmra.mrb[0].mxu0 %v2112
  %v2303 = vpop.f32.mrb[0].mxu0
  %v2304 = vadd.f32 0.0, %v2303
  %v2305 = vpop.f32.mrb[0].mxu0
  %v2306 = vadd.f32 0.0, %v2305
  %2307 = vmatprep.mubr.f32.mxu0 0.0
  %2308 = vmatmul.mubr.f32.gmra.mrb[0].mxu0 %v2115
  %v2309 = vpop.f32.mrb[0].mxu0
  %v2310 = vadd.f32 0.0, %v2309
  %v2311 = vpop.f32.mrb[0].mxu0
  %v2312 = vadd.f32 0.0, %v2311
  %2313 = vmatprep.mubr.f32.mxu0 0.0
  %2314 = vmatmul.mubr.f32.gmra.mrb[0].mxu0 %v2118
  %v2315 = vpop.f32.mrb[0].mxu0
  %v2316 = vadd.f32 0.0, %v2315
  %v2317 = vpop.f32.mrb[0].mxu0
  %v2318 = vadd.f32 0.0, %v2317
  %2319 = vmatprep.mubr.f32.mxu0 0.0
  %2320 = vmatmul.mubr.f32.gmra.mrb[0].mxu0 %v2121
  %v2321 = vpop.f32.mrb[0].mxu0
  %v2322 = vadd.f32 0.0, %v2321
  %v2323 = vpop.f32.mrb[0].mxu0
  %v2324 = vadd.f32 0.0, %v2323
  %2325 = vmatprep.mubr.f32.mxu0 0.0
  %2326 = vmatmul.mubr.f32.gmra.mrb[0].mxu0 %v2124
  %v2327 = vpop.f32.mrb[0].mxu0
  %v2328 = vadd.f32 0.0, %v2327
  %v2329 = vpop.f32.mrb[0].mxu0
  %v2330 = vadd.f32 0.0, %v2329
  %2331 = vmatprep.mubr.f32.mxu0 0.0
  %2332 = vmatmul.mubr.f32.gmra.mrb[0].mxu0 %v2127
  %v2333 = vpop.f32.mrb[0].mxu0
  %v2334 = vadd.f32 0.0, %v2333
  %v2335 = vpop.f32.mrb[0].mxu0
  %v2336 = vadd.f32 0.0, %v2335
  %2337 = vmatprep.mubr.f32.mxu0 0.0
  %2338 = vmatmul.mubr.f32.gmra.mrb[0].mxu0 %v2130
  %v2339 = vpop.f32.mrb[0].mxu0
  %v2340 = vadd.f32 0.0, %v2339
  %v2341 = vpop.f32.mrb[0].mxu0
  %v2342 = vadd.f32 0.0, %v2341
  %2343 = vmatprep.mubr.f32.mxu0 0.0
  %2344 = vmatmul.mubr.f32.gmra.mrb[0].mxu0 %v2133
  %v2345 = vpop.f32.mrb[0].mxu0
  %v2346 = vadd.f32 0.0, %v2345
  %v2347 = vpop.f32.mrb[0].mxu0
  %v2348 = vadd.f32 0.0, %v2347
  %2349 = vmatprep.mubr.f32.mxu0 0.0
  %2350 = vmatmul.mubr.f32.gmra.mrb[0].mxu0 %v2136
  %v2351 = vpop.f32.mrb[0].mxu0
  %v2352 = vadd.f32 0.0, %v2351
  %v2353 = vpop.f32.mrb[0].mxu0
  %v2354 = vadd.f32 0.0, %v2353
  %2355 = vmatprep.mubr.f32.mxu0 0.0
  %2356 = vmatmul.mubr.f32.gmra.mrb[0].mxu0 %v2139
  %v2357 = vpop.f32.mrb[0].mxu0
  %v2358 = vadd.f32 0.0, %v2357
  %v2359 = vpop.f32.mrb[0].mxu0
  %v2360 = vadd.f32 0.0, %v2359
  %2361 = vmatprep.mubr.f32.mxu0 0.0
  %2362 = vmatmul.mubr.f32.gmra.mrb[0].mxu0 %v2142
  %v2363 = vpop.f32.mrb[0].mxu0
  %v2364 = vadd.f32 0.0, %v2363
  %v2365 = vpop.f32.mrb[0].mxu0
  %v2366 = vadd.f32 0.0, %v2365
  %2367 = vmatprep.mubr.f32.mxu0 0.0
  %2368 = vmatmul.mubr.f32.gmra.mrb[0].mxu0 %v2145
  %v2369 = vpop.f32.mrb[0].mxu0
  %v2370 = vadd.f32 0.0, %v2369
  %v2371 = vpop.f32.mrb[0].mxu0
  %v2372 = vadd.f32 0.0, %v2371
  %2373 = vmatprep.mubr.f32.mxu0 0.0
  %2374 = vmatmul.mubr.f32.gmra.mrb[0].mxu0 %v2148
  %v2375 = vpop.f32.mrb[0].mxu0
  %v2376 = vadd.f32 0.0, %v2375
  %v2377 = vpop.f32.mrb[0].mxu0
  %v2378 = vadd.f32 0.0, %v2377
  %2379 = vmatprep.mubr.f32.mxu0 0.0
  %2380 = vmatmul.mubr.f32.gmra.mrb[0].mxu0 %v2151
  %v2381 = vpop.f32.mrb[0].mxu0
  %v2382 = vadd.f32 0.0, %v2381
  %v2383 = vpop.f32.mrb[0].mxu0
  %v2384 = vadd.f32 0.0, %v2383
  %2385 = vmatprep.mubr.f32.mxu0 0.0
  %2386 = vmatmul.mubr.f32.gmra.mrb[0].mxu0 %v2154
  %v2387 = vpop.f32.mrb[0].mxu0
  %v2388 = vadd.f32 0.0, %v2387
  %v2389 = vpop.f32.mrb[0].mxu0
  %v2390 = vadd.f32 0.0, %v2389
  %2391 = vmatprep.mubr.f32.mxu0 0.0
  %2392 = vmatmul.mubr.f32.gmra.mrb[0].mxu0 %v2157
  %v2393 = vpop.f32.mrb[0].mxu0
  %v2394 = vadd.f32 0.0, %v2393
  %v2395 = vpop.f32.mrb[0].mxu0
  %v2396 = vadd.f32 0.0, %v2395
  %2397 = vmatprep.mubr.f32.mxu0 0.0
  %2398 = vmatmul.mubr.f32.gmra.mrb[0].mxu0 %v2160
  %v2399 = vpop.f32.mrb[0].mxu0
  %v2400 = vadd.f32 0.0, %v2399
  %v2401 = vpop.f32.mrb[0].mxu0
  %v2402 = vadd.f32 0.0, %v2401
  %2403 = vmatprep.mubr.f32.mxu0 0.0
  %2404 = vmatmul.mubr.f32.gmra.mrb[0].mxu0 %v2163
  %v2405 = vpop.f32.mrb[0].mxu0
  %v2406 = vadd.f32 0.0, %v2405
  %v2407 = vpop.f32.mrb[0].mxu0
  %v2408 = vadd.f32 0.0, %v2407
  %2409 = vmatprep.mubr.f32.mxu0 0.0
  %2410 = vmatmul.mubr.f32.gmra.mrb[0].mxu0 %v2166
  %v2411 = vpop.f32.mrb[0].mxu0
  %v2412 = vadd.f32 0.0, %v2411
  %v2413 = vpop.f32.mrb[0].mxu0
  %v2414 = vadd.f32 0.0, %v2413
  %2415 = vmatprep.mubr.f32.mxu0 0.0
  %2416 = vmatmul.mubr.f32.gmra.mrb[0].mxu0 %v2169
  %v2417 = vpop.f32.mrb[0].mxu0
  %v2418 = vadd.f32 0.0, %v2417
  %v2419 = vpop.f32.mrb[0].mxu0
  %v2420 = vadd.f32 0.0, %v2419
  %2421 = vmatprep.mubr.f32.mxu0 0.0
  %2422 = vmatmul.mubr.f32.gmra.mrb[0].mxu0 %v2172
  %v2423 = vpop.f32.mrb[0].mxu0
  %v2424 = vadd.f32 0.0, %v2423
  %v2425 = vpop.f32.mrb[0].mxu0
  %v2426 = vadd.f32 0.0, %v2425
  %2427 = vmatprep.mubr.f32.mxu0 0.0
  %2428 = vmatmul.mubr.f32.gmra.mrb[0].mxu0 %v2175
  %v2429 = vpop.f32.mrb[0].mxu0
  %v2430 = vadd.f32 0.0, %v2429
  %v2431 = vpop.f32.mrb[0].mxu0
  %v2432 = vadd.f32 0.0, %v2431
  %2433 = vdwg.mxu0
  %v2434 = vmul.f32 %v2244, 0.25
  %v2435 = vmul.f32 %v2246, 0.25
  %v2436 = vmul.f32 %v2250, 0.25
  %v2437 = vmul.f32 %v2252, 0.25
  %v2438 = vmul.f32 %v2256, 0.25
  %v2439 = vmul.f32 %v2258, 0.25
  %v2440 = vmul.f32 %v2262, 0.25
  %v2441 = vmul.f32 %v2264, 0.25
  %v2442 = vmul.f32 %v2268, 0.25
  %v2443 = vmul.f32 %v2270, 0.25
  %v2444 = vmul.f32 %v2274, 0.25
  %v2445 = vmul.f32 %v2276, 0.25
  %v2446 = vmul.f32 %v2280, 0.25
  %v2447 = vmul.f32 %v2282, 0.25
  %v2448 = vmul.f32 %v2286, 0.25
  %v2449 = vmul.f32 %v2288, 0.25
  %v2450 = vmul.f32 %v2292, 0.25
  %v2451 = vmul.f32 %v2294, 0.25
  %v2452 = vmul.f32 %v2298, 0.25
  %v2453 = vmul.f32 %v2300, 0.25
  %v2454 = vmul.f32 %v2304, 0.25
  %v2455 = vmul.f32 %v2306, 0.25
  %v2456 = vmul.f32 %v2310, 0.25
  %v2457 = vmul.f32 %v2312, 0.25
  %v2458 = vmul.f32 %v2316, 0.25
  %v2459 = vmul.f32 %v2318, 0.25
  %v2460 = vmul.f32 %v2322, 0.25
  %v2461 = vmul.f32 %v2324, 0.25
  %v2462 = vmul.f32 %v2328, 0.25
  %v2463 = vmul.f32 %v2330, 0.25
  %v2464 = vmul.f32 %v2334, 0.25
  %v2465 = vmul.f32 %v2336, 0.25
  %v2466 = vmul.f32 %v2340, 0.25
  %v2467 = vmul.f32 %v2342, 0.25
  %v2468 = vmul.f32 %v2346, 0.25
  %v2469 = vmul.f32 %v2348, 0.25
  %v2470 = vmul.f32 %v2352, 0.25
  %v2471 = vmul.f32 %v2354, 0.25
  %v2472 = vmul.f32 %v2358, 0.25
  %v2473 = vmul.f32 %v2360, 0.25
  %v2474 = vmul.f32 %v2364, 0.25
  %v2475 = vmul.f32 %v2366, 0.25
  %v2476 = vmul.f32 %v2370, 0.25
  %v2477 = vmul.f32 %v2372, 0.25
  %v2478 = vmul.f32 %v2376, 0.25
  %v2479 = vmul.f32 %v2378, 0.25
  %v2480 = vmul.f32 %v2382, 0.25
  %v2481 = vmul.f32 %v2384, 0.25
  %v2482 = vmul.f32 %v2388, 0.25
  %v2483 = vmul.f32 %v2390, 0.25
  %v2484 = vmul.f32 %v2394, 0.25
  %v2485 = vmul.f32 %v2396, 0.25
  %v2486 = vmul.f32 %v2400, 0.25
  %v2487 = vmul.f32 %v2402, 0.25
  %v2488 = vmul.f32 %v2406, 0.25
  %v2489 = vmul.f32 %v2408, 0.25
  %v2490 = vmul.f32 %v2412, 0.25
  %v2491 = vmul.f32 %v2414, 0.25
  %v2492 = vmul.f32 %v2418, 0.25
  %v2493 = vmul.f32 %v2420, 0.25
  %v2494 = vmul.f32 %v2424, 0.25
  %v2495 = vmul.f32 %v2426, 0.25
  %v2496 = vmul.f32 %v2430, 0.25
  %v2497 = vmul.f32 %v2432, 0.25
  %v2498 = vmax.f32 %v2434, %v2435
  %2499 = vmax.xlane.f32.xlu0 %v2498
  %v2500 = vpop.xlane.xlu0 %2499
  %v2501 = vmax.f32 %v2436, %v2437
  %2502 = vmax.xlane.f32.xlu0 %v2501
  %v2503 = vpop.xlane.xlu0 %2502
  %v2504 = vmax.f32 %v2438, %v2439
  %2505 = vmax.xlane.f32.xlu0 %v2504
  %v2506 = vpop.xlane.xlu0 %2505
  %v2507 = vmax.f32 %v2440, %v2441
  %2508 = vmax.xlane.f32.xlu0 %v2507
  %v2509 = vpop.xlane.xlu0 %2508
  %v2510 = vmax.f32 %v2442, %v2443
  %2511 = vmax.xlane.f32.xlu0 %v2510
  %v2512 = vpop.xlane.xlu0 %2511
  %v2513 = vmax.f32 %v2444, %v2445
  %2514 = vmax.xlane.f32.xlu0 %v2513
  %v2515 = vpop.xlane.xlu0 %2514
  %v2516 = vmax.f32 %v2446, %v2447
  %2517 = vmax.xlane.f32.xlu0 %v2516
  %v2518 = vpop.xlane.xlu0 %2517
  %v2519 = vmax.f32 %v2448, %v2449
  %2520 = vmax.xlane.f32.xlu0 %v2519
  %v2521 = vpop.xlane.xlu0 %2520
  %v2522 = vmax.f32 %v2450, %v2451
  %2523 = vmax.xlane.f32.xlu0 %v2522
  %v2524 = vpop.xlane.xlu0 %2523
  %v2525 = vmax.f32 %v2452, %v2453
  %2526 = vmax.xlane.f32.xlu0 %v2525
  %v2527 = vpop.xlane.xlu0 %2526
  %v2528 = vmax.f32 %v2454, %v2455
  %2529 = vmax.xlane.f32.xlu0 %v2528
  %v2530 = vpop.xlane.xlu0 %2529
  %v2531 = vmax.f32 %v2456, %v2457
  %2532 = vmax.xlane.f32.xlu0 %v2531
  %v2533 = vpop.xlane.xlu0 %2532
  %v2534 = vmax.f32 %v2458, %v2459
  %2535 = vmax.xlane.f32.xlu0 %v2534
  %v2536 = vpop.xlane.xlu0 %2535
  %v2537 = vmax.f32 %v2460, %v2461
  %2538 = vmax.xlane.f32.xlu0 %v2537
  %v2539 = vpop.xlane.xlu0 %2538
  %v2540 = vmax.f32 %v2462, %v2463
  %2541 = vmax.xlane.f32.xlu0 %v2540
  %v2542 = vpop.xlane.xlu0 %2541
  %v2543 = vmax.f32 %v2464, %v2465
  %2544 = vmax.xlane.f32.xlu0 %v2543
  %v2545 = vpop.xlane.xlu0 %2544
  %v2546 = vmax.f32 %v2466, %v2467
  %2547 = vmax.xlane.f32.xlu0 %v2546
  %v2548 = vpop.xlane.xlu0 %2547
  %v2549 = vmax.f32 %v2468, %v2469
  %2550 = vmax.xlane.f32.xlu0 %v2549
  %v2551 = vpop.xlane.xlu0 %2550
  %v2552 = vmax.f32 %v2470, %v2471
  %2553 = vmax.xlane.f32.xlu0 %v2552
  %v2554 = vpop.xlane.xlu0 %2553
  %v2555 = vmax.f32 %v2472, %v2473
  %2556 = vmax.xlane.f32.xlu0 %v2555
  %v2557 = vpop.xlane.xlu0 %2556
  %v2558 = vmax.f32 %v2474, %v2475
  %2559 = vmax.xlane.f32.xlu0 %v2558
  %v2560 = vpop.xlane.xlu0 %2559
  %v2561 = vmax.f32 %v2476, %v2477
  %2562 = vmax.xlane.f32.xlu0 %v2561
  %v2563 = vpop.xlane.xlu0 %2562
  %v2564 = vmax.f32 %v2478, %v2479
  %2565 = vmax.xlane.f32.xlu0 %v2564
  %v2566 = vpop.xlane.xlu0 %2565
  %v2567 = vmax.f32 %v2480, %v2481
  %2568 = vmax.xlane.f32.xlu0 %v2567
  %v2569 = vpop.xlane.xlu0 %2568
  %v2570 = vmax.f32 %v2482, %v2483
  %2571 = vmax.xlane.f32.xlu0 %v2570
  %v2572 = vpop.xlane.xlu0 %2571
  %v2573 = vmax.f32 %v2484, %v2485
  %2574 = vmax.xlane.f32.xlu0 %v2573
  %v2575 = vpop.xlane.xlu0 %2574
  %v2576 = vmax.f32 %v2486, %v2487
  %2577 = vmax.xlane.f32.xlu0 %v2576
  %v2578 = vpop.xlane.xlu0 %2577
  %v2579 = vmax.f32 %v2488, %v2489
  %2580 = vmax.xlane.f32.xlu0 %v2579
  %v2581 = vpop.xlane.xlu0 %2580
  %v2582 = vmax.f32 %v2490, %v2491
  %2583 = vmax.xlane.f32.xlu0 %v2582
  %v2584 = vpop.xlane.xlu0 %2583
  %v2585 = vmax.f32 %v2492, %v2493
  %2586 = vmax.xlane.f32.xlu0 %v2585
  %v2587 = vpop.xlane.xlu0 %2586
  %v2588 = vmax.f32 %v2494, %v2495
  %2589 = vmax.xlane.f32.xlu0 %v2588
  %v2590 = vpop.xlane.xlu0 %2589
  %v2591 = vmax.f32 %v2496, %v2497
  %2592 = vmax.xlane.f32.xlu0 %v2591
  %v2593 = vpop.xlane.xlu0 %2592
  %v2594 = vsub.f32 %v2434, %v2500
  %v2595 = vsub.f32 %v2435, %v2500
  %v2596 = vsub.f32 %v2436, %v2503
  %v2597 = vsub.f32 %v2437, %v2503
  %v2598 = vsub.f32 %v2438, %v2506
  %v2599 = vsub.f32 %v2439, %v2506
  %v2600 = vsub.f32 %v2440, %v2509
  %v2601 = vsub.f32 %v2441, %v2509
  %v2602 = vsub.f32 %v2442, %v2512
  %v2603 = vsub.f32 %v2443, %v2512
  %v2604 = vsub.f32 %v2444, %v2515
  %v2605 = vsub.f32 %v2445, %v2515
  %v2606 = vsub.f32 %v2446, %v2518
  %v2607 = vsub.f32 %v2447, %v2518
  %v2608 = vsub.f32 %v2448, %v2521
  %v2609 = vsub.f32 %v2449, %v2521
  %v2610 = vsub.f32 %v2450, %v2524
  %v2611 = vsub.f32 %v2451, %v2524
  %v2612 = vsub.f32 %v2452, %v2527
  %v2613 = vsub.f32 %v2453, %v2527
  %v2614 = vsub.f32 %v2454, %v2530
  %v2615 = vsub.f32 %v2455, %v2530
  %v2616 = vsub.f32 %v2456, %v2533
  %v2617 = vsub.f32 %v2457, %v2533
  %v2618 = vsub.f32 %v2458, %v2536
  %v2619 = vsub.f32 %v2459, %v2536
  %v2620 = vsub.f32 %v2460, %v2539
  %v2621 = vsub.f32 %v2461, %v2539
  %v2622 = vsub.f32 %v2462, %v2542
  %v2623 = vsub.f32 %v2463, %v2542
  %v2624 = vsub.f32 %v2464, %v2545
  %v2625 = vsub.f32 %v2465, %v2545
  %v2626 = vsub.f32 %v2466, %v2548
  %v2627 = vsub.f32 %v2467, %v2548
  %v2628 = vsub.f32 %v2468, %v2551
  %v2629 = vsub.f32 %v2469, %v2551
  %v2630 = vsub.f32 %v2470, %v2554
  %v2631 = vsub.f32 %v2471, %v2554
  %v2632 = vsub.f32 %v2472, %v2557
  %v2633 = vsub.f32 %v2473, %v2557
  %v2634 = vsub.f32 %v2474, %v2560
  %v2635 = vsub.f32 %v2475, %v2560
  %v2636 = vsub.f32 %v2476, %v2563
  %v2637 = vsub.f32 %v2477, %v2563
  %v2638 = vsub.f32 %v2478, %v2566
  %v2639 = vsub.f32 %v2479, %v2566
  %v2640 = vsub.f32 %v2480, %v2569
  %v2641 = vsub.f32 %v2481, %v2569
  %v2642 = vsub.f32 %v2482, %v2572
  %v2643 = vsub.f32 %v2483, %v2572
  %v2644 = vsub.f32 %v2484, %v2575
  %v2645 = vsub.f32 %v2485, %v2575
  %v2646 = vsub.f32 %v2486, %v2578
  %v2647 = vsub.f32 %v2487, %v2578
  %v2648 = vsub.f32 %v2488, %v2581
  %v2649 = vsub.f32 %v2489, %v2581
  %v2650 = vsub.f32 %v2490, %v2584
  %v2651 = vsub.f32 %v2491, %v2584
  %v2652 = vsub.f32 %v2492, %v2587
  %v2653 = vsub.f32 %v2493, %v2587
  %v2654 = vsub.f32 %v2494, %v2590
  %v2655 = vsub.f32 %v2495, %v2590
  %v2656 = vsub.f32 %v2496, %v2593
  %v2657 = vsub.f32 %v2497, %v2593
  %v2658 = vmul.f32 %v2594, 1.442695
  %v2659 = vpow.pop %v2658
  %v2660 = vmul.f32 %v2595, 1.442695
  %v2661 = vpow.pop %v2660
  %v2662 = vmul.f32 %v2596, 1.442695
  %v2663 = vpow.pop %v2662
  %v2664 = vmul.f32 %v2597, 1.442695
  %v2665 = vpow.pop %v2664
  %v2666 = vmul.f32 %v2598, 1.442695
  %v2667 = vpow.pop %v2666
  %v2668 = vmul.f32 %v2599, 1.442695
  %v2669 = vpow.pop %v2668
  %v2670 = vmul.f32 %v2600, 1.442695
  %v2671 = vpow.pop %v2670
  %v2672 = vmul.f32 %v2601, 1.442695
  %v2673 = vpow.pop %v2672
  %v2674 = vmul.f32 %v2602, 1.442695
  %v2675 = vpow.pop %v2674
  %v2676 = vmul.f32 %v2603, 1.442695
  %v2677 = vpow.pop %v2676
  %v2678 = vmul.f32 %v2604, 1.442695
  %v2679 = vpow.pop %v2678
  %v2680 = vmul.f32 %v2605, 1.442695
  %v2681 = vpow.pop %v2680
  %v2682 = vmul.f32 %v2606, 1.442695
  %v2683 = vpow.pop %v2682
  %v2684 = vmul.f32 %v2607, 1.442695
  %v2685 = vpow.pop %v2684
  %v2686 = vmul.f32 %v2608, 1.442695
  %v2687 = vpow.pop %v2686
  %v2688 = vmul.f32 %v2609, 1.442695
  %v2689 = vpow.pop %v2688
  %v2690 = vmul.f32 %v2610, 1.442695
  %v2691 = vpow.pop %v2690
  %v2692 = vmul.f32 %v2611, 1.442695
  %v2693 = vpow.pop %v2692
  %v2694 = vmul.f32 %v2612, 1.442695
  %v2695 = vpow.pop %v2694
  %v2696 = vmul.f32 %v2613, 1.442695
  %v2697 = vpow.pop %v2696
  %v2698 = vmul.f32 %v2614, 1.442695
  %v2699 = vpow.pop %v2698
  %v2700 = vmul.f32 %v2615, 1.442695
  %v2701 = vpow.pop %v2700
  %v2702 = vmul.f32 %v2616, 1.442695
  %v2703 = vpow.pop %v2702
  %v2704 = vmul.f32 %v2617, 1.442695
  %v2705 = vpow.pop %v2704
  %v2706 = vmul.f32 %v2618, 1.442695
  %v2707 = vpow.pop %v2706
  %v2708 = vmul.f32 %v2619, 1.442695
  %v2709 = vpow.pop %v2708
  %v2710 = vmul.f32 %v2620, 1.442695
  %v2711 = vpow.pop %v2710
  %v2712 = vmul.f32 %v2621, 1.442695
  %v2713 = vpow.pop %v2712
  %v2714 = vmul.f32 %v2622, 1.442695
  %v2715 = vpow.pop %v2714
  %v2716 = vmul.f32 %v2623, 1.442695
  %v2717 = vpow.pop %v2716
  %v2718 = vmul.f32 %v2624, 1.442695
  %v2719 = vpow.pop %v2718
  %v2720 = vmul.f32 %v2625, 1.442695
  %v2721 = vpow.pop %v2720
  %v2722 = vmul.f32 %v2626, 1.442695
  %v2723 = vpow.pop %v2722
  %v2724 = vmul.f32 %v2627, 1.442695
  %v2725 = vpow.pop %v2724
  %v2726 = vmul.f32 %v2628, 1.442695
  %v2727 = vpow.pop %v2726
  %v2728 = vmul.f32 %v2629, 1.442695
  %v2729 = vpow.pop %v2728
  %v2730 = vmul.f32 %v2630, 1.442695
  %v2731 = vpow.pop %v2730
  %v2732 = vmul.f32 %v2631, 1.442695
  %v2733 = vpow.pop %v2732
  %v2734 = vmul.f32 %v2632, 1.442695
  %v2735 = vpow.pop %v2734
  %v2736 = vmul.f32 %v2633, 1.442695
  %v2737 = vpow.pop %v2736
  %v2738 = vmul.f32 %v2634, 1.442695
  %v2739 = vpow.pop %v2738
  %v2740 = vmul.f32 %v2635, 1.442695
  %v2741 = vpow.pop %v2740
  %v2742 = vmul.f32 %v2636, 1.442695
  %v2743 = vpow.pop %v2742
  %v2744 = vmul.f32 %v2637, 1.442695
  %v2745 = vpow.pop %v2744
  %v2746 = vmul.f32 %v2638, 1.442695
  %v2747 = vpow.pop %v2746
  %v2748 = vmul.f32 %v2639, 1.442695
  %v2749 = vpow.pop %v2748
  %v2750 = vmul.f32 %v2640, 1.442695
  %v2751 = vpow.pop %v2750
  %v2752 = vmul.f32 %v2641, 1.442695
  %v2753 = vpow.pop %v2752
  %v2754 = vmul.f32 %v2642, 1.442695
  %v2755 = vpow.pop %v2754
  %v2756 = vmul.f32 %v2643, 1.442695
  %v2757 = vpow.pop %v2756
  %v2758 = vmul.f32 %v2644, 1.442695
  %v2759 = vpow.pop %v2758
  %v2760 = vmul.f32 %v2645, 1.442695
  %v2761 = vpow.pop %v2760
  %v2762 = vmul.f32 %v2646, 1.442695
  %v2763 = vpow.pop %v2762
  %v2764 = vmul.f32 %v2647, 1.442695
  %v2765 = vpow.pop %v2764
  %v2766 = vmul.f32 %v2648, 1.442695
  %v2767 = vpow.pop %v2766
  %v2768 = vmul.f32 %v2649, 1.442695
  %v2769 = vpow.pop %v2768
  %v2770 = vmul.f32 %v2650, 1.442695
  %v2771 = vpow.pop %v2770
  %v2772 = vmul.f32 %v2651, 1.442695
  %v2773 = vpow.pop %v2772
  %v2774 = vmul.f32 %v2652, 1.442695
  %v2775 = vpow.pop %v2774
  %v2776 = vmul.f32 %v2653, 1.442695
  %v2777 = vpow.pop %v2776
  %v2778 = vmul.f32 %v2654, 1.442695
  %v2779 = vpow.pop %v2778
  %v2780 = vmul.f32 %v2655, 1.442695
  %v2781 = vpow.pop %v2780
  %v2782 = vmul.f32 %v2656, 1.442695
  %v2783 = vpow.pop %v2782
  %v2784 = vmul.f32 %v2657, 1.442695
  %v2785 = vpow.pop %v2784
  %v2786 = vadd.f32 %v2659, %v2661
  %2787 = vadd.xlane.f32.xlu0 %v2786
  %v2788 = vpop.xlane.xlu0 %2787
  %v2789 = vadd.f32 %v2663, %v2665
  %2790 = vadd.xlane.f32.xlu0 %v2789
  %v2791 = vpop.xlane.xlu0 %2790
  %v2792 = vadd.f32 %v2667, %v2669
  %2793 = vadd.xlane.f32.xlu0 %v2792
  %v2794 = vpop.xlane.xlu0 %2793
  %v2795 = vadd.f32 %v2671, %v2673
  %2796 = vadd.xlane.f32.xlu0 %v2795
  %v2797 = vpop.xlane.xlu0 %2796
  %v2798 = vadd.f32 %v2675, %v2677
  %2799 = vadd.xlane.f32.xlu0 %v2798
  %v2800 = vpop.xlane.xlu0 %2799
  %v2801 = vadd.f32 %v2679, %v2681
  %2802 = vadd.xlane.f32.xlu0 %v2801
  %v2803 = vpop.xlane.xlu0 %2802
  %v2804 = vadd.f32 %v2683, %v2685
  %2805 = vadd.xlane.f32.xlu0 %v2804
  %v2806 = vpop.xlane.xlu0 %2805
  %v2807 = vadd.f32 %v2687, %v2689
  %2808 = vadd.xlane.f32.xlu0 %v2807
  %v2809 = vpop.xlane.xlu0 %2808
  %v2810 = vadd.f32 %v2691, %v2693
  %2811 = vadd.xlane.f32.xlu0 %v2810
  %v2812 = vpop.xlane.xlu0 %2811
  %v2813 = vadd.f32 %v2695, %v2697
  %2814 = vadd.xlane.f32.xlu0 %v2813
  %v2815 = vpop.xlane.xlu0 %2814
  %v2816 = vadd.f32 %v2699, %v2701
  %2817 = vadd.xlane.f32.xlu0 %v2816
  %v2818 = vpop.xlane.xlu0 %2817
  %v2819 = vadd.f32 %v2703, %v2705
  %2820 = vadd.xlane.f32.xlu0 %v2819
  %v2821 = vpop.xlane.xlu0 %2820
  %v2822 = vadd.f32 %v2707, %v2709
  %2823 = vadd.xlane.f32.xlu0 %v2822
  %v2824 = vpop.xlane.xlu0 %2823
  %v2825 = vadd.f32 %v2711, %v2713
  %2826 = vadd.xlane.f32.xlu0 %v2825
  %v2827 = vpop.xlane.xlu0 %2826
  %v2828 = vadd.f32 %v2715, %v2717
  %2829 = vadd.xlane.f32.xlu0 %v2828
  %v2830 = vpop.xlane.xlu0 %2829
  %v2831 = vadd.f32 %v2719, %v2721
  %2832 = vadd.xlane.f32.xlu0 %v2831
  %v2833 = vpop.xlane.xlu0 %2832
  %v2834 = vadd.f32 %v2723, %v2725
  %2835 = vadd.xlane.f32.xlu0 %v2834
  %v2836 = vpop.xlane.xlu0 %2835
  %v2837 = vadd.f32 %v2727, %v2729
  %2838 = vadd.xlane.f32.xlu0 %v2837
  %v2839 = vpop.xlane.xlu0 %2838
  %v2840 = vadd.f32 %v2731, %v2733
  %2841 = vadd.xlane.f32.xlu0 %v2840
  %v2842 = vpop.xlane.xlu0 %2841
  %v2843 = vadd.f32 %v2735, %v2737
  %2844 = vadd.xlane.f32.xlu0 %v2843
  %v2845 = vpop.xlane.xlu0 %2844
  %v2846 = vadd.f32 %v2739, %v2741
  %2847 = vadd.xlane.f32.xlu0 %v2846
  %v2848 = vpop.xlane.xlu0 %2847
  %v2849 = vadd.f32 %v2743, %v2745
  %2850 = vadd.xlane.f32.xlu0 %v2849
  %v2851 = vpop.xlane.xlu0 %2850
  %v2852 = vadd.f32 %v2747, %v2749
  %2853 = vadd.xlane.f32.xlu0 %v2852
  %v2854 = vpop.xlane.xlu0 %2853
  %v2855 = vadd.f32 %v2751, %v2753
  %2856 = vadd.xlane.f32.xlu0 %v2855
  %v2857 = vpop.xlane.xlu0 %2856
  %v2858 = vadd.f32 %v2755, %v2757
  %2859 = vadd.xlane.f32.xlu0 %v2858
  %v2860 = vpop.xlane.xlu0 %2859
  %v2861 = vadd.f32 %v2759, %v2761
  %2862 = vadd.xlane.f32.xlu0 %v2861
  %v2863 = vpop.xlane.xlu0 %2862
  %v2864 = vadd.f32 %v2763, %v2765
  %2865 = vadd.xlane.f32.xlu0 %v2864
  %v2866 = vpop.xlane.xlu0 %2865
  %v2867 = vadd.f32 %v2767, %v2769
  %2868 = vadd.xlane.f32.xlu0 %v2867
  %v2869 = vpop.xlane.xlu0 %2868
  %v2870 = vadd.f32 %v2771, %v2773
  %2871 = vadd.xlane.f32.xlu0 %v2870
  %v2872 = vpop.xlane.xlu0 %2871
  %v2873 = vadd.f32 %v2775, %v2777
  %2874 = vadd.xlane.f32.xlu0 %v2873
  %v2875 = vpop.xlane.xlu0 %2874
  %v2876 = vadd.f32 %v2779, %v2781
  %2877 = vadd.xlane.f32.xlu0 %v2876
  %v2878 = vpop.xlane.xlu0 %2877
  %v2879 = vadd.f32 %v2783, %v2785
  %2880 = vadd.xlane.f32.xlu0 %v2879
  %v2881 = vpop.xlane.xlu0 %2880
  %v2882 = vrcp.pop %v2788
  %v2883 = vrcp.pop %v2791
  %v2884 = vrcp.pop %v2794
  %v2885 = vrcp.pop %v2797
  %v2886 = vrcp.pop %v2800
  %v2887 = vrcp.pop %v2803
  %v2888 = vrcp.pop %v2806
  %v2889 = vrcp.pop %v2809
  %v2890 = vrcp.pop %v2812
  %v2891 = vrcp.pop %v2815
  %v2892 = vrcp.pop %v2818
  %v2893 = vrcp.pop %v2821
  %v2894 = vrcp.pop %v2824
  %v2895 = vrcp.pop %v2827
  %v2896 = vrcp.pop %v2830
  %v2897 = vrcp.pop %v2833
  %v2898 = vrcp.pop %v2836
  %v2899 = vrcp.pop %v2839
  %v2900 = vrcp.pop %v2842
  %v2901 = vrcp.pop %v2845
  %v2902 = vrcp.pop %v2848
  %v2903 = vrcp.pop %v2851
  %v2904 = vrcp.pop %v2854
  %v2905 = vrcp.pop %v2857
  %v2906 = vrcp.pop %v2860
  %v2907 = vrcp.pop %v2863
  %v2908 = vrcp.pop %v2866
  %v2909 = vrcp.pop %v2869
  %v2910 = vrcp.pop %v2872
  %v2911 = vrcp.pop %v2875
  %v2912 = vrcp.pop %v2878
  %v2913 = vrcp.pop %v2881
  %v2914 = vmul.f32 %v2659, %v2882
  %v2915 = vmul.f32 %v2661, %v2882
  %v2916 = vmul.f32 %v2663, %v2883
  %v2917 = vmul.f32 %v2665, %v2883
  %v2918 = vmul.f32 %v2667, %v2884
  %v2919 = vmul.f32 %v2669, %v2884
  %v2920 = vmul.f32 %v2671, %v2885
  %v2921 = vmul.f32 %v2673, %v2885
  %v2922 = vmul.f32 %v2675, %v2886
  %v2923 = vmul.f32 %v2677, %v2886
  %v2924 = vmul.f32 %v2679, %v2887
  %v2925 = vmul.f32 %v2681, %v2887
  %v2926 = vmul.f32 %v2683, %v2888
  %v2927 = vmul.f32 %v2685, %v2888
  %v2928 = vmul.f32 %v2687, %v2889
  %v2929 = vmul.f32 %v2689, %v2889
  %v2930 = vmul.f32 %v2691, %v2890
  %v2931 = vmul.f32 %v2693, %v2890
  %v2932 = vmul.f32 %v2695, %v2891
  %v2933 = vmul.f32 %v2697, %v2891
  %v2934 = vmul.f32 %v2699, %v2892
  %v2935 = vmul.f32 %v2701, %v2892
  %v2936 = vmul.f32 %v2703, %v2893
  %v2937 = vmul.f32 %v2705, %v2893
  %v2938 = vmul.f32 %v2707, %v2894
  %v2939 = vmul.f32 %v2709, %v2894
  %v2940 = vmul.f32 %v2711, %v2895
  %v2941 = vmul.f32 %v2713, %v2895
  %v2942 = vmul.f32 %v2715, %v2896
  %v2943 = vmul.f32 %v2717, %v2896
  %v2944 = vmul.f32 %v2719, %v2897
  %v2945 = vmul.f32 %v2721, %v2897
  %v2946 = vmul.f32 %v2723, %v2898
  %v2947 = vmul.f32 %v2725, %v2898
  %v2948 = vmul.f32 %v2727, %v2899
  %v2949 = vmul.f32 %v2729, %v2899
  %v2950 = vmul.f32 %v2731, %v2900
  %v2951 = vmul.f32 %v2733, %v2900
  %v2952 = vmul.f32 %v2735, %v2901
  %v2953 = vmul.f32 %v2737, %v2901
  %v2954 = vmul.f32 %v2739, %v2902
  %v2955 = vmul.f32 %v2741, %v2902
  %v2956 = vmul.f32 %v2743, %v2903
  %v2957 = vmul.f32 %v2745, %v2903
  %v2958 = vmul.f32 %v2747, %v2904
  %v2959 = vmul.f32 %v2749, %v2904
  %v2960 = vmul.f32 %v2751, %v2905
  %v2961 = vmul.f32 %v2753, %v2905
  %v2962 = vmul.f32 %v2755, %v2906
  %v2963 = vmul.f32 %v2757, %v2906
  %v2964 = vmul.f32 %v2759, %v2907
  %v2965 = vmul.f32 %v2761, %v2907
  %v2966 = vmul.f32 %v2763, %v2908
  %v2967 = vmul.f32 %v2765, %v2908
  %v2968 = vmul.f32 %v2767, %v2909
  %v2969 = vmul.f32 %v2769, %v2909
  %v2970 = vmul.f32 %v2771, %v2910
  %v2971 = vmul.f32 %v2773, %v2910
  %v2972 = vmul.f32 %v2775, %v2911
  %v2973 = vmul.f32 %v2777, %v2911
  %v2974 = vmul.f32 %v2779, %v2912
  %v2975 = vmul.f32 %v2781, %v2912
  %v2976 = vmul.f32 %v2783, %v2913
  %v2977 = vmul.f32 %v2785, %v2913
  %2978 = vmatprep.subr.mxu0 %v2915
  %2979 = vmatpush1.xpose.msra.mxu0 %v2914
  %2980 = vmatprep.subr.mxu0 %v2917
  %2981 = vmatpush1.xpose.msra.mxu0 %v2916
  %2982 = vmatprep.subr.mxu0 %v2919
  %2983 = vmatpush1.xpose.msra.mxu0 %v2918
  %2984 = vmatprep.subr.mxu0 %v2921
  %2985 = vmatpush1.xpose.msra.mxu0 %v2920
  %2986 = vmatprep.subr.mxu0 %v2923
  %2987 = vmatpush1.xpose.msra.mxu0 %v2922
  %2988 = vmatprep.subr.mxu0 %v2925
  %2989 = vmatpush1.xpose.msra.mxu0 %v2924
  %2990 = vmatprep.subr.mxu0 %v2927
  %2991 = vmatpush1.xpose.msra.mxu0 %v2926
  %2992 = vmatprep.subr.mxu0 %v2929
  %2993 = vmatpush1.xpose.msra.mxu0 %v2928
  %2994 = vmatprep.subr.mxu0 %v2931
  %2995 = vmatpush1.xpose.msra.mxu0 %v2930
  %2996 = vmatprep.subr.mxu0 %v2933
  %2997 = vmatpush1.xpose.msra.mxu0 %v2932
  %2998 = vmatprep.subr.mxu0 %v2935
  %2999 = vmatpush1.xpose.msra.mxu0 %v2934
  %3000 = vmatprep.subr.mxu0 %v2937
  %3001 = vmatpush1.xpose.msra.mxu0 %v2936
  %3002 = vmatprep.subr.mxu0 %v2939
  %3003 = vmatpush1.xpose.msra.mxu0 %v2938
  %3004 = vmatprep.subr.mxu0 %v2941
  %3005 = vmatpush1.xpose.msra.mxu0 %v2940
  %3006 = vmatprep.subr.mxu0 %v2943
  %3007 = vmatpush1.xpose.msra.mxu0 %v2942
  %3008 = vmatprep.subr.mxu0 %v2945
  %3009 = vmatpush1.xpose.msra.mxu0 %v2944
  %3010 = vmatprep.subr.mxu0 %v2947
  %3011 = vmatpush1.xpose.msra.mxu0 %v2946
  %3012 = vmatprep.subr.mxu0 %v2949
  %3013 = vmatpush1.xpose.msra.mxu0 %v2948
  %3014 = vmatprep.subr.mxu0 %v2951
  %3015 = vmatpush1.xpose.msra.mxu0 %v2950
  %3016 = vmatprep.subr.mxu0 %v2953
  %3017 = vmatpush1.xpose.msra.mxu0 %v2952
  %3018 = vmatprep.subr.mxu0 %v2955
  %3019 = vmatpush1.xpose.msra.mxu0 %v2954
  %3020 = vmatprep.subr.mxu0 %v2957
  %3021 = vmatpush1.xpose.msra.mxu0 %v2956
  %3022 = vmatprep.subr.mxu0 %v2959
  %3023 = vmatpush1.xpose.msra.mxu0 %v2958
  %3024 = vmatprep.subr.mxu0 %v2961
  %3025 = vmatpush1.xpose.msra.mxu0 %v2960
  %3026 = vmatprep.subr.mxu0 %v2963
  %3027 = vmatpush1.xpose.msra.mxu0 %v2962
  %3028 = vmatprep.subr.mxu0 %v2965
  %3029 = vmatpush1.xpose.msra.mxu0 %v2964
  %3030 = vmatprep.subr.mxu0 %v2967
  %3031 = vmatpush1.xpose.msra.mxu0 %v2966
  %3032 = vmatprep.subr.mxu0 %v2969
  %3033 = vmatpush1.xpose.msra.mxu0 %v2968
  %3034 = vmatprep.subr.mxu0 %v2971
  %3035 = vmatpush1.xpose.msra.mxu0 %v2970
  %3036 = vmatprep.subr.mxu0 %v2973
  %3037 = vmatpush1.xpose.msra.mxu0 %v2972
  %3038 = vmatprep.subr.mxu0 %v2975
  %3039 = vmatpush1.xpose.msra.mxu0 %v2974
  %3040 = vmatprep.subr.mxu0 %v2977
  %3041 = vmatpush1.xpose.msra.mxu0 %v2976
  %3042 = vmatprep.mubr.f32.mxu0 %v975
  %3043 = vmatmul.mubr.f32.gmra.mrb[0].mxu0 %v974
  %v3044 = vpop.f32.mrb[0].mxu0
  %v3045 = vadd.f32 0.0, %v3044
  %v3046 = vpop.f32.mrb[0].mxu0
  %v3047 = vadd.f32 0.0, %v3046
  %3048 = vmatprep.mubr.f32.mxu0 %v977
  %3049 = vmatmul.mubr.f32.gmra.mrb[0].mxu0 %v976
  %v3050 = vpop.f32.mrb[0].mxu0
  %v3051 = vadd.f32 0.0, %v3050
  %v3052 = vpop.f32.mrb[0].mxu0
  %v3053 = vadd.f32 0.0, %v3052
  %3054 = vdwg.mxu0
  %v3055 = vld [vmem:[%s6] sm:$0xff]
  %v3056 = vld [vmem:[%s6 + $0x8] sm:$0xff]
  %v3057 = vld [vmem:[%s6 + $0x10] sm:$0xff]
  %v3058 = vld [vmem:[%s6 + $0x18] sm:$0xff]
  %3060 = vset.pattern.permute.xlu0 0
  %3061 = vperm.xlu0 %3060, %v568
  %v3062 = vpop.permute.xlu0 %3061
  %3065 = vset.pattern.permute.xlu0 0
  %3066 = vperm.xlu0 %3065, %v569
  %v3067 = vpop.permute.xlu0 %3066
  %3070 = vset.pattern.permute.xlu0 0
  %3071 = vperm.xlu0 %3070, %v570
  %v3072 = vpop.permute.xlu0 %3071
  %3075 = vset.pattern.permute.xlu0 0
  %3076 = vperm.xlu0 %3075, %v571
  %v3077 = vpop.permute.xlu0 %3076
  %v3079 = vmul.f32 %v3055, %v3062
  %v3080 = vmul.f32 %v3056, %v3067
  %v3081 = vmul.f32 %v3057, %v3072
  %v3082 = vmul.f32 %v3058, %v3077
  %s3083 = scalar_lea.vmem %s6, 32
  %v3084 = vld [vmem:[%s3083] sm:$0xff]
  %v3085 = vld [vmem:[%s3083 + $0x8] sm:$0xff]
  %v3086 = vld [vmem:[%s3083 + $0x10] sm:$0xff]
  %v3087 = vld [vmem:[%s3083 + $0x18] sm:$0xff]
  %3089 = vset.pattern.permute.xlu0 0
  %3090 = vperm.xlu0 %3089, %v572
  %v3091 = vpop.permute.xlu0 %3090
  %3094 = vset.pattern.permute.xlu0 0
  %3095 = vperm.xlu0 %3094, %v573
  %v3096 = vpop.permute.xlu0 %3095
  %3099 = vset.pattern.permute.xlu0 0
  %3100 = vperm.xlu0 %3099, %v574
  %v3101 = vpop.permute.xlu0 %3100
  %3104 = vset.pattern.permute.xlu0 0
  %3105 = vperm.xlu0 %3104, %v575
  %v3106 = vpop.permute.xlu0 %3105
  %v3108 = vmul.f32 %v3084, %v3091
  %v3109 = vmul.f32 %v3085, %v3096
  %v3110 = vmul.f32 %v3086, %v3101
  %v3111 = vmul.f32 %v3087, %v3106
  %3116 = vrot.lane.b32.xlu0 %v3108, 32
  %v3117 = vpop.permute.xlu0 %3116
  %3118 = vrot.lane.b32.xlu0 %v3109, 32
  %v3119 = vpop.permute.xlu0 %3118
  %3120 = vrot.lane.b32.xlu0 %v3110, 32
  %v3121 = vpop.permute.xlu0 %3120
  %3122 = vrot.lane.b32.xlu0 %v3111, 32
  %v3123 = vpop.permute.xlu0 %3122
  %v3128 = vsel %vm44, %v3079, %v3117
  %v3129 = vsel %vm44, %v3080, %v3119
  %v3130 = vsel %vm44, %v3081, %v3121
  %v3131 = vsel %vm44, %v3082, %v3123
  %v3132 = vld [vmem:[%s8] sm:$0xff]
  %v3133 = vld [vmem:[%s8 + $0x8] sm:$0xff]
  %v3134 = vld [vmem:[%s8 + $0x10] sm:$0xff]
  %v3135 = vld [vmem:[%s8 + $0x18] sm:$0xff]
  %3137 = vset.pattern.permute.xlu0 0
  %3138 = vperm.xlu0 %3137, %v3132
  %v3139 = vpop.permute.xlu0 %3138
  %3142 = vset.pattern.permute.xlu0 0
  %3143 = vperm.xlu0 %3142, %v3133
  %v3144 = vpop.permute.xlu0 %3143
  %3147 = vset.pattern.permute.xlu0 0
  %3148 = vperm.xlu0 %3147, %v3134
  %v3149 = vpop.permute.xlu0 %3148
  %3152 = vset.pattern.permute.xlu0 0
  %3153 = vperm.xlu0 %3152, %v3135
  %v3154 = vpop.permute.xlu0 %3153
  %vm3156 = vcmask 523264
  %v3158 = vsel %vm3156, %v3128, 0
  %v3161 = vsel %vm3156, %v3129, 0
  %v3164 = vsel %vm3156, %v3130, 0
  %v3167 = vsel %vm3156, %v3131, 0
  %3169 = vmatprep.subr.mxu0 %v2009
  %3170 = vmatpush1.msra.mxu0 %v2007
  %3171 = vmatprep.subr.mxu0 %v2015
  %3172 = vmatpush1.msra.mxu0 %v2013
  %3173 = vmatprep.subr.mxu0 %v3047
  %3174 = vmatpush1.msra.mxu0 %v3045
  %3175 = vmatprep.subr.mxu0 %v3053
  %3176 = vmatpush1.msra.mxu0 %v3051
  %3177 = vmatprep.subr.mxu0 %v971
  %3178 = vmatpush1.msra.mxu0 %v970
  %3179 = vmatprep.subr.mxu0 %v973
  %3180 = vmatpush1.msra.mxu0 %v972
  %3181 = vmatprep.subr.mxu0 %v975
  %3182 = vmatpush1.msra.mxu0 %v974
  %3183 = vmatprep.subr.mxu0 %v977
  %3184 = vmatpush1.msra.mxu0 %v976
  %3185 = vmatprep.subr.mxu0 0.0
  %3186 = vmatpush1.msra.mxu0 0.0
  %3187 = vmatprep.subr.mxu0 0.0
  %3188 = vmatpush1.msra.mxu0 0.0
  %3189 = vmatprep.subr.mxu0 0.0
  %3190 = vmatpush1.msra.mxu0 0.0
  %3191 = vmatprep.subr.mxu0 0.0
  %3192 = vmatpush1.msra.mxu0 0.0
  %3193 = vmatprep.subr.mxu0 0.0
  %3194 = vmatpush1.msra.mxu0 0.0
  %3195 = vmatprep.subr.mxu0 0.0
  %3196 = vmatpush1.msra.mxu0 0.0
  %3197 = vmatprep.subr.mxu0 0.0
  %3198 = vmatpush1.msra.mxu0 0.0
  %3199 = vmatprep.subr.mxu0 0.0
  %3200 = vmatpush1.msra.mxu0 0.0
  %3201 = vmatprep.subr.mxu0 0.0
  %3202 = vmatpush1.msra.mxu0 0.0
  %3203 = vmatprep.subr.mxu0 0.0
  %3204 = vmatpush1.msra.mxu0 0.0
  %3205 = vmatprep.subr.mxu0 0.0
  %3206 = vmatpush1.msra.mxu0 0.0
  %3207 = vmatprep.subr.mxu0 0.0
  %3208 = vmatpush1.msra.mxu0 0.0
  %3209 = vmatprep.subr.mxu0 0.0
  %3210 = vmatpush1.msra.mxu0 0.0
  %3211 = vmatprep.subr.mxu0 0.0
  %3212 = vmatpush1.msra.mxu0 0.0
  %3213 = vmatprep.subr.mxu0 0.0
  %3214 = vmatpush1.msra.mxu0 0.0
  %3215 = vmatprep.subr.mxu0 0.0
  %3216 = vmatpush1.msra.mxu0 0.0
  %3217 = vmatprep.subr.mxu0 0.0
  %3218 = vmatpush1.msra.mxu0 0.0
  %3219 = vmatprep.subr.mxu0 0.0
  %3220 = vmatpush1.msra.mxu0 0.0
  %3221 = vmatprep.subr.mxu0 0.0
  %3222 = vmatpush1.msra.mxu0 0.0
  %3223 = vmatprep.subr.mxu0 0.0
  %3224 = vmatpush1.msra.mxu0 0.0
  %3225 = vmatprep.subr.mxu0 0.0
  %3226 = vmatpush1.msra.mxu0 0.0
  %3227 = vmatprep.subr.mxu0 0.0
  %3228 = vmatpush1.msra.mxu0 0.0
  %3229 = vmatprep.subr.mxu0 0.0
  %3230 = vmatpush1.msra.mxu0 0.0
  %3231 = vmatprep.subr.mxu0 0.0
  %3232 = vmatpush1.msra.mxu0 0.0
  %3233 = vmatprep.mubr.f32.mxu0 0.0
  %3234 = vmatmul.mubr.f32.gmra.mrb[0].mxu0 %v3158
  %v3235 = vpop.f32.mrb[0].mxu0
  %v3236 = vadd.f32 %v3139, %v3235
  %v3237 = vpop.f32.mrb[0].mxu0
  %v3238 = vadd.f32 %v3139, %v3237
  %3239 = vmatprep.mubr.f32.mxu0 0.0
  %3240 = vmatmul.mubr.f32.gmra.mrb[0].mxu0 %v3161
  %v3241 = vpop.f32.mrb[0].mxu0
  %v3242 = vadd.f32 %v3144, %v3241
  %v3243 = vpop.f32.mrb[0].mxu0
  %v3244 = vadd.f32 %v3144, %v3243
  %3245 = vmatprep.mubr.f32.mxu0 0.0
  %3246 = vmatmul.mubr.f32.gmra.mrb[0].mxu0 %v3164
  %v3247 = vpop.f32.mrb[0].mxu0
  %v3248 = vadd.f32 %v3149, %v3247
  %v3249 = vpop.f32.mrb[0].mxu0
  %v3250 = vadd.f32 %v3149, %v3249
  %3251 = vmatprep.mubr.f32.mxu0 0.0
  %3252 = vmatmul.mubr.f32.gmra.mrb[0].mxu0 %v3167
  %v3253 = vpop.f32.mrb[0].mxu0
  %v3254 = vadd.f32 %v3154, %v3253
  %v3255 = vpop.f32.mrb[0].mxu0
  %v3256 = vadd.f32 %v3154, %v3255
  %3257 = vdwg.mxu0
  %vm3258 = vcmp.ge.f32.partialorder %v3236, 0.0
  %vm3259 = vcmp.ge.f32.partialorder %v3238, 0.0
  %vm3260 = vcmp.ge.f32.partialorder %v3242, 0.0
  %vm3261 = vcmp.ge.f32.partialorder %v3244, 0.0
  %vm3262 = vcmp.ge.f32.partialorder %v3248, 0.0
  %vm3263 = vcmp.ge.f32.partialorder %v3250, 0.0
  %vm3264 = vcmp.ge.f32.partialorder %v3254, 0.0
  %vm3265 = vcmp.ge.f32.partialorder %v3256, 0.0
  %v3266 = vmul.f32 %v3236, 0.2
  %v3267 = vmul.f32 %v3238, 0.2
  %v3268 = vmul.f32 %v3242, 0.2
  %v3269 = vmul.f32 %v3244, 0.2
  %v3270 = vmul.f32 %v3248, 0.2
  %v3271 = vmul.f32 %v3250, 0.2
  %v3272 = vmul.f32 %v3254, 0.2
  %v3273 = vmul.f32 %v3256, 0.2
  %v3274 = vsel %vm3258, %v3236, %v3266
  %v3275 = vsel %vm3259, %v3238, %v3267
  %v3276 = vsel %vm3260, %v3242, %v3268
  %v3277 = vsel %vm3261, %v3244, %v3269
  %v3278 = vsel %vm3262, %v3248, %v3270
  %v3279 = vsel %vm3263, %v3250, %v3271
  %v3280 = vsel %vm3264, %v3254, %v3272
  %v3281 = vsel %vm3265, %v3256, %v3273
  %v3282 = vmax.f32 %v3274, -256.0
  %v3283 = vmax.f32 %v3275, -256.0
  %v3284 = vmax.f32 %v3276, -256.0
  %v3285 = vmax.f32 %v3277, -256.0
  %v3286 = vmax.f32 %v3278, -256.0
  %v3287 = vmax.f32 %v3279, -256.0
  %v3288 = vmax.f32 %v3280, -256.0
  %v3289 = vmax.f32 %v3281, -256.0
  %v3290 = vmin.f32 %v3282, 256.0
  %v3291 = vmin.f32 %v3283, 256.0
  %v3292 = vmin.f32 %v3284, 256.0
  %v3293 = vmin.f32 %v3285, 256.0
  %v3294 = vmin.f32 %v3286, 256.0
  %v3295 = vmin.f32 %v3287, 256.0
  %v3296 = vmin.f32 %v3288, 256.0
  %v3297 = vmin.f32 %v3289, 256.0
  %3298 = vst [vmem:[%s9] sm:$0xff] %v3290
  %3299 = vst [vmem:[%s9 + $0x8] sm:$0xff] %v3291
  %3300 = vst [vmem:[%s9 + $0x10] sm:$0xff] %v3292
  %3301 = vst [vmem:[%s9 + $0x18] sm:$0xff] %v3293
  %3302 = vst [vmem:[%s9 + $0x20] sm:$0xff] %v3294
  %3303 = vst [vmem:[%s9 + $0x28] sm:$0xff] %v3295
  %3304 = vst [vmem:[%s9 + $0x30] sm:$0xff] %v3296
  %3305 = vst [vmem:[%s9 + $0x38] sm:$0xff] %v3297
  %s3306 = scalar_lea.vmem %s0, 64
  %v3307 = vld [vmem:[%s3306] sm:$0xff]
  %v3308 = vld [vmem:[%s3306 + $0x8] sm:$0xff]
  %v3309 = vld [vmem:[%s3306 + $0x10] sm:$0xff]
  %v3310 = vld [vmem:[%s3306 + $0x18] sm:$0xff]
  %v3311 = vld [vmem:[%s3306 + $0x20] sm:$0xff]
  %v3312 = vld [vmem:[%s3306 + $0x28] sm:$0xff]
  %v3313 = vld [vmem:[%s3306 + $0x30] sm:$0xff]
  %v3314 = vld [vmem:[%s3306 + $0x38] sm:$0xff]
  %3315 = vset.pattern.permute.xlu0 1
  %3316 = vperm.xlu0 %3315, %v230
  %v3317 = vpop.permute.xlu0 %3316
  %3319 = vset.pattern.permute.xlu0 1
  %3320 = vperm.xlu0 %3319, %v231
  %v3321 = vpop.permute.xlu0 %3320
  %3323 = vset.pattern.permute.xlu0 1
  %3324 = vperm.xlu0 %3323, %v232
  %v3325 = vpop.permute.xlu0 %3324
  %3327 = vset.pattern.permute.xlu0 1
  %3328 = vperm.xlu0 %3327, %v233
  %v3329 = vpop.permute.xlu0 %3328
  %v3331 = vmul.f32 %v3307, %v3317
  %v3332 = vmul.f32 %v3308, %v3317
  %v3333 = vmul.f32 %v3309, %v3321
  %v3334 = vmul.f32 %v3310, %v3321
  %v3335 = vmul.f32 %v3311, %v3325
  %v3336 = vmul.f32 %v3312, %v3325
  %v3337 = vmul.f32 %v3313, %v3329
  %v3338 = vmul.f32 %v3314, %v3329
  %v3339 = vadd.f32 %v3331, %v3333
  %v3340 = vadd.f32 %v3339, %v3335
  %v3341 = vadd.f32 %v3340, %v3337
  %v3342 = vrot.slane %v3341, 4
  %v3343 = vadd.f32 %v3341, %v3342
  %v3344 = vrot.slane %v3343, 2
  %v3345 = vadd.f32 %v3343, %v3344
  %v3346 = vrot.slane %v3345, 1
  %v3347 = vadd.f32 %v3345, %v3346
  %v3348 = vadd.f32 %v3332, %v3334
  %v3349 = vadd.f32 %v3348, %v3336
  %v3350 = vadd.f32 %v3349, %v3338
  %v3351 = vrot.slane %v3350, 4
  %v3352 = vadd.f32 %v3350, %v3351
  %v3353 = vrot.slane %v3352, 2
  %v3354 = vadd.f32 %v3352, %v3353
  %v3355 = vrot.slane %v3354, 1
  %v3356 = vadd.f32 %v3354, %v3355
  %v3357 = vmul.f32 %v3347, %v630
  %v3358 = vmul.f32 %v3356, %v630
  %v3359 = vsub.f32 %v3331, %v3357
  %v3360 = vsub.f32 %v3332, %v3358
  %v3361 = vsub.f32 %v3333, %v3357
  %v3362 = vsub.f32 %v3334, %v3358
  %v3363 = vsub.f32 %v3335, %v3357
  %v3364 = vsub.f32 %v3336, %v3358
  %v3365 = vsub.f32 %v3337, %v3357
  %v3366 = vsub.f32 %v3338, %v3358
  %v3367 = vmul.f32 %v3359, %v3359
  %v3368 = vmul.f32 %v3360, %v3360
  %v3369 = vmul.f32 %v3361, %v3361
  %v3370 = vmul.f32 %v3362, %v3362
  %v3371 = vmul.f32 %v3363, %v3363
  %v3372 = vmul.f32 %v3364, %v3364
  %v3373 = vmul.f32 %v3365, %v3365
  %v3374 = vmul.f32 %v3366, %v3366
  %v3375 = vadd.f32 %v3367, %v3369
  %v3376 = vadd.f32 %v3375, %v3371
  %v3377 = vadd.f32 %v3376, %v3373
  %v3378 = vrot.slane %v3377, 4
  %v3379 = vadd.f32 %v3377, %v3378
  %v3380 = vrot.slane %v3379, 2
  %v3381 = vadd.f32 %v3379, %v3380
  %v3382 = vrot.slane %v3381, 1
  %v3383 = vadd.f32 %v3381, %v3382
  %v3384 = vadd.f32 %v3368, %v3370
  %v3385 = vadd.f32 %v3384, %v3372
  %v3386 = vadd.f32 %v3385, %v3374
  %v3387 = vrot.slane %v3386, 4
  %v3388 = vadd.f32 %v3386, %v3387
  %v3389 = vrot.slane %v3388, 2
  %v3390 = vadd.f32 %v3388, %v3389
  %v3391 = vrot.slane %v3390, 1
  %v3392 = vadd.f32 %v3390, %v3391
  %v3393 = vmul.f32 %v3383, %v630
  %v3394 = vmul.f32 %v3392, %v630
  %v3395 = vadd.f32 %v3393, 1e-05
  %v3396 = vadd.f32 %v3394, 1e-05
  %v3397 = vrsqrt.pop %v3395
  %v3398 = vrsqrt.pop %v3396
  %v3399 = vmul.f32 %v3359, %v3397
  %v3400 = vmul.f32 %v3360, %v3398
  %v3401 = vmul.f32 %v3361, %v3397
  %v3402 = vmul.f32 %v3362, %v3398
  %v3403 = vmul.f32 %v3363, %v3397
  %v3404 = vmul.f32 %v3364, %v3398
  %v3405 = vmul.f32 %v3365, %v3397
  %v3406 = vmul.f32 %v3366, %v3398
  %v3407 = vld [vmem:[%s4] sm:$0xff]
  %v3408 = vld [vmem:[%s4 + $0x8] sm:$0xff]
  %v3409 = vld [vmem:[%s4 + $0x10] sm:$0xff]
  %v3410 = vld [vmem:[%s4 + $0x18] sm:$0xff]
  %v3411 = vld [vmem:[%s4 + $0x20] sm:$0xff]
  %v3412 = vld [vmem:[%s4 + $0x28] sm:$0xff]
  %v3413 = vld [vmem:[%s4 + $0x30] sm:$0xff]
  %v3414 = vld [vmem:[%s4 + $0x38] sm:$0xff]
  %v3415 = vld [vmem:[%s4 + $0x40] sm:$0xff]
  %v3416 = vld [vmem:[%s4 + $0x48] sm:$0xff]
  %v3417 = vld [vmem:[%s4 + $0x50] sm:$0xff]
  %v3418 = vld [vmem:[%s4 + $0x58] sm:$0xff]
  %v3420 = vsel %vm44, %v3407, 0
  %v3423 = vsel %vm44, %v3408, 0
  %v3426 = vsel %vm44, %v3409, 0
  %v3429 = vsel %vm44, %v3410, 0
  %v3432 = vsel %vm44, %v3411, 0
  %v3435 = vsel %vm44, %v3412, 0
  %v3438 = vsel %vm44, %v3413, 0
  %v3441 = vsel %vm44, %v3414, 0
  %v3444 = vsel %vm44, %v3415, 0
  %v3447 = vsel %vm44, %v3416, 0
  %v3450 = vsel %vm44, %v3417, 0
  %v3453 = vsel %vm44, %v3418, 0
  %3455 = vmatprep.subr.mxu0 %v3400
  %3456 = vmatpush1.msra.mxu0 %v3399
  %3457 = vmatprep.subr.mxu0 %v3402
  %3458 = vmatpush1.msra.mxu0 %v3401
  %3459 = vmatprep.subr.mxu0 %v3404
  %3460 = vmatpush1.msra.mxu0 %v3403
  %3461 = vmatprep.subr.mxu0 %v3406
  %3462 = vmatpush1.msra.mxu0 %v3405
  %3463 = vmatprep.subr.mxu0 0.0
  %3464 = vmatpush1.msra.mxu0 0.0
  %3465 = vmatprep.subr.mxu0 0.0
  %3466 = vmatpush1.msra.mxu0 0.0
  %3467 = vmatprep.subr.mxu0 0.0
  %3468 = vmatpush1.msra.mxu0 0.0
  %3469 = vmatprep.subr.mxu0 0.0
  %3470 = vmatpush1.msra.mxu0 0.0
  %3471 = vmatprep.subr.mxu0 0.0
  %3472 = vmatpush1.msra.mxu0 0.0
  %3473 = vmatprep.subr.mxu0 0.0
  %3474 = vmatpush1.msra.mxu0 0.0
  %3475 = vmatprep.subr.mxu0 0.0
  %3476 = vmatpush1.msra.mxu0 0.0
  %3477 = vmatprep.subr.mxu0 0.0
  %3478 = vmatpush1.msra.mxu0 0.0
  %3479 = vmatprep.subr.mxu0 0.0
  %3480 = vmatpush1.msra.mxu0 0.0
  %3481 = vmatprep.subr.mxu0 0.0
  %3482 = vmatpush1.msra.mxu0 0.0
  %3483 = vmatprep.subr.mxu0 0.0
  %3484 = vmatpush1.msra.mxu0 0.0
  %3485 = vmatprep.subr.mxu0 0.0
  %3486 = vmatpush1.msra.mxu0 0.0
  %3487 = vmatprep.subr.mxu0 0.0
  %3488 = vmatpush1.msra.mxu0 0.0
  %3489 = vmatprep.subr.mxu0 0.0
  %3490 = vmatpush1.msra.mxu0 0.0
  %3491 = vmatprep.subr.mxu0 0.0
  %3492 = vmatpush1.msra.mxu0 0.0
  %3493 = vmatprep.subr.mxu0 0.0
  %3494 = vmatpush1.msra.mxu0 0.0
  %3495 = vmatprep.subr.mxu0 0.0
  %3496 = vmatpush1.msra.mxu0 0.0
  %3497 = vmatprep.subr.mxu0 0.0
  %3498 = vmatpush1.msra.mxu0 0.0
  %3499 = vmatprep.subr.mxu0 0.0
  %3500 = vmatpush1.msra.mxu0 0.0
  %3501 = vmatprep.subr.mxu0 0.0
  %3502 = vmatpush1.msra.mxu0 0.0
  %3503 = vmatprep.subr.mxu0 0.0
  %3504 = vmatpush1.msra.mxu0 0.0
  %3505 = vmatprep.subr.mxu0 0.0
  %3506 = vmatpush1.msra.mxu0 0.0
  %3507 = vmatprep.subr.mxu0 0.0
  %3508 = vmatpush1.msra.mxu0 0.0
  %3509 = vmatprep.subr.mxu0 0.0
  %3510 = vmatpush1.msra.mxu0 0.0
  %3511 = vmatprep.subr.mxu0 0.0
  %3512 = vmatpush1.msra.mxu0 0.0
  %3513 = vmatprep.subr.mxu0 0.0
  %3514 = vmatpush1.msra.mxu0 0.0
  %3515 = vmatprep.subr.mxu0 0.0
  %3516 = vmatpush1.msra.mxu0 0.0
  %3517 = vmatprep.subr.mxu0 0.0
  %3518 = vmatpush1.msra.mxu0 0.0
  %3519 = vmatprep.mubr.f32.mxu0 0.0
  %3520 = vmatmul.mubr.f32.gmra.mrb[0].mxu0 %v3420
  %v3521 = vpop.f32.mrb[0].mxu0
  %v3522 = vadd.f32 0.0, %v3521
  %v3523 = vpop.f32.mrb[0].mxu0
  %v3524 = vadd.f32 0.0, %v3523
  %3525 = vmatprep.mubr.f32.mxu0 0.0
  %3526 = vmatmul.mubr.f32.gmra.mrb[0].mxu0 %v3423
  %v3527 = vpop.f32.mrb[0].mxu0
  %v3528 = vadd.f32 0.0, %v3527
  %v3529 = vpop.f32.mrb[0].mxu0
  %v3530 = vadd.f32 0.0, %v3529
  %3531 = vmatprep.mubr.f32.mxu0 0.0
  %3532 = vmatmul.mubr.f32.gmra.mrb[0].mxu0 %v3426
  %v3533 = vpop.f32.mrb[0].mxu0
  %v3534 = vadd.f32 0.0, %v3533
  %v3535 = vpop.f32.mrb[0].mxu0
  %v3536 = vadd.f32 0.0, %v3535
  %3537 = vmatprep.mubr.f32.mxu0 0.0
  %3538 = vmatmul.mubr.f32.gmra.mrb[0].mxu0 %v3429
  %v3539 = vpop.f32.mrb[0].mxu0
  %v3540 = vadd.f32 0.0, %v3539
  %v3541 = vpop.f32.mrb[0].mxu0
  %v3542 = vadd.f32 0.0, %v3541
  %3543 = vmatprep.mubr.f32.mxu0 0.0
  %3544 = vmatmul.mubr.f32.gmra.mrb[0].mxu0 %v3432
  %v3545 = vpop.f32.mrb[0].mxu0
  %v3546 = vadd.f32 0.0, %v3545
  %v3547 = vpop.f32.mrb[0].mxu0
  %v3548 = vadd.f32 0.0, %v3547
  %3549 = vmatprep.mubr.f32.mxu0 0.0
  %3550 = vmatmul.mubr.f32.gmra.mrb[0].mxu0 %v3435
  %v3551 = vpop.f32.mrb[0].mxu0
  %v3552 = vadd.f32 0.0, %v3551
  %v3553 = vpop.f32.mrb[0].mxu0
  %v3554 = vadd.f32 0.0, %v3553
  %3555 = vmatprep.mubr.f32.mxu0 0.0
  %3556 = vmatmul.mubr.f32.gmra.mrb[0].mxu0 %v3438
  %v3557 = vpop.f32.mrb[0].mxu0
  %v3558 = vadd.f32 0.0, %v3557
  %v3559 = vpop.f32.mrb[0].mxu0
  %v3560 = vadd.f32 0.0, %v3559
  %3561 = vmatprep.mubr.f32.mxu0 0.0
  %3562 = vmatmul.mubr.f32.gmra.mrb[0].mxu0 %v3441
  %v3563 = vpop.f32.mrb[0].mxu0
  %v3564 = vadd.f32 0.0, %v3563
  %v3565 = vpop.f32.mrb[0].mxu0
  %v3566 = vadd.f32 0.0, %v3565
  %3567 = vmatprep.mubr.f32.mxu0 0.0
  %3568 = vmatmul.mubr.f32.gmra.mrb[0].mxu0 %v3444
  %v3569 = vpop.f32.mrb[0].mxu0
  %v3570 = vadd.f32 0.0, %v3569
  %v3571 = vpop.f32.mrb[0].mxu0
  %v3572 = vadd.f32 0.0, %v3571
  %3573 = vmatprep.mubr.f32.mxu0 0.0
  %3574 = vmatmul.mubr.f32.gmra.mrb[0].mxu0 %v3447
  %v3575 = vpop.f32.mrb[0].mxu0
  %v3576 = vadd.f32 0.0, %v3575
  %v3577 = vpop.f32.mrb[0].mxu0
  %v3578 = vadd.f32 0.0, %v3577
  %3579 = vmatprep.mubr.f32.mxu0 0.0
  %3580 = vmatmul.mubr.f32.gmra.mrb[0].mxu0 %v3450
  %v3581 = vpop.f32.mrb[0].mxu0
  %v3582 = vadd.f32 0.0, %v3581
  %v3583 = vpop.f32.mrb[0].mxu0
  %v3584 = vadd.f32 0.0, %v3583
  %3585 = vmatprep.mubr.f32.mxu0 0.0
  %3586 = vmatmul.mubr.f32.gmra.mrb[0].mxu0 %v3453
  %v3587 = vpop.f32.mrb[0].mxu0
  %v3588 = vadd.f32 0.0, %v3587
  %v3589 = vpop.f32.mrb[0].mxu0
  %v3590 = vadd.f32 0.0, %v3589
  %3591 = vdwg.mxu0
  %3592 = vset.pattern.permute.xlu0 1
  %3593 = vperm.xlu0 %3592, %v415
  %v3594 = vpop.permute.xlu0 %3593
  %3596 = vset.pattern.permute.xlu0 1
  %3597 = vperm.xlu0 %3596, %v416
  %v3598 = vpop.permute.xlu0 %3597
  %3600 = vset.pattern.permute.xlu0 1
  %3601 = vperm.xlu0 %3600, %v417
  %v3602 = vpop.permute.xlu0 %3601
  %3604 = vset.pattern.permute.xlu0 1
  %3605 = vperm.xlu0 %3604, %v418
  %v3606 = vpop.permute.xlu0 %3605
  %3608 = vset.pattern.permute.xlu0 1
  %3609 = vperm.xlu0 %3608, %v419
  %v3610 = vpop.permute.xlu0 %3609
  %3612 = vset.pattern.permute.xlu0 1
  %3613 = vperm.xlu0 %3612, %v420
  %v3614 = vpop.permute.xlu0 %3613
  %3616 = vset.pattern.permute.xlu0 1
  %3617 = vperm.xlu0 %3616, %v421
  %v3618 = vpop.permute.xlu0 %3617
  %3620 = vset.pattern.permute.xlu0 1
  %3621 = vperm.xlu0 %3620, %v422
  %v3622 = vpop.permute.xlu0 %3621
  %3624 = vset.pattern.permute.xlu0 1
  %3625 = vperm.xlu0 %3624, %v423
  %v3626 = vpop.permute.xlu0 %3625
  %3628 = vset.pattern.permute.xlu0 1
  %3629 = vperm.xlu0 %3628, %v424
  %v3630 = vpop.permute.xlu0 %3629
  %3632 = vset.pattern.permute.xlu0 1
  %3633 = vperm.xlu0 %3632, %v425
  %v3634 = vpop.permute.xlu0 %3633
  %3636 = vset.pattern.permute.xlu0 1
  %3637 = vperm.xlu0 %3636, %v426
  %v3638 = vpop.permute.xlu0 %3637
  %v3640 = vmul.f32 %v3522, %v3594
  %v3641 = vmul.f32 %v3524, %v3594
  %v3642 = vmul.f32 %v3528, %v3598
  %v3643 = vmul.f32 %v3530, %v3598
  %v3644 = vmul.f32 %v3534, %v3602
  %v3645 = vmul.f32 %v3536, %v3602
  %v3646 = vmul.f32 %v3540, %v3606
  %v3647 = vmul.f32 %v3542, %v3606
  %v3648 = vmul.f32 %v3546, %v3610
  %v3649 = vmul.f32 %v3548, %v3610
  %v3650 = vmul.f32 %v3552, %v3614
  %v3651 = vmul.f32 %v3554, %v3614
  %v3652 = vmul.f32 %v3558, %v3618
  %v3653 = vmul.f32 %v3560, %v3618
  %v3654 = vmul.f32 %v3564, %v3622
  %v3655 = vmul.f32 %v3566, %v3622
  %v3656 = vmul.f32 %v3570, %v3626
  %v3657 = vmul.f32 %v3572, %v3626
  %v3658 = vmul.f32 %v3576, %v3630
  %v3659 = vmul.f32 %v3578, %v3630
  %v3660 = vmul.f32 %v3582, %v3634
  %v3661 = vmul.f32 %v3584, %v3634
  %v3662 = vmul.f32 %v3588, %v3638
  %v3663 = vmul.f32 %v3590, %v3638
  %3664 = vset.pattern.permute.xlu0 1
  %3665 = vperm.xlu0 %3664, %v234
  %v3666 = vpop.permute.xlu0 %3665
  %3668 = vset.pattern.permute.xlu0 1
  %3669 = vperm.xlu0 %3668, %v235
  %v3670 = vpop.permute.xlu0 %3669
  %3672 = vset.pattern.permute.xlu0 1
  %3673 = vperm.xlu0 %3672, %v236
  %v3674 = vpop.permute.xlu0 %3673
  %3676 = vset.pattern.permute.xlu0 1
  %3677 = vperm.xlu0 %3676, %v237
  %v3678 = vpop.permute.xlu0 %3677
  %v3680 = vmul.f32 %v3656, %v3666
  %v3681 = vmul.f32 %v3657, %v3666
  %v3682 = vmul.f32 %v3658, %v3670
  %v3683 = vmul.f32 %v3659, %v3670
  %v3684 = vmul.f32 %v3660, %v3674
  %v3685 = vmul.f32 %v3661, %v3674
  %v3686 = vmul.f32 %v3662, %v3678
  %v3687 = vmul.f32 %v3663, %v3678
  %3688 = vxpose.xlu0.b32.start [1/16] %v3640, 128
  %3689 = vxpose.xlu0.b32.cont [2/16] %v3642, 128
  %3690 = vxpose.xlu0.b32.cont [3/16] 0.0, 128
  %3691 = vxpose.xlu0.b32.cont [4/16] 0.0, 128
  %3692 = vxpose.xlu0.b32.cont [5/16] 0.0, 128
  %3693 = vxpose.xlu0.b32.cont [6/16] 0.0, 128
  %3694 = vxpose.xlu0.b32.cont [7/16] 0.0, 128
  %3695 = vxpose.xlu0.b32.cont [8/16] 0.0, 128
  %3696 = vxpose.xlu0.b32.cont [9/16] 0.0, 128
  %3697 = vxpose.xlu0.b32.cont [10/16] 0.0, 128
  %3698 = vxpose.xlu0.b32.cont [11/16] 0.0, 128
  %3699 = vxpose.xlu0.b32.cont [12/16] 0.0, 128
  %3700 = vxpose.xlu0.b32.cont [13/16] 0.0, 128
  %3701 = vxpose.xlu0.b32.cont [14/16] 0.0, 128
  %3702 = vxpose.xlu0.b32.cont [15/16] 0.0, 128
  %3703 = vxpose.xlu0.b32.end [16/16] 0.0, 128
  %v3704 = vpop.trf.xlu0
  %v3705 = vpop.trf.xlu0
  %v3706 = vpop.trf.xlu0
  %v3707 = vpop.trf.xlu0
  %v3708 = vpop.trf.xlu0
  %v3709 = vpop.trf.xlu0
  %v3710 = vpop.trf.xlu0
  %v3711 = vpop.trf.xlu0
  %v3712 = vpop.trf.xlu0
  %v3713 = vpop.trf.xlu0
  %v3714 = vpop.trf.xlu0
  %v3715 = vpop.trf.xlu0
  %v3716 = vpop.trf.xlu0
  %v3717 = vpop.trf.xlu0
  %v3718 = vpop.trf.xlu0
  %v3719 = vpop.trf.xlu0
  %3720 = vxpose.xlu0.b32.start [1/16] %v3641, 128
  %3721 = vxpose.xlu0.b32.cont [2/16] %v3643, 128
  %3722 = vxpose.xlu0.b32.cont [3/16] 0.0, 128
  %3723 = vxpose.xlu0.b32.cont [4/16] 0.0, 128
  %3724 = vxpose.xlu0.b32.cont [5/16] 0.0, 128
  %3725 = vxpose.xlu0.b32.cont [6/16] 0.0, 128
  %3726 = vxpose.xlu0.b32.cont [7/16] 0.0, 128
  %3727 = vxpose.xlu0.b32.cont [8/16] 0.0, 128
  %3728 = vxpose.xlu0.b32.cont [9/16] 0.0, 128
  %3729 = vxpose.xlu0.b32.cont [10/16] 0.0, 128
  %3730 = vxpose.xlu0.b32.cont [11/16] 0.0, 128
  %3731 = vxpose.xlu0.b32.cont [12/16] 0.0, 128
  %3732 = vxpose.xlu0.b32.cont [13/16] 0.0, 128
  %3733 = vxpose.xlu0.b32.cont [14/16] 0.0, 128
  %3734 = vxpose.xlu0.b32.cont [15/16] 0.0, 128
  %3735 = vxpose.xlu0.b32.end [16/16] 0.0, 128
  %v3736 = vpop.trf.xlu0
  %v3737 = vpop.trf.xlu0
  %v3738 = vpop.trf.xlu0
  %v3739 = vpop.trf.xlu0
  %v3740 = vpop.trf.xlu0
  %v3741 = vpop.trf.xlu0
  %v3742 = vpop.trf.xlu0
  %v3743 = vpop.trf.xlu0
  %v3744 = vpop.trf.xlu0
  %v3745 = vpop.trf.xlu0
  %v3746 = vpop.trf.xlu0
  %v3747 = vpop.trf.xlu0
  %v3748 = vpop.trf.xlu0
  %v3749 = vpop.trf.xlu0
  %v3750 = vpop.trf.xlu0
  %v3751 = vpop.trf.xlu0
  %v3753 = vsel %vm1042, %v3704, 0
  %v3756 = vsel %vm1042, %v3705, 0
  %v3759 = vsel %vm1042, %v3706, 0
  %v3762 = vsel %vm1042, %v3707, 0
  %v3765 = vsel %vm1042, %v3708, 0
  %v3768 = vsel %vm1042, %v3709, 0
  %v3771 = vsel %vm1042, %v3710, 0
  %v3774 = vsel %vm1042, %v3711, 0
  %v3777 = vsel %vm1042, %v3712, 0
  %v3780 = vsel %vm1042, %v3713, 0
  %v3783 = vsel %vm1042, %v3714, 0
  %v3786 = vsel %vm1042, %v3715, 0
  %v3789 = vsel %vm1042, %v3716, 0
  %v3792 = vsel %vm1042, %v3717, 0
  %v3795 = vsel %vm1042, %v3718, 0
  %v3798 = vsel %vm1042, %v3719, 0
  %v3801 = vsel %vm1042, %v3736, 0
  %v3804 = vsel %vm1042, %v3737, 0
  %v3807 = vsel %vm1042, %v3738, 0
  %v3810 = vsel %vm1042, %v3739, 0
  %v3813 = vsel %vm1042, %v3740, 0
  %v3816 = vsel %vm1042, %v3741, 0
  %v3819 = vsel %vm1042, %v3742, 0
  %v3822 = vsel %vm1042, %v3743, 0
  %v3825 = vsel %vm1042, %v3744, 0
  %v3828 = vsel %vm1042, %v3745, 0
  %v3831 = vsel %vm1042, %v3746, 0
  %v3834 = vsel %vm1042, %v3747, 0
  %v3837 = vsel %vm1042, %v3748, 0
  %v3840 = vsel %vm1042, %v3749, 0
  %v3843 = vsel %vm1042, %v3750, 0
  %v3846 = vsel %vm1042, %v3751, 0
  %3848 = vmatprep.subr.mxu0 %v3649
  %3849 = vmatpush1.msra.mxu0 %v3648
  %3850 = vmatprep.subr.mxu0 %v3651
  %3851 = vmatpush1.msra.mxu0 %v3650
  %3852 = vmatprep.subr.mxu0 0.0
  %3853 = vmatpush1.msra.mxu0 0.0
  %3854 = vmatprep.subr.mxu0 0.0
  %3855 = vmatpush1.msra.mxu0 0.0
  %3856 = vmatprep.subr.mxu0 0.0
  %3857 = vmatpush1.msra.mxu0 0.0
  %3858 = vmatprep.subr.mxu0 0.0
  %3859 = vmatpush1.msra.mxu0 0.0
  %3860 = vmatprep.subr.mxu0 0.0
  %3861 = vmatpush1.msra.mxu0 0.0
  %3862 = vmatprep.subr.mxu0 0.0
  %3863 = vmatpush1.msra.mxu0 0.0
  %3864 = vmatprep.subr.mxu0 0.0
  %3865 = vmatpush1.msra.mxu0 0.0
  %3866 = vmatprep.subr.mxu0 0.0
  %3867 = vmatpush1.msra.mxu0 0.0
  %3868 = vmatprep.subr.mxu0 0.0
  %3869 = vmatpush1.msra.mxu0 0.0
  %3870 = vmatprep.subr.mxu0 0.0
  %3871 = vmatpush1.msra.mxu0 0.0
  %3872 = vmatprep.subr.mxu0 0.0
  %3873 = vmatpush1.msra.mxu0 0.0
  %3874 = vmatprep.subr.mxu0 0.0
  %3875 = vmatpush1.msra.mxu0 0.0
  %3876 = vmatprep.subr.mxu0 0.0
  %3877 = vmatpush1.msra.mxu0 0.0
  %3878 = vmatprep.subr.mxu0 0.0
  %3879 = vmatpush1.msra.mxu0 0.0
  %3880 = vmatprep.subr.mxu0 0.0
  %3881 = vmatpush1.msra.mxu0 0.0
  %3882 = vmatprep.subr.mxu0 0.0
  %3883 = vmatpush1.msra.mxu0 0.0
  %3884 = vmatprep.subr.mxu0 0.0
  %3885 = vmatpush1.msra.mxu0 0.0
  %3886 = vmatprep.subr.mxu0 0.0
  %3887 = vmatpush1.msra.mxu0 0.0
  %3888 = vmatprep.subr.mxu0 0.0
  %3889 = vmatpush1.msra.mxu0 0.0
  %3890 = vmatprep.subr.mxu0 0.0
  %3891 = vmatpush1.msra.mxu0 0.0
  %3892 = vmatprep.subr.mxu0 0.0
  %3893 = vmatpush1.msra.mxu0 0.0
  %3894 = vmatprep.subr.mxu0 0.0
  %3895 = vmatpush1.msra.mxu0 0.0
  %3896 = vmatprep.subr.mxu0 0.0
  %3897 = vmatpush1.msra.mxu0 0.0
  %3898 = vmatprep.subr.mxu0 0.0
  %3899 = vmatpush1.msra.mxu0 0.0
  %3900 = vmatprep.subr.mxu0 0.0
  %3901 = vmatpush1.msra.mxu0 0.0
  %3902 = vmatprep.subr.mxu0 0.0
  %3903 = vmatpush1.msra.mxu0 0.0
  %3904 = vmatprep.subr.mxu0 0.0
  %3905 = vmatpush1.msra.mxu0 0.0
  %3906 = vmatprep.subr.mxu0 0.0
  %3907 = vmatpush1.msra.mxu0 0.0
  %3908 = vmatprep.subr.mxu0 0.0
  %3909 = vmatpush1.msra.mxu0 0.0
  %3910 = vmatprep.subr.mxu0 0.0
  %3911 = vmatpush1.msra.mxu0 0.0
  %3912 = vmatprep.mubr.f32.mxu0 0.0
  %3913 = vmatmul.mubr.f32.gmra.mrb[0].mxu0 %v3753
  %v3914 = vpop.f32.mrb[0].mxu0
  %v3915 = vadd.f32 0.0, %v3914
  %v3916 = vpop.f32.mrb[0].mxu0
  %v3917 = vadd.f32 0.0, %v3916
  %3918 = vmatprep.mubr.f32.mxu0 0.0
  %3919 = vmatmul.mubr.f32.gmra.mrb[0].mxu0 %v3756
  %v3920 = vpop.f32.mrb[0].mxu0
  %v3921 = vadd.f32 0.0, %v3920
  %v3922 = vpop.f32.mrb[0].mxu0
  %v3923 = vadd.f32 0.0, %v3922
  %3924 = vmatprep.mubr.f32.mxu0 0.0
  %3925 = vmatmul.mubr.f32.gmra.mrb[0].mxu0 %v3759
  %v3926 = vpop.f32.mrb[0].mxu0
  %v3927 = vadd.f32 0.0, %v3926
  %v3928 = vpop.f32.mrb[0].mxu0
  %v3929 = vadd.f32 0.0, %v3928
  %3930 = vmatprep.mubr.f32.mxu0 0.0
  %3931 = vmatmul.mubr.f32.gmra.mrb[0].mxu0 %v3762
  %v3932 = vpop.f32.mrb[0].mxu0
  %v3933 = vadd.f32 0.0, %v3932
  %v3934 = vpop.f32.mrb[0].mxu0
  %v3935 = vadd.f32 0.0, %v3934
  %3936 = vmatprep.mubr.f32.mxu0 0.0
  %3937 = vmatmul.mubr.f32.gmra.mrb[0].mxu0 %v3765
  %v3938 = vpop.f32.mrb[0].mxu0
  %v3939 = vadd.f32 0.0, %v3938
  %v3940 = vpop.f32.mrb[0].mxu0
  %v3941 = vadd.f32 0.0, %v3940
  %3942 = vmatprep.mubr.f32.mxu0 0.0
  %3943 = vmatmul.mubr.f32.gmra.mrb[0].mxu0 %v3768
  %v3944 = vpop.f32.mrb[0].mxu0
  %v3945 = vadd.f32 0.0, %v3944
  %v3946 = vpop.f32.mrb[0].mxu0
  %v3947 = vadd.f32 0.0, %v3946
  %3948 = vmatprep.mubr.f32.mxu0 0.0
  %3949 = vmatmul.mubr.f32.gmra.mrb[0].mxu0 %v3771
  %v3950 = vpop.f32.mrb[0].mxu0
  %v3951 = vadd.f32 0.0, %v3950
  %v3952 = vpop.f32.mrb[0].mxu0
  %v3953 = vadd.f32 0.0, %v3952
  %3954 = vmatprep.mubr.f32.mxu0 0.0
  %3955 = vmatmul.mubr.f32.gmra.mrb[0].mxu0 %v3774
  %v3956 = vpop.f32.mrb[0].mxu0
  %v3957 = vadd.f32 0.0, %v3956
  %v3958 = vpop.f32.mrb[0].mxu0
  %v3959 = vadd.f32 0.0, %v3958
  %3960 = vmatprep.mubr.f32.mxu0 0.0
  %3961 = vmatmul.mubr.f32.gmra.mrb[0].mxu0 %v3777
  %v3962 = vpop.f32.mrb[0].mxu0
  %v3963 = vadd.f32 0.0, %v3962
  %v3964 = vpop.f32.mrb[0].mxu0
  %v3965 = vadd.f32 0.0, %v3964
  %3966 = vmatprep.mubr.f32.mxu0 0.0
  %3967 = vmatmul.mubr.f32.gmra.mrb[0].mxu0 %v3780
  %v3968 = vpop.f32.mrb[0].mxu0
  %v3969 = vadd.f32 0.0, %v3968
  %v3970 = vpop.f32.mrb[0].mxu0
  %v3971 = vadd.f32 0.0, %v3970
  %3972 = vmatprep.mubr.f32.mxu0 0.0
  %3973 = vmatmul.mubr.f32.gmra.mrb[0].mxu0 %v3783
  %v3974 = vpop.f32.mrb[0].mxu0
  %v3975 = vadd.f32 0.0, %v3974
  %v3976 = vpop.f32.mrb[0].mxu0
  %v3977 = vadd.f32 0.0, %v3976
  %3978 = vmatprep.mubr.f32.mxu0 0.0
  %3979 = vmatmul.mubr.f32.gmra.mrb[0].mxu0 %v3786
  %v3980 = vpop.f32.mrb[0].mxu0
  %v3981 = vadd.f32 0.0, %v3980
  %v3982 = vpop.f32.mrb[0].mxu0
  %v3983 = vadd.f32 0.0, %v3982
  %3984 = vmatprep.mubr.f32.mxu0 0.0
  %3985 = vmatmul.mubr.f32.gmra.mrb[0].mxu0 %v3789
  %v3986 = vpop.f32.mrb[0].mxu0
  %v3987 = vadd.f32 0.0, %v3986
  %v3988 = vpop.f32.mrb[0].mxu0
  %v3989 = vadd.f32 0.0, %v3988
  %3990 = vmatprep.mubr.f32.mxu0 0.0
  %3991 = vmatmul.mubr.f32.gmra.mrb[0].mxu0 %v3792
  %v3992 = vpop.f32.mrb[0].mxu0
  %v3993 = vadd.f32 0.0, %v3992
  %v3994 = vpop.f32.mrb[0].mxu0
  %v3995 = vadd.f32 0.0, %v3994
  %3996 = vmatprep.mubr.f32.mxu0 0.0
  %3997 = vmatmul.mubr.f32.gmra.mrb[0].mxu0 %v3795
  %v3998 = vpop.f32.mrb[0].mxu0
  %v3999 = vadd.f32 0.0, %v3998
  %v4000 = vpop.f32.mrb[0].mxu0
  %v4001 = vadd.f32 0.0, %v4000
  %4002 = vmatprep.mubr.f32.mxu0 0.0
  %4003 = vmatmul.mubr.f32.gmra.mrb[0].mxu0 %v3798
  %v4004 = vpop.f32.mrb[0].mxu0
  %v4005 = vadd.f32 0.0, %v4004
  %v4006 = vpop.f32.mrb[0].mxu0
  %v4007 = vadd.f32 0.0, %v4006
  %4008 = vmatprep.mubr.f32.mxu0 0.0
  %4009 = vmatmul.mubr.f32.gmra.mrb[0].mxu0 %v3801
  %v4010 = vpop.f32.mrb[0].mxu0
  %v4011 = vadd.f32 0.0, %v4010
  %v4012 = vpop.f32.mrb[0].mxu0
  %v4013 = vadd.f32 0.0, %v4012
  %4014 = vmatprep.mubr.f32.mxu0 0.0
  %4015 = vmatmul.mubr.f32.gmra.mrb[0].mxu0 %v3804
  %v4016 = vpop.f32.mrb[0].mxu0
  %v4017 = vadd.f32 0.0, %v4016
  %v4018 = vpop.f32.mrb[0].mxu0
  %v4019 = vadd.f32 0.0, %v4018
  %4020 = vmatprep.mubr.f32.mxu0 0.0
  %4021 = vmatmul.mubr.f32.gmra.mrb[0].mxu0 %v3807
  %v4022 = vpop.f32.mrb[0].mxu0
  %v4023 = vadd.f32 0.0, %v4022
  %v4024 = vpop.f32.mrb[0].mxu0
  %v4025 = vadd.f32 0.0, %v4024
  %4026 = vmatprep.mubr.f32.mxu0 0.0
  %4027 = vmatmul.mubr.f32.gmra.mrb[0].mxu0 %v3810
  %v4028 = vpop.f32.mrb[0].mxu0
  %v4029 = vadd.f32 0.0, %v4028
  %v4030 = vpop.f32.mrb[0].mxu0
  %v4031 = vadd.f32 0.0, %v4030
  %4032 = vmatprep.mubr.f32.mxu0 0.0
  %4033 = vmatmul.mubr.f32.gmra.mrb[0].mxu0 %v3813
  %v4034 = vpop.f32.mrb[0].mxu0
  %v4035 = vadd.f32 0.0, %v4034
  %v4036 = vpop.f32.mrb[0].mxu0
  %v4037 = vadd.f32 0.0, %v4036
  %4038 = vmatprep.mubr.f32.mxu0 0.0
  %4039 = vmatmul.mubr.f32.gmra.mrb[0].mxu0 %v3816
  %v4040 = vpop.f32.mrb[0].mxu0
  %v4041 = vadd.f32 0.0, %v4040
  %v4042 = vpop.f32.mrb[0].mxu0
  %v4043 = vadd.f32 0.0, %v4042
  %4044 = vmatprep.mubr.f32.mxu0 0.0
  %4045 = vmatmul.mubr.f32.gmra.mrb[0].mxu0 %v3819
  %v4046 = vpop.f32.mrb[0].mxu0
  %v4047 = vadd.f32 0.0, %v4046
  %v4048 = vpop.f32.mrb[0].mxu0
  %v4049 = vadd.f32 0.0, %v4048
  %4050 = vmatprep.mubr.f32.mxu0 0.0
  %4051 = vmatmul.mubr.f32.gmra.mrb[0].mxu0 %v3822
  %v4052 = vpop.f32.mrb[0].mxu0
  %v4053 = vadd.f32 0.0, %v4052
  %v4054 = vpop.f32.mrb[0].mxu0
  %v4055 = vadd.f32 0.0, %v4054
  %4056 = vmatprep.mubr.f32.mxu0 0.0
  %4057 = vmatmul.mubr.f32.gmra.mrb[0].mxu0 %v3825
  %v4058 = vpop.f32.mrb[0].mxu0
  %v4059 = vadd.f32 0.0, %v4058
  %v4060 = vpop.f32.mrb[0].mxu0
  %v4061 = vadd.f32 0.0, %v4060
  %4062 = vmatprep.mubr.f32.mxu0 0.0
  %4063 = vmatmul.mubr.f32.gmra.mrb[0].mxu0 %v3828
  %v4064 = vpop.f32.mrb[0].mxu0
  %v4065 = vadd.f32 0.0, %v4064
  %v4066 = vpop.f32.mrb[0].mxu0
  %v4067 = vadd.f32 0.0, %v4066
  %4068 = vmatprep.mubr.f32.mxu0 0.0
  %4069 = vmatmul.mubr.f32.gmra.mrb[0].mxu0 %v3831
  %v4070 = vpop.f32.mrb[0].mxu0
  %v4071 = vadd.f32 0.0, %v4070
  %v4072 = vpop.f32.mrb[0].mxu0
  %v4073 = vadd.f32 0.0, %v4072
  %4074 = vmatprep.mubr.f32.mxu0 0.0
  %4075 = vmatmul.mubr.f32.gmra.mrb[0].mxu0 %v3834
  %v4076 = vpop.f32.mrb[0].mxu0
  %v4077 = vadd.f32 0.0, %v4076
  %v4078 = vpop.f32.mrb[0].mxu0
  %v4079 = vadd.f32 0.0, %v4078
  %4080 = vmatprep.mubr.f32.mxu0 0.0
  %4081 = vmatmul.mubr.f32.gmra.mrb[0].mxu0 %v3837
  %v4082 = vpop.f32.mrb[0].mxu0
  %v4083 = vadd.f32 0.0, %v4082
  %v4084 = vpop.f32.mrb[0].mxu0
  %v4085 = vadd.f32 0.0, %v4084
  %4086 = vmatprep.mubr.f32.mxu0 0.0
  %4087 = vmatmul.mubr.f32.gmra.mrb[0].mxu0 %v3840
  %v4088 = vpop.f32.mrb[0].mxu0
  %v4089 = vadd.f32 0.0, %v4088
  %v4090 = vpop.f32.mrb[0].mxu0
  %v4091 = vadd.f32 0.0, %v4090
  %4092 = vmatprep.mubr.f32.mxu0 0.0
  %4093 = vmatmul.mubr.f32.gmra.mrb[0].mxu0 %v3843
  %v4094 = vpop.f32.mrb[0].mxu0
  %v4095 = vadd.f32 0.0, %v4094
  %v4096 = vpop.f32.mrb[0].mxu0
  %v4097 = vadd.f32 0.0, %v4096
  %4098 = vmatprep.mubr.f32.mxu0 0.0
  %4099 = vmatmul.mubr.f32.gmra.mrb[0].mxu0 %v3846
  %v4100 = vpop.f32.mrb[0].mxu0
  %v4101 = vadd.f32 0.0, %v4100
  %v4102 = vpop.f32.mrb[0].mxu0
  %v4103 = vadd.f32 0.0, %v4102
  %4104 = vdwg.mxu0
  %v4105 = vmul.f32 %v3915, 0.25
  %v4106 = vmul.f32 %v3917, 0.25
  %v4107 = vmul.f32 %v3921, 0.25
  %v4108 = vmul.f32 %v3923, 0.25
  %v4109 = vmul.f32 %v3927, 0.25
  %v4110 = vmul.f32 %v3929, 0.25
  %v4111 = vmul.f32 %v3933, 0.25
  %v4112 = vmul.f32 %v3935, 0.25
  %v4113 = vmul.f32 %v3939, 0.25
  %v4114 = vmul.f32 %v3941, 0.25
  %v4115 = vmul.f32 %v3945, 0.25
  %v4116 = vmul.f32 %v3947, 0.25
  %v4117 = vmul.f32 %v3951, 0.25
  %v4118 = vmul.f32 %v3953, 0.25
  %v4119 = vmul.f32 %v3957, 0.25
  %v4120 = vmul.f32 %v3959, 0.25
  %v4121 = vmul.f32 %v3963, 0.25
  %v4122 = vmul.f32 %v3965, 0.25
  %v4123 = vmul.f32 %v3969, 0.25
  %v4124 = vmul.f32 %v3971, 0.25
  %v4125 = vmul.f32 %v3975, 0.25
  %v4126 = vmul.f32 %v3977, 0.25
  %v4127 = vmul.f32 %v3981, 0.25
  %v4128 = vmul.f32 %v3983, 0.25
  %v4129 = vmul.f32 %v3987, 0.25
  %v4130 = vmul.f32 %v3989, 0.25
  %v4131 = vmul.f32 %v3993, 0.25
  %v4132 = vmul.f32 %v3995, 0.25
  %v4133 = vmul.f32 %v3999, 0.25
  %v4134 = vmul.f32 %v4001, 0.25
  %v4135 = vmul.f32 %v4005, 0.25
  %v4136 = vmul.f32 %v4007, 0.25
  %v4137 = vmul.f32 %v4011, 0.25
  %v4138 = vmul.f32 %v4013, 0.25
  %v4139 = vmul.f32 %v4017, 0.25
  %v4140 = vmul.f32 %v4019, 0.25
  %v4141 = vmul.f32 %v4023, 0.25
  %v4142 = vmul.f32 %v4025, 0.25
  %v4143 = vmul.f32 %v4029, 0.25
  %v4144 = vmul.f32 %v4031, 0.25
  %v4145 = vmul.f32 %v4035, 0.25
  %v4146 = vmul.f32 %v4037, 0.25
  %v4147 = vmul.f32 %v4041, 0.25
  %v4148 = vmul.f32 %v4043, 0.25
  %v4149 = vmul.f32 %v4047, 0.25
  %v4150 = vmul.f32 %v4049, 0.25
  %v4151 = vmul.f32 %v4053, 0.25
  %v4152 = vmul.f32 %v4055, 0.25
  %v4153 = vmul.f32 %v4059, 0.25
  %v4154 = vmul.f32 %v4061, 0.25
  %v4155 = vmul.f32 %v4065, 0.25
  %v4156 = vmul.f32 %v4067, 0.25
  %v4157 = vmul.f32 %v4071, 0.25
  %v4158 = vmul.f32 %v4073, 0.25
  %v4159 = vmul.f32 %v4077, 0.25
  %v4160 = vmul.f32 %v4079, 0.25
  %v4161 = vmul.f32 %v4083, 0.25
  %v4162 = vmul.f32 %v4085, 0.25
  %v4163 = vmul.f32 %v4089, 0.25
  %v4164 = vmul.f32 %v4091, 0.25
  %v4165 = vmul.f32 %v4095, 0.25
  %v4166 = vmul.f32 %v4097, 0.25
  %v4167 = vmul.f32 %v4101, 0.25
  %v4168 = vmul.f32 %v4103, 0.25
  %v4169 = vmax.f32 %v4105, %v4106
  %4170 = vmax.xlane.f32.xlu0 %v4169
  %v4171 = vpop.xlane.xlu0 %4170
  %v4172 = vmax.f32 %v4107, %v4108
  %4173 = vmax.xlane.f32.xlu0 %v4172
  %v4174 = vpop.xlane.xlu0 %4173
  %v4175 = vmax.f32 %v4109, %v4110
  %4176 = vmax.xlane.f32.xlu0 %v4175
  %v4177 = vpop.xlane.xlu0 %4176
  %v4178 = vmax.f32 %v4111, %v4112
  %4179 = vmax.xlane.f32.xlu0 %v4178
  %v4180 = vpop.xlane.xlu0 %4179
  %v4181 = vmax.f32 %v4113, %v4114
  %4182 = vmax.xlane.f32.xlu0 %v4181
  %v4183 = vpop.xlane.xlu0 %4182
  %v4184 = vmax.f32 %v4115, %v4116
  %4185 = vmax.xlane.f32.xlu0 %v4184
  %v4186 = vpop.xlane.xlu0 %4185
  %v4187 = vmax.f32 %v4117, %v4118
  %4188 = vmax.xlane.f32.xlu0 %v4187
  %v4189 = vpop.xlane.xlu0 %4188
  %v4190 = vmax.f32 %v4119, %v4120
  %4191 = vmax.xlane.f32.xlu0 %v4190
  %v4192 = vpop.xlane.xlu0 %4191
  %v4193 = vmax.f32 %v4121, %v4122
  %4194 = vmax.xlane.f32.xlu0 %v4193
  %v4195 = vpop.xlane.xlu0 %4194
  %v4196 = vmax.f32 %v4123, %v4124
  %4197 = vmax.xlane.f32.xlu0 %v4196
  %v4198 = vpop.xlane.xlu0 %4197
  %v4199 = vmax.f32 %v4125, %v4126
  %4200 = vmax.xlane.f32.xlu0 %v4199
  %v4201 = vpop.xlane.xlu0 %4200
  %v4202 = vmax.f32 %v4127, %v4128
  %4203 = vmax.xlane.f32.xlu0 %v4202
  %v4204 = vpop.xlane.xlu0 %4203
  %v4205 = vmax.f32 %v4129, %v4130
  %4206 = vmax.xlane.f32.xlu0 %v4205
  %v4207 = vpop.xlane.xlu0 %4206
  %v4208 = vmax.f32 %v4131, %v4132
  %4209 = vmax.xlane.f32.xlu0 %v4208
  %v4210 = vpop.xlane.xlu0 %4209
  %v4211 = vmax.f32 %v4133, %v4134
  %4212 = vmax.xlane.f32.xlu0 %v4211
  %v4213 = vpop.xlane.xlu0 %4212
  %v4214 = vmax.f32 %v4135, %v4136
  %4215 = vmax.xlane.f32.xlu0 %v4214
  %v4216 = vpop.xlane.xlu0 %4215
  %v4217 = vmax.f32 %v4137, %v4138
  %4218 = vmax.xlane.f32.xlu0 %v4217
  %v4219 = vpop.xlane.xlu0 %4218
  %v4220 = vmax.f32 %v4139, %v4140
  %4221 = vmax.xlane.f32.xlu0 %v4220
  %v4222 = vpop.xlane.xlu0 %4221
  %v4223 = vmax.f32 %v4141, %v4142
  %4224 = vmax.xlane.f32.xlu0 %v4223
  %v4225 = vpop.xlane.xlu0 %4224
  %v4226 = vmax.f32 %v4143, %v4144
  %4227 = vmax.xlane.f32.xlu0 %v4226
  %v4228 = vpop.xlane.xlu0 %4227
  %v4229 = vmax.f32 %v4145, %v4146
  %4230 = vmax.xlane.f32.xlu0 %v4229
  %v4231 = vpop.xlane.xlu0 %4230
  %v4232 = vmax.f32 %v4147, %v4148
  %4233 = vmax.xlane.f32.xlu0 %v4232
  %v4234 = vpop.xlane.xlu0 %4233
  %v4235 = vmax.f32 %v4149, %v4150
  %4236 = vmax.xlane.f32.xlu0 %v4235
  %v4237 = vpop.xlane.xlu0 %4236
  %v4238 = vmax.f32 %v4151, %v4152
  %4239 = vmax.xlane.f32.xlu0 %v4238
  %v4240 = vpop.xlane.xlu0 %4239
  %v4241 = vmax.f32 %v4153, %v4154
  %4242 = vmax.xlane.f32.xlu0 %v4241
  %v4243 = vpop.xlane.xlu0 %4242
  %v4244 = vmax.f32 %v4155, %v4156
  %4245 = vmax.xlane.f32.xlu0 %v4244
  %v4246 = vpop.xlane.xlu0 %4245
  %v4247 = vmax.f32 %v4157, %v4158
  %4248 = vmax.xlane.f32.xlu0 %v4247
  %v4249 = vpop.xlane.xlu0 %4248
  %v4250 = vmax.f32 %v4159, %v4160
  %4251 = vmax.xlane.f32.xlu0 %v4250
  %v4252 = vpop.xlane.xlu0 %4251
  %v4253 = vmax.f32 %v4161, %v4162
  %4254 = vmax.xlane.f32.xlu0 %v4253
  %v4255 = vpop.xlane.xlu0 %4254
  %v4256 = vmax.f32 %v4163, %v4164
  %4257 = vmax.xlane.f32.xlu0 %v4256
  %v4258 = vpop.xlane.xlu0 %4257
  %v4259 = vmax.f32 %v4165, %v4166
  %4260 = vmax.xlane.f32.xlu0 %v4259
  %v4261 = vpop.xlane.xlu0 %4260
  %v4262 = vmax.f32 %v4167, %v4168
  %4263 = vmax.xlane.f32.xlu0 %v4262
  %v4264 = vpop.xlane.xlu0 %4263
  %v4265 = vsub.f32 %v4105, %v4171
  %v4266 = vsub.f32 %v4106, %v4171
  %v4267 = vsub.f32 %v4107, %v4174
  %v4268 = vsub.f32 %v4108, %v4174
  %v4269 = vsub.f32 %v4109, %v4177
  %v4270 = vsub.f32 %v4110, %v4177
  %v4271 = vsub.f32 %v4111, %v4180
  %v4272 = vsub.f32 %v4112, %v4180
  %v4273 = vsub.f32 %v4113, %v4183
  %v4274 = vsub.f32 %v4114, %v4183
  %v4275 = vsub.f32 %v4115, %v4186
  %v4276 = vsub.f32 %v4116, %v4186
  %v4277 = vsub.f32 %v4117, %v4189
  %v4278 = vsub.f32 %v4118, %v4189
  %v4279 = vsub.f32 %v4119, %v4192
  %v4280 = vsub.f32 %v4120, %v4192
  %v4281 = vsub.f32 %v4121, %v4195
  %v4282 = vsub.f32 %v4122, %v4195
  %v4283 = vsub.f32 %v4123, %v4198
  %v4284 = vsub.f32 %v4124, %v4198
  %v4285 = vsub.f32 %v4125, %v4201
  %v4286 = vsub.f32 %v4126, %v4201
  %v4287 = vsub.f32 %v4127, %v4204
  %v4288 = vsub.f32 %v4128, %v4204
  %v4289 = vsub.f32 %v4129, %v4207
  %v4290 = vsub.f32 %v4130, %v4207
  %v4291 = vsub.f32 %v4131, %v4210
  %v4292 = vsub.f32 %v4132, %v4210
  %v4293 = vsub.f32 %v4133, %v4213
  %v4294 = vsub.f32 %v4134, %v4213
  %v4295 = vsub.f32 %v4135, %v4216
  %v4296 = vsub.f32 %v4136, %v4216
  %v4297 = vsub.f32 %v4137, %v4219
  %v4298 = vsub.f32 %v4138, %v4219
  %v4299 = vsub.f32 %v4139, %v4222
  %v4300 = vsub.f32 %v4140, %v4222
  %v4301 = vsub.f32 %v4141, %v4225
  %v4302 = vsub.f32 %v4142, %v4225
  %v4303 = vsub.f32 %v4143, %v4228
  %v4304 = vsub.f32 %v4144, %v4228
  %v4305 = vsub.f32 %v4145, %v4231
  %v4306 = vsub.f32 %v4146, %v4231
  %v4307 = vsub.f32 %v4147, %v4234
  %v4308 = vsub.f32 %v4148, %v4234
  %v4309 = vsub.f32 %v4149, %v4237
  %v4310 = vsub.f32 %v4150, %v4237
  %v4311 = vsub.f32 %v4151, %v4240
  %v4312 = vsub.f32 %v4152, %v4240
  %v4313 = vsub.f32 %v4153, %v4243
  %v4314 = vsub.f32 %v4154, %v4243
  %v4315 = vsub.f32 %v4155, %v4246
  %v4316 = vsub.f32 %v4156, %v4246
  %v4317 = vsub.f32 %v4157, %v4249
  %v4318 = vsub.f32 %v4158, %v4249
  %v4319 = vsub.f32 %v4159, %v4252
  %v4320 = vsub.f32 %v4160, %v4252
  %v4321 = vsub.f32 %v4161, %v4255
  %v4322 = vsub.f32 %v4162, %v4255
  %v4323 = vsub.f32 %v4163, %v4258
  %v4324 = vsub.f32 %v4164, %v4258
  %v4325 = vsub.f32 %v4165, %v4261
  %v4326 = vsub.f32 %v4166, %v4261
  %v4327 = vsub.f32 %v4167, %v4264
  %v4328 = vsub.f32 %v4168, %v4264
  %v4329 = vmul.f32 %v4265, 1.442695
  %v4330 = vpow.pop %v4329
  %v4331 = vmul.f32 %v4266, 1.442695
  %v4332 = vpow.pop %v4331
  %v4333 = vmul.f32 %v4267, 1.442695
  %v4334 = vpow.pop %v4333
  %v4335 = vmul.f32 %v4268, 1.442695
  %v4336 = vpow.pop %v4335
  %v4337 = vmul.f32 %v4269, 1.442695
  %v4338 = vpow.pop %v4337
  %v4339 = vmul.f32 %v4270, 1.442695
  %v4340 = vpow.pop %v4339
  %v4341 = vmul.f32 %v4271, 1.442695
  %v4342 = vpow.pop %v4341
  %v4343 = vmul.f32 %v4272, 1.442695
  %v4344 = vpow.pop %v4343
  %v4345 = vmul.f32 %v4273, 1.442695
  %v4346 = vpow.pop %v4345
  %v4347 = vmul.f32 %v4274, 1.442695
  %v4348 = vpow.pop %v4347
  %v4349 = vmul.f32 %v4275, 1.442695
  %v4350 = vpow.pop %v4349
  %v4351 = vmul.f32 %v4276, 1.442695
  %v4352 = vpow.pop %v4351
  %v4353 = vmul.f32 %v4277, 1.442695
  %v4354 = vpow.pop %v4353
  %v4355 = vmul.f32 %v4278, 1.442695
  %v4356 = vpow.pop %v4355
  %v4357 = vmul.f32 %v4279, 1.442695
  %v4358 = vpow.pop %v4357
  %v4359 = vmul.f32 %v4280, 1.442695
  %v4360 = vpow.pop %v4359
  %v4361 = vmul.f32 %v4281, 1.442695
  %v4362 = vpow.pop %v4361
  %v4363 = vmul.f32 %v4282, 1.442695
  %v4364 = vpow.pop %v4363
  %v4365 = vmul.f32 %v4283, 1.442695
  %v4366 = vpow.pop %v4365
  %v4367 = vmul.f32 %v4284, 1.442695
  %v4368 = vpow.pop %v4367
  %v4369 = vmul.f32 %v4285, 1.442695
  %v4370 = vpow.pop %v4369
  %v4371 = vmul.f32 %v4286, 1.442695
  %v4372 = vpow.pop %v4371
  %v4373 = vmul.f32 %v4287, 1.442695
  %v4374 = vpow.pop %v4373
  %v4375 = vmul.f32 %v4288, 1.442695
  %v4376 = vpow.pop %v4375
  %v4377 = vmul.f32 %v4289, 1.442695
  %v4378 = vpow.pop %v4377
  %v4379 = vmul.f32 %v4290, 1.442695
  %v4380 = vpow.pop %v4379
  %v4381 = vmul.f32 %v4291, 1.442695
  %v4382 = vpow.pop %v4381
  %v4383 = vmul.f32 %v4292, 1.442695
  %v4384 = vpow.pop %v4383
  %v4385 = vmul.f32 %v4293, 1.442695
  %v4386 = vpow.pop %v4385
  %v4387 = vmul.f32 %v4294, 1.442695
  %v4388 = vpow.pop %v4387
  %v4389 = vmul.f32 %v4295, 1.442695
  %v4390 = vpow.pop %v4389
  %v4391 = vmul.f32 %v4296, 1.442695
  %v4392 = vpow.pop %v4391
  %v4393 = vmul.f32 %v4297, 1.442695
  %v4394 = vpow.pop %v4393
  %v4395 = vmul.f32 %v4298, 1.442695
  %v4396 = vpow.pop %v4395
  %v4397 = vmul.f32 %v4299, 1.442695
  %v4398 = vpow.pop %v4397
  %v4399 = vmul.f32 %v4300, 1.442695
  %v4400 = vpow.pop %v4399
  %v4401 = vmul.f32 %v4301, 1.442695
  %v4402 = vpow.pop %v4401
  %v4403 = vmul.f32 %v4302, 1.442695
  %v4404 = vpow.pop %v4403
  %v4405 = vmul.f32 %v4303, 1.442695
  %v4406 = vpow.pop %v4405
  %v4407 = vmul.f32 %v4304, 1.442695
  %v4408 = vpow.pop %v4407
  %v4409 = vmul.f32 %v4305, 1.442695
  %v4410 = vpow.pop %v4409
  %v4411 = vmul.f32 %v4306, 1.442695
  %v4412 = vpow.pop %v4411
  %v4413 = vmul.f32 %v4307, 1.442695
  %v4414 = vpow.pop %v4413
  %v4415 = vmul.f32 %v4308, 1.442695
  %v4416 = vpow.pop %v4415
  %v4417 = vmul.f32 %v4309, 1.442695
  %v4418 = vpow.pop %v4417
  %v4419 = vmul.f32 %v4310, 1.442695
  %v4420 = vpow.pop %v4419
  %v4421 = vmul.f32 %v4311, 1.442695
  %v4422 = vpow.pop %v4421
  %v4423 = vmul.f32 %v4312, 1.442695
  %v4424 = vpow.pop %v4423
  %v4425 = vmul.f32 %v4313, 1.442695
  %v4426 = vpow.pop %v4425
  %v4427 = vmul.f32 %v4314, 1.442695
  %v4428 = vpow.pop %v4427
  %v4429 = vmul.f32 %v4315, 1.442695
  %v4430 = vpow.pop %v4429
  %v4431 = vmul.f32 %v4316, 1.442695
  %v4432 = vpow.pop %v4431
  %v4433 = vmul.f32 %v4317, 1.442695
  %v4434 = vpow.pop %v4433
  %v4435 = vmul.f32 %v4318, 1.442695
  %v4436 = vpow.pop %v4435
  %v4437 = vmul.f32 %v4319, 1.442695
  %v4438 = vpow.pop %v4437
  %v4439 = vmul.f32 %v4320, 1.442695
  %v4440 = vpow.pop %v4439
  %v4441 = vmul.f32 %v4321, 1.442695
  %v4442 = vpow.pop %v4441
  %v4443 = vmul.f32 %v4322, 1.442695
  %v4444 = vpow.pop %v4443
  %v4445 = vmul.f32 %v4323, 1.442695
  %v4446 = vpow.pop %v4445
  %v4447 = vmul.f32 %v4324, 1.442695
  %v4448 = vpow.pop %v4447
  %v4449 = vmul.f32 %v4325, 1.442695
  %v4450 = vpow.pop %v4449
  %v4451 = vmul.f32 %v4326, 1.442695
  %v4452 = vpow.pop %v4451
  %v4453 = vmul.f32 %v4327, 1.442695
  %v4454 = vpow.pop %v4453
  %v4455 = vmul.f32 %v4328, 1.442695
  %v4456 = vpow.pop %v4455
  %v4457 = vadd.f32 %v4330, %v4332
  %4458 = vadd.xlane.f32.xlu0 %v4457
  %v4459 = vpop.xlane.xlu0 %4458
  %v4460 = vadd.f32 %v4334, %v4336
  %4461 = vadd.xlane.f32.xlu0 %v4460
  %v4462 = vpop.xlane.xlu0 %4461
  %v4463 = vadd.f32 %v4338, %v4340
  %4464 = vadd.xlane.f32.xlu0 %v4463
  %v4465 = vpop.xlane.xlu0 %4464
  %v4466 = vadd.f32 %v4342, %v4344
  %4467 = vadd.xlane.f32.xlu0 %v4466
  %v4468 = vpop.xlane.xlu0 %4467
  %v4469 = vadd.f32 %v4346, %v4348
  %4470 = vadd.xlane.f32.xlu0 %v4469
  %v4471 = vpop.xlane.xlu0 %4470
  %v4472 = vadd.f32 %v4350, %v4352
  %4473 = vadd.xlane.f32.xlu0 %v4472
  %v4474 = vpop.xlane.xlu0 %4473
  %v4475 = vadd.f32 %v4354, %v4356
  %4476 = vadd.xlane.f32.xlu0 %v4475
  %v4477 = vpop.xlane.xlu0 %4476
  %v4478 = vadd.f32 %v4358, %v4360
  %4479 = vadd.xlane.f32.xlu0 %v4478
  %v4480 = vpop.xlane.xlu0 %4479
  %v4481 = vadd.f32 %v4362, %v4364
  %4482 = vadd.xlane.f32.xlu0 %v4481
  %v4483 = vpop.xlane.xlu0 %4482
  %v4484 = vadd.f32 %v4366, %v4368
  %4485 = vadd.xlane.f32.xlu0 %v4484
  %v4486 = vpop.xlane.xlu0 %4485
  %v4487 = vadd.f32 %v4370, %v4372
  %4488 = vadd.xlane.f32.xlu0 %v4487
  %v4489 = vpop.xlane.xlu0 %4488
  %v4490 = vadd.f32 %v4374, %v4376
  %4491 = vadd.xlane.f32.xlu0 %v4490
  %v4492 = vpop.xlane.xlu0 %4491
  %v4493 = vadd.f32 %v4378, %v4380
  %4494 = vadd.xlane.f32.xlu0 %v4493
  %v4495 = vpop.xlane.xlu0 %4494
  %v4496 = vadd.f32 %v4382, %v4384
  %4497 = vadd.xlane.f32.xlu0 %v4496
  %v4498 = vpop.xlane.xlu0 %4497
  %v4499 = vadd.f32 %v4386, %v4388
  %4500 = vadd.xlane.f32.xlu0 %v4499
  %v4501 = vpop.xlane.xlu0 %4500
  %v4502 = vadd.f32 %v4390, %v4392
  %4503 = vadd.xlane.f32.xlu0 %v4502
  %v4504 = vpop.xlane.xlu0 %4503
  %v4505 = vadd.f32 %v4394, %v4396
  %4506 = vadd.xlane.f32.xlu0 %v4505
  %v4507 = vpop.xlane.xlu0 %4506
  %v4508 = vadd.f32 %v4398, %v4400
  %4509 = vadd.xlane.f32.xlu0 %v4508
  %v4510 = vpop.xlane.xlu0 %4509
  %v4511 = vadd.f32 %v4402, %v4404
  %4512 = vadd.xlane.f32.xlu0 %v4511
  %v4513 = vpop.xlane.xlu0 %4512
  %v4514 = vadd.f32 %v4406, %v4408
  %4515 = vadd.xlane.f32.xlu0 %v4514
  %v4516 = vpop.xlane.xlu0 %4515
  %v4517 = vadd.f32 %v4410, %v4412
  %4518 = vadd.xlane.f32.xlu0 %v4517
  %v4519 = vpop.xlane.xlu0 %4518
  %v4520 = vadd.f32 %v4414, %v4416
  %4521 = vadd.xlane.f32.xlu0 %v4520
  %v4522 = vpop.xlane.xlu0 %4521
  %v4523 = vadd.f32 %v4418, %v4420
  %4524 = vadd.xlane.f32.xlu0 %v4523
  %v4525 = vpop.xlane.xlu0 %4524
  %v4526 = vadd.f32 %v4422, %v4424
  %4527 = vadd.xlane.f32.xlu0 %v4526
  %v4528 = vpop.xlane.xlu0 %4527
  %v4529 = vadd.f32 %v4426, %v4428
  %4530 = vadd.xlane.f32.xlu0 %v4529
  %v4531 = vpop.xlane.xlu0 %4530
  %v4532 = vadd.f32 %v4430, %v4432
  %4533 = vadd.xlane.f32.xlu0 %v4532
  %v4534 = vpop.xlane.xlu0 %4533
  %v4535 = vadd.f32 %v4434, %v4436
  %4536 = vadd.xlane.f32.xlu0 %v4535
  %v4537 = vpop.xlane.xlu0 %4536
  %v4538 = vadd.f32 %v4438, %v4440
  %4539 = vadd.xlane.f32.xlu0 %v4538
  %v4540 = vpop.xlane.xlu0 %4539
  %v4541 = vadd.f32 %v4442, %v4444
  %4542 = vadd.xlane.f32.xlu0 %v4541
  %v4543 = vpop.xlane.xlu0 %4542
  %v4544 = vadd.f32 %v4446, %v4448
  %4545 = vadd.xlane.f32.xlu0 %v4544
  %v4546 = vpop.xlane.xlu0 %4545
  %v4547 = vadd.f32 %v4450, %v4452
  %4548 = vadd.xlane.f32.xlu0 %v4547
  %v4549 = vpop.xlane.xlu0 %4548
  %v4550 = vadd.f32 %v4454, %v4456
  %4551 = vadd.xlane.f32.xlu0 %v4550
  %v4552 = vpop.xlane.xlu0 %4551
  %v4553 = vrcp.pop %v4459
  %v4554 = vrcp.pop %v4462
  %v4555 = vrcp.pop %v4465
  %v4556 = vrcp.pop %v4468
  %v4557 = vrcp.pop %v4471
  %v4558 = vrcp.pop %v4474
  %v4559 = vrcp.pop %v4477
  %v4560 = vrcp.pop %v4480
  %v4561 = vrcp.pop %v4483
  %v4562 = vrcp.pop %v4486
  %v4563 = vrcp.pop %v4489
  %v4564 = vrcp.pop %v4492
  %v4565 = vrcp.pop %v4495
  %v4566 = vrcp.pop %v4498
  %v4567 = vrcp.pop %v4501
  %v4568 = vrcp.pop %v4504
  %v4569 = vrcp.pop %v4507
  %v4570 = vrcp.pop %v4510
  %v4571 = vrcp.pop %v4513
  %v4572 = vrcp.pop %v4516
  %v4573 = vrcp.pop %v4519
  %v4574 = vrcp.pop %v4522
  %v4575 = vrcp.pop %v4525
  %v4576 = vrcp.pop %v4528
  %v4577 = vrcp.pop %v4531
  %v4578 = vrcp.pop %v4534
  %v4579 = vrcp.pop %v4537
  %v4580 = vrcp.pop %v4540
  %v4581 = vrcp.pop %v4543
  %v4582 = vrcp.pop %v4546
  %v4583 = vrcp.pop %v4549
  %v4584 = vrcp.pop %v4552
  %v4585 = vmul.f32 %v4330, %v4553
  %v4586 = vmul.f32 %v4332, %v4553
  %v4587 = vmul.f32 %v4334, %v4554
  %v4588 = vmul.f32 %v4336, %v4554
  %v4589 = vmul.f32 %v4338, %v4555
  %v4590 = vmul.f32 %v4340, %v4555
  %v4591 = vmul.f32 %v4342, %v4556
  %v4592 = vmul.f32 %v4344, %v4556
  %v4593 = vmul.f32 %v4346, %v4557
  %v4594 = vmul.f32 %v4348, %v4557
  %v4595 = vmul.f32 %v4350, %v4558
  %v4596 = vmul.f32 %v4352, %v4558
  %v4597 = vmul.f32 %v4354, %v4559
  %v4598 = vmul.f32 %v4356, %v4559
  %v4599 = vmul.f32 %v4358, %v4560
  %v4600 = vmul.f32 %v4360, %v4560
  %v4601 = vmul.f32 %v4362, %v4561
  %v4602 = vmul.f32 %v4364, %v4561
  %v4603 = vmul.f32 %v4366, %v4562
  %v4604 = vmul.f32 %v4368, %v4562
  %v4605 = vmul.f32 %v4370, %v4563
  %v4606 = vmul.f32 %v4372, %v4563
  %v4607 = vmul.f32 %v4374, %v4564
  %v4608 = vmul.f32 %v4376, %v4564
  %v4609 = vmul.f32 %v4378, %v4565
  %v4610 = vmul.f32 %v4380, %v4565
  %v4611 = vmul.f32 %v4382, %v4566
  %v4612 = vmul.f32 %v4384, %v4566
  %v4613 = vmul.f32 %v4386, %v4567
  %v4614 = vmul.f32 %v4388, %v4567
  %v4615 = vmul.f32 %v4390, %v4568
  %v4616 = vmul.f32 %v4392, %v4568
  %v4617 = vmul.f32 %v4394, %v4569
  %v4618 = vmul.f32 %v4396, %v4569
  %v4619 = vmul.f32 %v4398, %v4570
  %v4620 = vmul.f32 %v4400, %v4570
  %v4621 = vmul.f32 %v4402, %v4571
  %v4622 = vmul.f32 %v4404, %v4571
  %v4623 = vmul.f32 %v4406, %v4572
  %v4624 = vmul.f32 %v4408, %v4572
  %v4625 = vmul.f32 %v4410, %v4573
  %v4626 = vmul.f32 %v4412, %v4573
  %v4627 = vmul.f32 %v4414, %v4574
  %v4628 = vmul.f32 %v4416, %v4574
  %v4629 = vmul.f32 %v4418, %v4575
  %v4630 = vmul.f32 %v4420, %v4575
  %v4631 = vmul.f32 %v4422, %v4576
  %v4632 = vmul.f32 %v4424, %v4576
  %v4633 = vmul.f32 %v4426, %v4577
  %v4634 = vmul.f32 %v4428, %v4577
  %v4635 = vmul.f32 %v4430, %v4578
  %v4636 = vmul.f32 %v4432, %v4578
  %v4637 = vmul.f32 %v4434, %v4579
  %v4638 = vmul.f32 %v4436, %v4579
  %v4639 = vmul.f32 %v4438, %v4580
  %v4640 = vmul.f32 %v4440, %v4580
  %v4641 = vmul.f32 %v4442, %v4581
  %v4642 = vmul.f32 %v4444, %v4581
  %v4643 = vmul.f32 %v4446, %v4582
  %v4644 = vmul.f32 %v4448, %v4582
  %v4645 = vmul.f32 %v4450, %v4583
  %v4646 = vmul.f32 %v4452, %v4583
  %v4647 = vmul.f32 %v4454, %v4584
  %v4648 = vmul.f32 %v4456, %v4584
  %4649 = vmatprep.subr.mxu0 %v4586
  %4650 = vmatpush1.xpose.msra.mxu0 %v4585
  %4651 = vmatprep.subr.mxu0 %v4588
  %4652 = vmatpush1.xpose.msra.mxu0 %v4587
  %4653 = vmatprep.subr.mxu0 %v4590
  %4654 = vmatpush1.xpose.msra.mxu0 %v4589
  %4655 = vmatprep.subr.mxu0 %v4592
  %4656 = vmatpush1.xpose.msra.mxu0 %v4591
  %4657 = vmatprep.subr.mxu0 %v4594
  %4658 = vmatpush1.xpose.msra.mxu0 %v4593
  %4659 = vmatprep.subr.mxu0 %v4596
  %4660 = vmatpush1.xpose.msra.mxu0 %v4595
  %4661 = vmatprep.subr.mxu0 %v4598
  %4662 = vmatpush1.xpose.msra.mxu0 %v4597
  %4663 = vmatprep.subr.mxu0 %v4600
  %4664 = vmatpush1.xpose.msra.mxu0 %v4599
  %4665 = vmatprep.subr.mxu0 %v4602
  %4666 = vmatpush1.xpose.msra.mxu0 %v4601
  %4667 = vmatprep.subr.mxu0 %v4604
  %4668 = vmatpush1.xpose.msra.mxu0 %v4603
  %4669 = vmatprep.subr.mxu0 %v4606
  %4670 = vmatpush1.xpose.msra.mxu0 %v4605
  %4671 = vmatprep.subr.mxu0 %v4608
  %4672 = vmatpush1.xpose.msra.mxu0 %v4607
  %4673 = vmatprep.subr.mxu0 %v4610
  %4674 = vmatpush1.xpose.msra.mxu0 %v4609
  %4675 = vmatprep.subr.mxu0 %v4612
  %4676 = vmatpush1.xpose.msra.mxu0 %v4611
  %4677 = vmatprep.subr.mxu0 %v4614
  %4678 = vmatpush1.xpose.msra.mxu0 %v4613
  %4679 = vmatprep.subr.mxu0 %v4616
  %4680 = vmatpush1.xpose.msra.mxu0 %v4615
  %4681 = vmatprep.subr.mxu0 %v4618
  %4682 = vmatpush1.xpose.msra.mxu0 %v4617
  %4683 = vmatprep.subr.mxu0 %v4620
  %4684 = vmatpush1.xpose.msra.mxu0 %v4619
  %4685 = vmatprep.subr.mxu0 %v4622
  %4686 = vmatpush1.xpose.msra.mxu0 %v4621
  %4687 = vmatprep.subr.mxu0 %v4624
  %4688 = vmatpush1.xpose.msra.mxu0 %v4623
  %4689 = vmatprep.subr.mxu0 %v4626
  %4690 = vmatpush1.xpose.msra.mxu0 %v4625
  %4691 = vmatprep.subr.mxu0 %v4628
  %4692 = vmatpush1.xpose.msra.mxu0 %v4627
  %4693 = vmatprep.subr.mxu0 %v4630
  %4694 = vmatpush1.xpose.msra.mxu0 %v4629
  %4695 = vmatprep.subr.mxu0 %v4632
  %4696 = vmatpush1.xpose.msra.mxu0 %v4631
  %4697 = vmatprep.subr.mxu0 %v4634
  %4698 = vmatpush1.xpose.msra.mxu0 %v4633
  %4699 = vmatprep.subr.mxu0 %v4636
  %4700 = vmatpush1.xpose.msra.mxu0 %v4635
  %4701 = vmatprep.subr.mxu0 %v4638
  %4702 = vmatpush1.xpose.msra.mxu0 %v4637
  %4703 = vmatprep.subr.mxu0 %v4640
  %4704 = vmatpush1.xpose.msra.mxu0 %v4639
  %4705 = vmatprep.subr.mxu0 %v4642
  %4706 = vmatpush1.xpose.msra.mxu0 %v4641
  %4707 = vmatprep.subr.mxu0 %v4644
  %4708 = vmatpush1.xpose.msra.mxu0 %v4643
  %4709 = vmatprep.subr.mxu0 %v4646
  %4710 = vmatpush1.xpose.msra.mxu0 %v4645
  %4711 = vmatprep.subr.mxu0 %v4648
  %4712 = vmatpush1.xpose.msra.mxu0 %v4647
  %4713 = vmatprep.mubr.f32.mxu0 %v3681
  %4714 = vmatmul.mubr.f32.gmra.mrb[0].mxu0 %v3680
  %v4715 = vpop.f32.mrb[0].mxu0
  %v4716 = vadd.f32 0.0, %v4715
  %v4717 = vpop.f32.mrb[0].mxu0
  %v4718 = vadd.f32 0.0, %v4717
  %4719 = vmatprep.mubr.f32.mxu0 %v3683
  %4720 = vmatmul.mubr.f32.gmra.mrb[0].mxu0 %v3682
  %v4721 = vpop.f32.mrb[0].mxu0
  %v4722 = vadd.f32 0.0, %v4721
  %v4723 = vpop.f32.mrb[0].mxu0
  %v4724 = vadd.f32 0.0, %v4723
  %4725 = vdwg.mxu0
  %4726 = vxpose.xlu0.b32.start [1/16] %v3644, 128
  %4727 = vxpose.xlu0.b32.cont [2/16] %v3646, 128
  %4728 = vxpose.xlu0.b32.cont [3/16] 0.0, 128
  %4729 = vxpose.xlu0.b32.cont [4/16] 0.0, 128
  %4730 = vxpose.xlu0.b32.cont [5/16] 0.0, 128
  %4731 = vxpose.xlu0.b32.cont [6/16] 0.0, 128
  %4732 = vxpose.xlu0.b32.cont [7/16] 0.0, 128
  %4733 = vxpose.xlu0.b32.cont [8/16] 0.0, 128
  %4734 = vxpose.xlu0.b32.cont [9/16] 0.0, 128
  %4735 = vxpose.xlu0.b32.cont [10/16] 0.0, 128
  %4736 = vxpose.xlu0.b32.cont [11/16] 0.0, 128
  %4737 = vxpose.xlu0.b32.cont [12/16] 0.0, 128
  %4738 = vxpose.xlu0.b32.cont [13/16] 0.0, 128
  %4739 = vxpose.xlu0.b32.cont [14/16] 0.0, 128
  %4740 = vxpose.xlu0.b32.cont [15/16] 0.0, 128
  %4741 = vxpose.xlu0.b32.end [16/16] 0.0, 128
  %v4742 = vpop.trf.xlu0
  %v4743 = vpop.trf.xlu0
  %v4744 = vpop.trf.xlu0
  %v4745 = vpop.trf.xlu0
  %v4746 = vpop.trf.xlu0
  %v4747 = vpop.trf.xlu0
  %v4748 = vpop.trf.xlu0
  %v4749 = vpop.trf.xlu0
  %v4750 = vpop.trf.xlu0
  %v4751 = vpop.trf.xlu0
  %v4752 = vpop.trf.xlu0
  %v4753 = vpop.trf.xlu0
  %v4754 = vpop.trf.xlu0
  %v4755 = vpop.trf.xlu0
  %v4756 = vpop.trf.xlu0
  %v4757 = vpop.trf.xlu0
  %4758 = vxpose.xlu0.b32.start [1/16] %v3645, 128
  %4759 = vxpose.xlu0.b32.cont [2/16] %v3647, 128
  %4760 = vxpose.xlu0.b32.cont [3/16] 0.0, 128
  %4761 = vxpose.xlu0.b32.cont [4/16] 0.0, 128
  %4762 = vxpose.xlu0.b32.cont [5/16] 0.0, 128
  %4763 = vxpose.xlu0.b32.cont [6/16] 0.0, 128
  %4764 = vxpose.xlu0.b32.cont [7/16] 0.0, 128
  %4765 = vxpose.xlu0.b32.cont [8/16] 0.0, 128
  %4766 = vxpose.xlu0.b32.cont [9/16] 0.0, 128
  %4767 = vxpose.xlu0.b32.cont [10/16] 0.0, 128
  %4768 = vxpose.xlu0.b32.cont [11/16] 0.0, 128
  %4769 = vxpose.xlu0.b32.cont [12/16] 0.0, 128
  %4770 = vxpose.xlu0.b32.cont [13/16] 0.0, 128
  %4771 = vxpose.xlu0.b32.cont [14/16] 0.0, 128
  %4772 = vxpose.xlu0.b32.cont [15/16] 0.0, 128
  %4773 = vxpose.xlu0.b32.end [16/16] 0.0, 128
  %v4774 = vpop.trf.xlu0
  %v4775 = vpop.trf.xlu0
  %v4776 = vpop.trf.xlu0
  %v4777 = vpop.trf.xlu0
  %v4778 = vpop.trf.xlu0
  %v4779 = vpop.trf.xlu0
  %v4780 = vpop.trf.xlu0
  %v4781 = vpop.trf.xlu0
  %v4782 = vpop.trf.xlu0
  %v4783 = vpop.trf.xlu0
  %v4784 = vpop.trf.xlu0
  %v4785 = vpop.trf.xlu0
  %v4786 = vpop.trf.xlu0
  %v4787 = vpop.trf.xlu0
  %v4788 = vpop.trf.xlu0
  %v4789 = vpop.trf.xlu0
  %v4791 = vsel %vm1042, %v4742, 0
  %v4794 = vsel %vm1042, %v4743, 0
  %v4797 = vsel %vm1042, %v4744, 0
  %v4800 = vsel %vm1042, %v4745, 0
  %v4803 = vsel %vm1042, %v4746, 0
  %v4806 = vsel %vm1042, %v4747, 0
  %v4809 = vsel %vm1042, %v4748, 0
  %v4812 = vsel %vm1042, %v4749, 0
  %v4815 = vsel %vm1042, %v4750, 0
  %v4818 = vsel %vm1042, %v4751, 0
  %v4821 = vsel %vm1042, %v4752, 0
  %v4824 = vsel %vm1042, %v4753, 0
  %v4827 = vsel %vm1042, %v4754, 0
  %v4830 = vsel %vm1042, %v4755, 0
  %v4833 = vsel %vm1042, %v4756, 0
  %v4836 = vsel %vm1042, %v4757, 0
  %v4839 = vsel %vm1042, %v4774, 0
  %v4842 = vsel %vm1042, %v4775, 0
  %v4845 = vsel %vm1042, %v4776, 0
  %v4848 = vsel %vm1042, %v4777, 0
  %v4851 = vsel %vm1042, %v4778, 0
  %v4854 = vsel %vm1042, %v4779, 0
  %v4857 = vsel %vm1042, %v4780, 0
  %v4860 = vsel %vm1042, %v4781, 0
  %v4863 = vsel %vm1042, %v4782, 0
  %v4866 = vsel %vm1042, %v4783, 0
  %v4869 = vsel %vm1042, %v4784, 0
  %v4872 = vsel %vm1042, %v4785, 0
  %v4875 = vsel %vm1042, %v4786, 0
  %v4878 = vsel %vm1042, %v4787, 0
  %v4881 = vsel %vm1042, %v4788, 0
  %v4884 = vsel %vm1042, %v4789, 0
  %4886 = vmatprep.subr.mxu0 %v3653
  %4887 = vmatpush1.msra.mxu0 %v3652
  %4888 = vmatprep.subr.mxu0 %v3655
  %4889 = vmatpush1.msra.mxu0 %v3654
  %4890 = vmatprep.subr.mxu0 0.0
  %4891 = vmatpush1.msra.mxu0 0.0
  %4892 = vmatprep.subr.mxu0 0.0
  %4893 = vmatpush1.msra.mxu0 0.0
  %4894 = vmatprep.subr.mxu0 0.0
  %4895 = vmatpush1.msra.mxu0 0.0
  %4896 = vmatprep.subr.mxu0 0.0
  %4897 = vmatpush1.msra.mxu0 0.0
  %4898 = vmatprep.subr.mxu0 0.0
  %4899 = vmatpush1.msra.mxu0 0.0
  %4900 = vmatprep.subr.mxu0 0.0
  %4901 = vmatpush1.msra.mxu0 0.0
  %4902 = vmatprep.subr.mxu0 0.0
  %4903 = vmatpush1.msra.mxu0 0.0
  %4904 = vmatprep.subr.mxu0 0.0
  %4905 = vmatpush1.msra.mxu0 0.0
  %4906 = vmatprep.subr.mxu0 0.0
  %4907 = vmatpush1.msra.mxu0 0.0
  %4908 = vmatprep.subr.mxu0 0.0
  %4909 = vmatpush1.msra.mxu0 0.0
  %4910 = vmatprep.subr.mxu0 0.0
  %4911 = vmatpush1.msra.mxu0 0.0
  %4912 = vmatprep.subr.mxu0 0.0
  %4913 = vmatpush1.msra.mxu0 0.0
  %4914 = vmatprep.subr.mxu0 0.0
  %4915 = vmatpush1.msra.mxu0 0.0
  %4916 = vmatprep.subr.mxu0 0.0
  %4917 = vmatpush1.msra.mxu0 0.0
  %4918 = vmatprep.subr.mxu0 0.0
  %4919 = vmatpush1.msra.mxu0 0.0
  %4920 = vmatprep.subr.mxu0 0.0
  %4921 = vmatpush1.msra.mxu0 0.0
  %4922 = vmatprep.subr.mxu0 0.0
  %4923 = vmatpush1.msra.mxu0 0.0
  %4924 = vmatprep.subr.mxu0 0.0
  %4925 = vmatpush1.msra.mxu0 0.0
  %4926 = vmatprep.subr.mxu0 0.0
  %4927 = vmatpush1.msra.mxu0 0.0
  %4928 = vmatprep.subr.mxu0 0.0
  %4929 = vmatpush1.msra.mxu0 0.0
  %4930 = vmatprep.subr.mxu0 0.0
  %4931 = vmatpush1.msra.mxu0 0.0
  %4932 = vmatprep.subr.mxu0 0.0
  %4933 = vmatpush1.msra.mxu0 0.0
  %4934 = vmatprep.subr.mxu0 0.0
  %4935 = vmatpush1.msra.mxu0 0.0
  %4936 = vmatprep.subr.mxu0 0.0
  %4937 = vmatpush1.msra.mxu0 0.0
  %4938 = vmatprep.subr.mxu0 0.0
  %4939 = vmatpush1.msra.mxu0 0.0
  %4940 = vmatprep.subr.mxu0 0.0
  %4941 = vmatpush1.msra.mxu0 0.0
  %4942 = vmatprep.subr.mxu0 0.0
  %4943 = vmatpush1.msra.mxu0 0.0
  %4944 = vmatprep.subr.mxu0 0.0
  %4945 = vmatpush1.msra.mxu0 0.0
  %4946 = vmatprep.subr.mxu0 0.0
  %4947 = vmatpush1.msra.mxu0 0.0
  %4948 = vmatprep.subr.mxu0 0.0
  %4949 = vmatpush1.msra.mxu0 0.0
  %4950 = vmatprep.mubr.f32.mxu0 0.0
  %4951 = vmatmul.mubr.f32.gmra.mrb[0].mxu0 %v4791
  %v4952 = vpop.f32.mrb[0].mxu0
  %v4953 = vadd.f32 0.0, %v4952
  %v4954 = vpop.f32.mrb[0].mxu0
  %v4955 = vadd.f32 0.0, %v4954
  %4956 = vmatprep.mubr.f32.mxu0 0.0
  %4957 = vmatmul.mubr.f32.gmra.mrb[0].mxu0 %v4794
  %v4958 = vpop.f32.mrb[0].mxu0
  %v4959 = vadd.f32 0.0, %v4958
  %v4960 = vpop.f32.mrb[0].mxu0
  %v4961 = vadd.f32 0.0, %v4960
  %4962 = vmatprep.mubr.f32.mxu0 0.0
  %4963 = vmatmul.mubr.f32.gmra.mrb[0].mxu0 %v4797
  %v4964 = vpop.f32.mrb[0].mxu0
  %v4965 = vadd.f32 0.0, %v4964
  %v4966 = vpop.f32.mrb[0].mxu0
  %v4967 = vadd.f32 0.0, %v4966
  %4968 = vmatprep.mubr.f32.mxu0 0.0
  %4969 = vmatmul.mubr.f32.gmra.mrb[0].mxu0 %v4800
  %v4970 = vpop.f32.mrb[0].mxu0
  %v4971 = vadd.f32 0.0, %v4970
  %v4972 = vpop.f32.mrb[0].mxu0
  %v4973 = vadd.f32 0.0, %v4972
  %4974 = vmatprep.mubr.f32.mxu0 0.0
  %4975 = vmatmul.mubr.f32.gmra.mrb[0].mxu0 %v4803
  %v4976 = vpop.f32.mrb[0].mxu0
  %v4977 = vadd.f32 0.0, %v4976
  %v4978 = vpop.f32.mrb[0].mxu0
  %v4979 = vadd.f32 0.0, %v4978
  %4980 = vmatprep.mubr.f32.mxu0 0.0
  %4981 = vmatmul.mubr.f32.gmra.mrb[0].mxu0 %v4806
  %v4982 = vpop.f32.mrb[0].mxu0
  %v4983 = vadd.f32 0.0, %v4982
  %v4984 = vpop.f32.mrb[0].mxu0
  %v4985 = vadd.f32 0.0, %v4984
  %4986 = vmatprep.mubr.f32.mxu0 0.0
  %4987 = vmatmul.mubr.f32.gmra.mrb[0].mxu0 %v4809
  %v4988 = vpop.f32.mrb[0].mxu0
  %v4989 = vadd.f32 0.0, %v4988
  %v4990 = vpop.f32.mrb[0].mxu0
  %v4991 = vadd.f32 0.0, %v4990
  %4992 = vmatprep.mubr.f32.mxu0 0.0
  %4993 = vmatmul.mubr.f32.gmra.mrb[0].mxu0 %v4812
  %v4994 = vpop.f32.mrb[0].mxu0
  %v4995 = vadd.f32 0.0, %v4994
  %v4996 = vpop.f32.mrb[0].mxu0
  %v4997 = vadd.f32 0.0, %v4996
  %4998 = vmatprep.mubr.f32.mxu0 0.0
  %4999 = vmatmul.mubr.f32.gmra.mrb[0].mxu0 %v4815
  %v5000 = vpop.f32.mrb[0].mxu0
  %v5001 = vadd.f32 0.0, %v5000
  %v5002 = vpop.f32.mrb[0].mxu0
  %v5003 = vadd.f32 0.0, %v5002
  %5004 = vmatprep.mubr.f32.mxu0 0.0
  %5005 = vmatmul.mubr.f32.gmra.mrb[0].mxu0 %v4818
  %v5006 = vpop.f32.mrb[0].mxu0
  %v5007 = vadd.f32 0.0, %v5006
  %v5008 = vpop.f32.mrb[0].mxu0
  %v5009 = vadd.f32 0.0, %v5008
  %5010 = vmatprep.mubr.f32.mxu0 0.0
  %5011 = vmatmul.mubr.f32.gmra.mrb[0].mxu0 %v4821
  %v5012 = vpop.f32.mrb[0].mxu0
  %v5013 = vadd.f32 0.0, %v5012
  %v5014 = vpop.f32.mrb[0].mxu0
  %v5015 = vadd.f32 0.0, %v5014
  %5016 = vmatprep.mubr.f32.mxu0 0.0
  %5017 = vmatmul.mubr.f32.gmra.mrb[0].mxu0 %v4824
  %v5018 = vpop.f32.mrb[0].mxu0
  %v5019 = vadd.f32 0.0, %v5018
  %v5020 = vpop.f32.mrb[0].mxu0
  %v5021 = vadd.f32 0.0, %v5020
  %5022 = vmatprep.mubr.f32.mxu0 0.0
  %5023 = vmatmul.mubr.f32.gmra.mrb[0].mxu0 %v4827
  %v5024 = vpop.f32.mrb[0].mxu0
  %v5025 = vadd.f32 0.0, %v5024
  %v5026 = vpop.f32.mrb[0].mxu0
  %v5027 = vadd.f32 0.0, %v5026
  %5028 = vmatprep.mubr.f32.mxu0 0.0
  %5029 = vmatmul.mubr.f32.gmra.mrb[0].mxu0 %v4830
  %v5030 = vpop.f32.mrb[0].mxu0
  %v5031 = vadd.f32 0.0, %v5030
  %v5032 = vpop.f32.mrb[0].mxu0
  %v5033 = vadd.f32 0.0, %v5032
  %5034 = vmatprep.mubr.f32.mxu0 0.0
  %5035 = vmatmul.mubr.f32.gmra.mrb[0].mxu0 %v4833
  %v5036 = vpop.f32.mrb[0].mxu0
  %v5037 = vadd.f32 0.0, %v5036
  %v5038 = vpop.f32.mrb[0].mxu0
  %v5039 = vadd.f32 0.0, %v5038
  %5040 = vmatprep.mubr.f32.mxu0 0.0
  %5041 = vmatmul.mubr.f32.gmra.mrb[0].mxu0 %v4836
  %v5042 = vpop.f32.mrb[0].mxu0
  %v5043 = vadd.f32 0.0, %v5042
  %v5044 = vpop.f32.mrb[0].mxu0
  %v5045 = vadd.f32 0.0, %v5044
  %5046 = vmatprep.mubr.f32.mxu0 0.0
  %5047 = vmatmul.mubr.f32.gmra.mrb[0].mxu0 %v4839
  %v5048 = vpop.f32.mrb[0].mxu0
  %v5049 = vadd.f32 0.0, %v5048
  %v5050 = vpop.f32.mrb[0].mxu0
  %v5051 = vadd.f32 0.0, %v5050
  %5052 = vmatprep.mubr.f32.mxu0 0.0
  %5053 = vmatmul.mubr.f32.gmra.mrb[0].mxu0 %v4842
  %v5054 = vpop.f32.mrb[0].mxu0
  %v5055 = vadd.f32 0.0, %v5054
  %v5056 = vpop.f32.mrb[0].mxu0
  %v5057 = vadd.f32 0.0, %v5056
  %5058 = vmatprep.mubr.f32.mxu0 0.0
  %5059 = vmatmul.mubr.f32.gmra.mrb[0].mxu0 %v4845
  %v5060 = vpop.f32.mrb[0].mxu0
  %v5061 = vadd.f32 0.0, %v5060
  %v5062 = vpop.f32.mrb[0].mxu0
  %v5063 = vadd.f32 0.0, %v5062
  %5064 = vmatprep.mubr.f32.mxu0 0.0
  %5065 = vmatmul.mubr.f32.gmra.mrb[0].mxu0 %v4848
  %v5066 = vpop.f32.mrb[0].mxu0
  %v5067 = vadd.f32 0.0, %v5066
  %v5068 = vpop.f32.mrb[0].mxu0
  %v5069 = vadd.f32 0.0, %v5068
  %5070 = vmatprep.mubr.f32.mxu0 0.0
  %5071 = vmatmul.mubr.f32.gmra.mrb[0].mxu0 %v4851
  %v5072 = vpop.f32.mrb[0].mxu0
  %v5073 = vadd.f32 0.0, %v5072
  %v5074 = vpop.f32.mrb[0].mxu0
  %v5075 = vadd.f32 0.0, %v5074
  %5076 = vmatprep.mubr.f32.mxu0 0.0
  %5077 = vmatmul.mubr.f32.gmra.mrb[0].mxu0 %v4854
  %v5078 = vpop.f32.mrb[0].mxu0
  %v5079 = vadd.f32 0.0, %v5078
  %v5080 = vpop.f32.mrb[0].mxu0
  %v5081 = vadd.f32 0.0, %v5080
  %5082 = vmatprep.mubr.f32.mxu0 0.0
  %5083 = vmatmul.mubr.f32.gmra.mrb[0].mxu0 %v4857
  %v5084 = vpop.f32.mrb[0].mxu0
  %v5085 = vadd.f32 0.0, %v5084
  %v5086 = vpop.f32.mrb[0].mxu0
  %v5087 = vadd.f32 0.0, %v5086
  %5088 = vmatprep.mubr.f32.mxu0 0.0
  %5089 = vmatmul.mubr.f32.gmra.mrb[0].mxu0 %v4860
  %v5090 = vpop.f32.mrb[0].mxu0
  %v5091 = vadd.f32 0.0, %v5090
  %v5092 = vpop.f32.mrb[0].mxu0
  %v5093 = vadd.f32 0.0, %v5092
  %5094 = vmatprep.mubr.f32.mxu0 0.0
  %5095 = vmatmul.mubr.f32.gmra.mrb[0].mxu0 %v4863
  %v5096 = vpop.f32.mrb[0].mxu0
  %v5097 = vadd.f32 0.0, %v5096
  %v5098 = vpop.f32.mrb[0].mxu0
  %v5099 = vadd.f32 0.0, %v5098
  %5100 = vmatprep.mubr.f32.mxu0 0.0
  %5101 = vmatmul.mubr.f32.gmra.mrb[0].mxu0 %v4866
  %v5102 = vpop.f32.mrb[0].mxu0
  %v5103 = vadd.f32 0.0, %v5102
  %v5104 = vpop.f32.mrb[0].mxu0
  %v5105 = vadd.f32 0.0, %v5104
  %5106 = vmatprep.mubr.f32.mxu0 0.0
  %5107 = vmatmul.mubr.f32.gmra.mrb[0].mxu0 %v4869
  %v5108 = vpop.f32.mrb[0].mxu0
  %v5109 = vadd.f32 0.0, %v5108
  %v5110 = vpop.f32.mrb[0].mxu0
  %v5111 = vadd.f32 0.0, %v5110
  %5112 = vmatprep.mubr.f32.mxu0 0.0
  %5113 = vmatmul.mubr.f32.gmra.mrb[0].mxu0 %v4872
  %v5114 = vpop.f32.mrb[0].mxu0
  %v5115 = vadd.f32 0.0, %v5114
  %v5116 = vpop.f32.mrb[0].mxu0
  %v5117 = vadd.f32 0.0, %v5116
  %5118 = vmatprep.mubr.f32.mxu0 0.0
  %5119 = vmatmul.mubr.f32.gmra.mrb[0].mxu0 %v4875
  %v5120 = vpop.f32.mrb[0].mxu0
  %v5121 = vadd.f32 0.0, %v5120
  %v5122 = vpop.f32.mrb[0].mxu0
  %v5123 = vadd.f32 0.0, %v5122
  %5124 = vmatprep.mubr.f32.mxu0 0.0
  %5125 = vmatmul.mubr.f32.gmra.mrb[0].mxu0 %v4878
  %v5126 = vpop.f32.mrb[0].mxu0
  %v5127 = vadd.f32 0.0, %v5126
  %v5128 = vpop.f32.mrb[0].mxu0
  %v5129 = vadd.f32 0.0, %v5128
  %5130 = vmatprep.mubr.f32.mxu0 0.0
  %5131 = vmatmul.mubr.f32.gmra.mrb[0].mxu0 %v4881
  %v5132 = vpop.f32.mrb[0].mxu0
  %v5133 = vadd.f32 0.0, %v5132
  %v5134 = vpop.f32.mrb[0].mxu0
  %v5135 = vadd.f32 0.0, %v5134
  %5136 = vmatprep.mubr.f32.mxu0 0.0
  %5137 = vmatmul.mubr.f32.gmra.mrb[0].mxu0 %v4884
  %v5138 = vpop.f32.mrb[0].mxu0
  %v5139 = vadd.f32 0.0, %v5138
  %v5140 = vpop.f32.mrb[0].mxu0
  %v5141 = vadd.f32 0.0, %v5140
  %5142 = vdwg.mxu0
  %v5143 = vmul.f32 %v4953, 0.25
  %v5144 = vmul.f32 %v4955, 0.25
  %v5145 = vmul.f32 %v4959, 0.25
  %v5146 = vmul.f32 %v4961, 0.25
  %v5147 = vmul.f32 %v4965, 0.25
  %v5148 = vmul.f32 %v4967, 0.25
  %v5149 = vmul.f32 %v4971, 0.25
  %v5150 = vmul.f32 %v4973, 0.25
  %v5151 = vmul.f32 %v4977, 0.25
  %v5152 = vmul.f32 %v4979, 0.25
  %v5153 = vmul.f32 %v4983, 0.25
  %v5154 = vmul.f32 %v4985, 0.25
  %v5155 = vmul.f32 %v4989, 0.25
  %v5156 = vmul.f32 %v4991, 0.25
  %v5157 = vmul.f32 %v4995, 0.25
  %v5158 = vmul.f32 %v4997, 0.25
  %v5159 = vmul.f32 %v5001, 0.25
  %v5160 = vmul.f32 %v5003, 0.25
  %v5161 = vmul.f32 %v5007, 0.25
  %v5162 = vmul.f32 %v5009, 0.25
  %v5163 = vmul.f32 %v5013, 0.25
  %v5164 = vmul.f32 %v5015, 0.25
  %v5165 = vmul.f32 %v5019, 0.25
  %v5166 = vmul.f32 %v5021, 0.25
  %v5167 = vmul.f32 %v5025, 0.25
  %v5168 = vmul.f32 %v5027, 0.25
  %v5169 = vmul.f32 %v5031, 0.25
  %v5170 = vmul.f32 %v5033, 0.25
  %v5171 = vmul.f32 %v5037, 0.25
  %v5172 = vmul.f32 %v5039, 0.25
  %v5173 = vmul.f32 %v5043, 0.25
  %v5174 = vmul.f32 %v5045, 0.25
  %v5175 = vmul.f32 %v5049, 0.25
  %v5176 = vmul.f32 %v5051, 0.25
  %v5177 = vmul.f32 %v5055, 0.25
  %v5178 = vmul.f32 %v5057, 0.25
  %v5179 = vmul.f32 %v5061, 0.25
  %v5180 = vmul.f32 %v5063, 0.25
  %v5181 = vmul.f32 %v5067, 0.25
  %v5182 = vmul.f32 %v5069, 0.25
  %v5183 = vmul.f32 %v5073, 0.25
  %v5184 = vmul.f32 %v5075, 0.25
  %v5185 = vmul.f32 %v5079, 0.25
  %v5186 = vmul.f32 %v5081, 0.25
  %v5187 = vmul.f32 %v5085, 0.25
  %v5188 = vmul.f32 %v5087, 0.25
  %v5189 = vmul.f32 %v5091, 0.25
  %v5190 = vmul.f32 %v5093, 0.25
  %v5191 = vmul.f32 %v5097, 0.25
  %v5192 = vmul.f32 %v5099, 0.25
  %v5193 = vmul.f32 %v5103, 0.25
  %v5194 = vmul.f32 %v5105, 0.25
  %v5195 = vmul.f32 %v5109, 0.25
  %v5196 = vmul.f32 %v5111, 0.25
  %v5197 = vmul.f32 %v5115, 0.25
  %v5198 = vmul.f32 %v5117, 0.25
  %v5199 = vmul.f32 %v5121, 0.25
  %v5200 = vmul.f32 %v5123, 0.25
  %v5201 = vmul.f32 %v5127, 0.25
  %v5202 = vmul.f32 %v5129, 0.25
  %v5203 = vmul.f32 %v5133, 0.25
  %v5204 = vmul.f32 %v5135, 0.25
  %v5205 = vmul.f32 %v5139, 0.25
  %v5206 = vmul.f32 %v5141, 0.25
  %v5207 = vmax.f32 %v5143, %v5144
  %5208 = vmax.xlane.f32.xlu0 %v5207
  %v5209 = vpop.xlane.xlu0 %5208
  %v5210 = vmax.f32 %v5145, %v5146
  %5211 = vmax.xlane.f32.xlu0 %v5210
  %v5212 = vpop.xlane.xlu0 %5211
  %v5213 = vmax.f32 %v5147, %v5148
  %5214 = vmax.xlane.f32.xlu0 %v5213
  %v5215 = vpop.xlane.xlu0 %5214
  %v5216 = vmax.f32 %v5149, %v5150
  %5217 = vmax.xlane.f32.xlu0 %v5216
  %v5218 = vpop.xlane.xlu0 %5217
  %v5219 = vmax.f32 %v5151, %v5152
  %5220 = vmax.xlane.f32.xlu0 %v5219
  %v5221 = vpop.xlane.xlu0 %5220
  %v5222 = vmax.f32 %v5153, %v5154
  %5223 = vmax.xlane.f32.xlu0 %v5222
  %v5224 = vpop.xlane.xlu0 %5223
  %v5225 = vmax.f32 %v5155, %v5156
  %5226 = vmax.xlane.f32.xlu0 %v5225
  %v5227 = vpop.xlane.xlu0 %5226
  %v5228 = vmax.f32 %v5157, %v5158
  %5229 = vmax.xlane.f32.xlu0 %v5228
  %v5230 = vpop.xlane.xlu0 %5229
  %v5231 = vmax.f32 %v5159, %v5160
  %5232 = vmax.xlane.f32.xlu0 %v5231
  %v5233 = vpop.xlane.xlu0 %5232
  %v5234 = vmax.f32 %v5161, %v5162
  %5235 = vmax.xlane.f32.xlu0 %v5234
  %v5236 = vpop.xlane.xlu0 %5235
  %v5237 = vmax.f32 %v5163, %v5164
  %5238 = vmax.xlane.f32.xlu0 %v5237
  %v5239 = vpop.xlane.xlu0 %5238
  %v5240 = vmax.f32 %v5165, %v5166
  %5241 = vmax.xlane.f32.xlu0 %v5240
  %v5242 = vpop.xlane.xlu0 %5241
  %v5243 = vmax.f32 %v5167, %v5168
  %5244 = vmax.xlane.f32.xlu0 %v5243
  %v5245 = vpop.xlane.xlu0 %5244
  %v5246 = vmax.f32 %v5169, %v5170
  %5247 = vmax.xlane.f32.xlu0 %v5246
  %v5248 = vpop.xlane.xlu0 %5247
  %v5249 = vmax.f32 %v5171, %v5172
  %5250 = vmax.xlane.f32.xlu0 %v5249
  %v5251 = vpop.xlane.xlu0 %5250
  %v5252 = vmax.f32 %v5173, %v5174
  %5253 = vmax.xlane.f32.xlu0 %v5252
  %v5254 = vpop.xlane.xlu0 %5253
  %v5255 = vmax.f32 %v5175, %v5176
  %5256 = vmax.xlane.f32.xlu0 %v5255
  %v5257 = vpop.xlane.xlu0 %5256
  %v5258 = vmax.f32 %v5177, %v5178
  %5259 = vmax.xlane.f32.xlu0 %v5258
  %v5260 = vpop.xlane.xlu0 %5259
  %v5261 = vmax.f32 %v5179, %v5180
  %5262 = vmax.xlane.f32.xlu0 %v5261
  %v5263 = vpop.xlane.xlu0 %5262
  %v5264 = vmax.f32 %v5181, %v5182
  %5265 = vmax.xlane.f32.xlu0 %v5264
  %v5266 = vpop.xlane.xlu0 %5265
  %v5267 = vmax.f32 %v5183, %v5184
  %5268 = vmax.xlane.f32.xlu0 %v5267
  %v5269 = vpop.xlane.xlu0 %5268
  %v5270 = vmax.f32 %v5185, %v5186
  %5271 = vmax.xlane.f32.xlu0 %v5270
  %v5272 = vpop.xlane.xlu0 %5271
  %v5273 = vmax.f32 %v5187, %v5188
  %5274 = vmax.xlane.f32.xlu0 %v5273
  %v5275 = vpop.xlane.xlu0 %5274
  %v5276 = vmax.f32 %v5189, %v5190
  %5277 = vmax.xlane.f32.xlu0 %v5276
  %v5278 = vpop.xlane.xlu0 %5277
  %v5279 = vmax.f32 %v5191, %v5192
  %5280 = vmax.xlane.f32.xlu0 %v5279
  %v5281 = vpop.xlane.xlu0 %5280
  %v5282 = vmax.f32 %v5193, %v5194
  %5283 = vmax.xlane.f32.xlu0 %v5282
  %v5284 = vpop.xlane.xlu0 %5283
  %v5285 = vmax.f32 %v5195, %v5196
  %5286 = vmax.xlane.f32.xlu0 %v5285
  %v5287 = vpop.xlane.xlu0 %5286
  %v5288 = vmax.f32 %v5197, %v5198
  %5289 = vmax.xlane.f32.xlu0 %v5288
  %v5290 = vpop.xlane.xlu0 %5289
  %v5291 = vmax.f32 %v5199, %v5200
  %5292 = vmax.xlane.f32.xlu0 %v5291
  %v5293 = vpop.xlane.xlu0 %5292
  %v5294 = vmax.f32 %v5201, %v5202
  %5295 = vmax.xlane.f32.xlu0 %v5294
  %v5296 = vpop.xlane.xlu0 %5295
  %v5297 = vmax.f32 %v5203, %v5204
  %5298 = vmax.xlane.f32.xlu0 %v5297
  %v5299 = vpop.xlane.xlu0 %5298
  %v5300 = vmax.f32 %v5205, %v5206
  %5301 = vmax.xlane.f32.xlu0 %v5300
  %v5302 = vpop.xlane.xlu0 %5301
  %v5303 = vsub.f32 %v5143, %v5209
  %v5304 = vsub.f32 %v5144, %v5209
  %v5305 = vsub.f32 %v5145, %v5212
  %v5306 = vsub.f32 %v5146, %v5212
  %v5307 = vsub.f32 %v5147, %v5215
  %v5308 = vsub.f32 %v5148, %v5215
  %v5309 = vsub.f32 %v5149, %v5218
  %v5310 = vsub.f32 %v5150, %v5218
  %v5311 = vsub.f32 %v5151, %v5221
  %v5312 = vsub.f32 %v5152, %v5221
  %v5313 = vsub.f32 %v5153, %v5224
  %v5314 = vsub.f32 %v5154, %v5224
  %v5315 = vsub.f32 %v5155, %v5227
  %v5316 = vsub.f32 %v5156, %v5227
  %v5317 = vsub.f32 %v5157, %v5230
  %v5318 = vsub.f32 %v5158, %v5230
  %v5319 = vsub.f32 %v5159, %v5233
  %v5320 = vsub.f32 %v5160, %v5233
  %v5321 = vsub.f32 %v5161, %v5236
  %v5322 = vsub.f32 %v5162, %v5236
  %v5323 = vsub.f32 %v5163, %v5239
  %v5324 = vsub.f32 %v5164, %v5239
  %v5325 = vsub.f32 %v5165, %v5242
  %v5326 = vsub.f32 %v5166, %v5242
  %v5327 = vsub.f32 %v5167, %v5245
  %v5328 = vsub.f32 %v5168, %v5245
  %v5329 = vsub.f32 %v5169, %v5248
  %v5330 = vsub.f32 %v5170, %v5248
  %v5331 = vsub.f32 %v5171, %v5251
  %v5332 = vsub.f32 %v5172, %v5251
  %v5333 = vsub.f32 %v5173, %v5254
  %v5334 = vsub.f32 %v5174, %v5254
  %v5335 = vsub.f32 %v5175, %v5257
  %v5336 = vsub.f32 %v5176, %v5257
  %v5337 = vsub.f32 %v5177, %v5260
  %v5338 = vsub.f32 %v5178, %v5260
  %v5339 = vsub.f32 %v5179, %v5263
  %v5340 = vsub.f32 %v5180, %v5263
  %v5341 = vsub.f32 %v5181, %v5266
  %v5342 = vsub.f32 %v5182, %v5266
  %v5343 = vsub.f32 %v5183, %v5269
  %v5344 = vsub.f32 %v5184, %v5269
  %v5345 = vsub.f32 %v5185, %v5272
  %v5346 = vsub.f32 %v5186, %v5272
  %v5347 = vsub.f32 %v5187, %v5275
  %v5348 = vsub.f32 %v5188, %v5275
  %v5349 = vsub.f32 %v5189, %v5278
  %v5350 = vsub.f32 %v5190, %v5278
  %v5351 = vsub.f32 %v5191, %v5281
  %v5352 = vsub.f32 %v5192, %v5281
  %v5353 = vsub.f32 %v5193, %v5284
  %v5354 = vsub.f32 %v5194, %v5284
  %v5355 = vsub.f32 %v5195, %v5287
  %v5356 = vsub.f32 %v5196, %v5287
  %v5357 = vsub.f32 %v5197, %v5290
  %v5358 = vsub.f32 %v5198, %v5290
  %v5359 = vsub.f32 %v5199, %v5293
  %v5360 = vsub.f32 %v5200, %v5293
  %v5361 = vsub.f32 %v5201, %v5296
  %v5362 = vsub.f32 %v5202, %v5296
  %v5363 = vsub.f32 %v5203, %v5299
  %v5364 = vsub.f32 %v5204, %v5299
  %v5365 = vsub.f32 %v5205, %v5302
  %v5366 = vsub.f32 %v5206, %v5302
  %v5367 = vmul.f32 %v5303, 1.442695
  %v5368 = vpow.pop %v5367
  %v5369 = vmul.f32 %v5304, 1.442695
  %v5370 = vpow.pop %v5369
  %v5371 = vmul.f32 %v5305, 1.442695
  %v5372 = vpow.pop %v5371
  %v5373 = vmul.f32 %v5306, 1.442695
  %v5374 = vpow.pop %v5373
  %v5375 = vmul.f32 %v5307, 1.442695
  %v5376 = vpow.pop %v5375
  %v5377 = vmul.f32 %v5308, 1.442695
  %v5378 = vpow.pop %v5377
  %v5379 = vmul.f32 %v5309, 1.442695
  %v5380 = vpow.pop %v5379
  %v5381 = vmul.f32 %v5310, 1.442695
  %v5382 = vpow.pop %v5381
  %v5383 = vmul.f32 %v5311, 1.442695
  %v5384 = vpow.pop %v5383
  %v5385 = vmul.f32 %v5312, 1.442695
  %v5386 = vpow.pop %v5385
  %v5387 = vmul.f32 %v5313, 1.442695
  %v5388 = vpow.pop %v5387
  %v5389 = vmul.f32 %v5314, 1.442695
  %v5390 = vpow.pop %v5389
  %v5391 = vmul.f32 %v5315, 1.442695
  %v5392 = vpow.pop %v5391
  %v5393 = vmul.f32 %v5316, 1.442695
  %v5394 = vpow.pop %v5393
  %v5395 = vmul.f32 %v5317, 1.442695
  %v5396 = vpow.pop %v5395
  %v5397 = vmul.f32 %v5318, 1.442695
  %v5398 = vpow.pop %v5397
  %v5399 = vmul.f32 %v5319, 1.442695
  %v5400 = vpow.pop %v5399
  %v5401 = vmul.f32 %v5320, 1.442695
  %v5402 = vpow.pop %v5401
  %v5403 = vmul.f32 %v5321, 1.442695
  %v5404 = vpow.pop %v5403
  %v5405 = vmul.f32 %v5322, 1.442695
  %v5406 = vpow.pop %v5405
  %v5407 = vmul.f32 %v5323, 1.442695
  %v5408 = vpow.pop %v5407
  %v5409 = vmul.f32 %v5324, 1.442695
  %v5410 = vpow.pop %v5409
  %v5411 = vmul.f32 %v5325, 1.442695
  %v5412 = vpow.pop %v5411
  %v5413 = vmul.f32 %v5326, 1.442695
  %v5414 = vpow.pop %v5413
  %v5415 = vmul.f32 %v5327, 1.442695
  %v5416 = vpow.pop %v5415
  %v5417 = vmul.f32 %v5328, 1.442695
  %v5418 = vpow.pop %v5417
  %v5419 = vmul.f32 %v5329, 1.442695
  %v5420 = vpow.pop %v5419
  %v5421 = vmul.f32 %v5330, 1.442695
  %v5422 = vpow.pop %v5421
  %v5423 = vmul.f32 %v5331, 1.442695
  %v5424 = vpow.pop %v5423
  %v5425 = vmul.f32 %v5332, 1.442695
  %v5426 = vpow.pop %v5425
  %v5427 = vmul.f32 %v5333, 1.442695
  %v5428 = vpow.pop %v5427
  %v5429 = vmul.f32 %v5334, 1.442695
  %v5430 = vpow.pop %v5429
  %v5431 = vmul.f32 %v5335, 1.442695
  %v5432 = vpow.pop %v5431
  %v5433 = vmul.f32 %v5336, 1.442695
  %v5434 = vpow.pop %v5433
  %v5435 = vmul.f32 %v5337, 1.442695
  %v5436 = vpow.pop %v5435
  %v5437 = vmul.f32 %v5338, 1.442695
  %v5438 = vpow.pop %v5437
  %v5439 = vmul.f32 %v5339, 1.442695
  %v5440 = vpow.pop %v5439
  %v5441 = vmul.f32 %v5340, 1.442695
  %v5442 = vpow.pop %v5441
  %v5443 = vmul.f32 %v5341, 1.442695
  %v5444 = vpow.pop %v5443
  %v5445 = vmul.f32 %v5342, 1.442695
  %v5446 = vpow.pop %v5445
  %v5447 = vmul.f32 %v5343, 1.442695
  %v5448 = vpow.pop %v5447
  %v5449 = vmul.f32 %v5344, 1.442695
  %v5450 = vpow.pop %v5449
  %v5451 = vmul.f32 %v5345, 1.442695
  %v5452 = vpow.pop %v5451
  %v5453 = vmul.f32 %v5346, 1.442695
  %v5454 = vpow.pop %v5453
  %v5455 = vmul.f32 %v5347, 1.442695
  %v5456 = vpow.pop %v5455
  %v5457 = vmul.f32 %v5348, 1.442695
  %v5458 = vpow.pop %v5457
  %v5459 = vmul.f32 %v5349, 1.442695
  %v5460 = vpow.pop %v5459
  %v5461 = vmul.f32 %v5350, 1.442695
  %v5462 = vpow.pop %v5461
  %v5463 = vmul.f32 %v5351, 1.442695
  %v5464 = vpow.pop %v5463
  %v5465 = vmul.f32 %v5352, 1.442695
  %v5466 = vpow.pop %v5465
  %v5467 = vmul.f32 %v5353, 1.442695
  %v5468 = vpow.pop %v5467
  %v5469 = vmul.f32 %v5354, 1.442695
  %v5470 = vpow.pop %v5469
  %v5471 = vmul.f32 %v5355, 1.442695
  %v5472 = vpow.pop %v5471
  %v5473 = vmul.f32 %v5356, 1.442695
  %v5474 = vpow.pop %v5473
  %v5475 = vmul.f32 %v5357, 1.442695
  %v5476 = vpow.pop %v5475
  %v5477 = vmul.f32 %v5358, 1.442695
  %v5478 = vpow.pop %v5477
  %v5479 = vmul.f32 %v5359, 1.442695
  %v5480 = vpow.pop %v5479
  %v5481 = vmul.f32 %v5360, 1.442695
  %v5482 = vpow.pop %v5481
  %v5483 = vmul.f32 %v5361, 1.442695
  %v5484 = vpow.pop %v5483
  %v5485 = vmul.f32 %v5362, 1.442695
  %v5486 = vpow.pop %v5485
  %v5487 = vmul.f32 %v5363, 1.442695
  %v5488 = vpow.pop %v5487
  %v5489 = vmul.f32 %v5364, 1.442695
  %v5490 = vpow.pop %v5489
  %v5491 = vmul.f32 %v5365, 1.442695
  %v5492 = vpow.pop %v5491
  %v5493 = vmul.f32 %v5366, 1.442695
  %v5494 = vpow.pop %v5493
  %v5495 = vadd.f32 %v5368, %v5370
  %5496 = vadd.xlane.f32.xlu0 %v5495
  %v5497 = vpop.xlane.xlu0 %5496
  %v5498 = vadd.f32 %v5372, %v5374
  %5499 = vadd.xlane.f32.xlu0 %v5498
  %v5500 = vpop.xlane.xlu0 %5499
  %v5501 = vadd.f32 %v5376, %v5378
  %5502 = vadd.xlane.f32.xlu0 %v5501
  %v5503 = vpop.xlane.xlu0 %5502
  %v5504 = vadd.f32 %v5380, %v5382
  %5505 = vadd.xlane.f32.xlu0 %v5504
  %v5506 = vpop.xlane.xlu0 %5505
  %v5507 = vadd.f32 %v5384, %v5386
  %5508 = vadd.xlane.f32.xlu0 %v5507
  %v5509 = vpop.xlane.xlu0 %5508
  %v5510 = vadd.f32 %v5388, %v5390
  %5511 = vadd.xlane.f32.xlu0 %v5510
  %v5512 = vpop.xlane.xlu0 %5511
  %v5513 = vadd.f32 %v5392, %v5394
  %5514 = vadd.xlane.f32.xlu0 %v5513
  %v5515 = vpop.xlane.xlu0 %5514
  %v5516 = vadd.f32 %v5396, %v5398
  %5517 = vadd.xlane.f32.xlu0 %v5516
  %v5518 = vpop.xlane.xlu0 %5517
  %v5519 = vadd.f32 %v5400, %v5402
  %5520 = vadd.xlane.f32.xlu0 %v5519
  %v5521 = vpop.xlane.xlu0 %5520
  %v5522 = vadd.f32 %v5404, %v5406
  %5523 = vadd.xlane.f32.xlu0 %v5522
  %v5524 = vpop.xlane.xlu0 %5523
  %v5525 = vadd.f32 %v5408, %v5410
  %5526 = vadd.xlane.f32.xlu0 %v5525
  %v5527 = vpop.xlane.xlu0 %5526
  %v5528 = vadd.f32 %v5412, %v5414
  %5529 = vadd.xlane.f32.xlu0 %v5528
  %v5530 = vpop.xlane.xlu0 %5529
  %v5531 = vadd.f32 %v5416, %v5418
  %5532 = vadd.xlane.f32.xlu0 %v5531
  %v5533 = vpop.xlane.xlu0 %5532
  %v5534 = vadd.f32 %v5420, %v5422
  %5535 = vadd.xlane.f32.xlu0 %v5534
  %v5536 = vpop.xlane.xlu0 %5535
  %v5537 = vadd.f32 %v5424, %v5426
  %5538 = vadd.xlane.f32.xlu0 %v5537
  %v5539 = vpop.xlane.xlu0 %5538
  %v5540 = vadd.f32 %v5428, %v5430
  %5541 = vadd.xlane.f32.xlu0 %v5540
  %v5542 = vpop.xlane.xlu0 %5541
  %v5543 = vadd.f32 %v5432, %v5434
  %5544 = vadd.xlane.f32.xlu0 %v5543
  %v5545 = vpop.xlane.xlu0 %5544
  %v5546 = vadd.f32 %v5436, %v5438
  %5547 = vadd.xlane.f32.xlu0 %v5546
  %v5548 = vpop.xlane.xlu0 %5547
  %v5549 = vadd.f32 %v5440, %v5442
  %5550 = vadd.xlane.f32.xlu0 %v5549
  %v5551 = vpop.xlane.xlu0 %5550
  %v5552 = vadd.f32 %v5444, %v5446
  %5553 = vadd.xlane.f32.xlu0 %v5552
  %v5554 = vpop.xlane.xlu0 %5553
  %v5555 = vadd.f32 %v5448, %v5450
  %5556 = vadd.xlane.f32.xlu0 %v5555
  %v5557 = vpop.xlane.xlu0 %5556
  %v5558 = vadd.f32 %v5452, %v5454
  %5559 = vadd.xlane.f32.xlu0 %v5558
  %v5560 = vpop.xlane.xlu0 %5559
  %v5561 = vadd.f32 %v5456, %v5458
  %5562 = vadd.xlane.f32.xlu0 %v5561
  %v5563 = vpop.xlane.xlu0 %5562
  %v5564 = vadd.f32 %v5460, %v5462
  %5565 = vadd.xlane.f32.xlu0 %v5564
  %v5566 = vpop.xlane.xlu0 %5565
  %v5567 = vadd.f32 %v5464, %v5466
  %5568 = vadd.xlane.f32.xlu0 %v5567
  %v5569 = vpop.xlane.xlu0 %5568
  %v5570 = vadd.f32 %v5468, %v5470
  %5571 = vadd.xlane.f32.xlu0 %v5570
  %v5572 = vpop.xlane.xlu0 %5571
  %v5573 = vadd.f32 %v5472, %v5474
  %5574 = vadd.xlane.f32.xlu0 %v5573
  %v5575 = vpop.xlane.xlu0 %5574
  %v5576 = vadd.f32 %v5476, %v5478
  %5577 = vadd.xlane.f32.xlu0 %v5576
  %v5578 = vpop.xlane.xlu0 %5577
  %v5579 = vadd.f32 %v5480, %v5482
  %5580 = vadd.xlane.f32.xlu0 %v5579
  %v5581 = vpop.xlane.xlu0 %5580
  %v5582 = vadd.f32 %v5484, %v5486
  %5583 = vadd.xlane.f32.xlu0 %v5582
  %v5584 = vpop.xlane.xlu0 %5583
  %v5585 = vadd.f32 %v5488, %v5490
  %5586 = vadd.xlane.f32.xlu0 %v5585
  %v5587 = vpop.xlane.xlu0 %5586
  %v5588 = vadd.f32 %v5492, %v5494
  %5589 = vadd.xlane.f32.xlu0 %v5588
  %v5590 = vpop.xlane.xlu0 %5589
  %v5591 = vrcp.pop %v5497
  %v5592 = vrcp.pop %v5500
  %v5593 = vrcp.pop %v5503
  %v5594 = vrcp.pop %v5506
  %v5595 = vrcp.pop %v5509
  %v5596 = vrcp.pop %v5512
  %v5597 = vrcp.pop %v5515
  %v5598 = vrcp.pop %v5518
  %v5599 = vrcp.pop %v5521
  %v5600 = vrcp.pop %v5524
  %v5601 = vrcp.pop %v5527
  %v5602 = vrcp.pop %v5530
  %v5603 = vrcp.pop %v5533
  %v5604 = vrcp.pop %v5536
  %v5605 = vrcp.pop %v5539
  %v5606 = vrcp.pop %v5542
  %v5607 = vrcp.pop %v5545
  %v5608 = vrcp.pop %v5548
  %v5609 = vrcp.pop %v5551
  %v5610 = vrcp.pop %v5554
  %v5611 = vrcp.pop %v5557
  %v5612 = vrcp.pop %v5560
  %v5613 = vrcp.pop %v5563
  %v5614 = vrcp.pop %v5566
  %v5615 = vrcp.pop %v5569
  %v5616 = vrcp.pop %v5572
  %v5617 = vrcp.pop %v5575
  %v5618 = vrcp.pop %v5578
  %v5619 = vrcp.pop %v5581
  %v5620 = vrcp.pop %v5584
  %v5621 = vrcp.pop %v5587
  %v5622 = vrcp.pop %v5590
  %v5623 = vmul.f32 %v5368, %v5591
  %v5624 = vmul.f32 %v5370, %v5591
  %v5625 = vmul.f32 %v5372, %v5592
  %v5626 = vmul.f32 %v5374, %v5592
  %v5627 = vmul.f32 %v5376, %v5593
  %v5628 = vmul.f32 %v5378, %v5593
  %v5629 = vmul.f32 %v5380, %v5594
  %v5630 = vmul.f32 %v5382, %v5594
  %v5631 = vmul.f32 %v5384, %v5595
  %v5632 = vmul.f32 %v5386, %v5595
  %v5633 = vmul.f32 %v5388, %v5596
  %v5634 = vmul.f32 %v5390, %v5596
  %v5635 = vmul.f32 %v5392, %v5597
  %v5636 = vmul.f32 %v5394, %v5597
  %v5637 = vmul.f32 %v5396, %v5598
  %v5638 = vmul.f32 %v5398, %v5598
  %v5639 = vmul.f32 %v5400, %v5599
  %v5640 = vmul.f32 %v5402, %v5599
  %v5641 = vmul.f32 %v5404, %v5600
  %v5642 = vmul.f32 %v5406, %v5600
  %v5643 = vmul.f32 %v5408, %v5601
  %v5644 = vmul.f32 %v5410, %v5601
  %v5645 = vmul.f32 %v5412, %v5602
  %v5646 = vmul.f32 %v5414, %v5602
  %v5647 = vmul.f32 %v5416, %v5603
  %v5648 = vmul.f32 %v5418, %v5603
  %v5649 = vmul.f32 %v5420, %v5604
  %v5650 = vmul.f32 %v5422, %v5604
  %v5651 = vmul.f32 %v5424, %v5605
  %v5652 = vmul.f32 %v5426, %v5605
  %v5653 = vmul.f32 %v5428, %v5606
  %v5654 = vmul.f32 %v5430, %v5606
  %v5655 = vmul.f32 %v5432, %v5607
  %v5656 = vmul.f32 %v5434, %v5607
  %v5657 = vmul.f32 %v5436, %v5608
  %v5658 = vmul.f32 %v5438, %v5608
  %v5659 = vmul.f32 %v5440, %v5609
  %v5660 = vmul.f32 %v5442, %v5609
  %v5661 = vmul.f32 %v5444, %v5610
  %v5662 = vmul.f32 %v5446, %v5610
  %v5663 = vmul.f32 %v5448, %v5611
  %v5664 = vmul.f32 %v5450, %v5611
  %v5665 = vmul.f32 %v5452, %v5612
  %v5666 = vmul.f32 %v5454, %v5612
  %v5667 = vmul.f32 %v5456, %v5613
  %v5668 = vmul.f32 %v5458, %v5613
  %v5669 = vmul.f32 %v5460, %v5614
  %v5670 = vmul.f32 %v5462, %v5614
  %v5671 = vmul.f32 %v5464, %v5615
  %v5672 = vmul.f32 %v5466, %v5615
  %v5673 = vmul.f32 %v5468, %v5616
  %v5674 = vmul.f32 %v5470, %v5616
  %v5675 = vmul.f32 %v5472, %v5617
  %v5676 = vmul.f32 %v5474, %v5617
  %v5677 = vmul.f32 %v5476, %v5618
  %v5678 = vmul.f32 %v5478, %v5618
  %v5679 = vmul.f32 %v5480, %v5619
  %v5680 = vmul.f32 %v5482, %v5619
  %v5681 = vmul.f32 %v5484, %v5620
  %v5682 = vmul.f32 %v5486, %v5620
  %v5683 = vmul.f32 %v5488, %v5621
  %v5684 = vmul.f32 %v5490, %v5621
  %v5685 = vmul.f32 %v5492, %v5622
  %v5686 = vmul.f32 %v5494, %v5622
  %5687 = vmatprep.subr.mxu0 %v5624
  %5688 = vmatpush1.xpose.msra.mxu0 %v5623
  %5689 = vmatprep.subr.mxu0 %v5626
  %5690 = vmatpush1.xpose.msra.mxu0 %v5625
  %5691 = vmatprep.subr.mxu0 %v5628
  %5692 = vmatpush1.xpose.msra.mxu0 %v5627
  %5693 = vmatprep.subr.mxu0 %v5630
  %5694 = vmatpush1.xpose.msra.mxu0 %v5629
  %5695 = vmatprep.subr.mxu0 %v5632
  %5696 = vmatpush1.xpose.msra.mxu0 %v5631
  %5697 = vmatprep.subr.mxu0 %v5634
  %5698 = vmatpush1.xpose.msra.mxu0 %v5633
  %5699 = vmatprep.subr.mxu0 %v5636
  %5700 = vmatpush1.xpose.msra.mxu0 %v5635
  %5701 = vmatprep.subr.mxu0 %v5638
  %5702 = vmatpush1.xpose.msra.mxu0 %v5637
  %5703 = vmatprep.subr.mxu0 %v5640
  %5704 = vmatpush1.xpose.msra.mxu0 %v5639
  %5705 = vmatprep.subr.mxu0 %v5642
  %5706 = vmatpush1.xpose.msra.mxu0 %v5641
  %5707 = vmatprep.subr.mxu0 %v5644
  %5708 = vmatpush1.xpose.msra.mxu0 %v5643
  %5709 = vmatprep.subr.mxu0 %v5646
  %5710 = vmatpush1.xpose.msra.mxu0 %v5645
  %5711 = vmatprep.subr.mxu0 %v5648
  %5712 = vmatpush1.xpose.msra.mxu0 %v5647
  %5713 = vmatprep.subr.mxu0 %v5650
  %5714 = vmatpush1.xpose.msra.mxu0 %v5649
  %5715 = vmatprep.subr.mxu0 %v5652
  %5716 = vmatpush1.xpose.msra.mxu0 %v5651
  %5717 = vmatprep.subr.mxu0 %v5654
  %5718 = vmatpush1.xpose.msra.mxu0 %v5653
  %5719 = vmatprep.subr.mxu0 %v5656
  %5720 = vmatpush1.xpose.msra.mxu0 %v5655
  %5721 = vmatprep.subr.mxu0 %v5658
  %5722 = vmatpush1.xpose.msra.mxu0 %v5657
  %5723 = vmatprep.subr.mxu0 %v5660
  %5724 = vmatpush1.xpose.msra.mxu0 %v5659
  %5725 = vmatprep.subr.mxu0 %v5662
  %5726 = vmatpush1.xpose.msra.mxu0 %v5661
  %5727 = vmatprep.subr.mxu0 %v5664
  %5728 = vmatpush1.xpose.msra.mxu0 %v5663
  %5729 = vmatprep.subr.mxu0 %v5666
  %5730 = vmatpush1.xpose.msra.mxu0 %v5665
  %5731 = vmatprep.subr.mxu0 %v5668
  %5732 = vmatpush1.xpose.msra.mxu0 %v5667
  %5733 = vmatprep.subr.mxu0 %v5670
  %5734 = vmatpush1.xpose.msra.mxu0 %v5669
  %5735 = vmatprep.subr.mxu0 %v5672
  %5736 = vmatpush1.xpose.msra.mxu0 %v5671
  %5737 = vmatprep.subr.mxu0 %v5674
  %5738 = vmatpush1.xpose.msra.mxu0 %v5673
  %5739 = vmatprep.subr.mxu0 %v5676
  %5740 = vmatpush1.xpose.msra.mxu0 %v5675
  %5741 = vmatprep.subr.mxu0 %v5678
  %5742 = vmatpush1.xpose.msra.mxu0 %v5677
  %5743 = vmatprep.subr.mxu0 %v5680
  %5744 = vmatpush1.xpose.msra.mxu0 %v5679
  %5745 = vmatprep.subr.mxu0 %v5682
  %5746 = vmatpush1.xpose.msra.mxu0 %v5681
  %5747 = vmatprep.subr.mxu0 %v5684
  %5748 = vmatpush1.xpose.msra.mxu0 %v5683
  %5749 = vmatprep.subr.mxu0 %v5686
  %5750 = vmatpush1.xpose.msra.mxu0 %v5685
  %5751 = vmatprep.mubr.f32.mxu0 %v3685
  %5752 = vmatmul.mubr.f32.gmra.mrb[0].mxu0 %v3684
  %v5753 = vpop.f32.mrb[0].mxu0
  %v5754 = vadd.f32 0.0, %v5753
  %v5755 = vpop.f32.mrb[0].mxu0
  %v5756 = vadd.f32 0.0, %v5755
  %5757 = vmatprep.mubr.f32.mxu0 %v3687
  %5758 = vmatmul.mubr.f32.gmra.mrb[0].mxu0 %v3686
  %v5759 = vpop.f32.mrb[0].mxu0
  %v5760 = vadd.f32 0.0, %v5759
  %v5761 = vpop.f32.mrb[0].mxu0
  %v5762 = vadd.f32 0.0, %v5761
  %5763 = vdwg.mxu0
  %v5764 = vld [vmem:[%s6] sm:$0xff]
  %v5765 = vld [vmem:[%s6 + $0x8] sm:$0xff]
  %v5766 = vld [vmem:[%s6 + $0x10] sm:$0xff]
  %v5767 = vld [vmem:[%s6 + $0x18] sm:$0xff]
  %5768 = vset.pattern.permute.xlu0 1
  %5769 = vperm.xlu0 %5768, %v568
  %v5770 = vpop.permute.xlu0 %5769
  %5772 = vset.pattern.permute.xlu0 1
  %5773 = vperm.xlu0 %5772, %v569
  %v5774 = vpop.permute.xlu0 %5773
  %5776 = vset.pattern.permute.xlu0 1
  %5777 = vperm.xlu0 %5776, %v570
  %v5778 = vpop.permute.xlu0 %5777
  %5780 = vset.pattern.permute.xlu0 1
  %5781 = vperm.xlu0 %5780, %v571
  %v5782 = vpop.permute.xlu0 %5781
  %v5784 = vmul.f32 %v5764, %v5770
  %v5785 = vmul.f32 %v5765, %v5774
  %v5786 = vmul.f32 %v5766, %v5778
  %v5787 = vmul.f32 %v5767, %v5782
  %v5788 = vld [vmem:[%s3083] sm:$0xff]
  %v5789 = vld [vmem:[%s3083 + $0x8] sm:$0xff]
  %v5790 = vld [vmem:[%s3083 + $0x10] sm:$0xff]
  %v5791 = vld [vmem:[%s3083 + $0x18] sm:$0xff]
  %5792 = vset.pattern.permute.xlu0 1
  %5793 = vperm.xlu0 %5792, %v572
  %v5794 = vpop.permute.xlu0 %5793
  %5796 = vset.pattern.permute.xlu0 1
  %5797 = vperm.xlu0 %5796, %v573
  %v5798 = vpop.permute.xlu0 %5797
  %5800 = vset.pattern.permute.xlu0 1
  %5801 = vperm.xlu0 %5800, %v574
  %v5802 = vpop.permute.xlu0 %5801
  %5804 = vset.pattern.permute.xlu0 1
  %5805 = vperm.xlu0 %5804, %v575
  %v5806 = vpop.permute.xlu0 %5805
  %v5808 = vmul.f32 %v5788, %v5794
  %v5809 = vmul.f32 %v5789, %v5798
  %v5810 = vmul.f32 %v5790, %v5802
  %v5811 = vmul.f32 %v5791, %v5806
  %5816 = vrot.lane.b32.xlu0 %v5808, 32
  %v5817 = vpop.permute.xlu0 %5816
  %5818 = vrot.lane.b32.xlu0 %v5809, 32
  %v5819 = vpop.permute.xlu0 %5818
  %5820 = vrot.lane.b32.xlu0 %v5810, 32
  %v5821 = vpop.permute.xlu0 %5820
  %5822 = vrot.lane.b32.xlu0 %v5811, 32
  %v5823 = vpop.permute.xlu0 %5822
  %v5828 = vsel %vm44, %v5784, %v5817
  %v5829 = vsel %vm44, %v5785, %v5819
  %v5830 = vsel %vm44, %v5786, %v5821
  %v5831 = vsel %vm44, %v5787, %v5823
  %v5832 = vld [vmem:[%s8] sm:$0xff]
  %v5833 = vld [vmem:[%s8 + $0x8] sm:$0xff]
  %v5834 = vld [vmem:[%s8 + $0x10] sm:$0xff]
  %v5835 = vld [vmem:[%s8 + $0x18] sm:$0xff]
  %5837 = vset.pattern.permute.xlu0 0
  %5838 = vperm.xlu0 %5837, %v5832
  %v5839 = vpop.permute.xlu0 %5838
  %5842 = vset.pattern.permute.xlu0 0
  %5843 = vperm.xlu0 %5842, %v5833
  %v5844 = vpop.permute.xlu0 %5843
  %5847 = vset.pattern.permute.xlu0 0
  %5848 = vperm.xlu0 %5847, %v5834
  %v5849 = vpop.permute.xlu0 %5848
  %5852 = vset.pattern.permute.xlu0 0
  %5853 = vperm.xlu0 %5852, %v5835
  %v5854 = vpop.permute.xlu0 %5853
  %v5857 = vsel %vm3156, %v5828, 0
  %v5860 = vsel %vm3156, %v5829, 0
  %v5863 = vsel %vm3156, %v5830, 0
  %v5866 = vsel %vm3156, %v5831, 0
  %5868 = vmatprep.subr.mxu0 %v4718
  %5869 = vmatpush1.msra.mxu0 %v4716
  %5870 = vmatprep.subr.mxu0 %v4724
  %5871 = vmatpush1.msra.mxu0 %v4722
  %5872 = vmatprep.subr.mxu0 %v5756
  %5873 = vmatpush1.msra.mxu0 %v5754
  %5874 = vmatprep.subr.mxu0 %v5762
  %5875 = vmatpush1.msra.mxu0 %v5760
  %5876 = vmatprep.subr.mxu0 %v3681
  %5877 = vmatpush1.msra.mxu0 %v3680
  %5878 = vmatprep.subr.mxu0 %v3683
  %5879 = vmatpush1.msra.mxu0 %v3682
  %5880 = vmatprep.subr.mxu0 %v3685
  %5881 = vmatpush1.msra.mxu0 %v3684
  %5882 = vmatprep.subr.mxu0 %v3687
  %5883 = vmatpush1.msra.mxu0 %v3686
  %5884 = vmatprep.subr.mxu0 0.0
  %5885 = vmatpush1.msra.mxu0 0.0
  %5886 = vmatprep.subr.mxu0 0.0
  %5887 = vmatpush1.msra.mxu0 0.0
  %5888 = vmatprep.subr.mxu0 0.0
  %5889 = vmatpush1.msra.mxu0 0.0
  %5890 = vmatprep.subr.mxu0 0.0
  %5891 = vmatpush1.msra.mxu0 0.0
  %5892 = vmatprep.subr.mxu0 0.0
  %5893 = vmatpush1.msra.mxu0 0.0
  %5894 = vmatprep.subr.mxu0 0.0
  %5895 = vmatpush1.msra.mxu0 0.0
  %5896 = vmatprep.subr.mxu0 0.0
  %5897 = vmatpush1.msra.mxu0 0.0
  %5898 = vmatprep.subr.mxu0 0.0
  %5899 = vmatpush1.msra.mxu0 0.0
  %5900 = vmatprep.subr.mxu0 0.0
  %5901 = vmatpush1.msra.mxu0 0.0
  %5902 = vmatprep.subr.mxu0 0.0
  %5903 = vmatpush1.msra.mxu0 0.0
  %5904 = vmatprep.subr.mxu0 0.0
  %5905 = vmatpush1.msra.mxu0 0.0
  %5906 = vmatprep.subr.mxu0 0.0
  %5907 = vmatpush1.msra.mxu0 0.0
  %5908 = vmatprep.subr.mxu0 0.0
  %5909 = vmatpush1.msra.mxu0 0.0
  %5910 = vmatprep.subr.mxu0 0.0
  %5911 = vmatpush1.msra.mxu0 0.0
  %5912 = vmatprep.subr.mxu0 0.0
  %5913 = vmatpush1.msra.mxu0 0.0
  %5914 = vmatprep.subr.mxu0 0.0
  %5915 = vmatpush1.msra.mxu0 0.0
  %5916 = vmatprep.subr.mxu0 0.0
  %5917 = vmatpush1.msra.mxu0 0.0
  %5918 = vmatprep.subr.mxu0 0.0
  %5919 = vmatpush1.msra.mxu0 0.0
  %5920 = vmatprep.subr.mxu0 0.0
  %5921 = vmatpush1.msra.mxu0 0.0
  %5922 = vmatprep.subr.mxu0 0.0
  %5923 = vmatpush1.msra.mxu0 0.0
  %5924 = vmatprep.subr.mxu0 0.0
  %5925 = vmatpush1.msra.mxu0 0.0
  %5926 = vmatprep.subr.mxu0 0.0
  %5927 = vmatpush1.msra.mxu0 0.0
  %5928 = vmatprep.subr.mxu0 0.0
  %5929 = vmatpush1.msra.mxu0 0.0
  %5930 = vmatprep.subr.mxu0 0.0
  %5931 = vmatpush1.msra.mxu0 0.0
  %5932 = vmatprep.mubr.f32.mxu0 0.0
  %5933 = vmatmul.mubr.f32.gmra.mrb[0].mxu0 %v5857
  %v5934 = vpop.f32.mrb[0].mxu0
  %v5935 = vadd.f32 %v5839, %v5934
  %v5936 = vpop.f32.mrb[0].mxu0
  %v5937 = vadd.f32 %v5839, %v5936
  %5938 = vmatprep.mubr.f32.mxu0 0.0
  %5939 = vmatmul.mubr.f32.gmra.mrb[0].mxu0 %v5860
  %v5940 = vpop.f32.mrb[0].mxu0
  %v5941 = vadd.f32 %v5844, %v5940
  %v5942 = vpop.f32.mrb[0].mxu0
  %v5943 = vadd.f32 %v5844, %v5942
  %5944 = vmatprep.mubr.f32.mxu0 0.0
  %5945 = vmatmul.mubr.f32.gmra.mrb[0].mxu0 %v5863
  %v5946 = vpop.f32.mrb[0].mxu0
  %v5947 = vadd.f32 %v5849, %v5946
  %v5948 = vpop.f32.mrb[0].mxu0
  %v5949 = vadd.f32 %v5849, %v5948
  %5950 = vmatprep.mubr.f32.mxu0 0.0
  %5951 = vmatmul.mubr.f32.gmra.mrb[0].mxu0 %v5866
  %v5952 = vpop.f32.mrb[0].mxu0
  %v5953 = vadd.f32 %v5854, %v5952
  %v5954 = vpop.f32.mrb[0].mxu0
  %v5955 = vadd.f32 %v5854, %v5954
  %5956 = vdwg.mxu0
  %vm5957 = vcmp.ge.f32.partialorder %v5935, 0.0
  %vm5958 = vcmp.ge.f32.partialorder %v5937, 0.0
  %vm5959 = vcmp.ge.f32.partialorder %v5941, 0.0
  %vm5960 = vcmp.ge.f32.partialorder %v5943, 0.0
  %vm5961 = vcmp.ge.f32.partialorder %v5947, 0.0
  %vm5962 = vcmp.ge.f32.partialorder %v5949, 0.0
  %vm5963 = vcmp.ge.f32.partialorder %v5953, 0.0
  %vm5964 = vcmp.ge.f32.partialorder %v5955, 0.0
  %v5965 = vmul.f32 %v5935, 0.2
  %v5966 = vmul.f32 %v5937, 0.2
  %v5967 = vmul.f32 %v5941, 0.2
  %v5968 = vmul.f32 %v5943, 0.2
  %v5969 = vmul.f32 %v5947, 0.2
  %v5970 = vmul.f32 %v5949, 0.2
  %v5971 = vmul.f32 %v5953, 0.2
  %v5972 = vmul.f32 %v5955, 0.2
  %v5973 = vsel %vm5957, %v5935, %v5965
  %v5974 = vsel %vm5958, %v5937, %v5966
  %v5975 = vsel %vm5959, %v5941, %v5967
  %v5976 = vsel %vm5960, %v5943, %v5968
  %v5977 = vsel %vm5961, %v5947, %v5969
  %v5978 = vsel %vm5962, %v5949, %v5970
  %v5979 = vsel %vm5963, %v5953, %v5971
  %v5980 = vsel %vm5964, %v5955, %v5972
  %v5981 = vmax.f32 %v5973, -256.0
  %v5982 = vmax.f32 %v5974, -256.0
  %v5983 = vmax.f32 %v5975, -256.0
  %v5984 = vmax.f32 %v5976, -256.0
  %v5985 = vmax.f32 %v5977, -256.0
  %v5986 = vmax.f32 %v5978, -256.0
  %v5987 = vmax.f32 %v5979, -256.0
  %v5988 = vmax.f32 %v5980, -256.0
  %v5989 = vmin.f32 %v5981, 256.0
  %v5990 = vmin.f32 %v5982, 256.0
  %v5991 = vmin.f32 %v5983, 256.0
  %v5992 = vmin.f32 %v5984, 256.0
  %v5993 = vmin.f32 %v5985, 256.0
  %v5994 = vmin.f32 %v5986, 256.0
  %v5995 = vmin.f32 %v5987, 256.0
  %v5996 = vmin.f32 %v5988, 256.0
  %s5997 = scalar_lea.vmem %s9, 64
  %5998 = vst [vmem:[%s5997] sm:$0xff] %v5989
  %5999 = vst [vmem:[%s5997 + $0x8] sm:$0xff] %v5990
  %6000 = vst [vmem:[%s5997 + $0x10] sm:$0xff] %v5991
  %6001 = vst [vmem:[%s5997 + $0x18] sm:$0xff] %v5992
  %6002 = vst [vmem:[%s5997 + $0x20] sm:$0xff] %v5993
  %6003 = vst [vmem:[%s5997 + $0x28] sm:$0xff] %v5994
  %6004 = vst [vmem:[%s5997 + $0x30] sm:$0xff] %v5995
  %6005 = vst [vmem:[%s5997 + $0x38] sm:$0xff] %v5996
  // Predicated region
  $region38: #{_lambda_.9} parent=0 // pred_check
    _
  $region39: #{_lambda_.9} parent=0 // pred_check_branch
    %6007 = sbr.rel (0) target = $region41
  $region40: #{_lambda_.9} parent=0 // pred_region
    _
  $region41: #{_lambda_.9} parent=0 // pred_fallthru
    _
  // Predicated region
  $region42: #{_lambda_.9} parent=0 // pred_check
    _
  $region43: #{_lambda_.9} parent=0 // pred_check_branch
    %6009 = sbr.rel (0) target = $region45
  $region44: #{_lambda_.9} parent=0 // pred_region
    _
  $region45: #{_lambda_.9} parent=0 // pred_fallthru
    _

</llo_original>
